<compile_context>
chip_gen: v7x
topology: tpu7x:2x2x1
jax: 0.10.0
libtpu: 0.0.40
codegen_flags: <defaults>
</compile_context>

<pallas_src>
import jax
import jax.numpy as jnp
from jax import lax
from jax.experimental import pallas as pl
from jax.experimental.pallas import tpu as pltpu


# ----------------------------------------------------------------------------
# Fused backbone kernel factory (single invocation, folded batch Bp = 2*B)
# ----------------------------------------------------------------------------
def _make_fused_kernel(Bp, H, W, C, c1, c2):
    assert H % 4 == 0 and W % 4 == 0, "spatial dims must be divisible by 4"
    H2, W2 = H // 2, W // 2
    H4, W4 = H2 // 2, W2 // 2
    M1 = Bp * H * W            # conv1 output rows (real pixels only)
    M2 = Bp * H2 * W2          # conv2 output rows
    f32 = jnp.float32

    def _half_sel(n_out, n_in):
        # 0/1 selection matrices picking source rows 2i and 2i+1.  Decimation
        # by 2 along the flattened (fastest-varying = W) row axis expressed as
        # a matmul, so the idle MXU replaces many misaligned strided loads.
        r = lax.broadcasted_iota(jnp.int32, (n_out, n_in), 0)
        c = lax.broadcasted_iota(jnp.int32, (n_out, n_in), 1)
        return (c == 2 * r).astype(f32), (c == 2 * r + 1).astype(f32)

    def kernel(xp1_ref, w1_ref, b1_ref, w2_ref, b2_ref, wfc_ref, bfc_ref,
               out_ref, xp2_ref):
        # ---- stage 1: conv3x3(C->c1, pad=1) + ReLU, ONE im2col matmul ------
        taps1 = [xp1_ref[:, kh:kh + H, kw:kw + W, :].reshape(M1, C)
                 for kh in range(3) for kw in range(3)]
        col1 = jnp.concatenate(taps1, axis=-1)                   # [M1, 9*C]
        a1 = jnp.dot(col1, w1_ref[...], preferred_element_type=f32)
        a1 = jnp.maximum(a1 + b1_ref[...], 0.0)                  # [M1, c1]

        # ---- stage 2: 2x2 max-pool -------------------------------------
        # H direction: split the (major) row dim and max the two halves.
        a1h = a1.reshape(Bp, H2, 2, W, c1)
        ah = jnp.maximum(a1h[:, :, 0], a1h[:, :, 1]).reshape(Bp * H2 * W, c1)
        # W direction: even/odd row selection matmuls + max.
        se1, so1 = _half_sel(M2, Bp * H2 * W)
        p1 = jnp.maximum(jnp.dot(se1, ah, preferred_element_type=f32),
                         jnp.dot(so1, ah, preferred_element_type=f32))  # [M2,c1]

        # ---- zero-padded conv2 input: one memset + one bulk interior store -
        xp2_ref[...] = jnp.zeros_like(xp2_ref)
        xp2_ref[:, 1:H2 + 1, 1:W2 + 1, :] = p1.reshape(Bp, H2, W2, c1)

        # ---- stage 3: conv3x3(c1->c2, pad=1) + ReLU, ONE im2col matmul -----
        taps2 = [xp2_ref[:, kh:kh + H2, kw:kw + W2, :].reshape(M2, c1)
                 for kh in range(3) for kw in range(3)]
        col2 = jnp.concatenate(taps2, axis=-1)                   # [M2, 9*c1]
        a2 = jnp.dot(col2, w2_ref[...], preferred_element_type=f32)
        a2 = jnp.maximum(a2 + b2_ref[...], 0.0)                  # [M2, c2]

        # ---- stage 4: 2x2 max-pool -----------------------------------------
        a2h = a2.reshape(Bp, H4, 2, W2, c2)
        ah2 = jnp.maximum(a2h[:, :, 0], a2h[:, :, 1]).reshape(Bp * H4 * W2, c2)
        n2 = Bp * H4 * W4
        se2, so2 = _half_sel(n2, Bp * H4 * W2)
        p2 = jnp.maximum(jnp.dot(se2, ah2, preferred_element_type=f32),
                         jnp.dot(so2, ah2, preferred_element_type=f32))  # [n2,c2]

        # ---- stage 5: global-avg-pool + fc (batched, single dense store) ---
        gap = jnp.sum(p2.reshape(Bp, H4 * W4, c2), axis=1) * (1.0 / (H4 * W4))
        out = jnp.dot(gap, wfc_ref[...], preferred_element_type=f32) + bfc_ref[...]
        out_ref[...] = out.astype(out_ref.dtype)

    scratch = [pltpu.VMEM((Bp, H2 + 2, W2 + 2, c1), f32)]   # padded conv2 input
    return kernel, scratch


# ----------------------------------------------------------------------------
# Shared-weight Siamese forward (matches SiameseNetwork.forward semantics)
# ----------------------------------------------------------------------------
@jax.jit
def siamese_forward(input1, input2, params):
    B, C, H, W = input1.shape
    c1 = params["w1"].shape[-1]
    c2 = params["w2"].shape[-1]
    emb = params["wfc"].shape[-1]
    Bp = 2 * B

    # Tiny XLA glue: fold the twins into one batch (shared weights => a single
    # backbone pass), NCHW -> NHWC, zero-pad H/W by 1 (bulk, no in-kernel
    # scatter), and pre-flatten the conv weights into im2col layout.
    x = jnp.concatenate([input1, input2], axis=0)              # [2B, C, H, W]
    x = jnp.transpose(x, (0, 2, 3, 1)).astype(jnp.float32)     # [2B, H, W, C]
    xp = jnp.pad(x, ((0, 0), (1, 1), (1, 1), (0, 0)))          # [2B, H+2, W+2, C]
    w1 = params["w1"].reshape(9 * C, c1).astype(jnp.float32)   # [9C,  c1]
    w2 = params["w2"].reshape(9 * c1, c2).astype(jnp.float32)  # [9c1, c2]

    kernel, scratch = _make_fused_kernel(Bp, H, W, C, c1, c2)

    out = pl.pallas_call(
        kernel,
        out_shape=jax.ShapeDtypeStruct((Bp, emb), jnp.float32),
        scratch_shapes=scratch,
    )(xp, w1, params["b1"], w2, params["b2"], params["wfc"], params["bfc"])

    return out[:B], out[B:]


def init_params(key):
    k1, k2, k3 = jax.random.split(key, 3)
    c_in, c1, c2, emb = 4, 16, 32, 32
    return {
        "w1": 0.05 * jax.random.normal(k1, (3, 3, c_in, c1), jnp.float32),
        "b1": jnp.zeros((1, c1), jnp.float32),
        "w2": 0.05 * jax.random.normal(k2, (3, 3, c1, c2), jnp.float32),
        "b2": jnp.zeros((1, c2), jnp.float32),
        "wfc": 0.05 * jax.random.normal(k3, (c2, emb), jnp.float32),
        "bfc": jnp.zeros((1, emb), jnp.float32),
    }


if __name__ == "__main__":
    key = jax.random.PRNGKey(0)
    kp, ka, kb = jax.random.split(key, 3)
    params = init_params(kp)

    # NCHW inputs, matching the PyTorch module's convention.
    input1 = jax.random.normal(ka, (2, 4, 16, 16), jnp.float32)
    input2 = jax.random.normal(kb, (2, 4, 16, 16), jnp.float32)

    out1, out2 = siamese_forward(input1, input2, params)
    jax.block_until_ready((out1, out2))

    assert out1.shape == (2, 32) and out2.shape == (2, 32)
    assert bool(jnp.all(jnp.isfinite(out1))) and bool(jnp.all(jnp.isfinite(out2)))

    # Shared-weight sanity check: identical twins must give identical outputs.
    o1s, o2s = siamese_forward(input1, input1, params)
    jax.block_until_ready((o1s, o2s))
    assert bool(jnp.array_equal(o1s, o2s))

    print("KERNEL_OK")
</pallas_src>

<mosaic_0001>
module attributes {stable_mosaic.version = 11 : i64} {
  func.func @kernel(%arg0: memref<4x18x18x4xf32, #tpu.memory_space<vmem>>, %arg1: memref<36x16xf32, #tpu.memory_space<vmem>>, %arg2: memref<1x16xf32, #tpu.memory_space<vmem>>, %arg3: memref<144x32xf32, #tpu.memory_space<vmem>>, %arg4: memref<1x32xf32, #tpu.memory_space<vmem>>, %arg5: memref<32x32xf32, #tpu.memory_space<vmem>>, %arg6: memref<1x32xf32, #tpu.memory_space<vmem>>, %arg7: memref<4x32xf32, #tpu.memory_space<vmem>>, %arg8: memref<4x10x10x16xf32, #tpu.memory_space<vmem>>) attributes {dimension_semantics = [], scalar_prefetch = 0 : i64, scratch_operands = 1 : i64, tpu.core_type = #tpu.core_type<tc>} {
    %c0 = arith.constant 0 : index
    %c0_0 = arith.constant 0 : index
    %c0_1 = arith.constant 0 : index
    %c0_2 = arith.constant 0 : index
    %0 = vector.load %arg0[%c0, %c0_0, %c0_1, %c0_2] : memref<4x18x18x4xf32, #tpu.memory_space<vmem>>, vector<4x16x16x4xf32>
    %1 = vector.shape_cast %0 : vector<4x16x16x4xf32> to vector<1024x4xf32>
    %c0_3 = arith.constant 0 : index
    %c0_4 = arith.constant 0 : index
    %c1 = arith.constant 1 : index
    %c0_5 = arith.constant 0 : index
    %2 = vector.load %arg0[%c0_3, %c0_4, %c1, %c0_5] : memref<4x18x18x4xf32, #tpu.memory_space<vmem>>, vector<4x16x16x4xf32>
    %3 = vector.shape_cast %2 : vector<4x16x16x4xf32> to vector<1024x4xf32>
    %c0_6 = arith.constant 0 : index
    %c0_7 = arith.constant 0 : index
    %c2 = arith.constant 2 : index
    %c0_8 = arith.constant 0 : index
    %4 = vector.load %arg0[%c0_6, %c0_7, %c2, %c0_8] : memref<4x18x18x4xf32, #tpu.memory_space<vmem>>, vector<4x16x16x4xf32>
    %5 = vector.shape_cast %4 : vector<4x16x16x4xf32> to vector<1024x4xf32>
    %c0_9 = arith.constant 0 : index
    %c1_10 = arith.constant 1 : index
    %c0_11 = arith.constant 0 : index
    %c0_12 = arith.constant 0 : index
    %6 = vector.load %arg0[%c0_9, %c1_10, %c0_11, %c0_12] : memref<4x18x18x4xf32, #tpu.memory_space<vmem>>, vector<4x16x16x4xf32>
    %7 = vector.shape_cast %6 : vector<4x16x16x4xf32> to vector<1024x4xf32>
    %c0_13 = arith.constant 0 : index
    %c1_14 = arith.constant 1 : index
    %c1_15 = arith.constant 1 : index
    %c0_16 = arith.constant 0 : index
    %8 = vector.load %arg0[%c0_13, %c1_14, %c1_15, %c0_16] : memref<4x18x18x4xf32, #tpu.memory_space<vmem>>, vector<4x16x16x4xf32>
    %9 = vector.shape_cast %8 : vector<4x16x16x4xf32> to vector<1024x4xf32>
    %c0_17 = arith.constant 0 : index
    %c1_18 = arith.constant 1 : index
    %c2_19 = arith.constant 2 : index
    %c0_20 = arith.constant 0 : index
    %10 = vector.load %arg0[%c0_17, %c1_18, %c2_19, %c0_20] : memref<4x18x18x4xf32, #tpu.memory_space<vmem>>, vector<4x16x16x4xf32>
    %11 = vector.shape_cast %10 : vector<4x16x16x4xf32> to vector<1024x4xf32>
    %c0_21 = arith.constant 0 : index
    %c2_22 = arith.constant 2 : index
    %c0_23 = arith.constant 0 : index
    %c0_24 = arith.constant 0 : index
    %12 = vector.load %arg0[%c0_21, %c2_22, %c0_23, %c0_24] : memref<4x18x18x4xf32, #tpu.memory_space<vmem>>, vector<4x16x16x4xf32>
    %13 = vector.shape_cast %12 : vector<4x16x16x4xf32> to vector<1024x4xf32>
    %c0_25 = arith.constant 0 : index
    %c2_26 = arith.constant 2 : index
    %c1_27 = arith.constant 1 : index
    %c0_28 = arith.constant 0 : index
    %14 = vector.load %arg0[%c0_25, %c2_26, %c1_27, %c0_28] : memref<4x18x18x4xf32, #tpu.memory_space<vmem>>, vector<4x16x16x4xf32>
    %15 = vector.shape_cast %14 : vector<4x16x16x4xf32> to vector<1024x4xf32>
    %c0_29 = arith.constant 0 : index
    %c2_30 = arith.constant 2 : index
    %c2_31 = arith.constant 2 : index
    %c0_32 = arith.constant 0 : index
    %16 = vector.load %arg0[%c0_29, %c2_30, %c2_31, %c0_32] : memref<4x18x18x4xf32, #tpu.memory_space<vmem>>, vector<4x16x16x4xf32>
    %17 = vector.shape_cast %16 : vector<4x16x16x4xf32> to vector<1024x4xf32>
    %18 = tpu.concatenate %1, %3, %5, %7, %9, %11, %13, %15, %17 in 1 : vector<1024x4xf32>, vector<1024x4xf32>, vector<1024x4xf32>, vector<1024x4xf32>, vector<1024x4xf32>, vector<1024x4xf32>, vector<1024x4xf32>, vector<1024x4xf32>, vector<1024x4xf32> -> vector<1024x36xf32>
    %c0_33 = arith.constant 0 : index
    %c0_34 = arith.constant 0 : index
    %19 = vector.load %arg1[%c0_33, %c0_34] : memref<36x16xf32, #tpu.memory_space<vmem>>, vector<36x16xf32>
    %cst = arith.constant dense<0.000000e+00> : vector<1024x16xf32>
    %20 = tpu.matmul %18, %19, %cst {dimension_numbers = #tpu.dot_dimension_numbers<[1], [0], [0], [1], [0, 0, 1, 1], [], []>} : vector<1024x36xf32>, vector<36x16xf32>, vector<1024x16xf32> -> vector<1024x16xf32>
    %c0_35 = arith.constant 0 : index
    %c0_36 = arith.constant 0 : index
    %21 = vector.load %arg2[%c0_35, %c0_36] : memref<1x16xf32, #tpu.memory_space<vmem>>, vector<1x16xf32>
    %22 = vector.broadcast %21 : vector<1x16xf32> to vector<1024x16xf32>
    %23 = arith.addf %20, %22 : vector<1024x16xf32>
    %cst_37 = arith.constant 0.000000e+00 : f32
    %24 = vector.broadcast %cst_37 : f32 to vector<1024x16xf32>
    %25 = arith.maximumf %23, %24 : vector<1024x16xf32>
    %26 = vector.shape_cast %25 : vector<1024x16xf32> to vector<4x8x2x16x16xf32>
    %27 = vector.extract_strided_slice %26 {offsets = [0, 0, 0, 0, 0], sizes = [4, 8, 1, 16, 16], strides = [1, 1, 1, 1, 1]} : vector<4x8x2x16x16xf32> to vector<4x8x1x16x16xf32>
    %28 = vector.shape_cast %27 : vector<4x8x1x16x16xf32> to vector<4x8x16x16xf32>
    %29 = vector.extract_strided_slice %26 {offsets = [0, 0, 1, 0, 0], sizes = [4, 8, 1, 16, 16], strides = [1, 1, 1, 1, 1]} : vector<4x8x2x16x16xf32> to vector<4x8x1x16x16xf32>
    %30 = vector.shape_cast %29 : vector<4x8x1x16x16xf32> to vector<4x8x16x16xf32>
    %31 = arith.maximumf %28, %30 : vector<4x8x16x16xf32>
    %32 = vector.shape_cast %31 : vector<4x8x16x16xf32> to vector<512x16xf32>
    %33 = tpu.iota {dimensions = array<i32: 0>} : vector<256x512xi32>
    %34 = tpu.iota {dimensions = array<i32: 1>} : vector<256x512xi32>
    %c2_i32 = arith.constant 2 : i32
    %35 = vector.broadcast %c2_i32 : i32 to vector<256x512xi32>
    %36 = arith.muli %35, %33 : vector<256x512xi32>
    %37 = arith.cmpi eq, %34, %36 : vector<256x512xi32>
    %38 = arith.extui %37 : vector<256x512xi1> to vector<256x512xi32>
    %39 = arith.sitofp %38 : vector<256x512xi32> to vector<256x512xf32>
    %c2_i32_38 = arith.constant 2 : i32
    %40 = vector.broadcast %c2_i32_38 : i32 to vector<256x512xi32>
    %41 = arith.muli %40, %33 : vector<256x512xi32>
    %c1_i32 = arith.constant 1 : i32
    %42 = vector.broadcast %c1_i32 : i32 to vector<256x512xi32>
    %43 = arith.addi %41, %42 : vector<256x512xi32>
    %44 = arith.cmpi eq, %34, %43 : vector<256x512xi32>
    %45 = arith.extui %44 : vector<256x512xi1> to vector<256x512xi32>
    %46 = arith.sitofp %45 : vector<256x512xi32> to vector<256x512xf32>
    %cst_39 = arith.constant dense<0.000000e+00> : vector<256x16xf32>
    %47 = tpu.matmul %39, %32, %cst_39 {dimension_numbers = #tpu.dot_dimension_numbers<[1], [0], [0], [1], [0, 0, 1, 1], [], []>} : vector<256x512xf32>, vector<512x16xf32>, vector<256x16xf32> -> vector<256x16xf32>
    %cst_40 = arith.constant dense<0.000000e+00> : vector<256x16xf32>
    %48 = tpu.matmul %46, %32, %cst_40 {dimension_numbers = #tpu.dot_dimension_numbers<[1], [0], [0], [1], [0, 0, 1, 1], [], []>} : vector<256x512xf32>, vector<512x16xf32>, vector<256x16xf32> -> vector<256x16xf32>
    %49 = arith.maximumf %47, %48 : vector<256x16xf32>
    %cst_41 = arith.constant 0.000000e+00 : f32
    %50 = vector.broadcast %cst_41 : f32 to vector<4x10x10x16xf32>
    %c0_42 = arith.constant 0 : index
    %c0_43 = arith.constant 0 : index
    %c0_44 = arith.constant 0 : index
    %c0_45 = arith.constant 0 : index
    %51 = vector.load %arg8[%c0_42, %c0_43, %c0_44, %c0_45] : memref<4x10x10x16xf32, #tpu.memory_space<vmem>>, vector<4x10x10x16xf32>
    tpu.vector_store %arg8[%c0_42, %c0_43, %c0_44, %c0_45], %50 {strides = array<i32>} : memref<4x10x10x16xf32, #tpu.memory_space<vmem>>, vector<4x10x10x16xf32>,
    %52 = vector.shape_cast %49 : vector<256x16xf32> to vector<4x8x8x16xf32>
    %c0_46 = arith.constant 0 : index
    %c1_47 = arith.constant 1 : index
    %c1_48 = arith.constant 1 : index
    %c0_49 = arith.constant 0 : index
    %53 = vector.load %arg8[%c0_46, %c1_47, %c1_48, %c0_49] : memref<4x10x10x16xf32, #tpu.memory_space<vmem>>, vector<4x8x8x16xf32>
    tpu.vector_store %arg8[%c0_46, %c1_47, %c1_48, %c0_49], %52 {strides = array<i32>} : memref<4x10x10x16xf32, #tpu.memory_space<vmem>>, vector<4x8x8x16xf32>,
    %c0_50 = arith.constant 0 : index
    %c0_51 = arith.constant 0 : index
    %c0_52 = arith.constant 0 : index
    %c0_53 = arith.constant 0 : index
    %54 = vector.load %arg8[%c0_50, %c0_51, %c0_52, %c0_53] : memref<4x10x10x16xf32, #tpu.memory_space<vmem>>, vector<4x8x8x16xf32>
    %55 = vector.shape_cast %54 : vector<4x8x8x16xf32> to vector<256x16xf32>
    %c0_54 = arith.constant 0 : index
    %c0_55 = arith.constant 0 : index
    %c1_56 = arith.constant 1 : index
    %c0_57 = arith.constant 0 : index
    %56 = vector.load %arg8[%c0_54, %c0_55, %c1_56, %c0_57] : memref<4x10x10x16xf32, #tpu.memory_space<vmem>>, vector<4x8x8x16xf32>
    %57 = vector.shape_cast %56 : vector<4x8x8x16xf32> to vector<256x16xf32>
    %c0_58 = arith.constant 0 : index
    %c0_59 = arith.constant 0 : index
    %c2_60 = arith.constant 2 : index
    %c0_61 = arith.constant 0 : index
    %58 = vector.load %arg8[%c0_58, %c0_59, %c2_60, %c0_61] : memref<4x10x10x16xf32, #tpu.memory_space<vmem>>, vector<4x8x8x16xf32>
    %59 = vector.shape_cast %58 : vector<4x8x8x16xf32> to vector<256x16xf32>
    %c0_62 = arith.constant 0 : index
    %c1_63 = arith.constant 1 : index
    %c0_64 = arith.constant 0 : index
    %c0_65 = arith.constant 0 : index
    %60 = vector.load %arg8[%c0_62, %c1_63, %c0_64, %c0_65] : memref<4x10x10x16xf32, #tpu.memory_space<vmem>>, vector<4x8x8x16xf32>
    %61 = vector.shape_cast %60 : vector<4x8x8x16xf32> to vector<256x16xf32>
    %c0_66 = arith.constant 0 : index
    %c1_67 = arith.constant 1 : index
    %c1_68 = arith.constant 1 : index
    %c0_69 = arith.constant 0 : index
    %62 = vector.load %arg8[%c0_66, %c1_67, %c1_68, %c0_69] : memref<4x10x10x16xf32, #tpu.memory_space<vmem>>, vector<4x8x8x16xf32>
    %63 = vector.shape_cast %62 : vector<4x8x8x16xf32> to vector<256x16xf32>
    %c0_70 = arith.constant 0 : index
    %c1_71 = arith.constant 1 : index
    %c2_72 = arith.constant 2 : index
    %c0_73 = arith.constant 0 : index
    %64 = vector.load %arg8[%c0_70, %c1_71, %c2_72, %c0_73] : memref<4x10x10x16xf32, #tpu.memory_space<vmem>>, vector<4x8x8x16xf32>
    %65 = vector.shape_cast %64 : vector<4x8x8x16xf32> to vector<256x16xf32>
    %c0_74 = arith.constant 0 : index
    %c2_75 = arith.constant 2 : index
    %c0_76 = arith.constant 0 : index
    %c0_77 = arith.constant 0 : index
    %66 = vector.load %arg8[%c0_74, %c2_75, %c0_76, %c0_77] : memref<4x10x10x16xf32, #tpu.memory_space<vmem>>, vector<4x8x8x16xf32>
    %67 = vector.shape_cast %66 : vector<4x8x8x16xf32> to vector<256x16xf32>
    %c0_78 = arith.constant 0 : index
    %c2_79 = arith.constant 2 : index
    %c1_80 = arith.constant 1 : index
    %c0_81 = arith.constant 0 : index
    %68 = vector.load %arg8[%c0_78, %c2_79, %c1_80, %c0_81] : memref<4x10x10x16xf32, #tpu.memory_space<vmem>>, vector<4x8x8x16xf32>
    %69 = vector.shape_cast %68 : vector<4x8x8x16xf32> to vector<256x16xf32>
    %c0_82 = arith.constant 0 : index
    %c2_83 = arith.constant 2 : index
    %c2_84 = arith.constant 2 : index
    %c0_85 = arith.constant 0 : index
    %70 = vector.load %arg8[%c0_82, %c2_83, %c2_84, %c0_85] : memref<4x10x10x16xf32, #tpu.memory_space<vmem>>, vector<4x8x8x16xf32>
    %71 = vector.shape_cast %70 : vector<4x8x8x16xf32> to vector<256x16xf32>
    %72 = tpu.concatenate %55, %57, %59, %61, %63, %65, %67, %69, %71 in 1 : vector<256x16xf32>, vector<256x16xf32>, vector<256x16xf32>, vector<256x16xf32>, vector<256x16xf32>, vector<256x16xf32>, vector<256x16xf32>, vector<256x16xf32>, vector<256x16xf32> -> vector<256x144xf32>
    %c0_86 = arith.constant 0 : index
    %c0_87 = arith.constant 0 : index
    %73 = vector.load %arg3[%c0_86, %c0_87] : memref<144x32xf32, #tpu.memory_space<vmem>>, vector<144x32xf32>
    %cst_88 = arith.constant dense<0.000000e+00> : vector<256x32xf32>
    %74 = tpu.matmul %72, %73, %cst_88 {dimension_numbers = #tpu.dot_dimension_numbers<[1], [0], [0], [1], [0, 0, 1, 1], [], []>} : vector<256x144xf32>, vector<144x32xf32>, vector<256x32xf32> -> vector<256x32xf32>
    %c0_89 = arith.constant 0 : index
    %c0_90 = arith.constant 0 : index
    %75 = vector.load %arg4[%c0_89, %c0_90] : memref<1x32xf32, #tpu.memory_space<vmem>>, vector<1x32xf32>
    %76 = vector.broadcast %75 : vector<1x32xf32> to vector<256x32xf32>
    %77 = arith.addf %74, %76 : vector<256x32xf32>
    %cst_91 = arith.constant 0.000000e+00 : f32
    %78 = vector.broadcast %cst_91 : f32 to vector<256x32xf32>
    %79 = arith.maximumf %77, %78 : vector<256x32xf32>
    %80 = vector.shape_cast %79 : vector<256x32xf32> to vector<4x4x2x8x32xf32>
    %81 = vector.extract_strided_slice %80 {offsets = [0, 0, 0, 0, 0], sizes = [4, 4, 1, 8, 32], strides = [1, 1, 1, 1, 1]} : vector<4x4x2x8x32xf32> to vector<4x4x1x8x32xf32>
    %82 = vector.shape_cast %81 : vector<4x4x1x8x32xf32> to vector<4x4x8x32xf32>
    %83 = vector.extract_strided_slice %80 {offsets = [0, 0, 1, 0, 0], sizes = [4, 4, 1, 8, 32], strides = [1, 1, 1, 1, 1]} : vector<4x4x2x8x32xf32> to vector<4x4x1x8x32xf32>
    %84 = vector.shape_cast %83 : vector<4x4x1x8x32xf32> to vector<4x4x8x32xf32>
    %85 = arith.maximumf %82, %84 : vector<4x4x8x32xf32>
    %86 = vector.shape_cast %85 : vector<4x4x8x32xf32> to vector<128x32xf32>
    %87 = tpu.iota {dimensions = array<i32: 0>} : vector<64x128xi32>
    %88 = tpu.iota {dimensions = array<i32: 1>} : vector<64x128xi32>
    %c2_i32_92 = arith.constant 2 : i32
    %89 = vector.broadcast %c2_i32_92 : i32 to vector<64x128xi32>
    %90 = arith.muli %89, %87 : vector<64x128xi32>
    %91 = arith.cmpi eq, %88, %90 : vector<64x128xi32>
    %92 = arith.extui %91 : vector<64x128xi1> to vector<64x128xi32>
    %93 = arith.sitofp %92 : vector<64x128xi32> to vector<64x128xf32>
    %c2_i32_93 = arith.constant 2 : i32
    %94 = vector.broadcast %c2_i32_93 : i32 to vector<64x128xi32>
    %95 = arith.muli %94, %87 : vector<64x128xi32>
    %c1_i32_94 = arith.constant 1 : i32
    %96 = vector.broadcast %c1_i32_94 : i32 to vector<64x128xi32>
    %97 = arith.addi %95, %96 : vector<64x128xi32>
    %98 = arith.cmpi eq, %88, %97 : vector<64x128xi32>
    %99 = arith.extui %98 : vector<64x128xi1> to vector<64x128xi32>
    %100 = arith.sitofp %99 : vector<64x128xi32> to vector<64x128xf32>
    %cst_95 = arith.constant dense<0.000000e+00> : vector<64x32xf32>
    %101 = tpu.matmul %93, %86, %cst_95 {dimension_numbers = #tpu.dot_dimension_numbers<[1], [0], [0], [1], [0, 0, 1, 1], [], []>} : vector<64x128xf32>, vector<128x32xf32>, vector<64x32xf32> -> vector<64x32xf32>
    %cst_96 = arith.constant dense<0.000000e+00> : vector<64x32xf32>
    %102 = tpu.matmul %100, %86, %cst_96 {dimension_numbers = #tpu.dot_dimension_numbers<[1], [0], [0], [1], [0, 0, 1, 1], [], []>} : vector<64x128xf32>, vector<128x32xf32>, vector<64x32xf32> -> vector<64x32xf32>
    %103 = arith.maximumf %101, %102 : vector<64x32xf32>
    %104 = vector.shape_cast %103 : vector<64x32xf32> to vector<4x16x32xf32>
    %cst_97 = arith.constant dense<0.000000e+00> : vector<4x32xf32>
    %105 = vector.multi_reduction <add>, %104, %cst_97 [1] : vector<4x16x32xf32> to vector<4x32xf32>
    %cst_98 = arith.constant 6.250000e-02 : f32
    %106 = vector.broadcast %cst_98 : f32 to vector<4x32xf32>
    %107 = arith.mulf %105, %106 : vector<4x32xf32>
    %c0_99 = arith.constant 0 : index
    %c0_100 = arith.constant 0 : index
    %108 = vector.load %arg5[%c0_99, %c0_100] : memref<32x32xf32, #tpu.memory_space<vmem>>, vector<32x32xf32>
    %cst_101 = arith.constant dense<0.000000e+00> : vector<4x32xf32>
    %109 = tpu.matmul %107, %108, %cst_101 {dimension_numbers = #tpu.dot_dimension_numbers<[1], [0], [0], [1], [0, 0, 1, 1], [], []>} : vector<4x32xf32>, vector<32x32xf32>, vector<4x32xf32> -> vector<4x32xf32>
    %c0_102 = arith.constant 0 : index
    %c0_103 = arith.constant 0 : index
    %110 = vector.load %arg6[%c0_102, %c0_103] : memref<1x32xf32, #tpu.memory_space<vmem>>, vector<1x32xf32>
    %111 = vector.broadcast %110 : vector<1x32xf32> to vector<4x32xf32>
    %112 = arith.addf %109, %111 : vector<4x32xf32>
    %c0_104 = arith.constant 0 : index
    %c0_105 = arith.constant 0 : index
    %113 = vector.load %arg7[%c0_104, %c0_105] : memref<4x32xf32, #tpu.memory_space<vmem>>, vector<4x32xf32>
    tpu.vector_store %arg7[%c0_104, %c0_105], %112 {strides = array<i32>} : memref<4x32xf32, #tpu.memory_space<vmem>>, vector<4x32xf32>,
    return
  }
}

</mosaic_0001>

<llo_original>
// kernel: siamese_forward.1
$region0: #{siamese_forward.1}
  #allocation0 [shape = 'u32[]', space=smem, size = 0x4, offset = 0x4, fixed_abs, tag = 'smem constant byte address 0x4 - core index']
  #allocation1 [shape = 'u32[144,128]{1,0:T(1,128)}', space=vmem, size = 0x12000, scoped, tag = 'internal scratch']
  #allocation2 [shape = 'f32[4,10,10,16]{3,2,1,0:T(8,128)}', space=vmem, size = 0x50000, scoped, tag = 'scratch operand']
  %s0 = inlined_call_operand.vmem [shape: f32[4,18,18,4], index: 0, kind: input, shape index: {}]
  %s1 = inlined_call_operand.vmem [shape: f32[36,16], index: 1, kind: input, shape index: {}]
  %s2 = inlined_call_operand.vmem [shape: f32[1,16], index: 2, kind: input, shape index: {}]
  %s3 = inlined_call_operand.vmem [shape: f32[144,32], index: 3, kind: input, shape index: {}]
  %s4 = inlined_call_operand.vmem [shape: f32[1,32], index: 4, kind: input, shape index: {}]
  %s5 = inlined_call_operand.vmem [shape: f32[32,32], index: 5, kind: input, shape index: {}]
  %s6 = inlined_call_operand.vmem [shape: f32[1,32], index: 6, kind: input, shape index: {}]
  %s7 = inlined_call_operand.vmem [shape: f32[4,32], index: 7, kind: output, shape index: {}]
  %s8 = sld [smem:[#allocation0]]
  $region38: #{siamese_forward.1} parent=0
    _
  %s10 = ssub.s32 1, %s8
  %s11 = scalar_select 0, %s10, %s8
  // Predicated region
  $region2: #{siamese_forward.1} parent=0 // pred_check
    _
  $region3: #{siamese_forward.1} parent=0 // pred_check_branch
    %13 = sbr.rel (0) target = $region5
  $region4: #{siamese_forward.1} parent=0 // pred_region
    _
  $region5: #{siamese_forward.1} parent=0 // pred_fallthru
    _
  // Predicated region
  $region6: #{siamese_forward.1} parent=0 // pred_check
    _
  $region7: #{siamese_forward.1} parent=0 // pred_check_branch
    %15 = sbr.rel (0) target = $region9
  $region8: #{siamese_forward.1} parent=0 // pred_region
    _
  $region9: #{siamese_forward.1} parent=0 // pred_fallthru
    _
  // Predicated region
  $region10: #{siamese_forward.1} parent=0 // pred_check
    _
  $region11: #{siamese_forward.1} parent=0 // pred_check_branch
    %17 = sbr.rel (0) target = $region13
  $region12: #{siamese_forward.1} parent=0 // pred_region
    _
  $region13: #{siamese_forward.1} parent=0 // pred_fallthru
    _
  // Predicated region
  $region14: #{siamese_forward.1} parent=0 // pred_check
    _
  $region15: #{siamese_forward.1} parent=0 // pred_check_branch
    %19 = sbr.rel (0) target = $region17
  $region16: #{siamese_forward.1} parent=0 // pred_region
    _
  $region17: #{siamese_forward.1} parent=0 // pred_fallthru
    _
  // Predicated region
  $region18: #{siamese_forward.1} parent=0 // pred_check
    _
  $region19: #{siamese_forward.1} parent=0 // pred_check_branch
    %21 = sbr.rel (0) target = $region21
  $region20: #{siamese_forward.1} parent=0 // pred_region
    _
  $region21: #{siamese_forward.1} parent=0 // pred_fallthru
    _
  // Predicated region
  $region22: #{siamese_forward.1} parent=0 // pred_check
    _
  $region23: #{siamese_forward.1} parent=0 // pred_check_branch
    %23 = sbr.rel (0) target = $region25
  $region24: #{siamese_forward.1} parent=0 // pred_region
    _
  $region25: #{siamese_forward.1} parent=0 // pred_fallthru
    _
  // Predicated region
  $region26: #{siamese_forward.1} parent=0 // pred_check
    _
  $region27: #{siamese_forward.1} parent=0 // pred_check_branch
    %25 = sbr.rel (0) target = $region29
  $region28: #{siamese_forward.1} parent=0 // pred_region
    _
  $region29: #{siamese_forward.1} parent=0 // pred_fallthru
    _
  %v26 = vld [vmem:[%s0] sm:$0xff]
  %v27 = vld [vmem:[%s0 + $0x8] sm:$0xff]
  %v28 = vld [vmem:[%s0 + $0x18] sm:$0xff]
  %v29 = vld [vmem:[%s0 + $0x20] sm:$0xff]
  %v30 = vld [vmem:[%s0 + $0x30] sm:$0xff]
  %v31 = vld [vmem:[%s0 + $0x38] sm:$0xff]
  %v32 = vld [vmem:[%s0 + $0x48] sm:$0xff]
  %v33 = vld [vmem:[%s0 + $0x50] sm:$0xff]
  %v34 = vld [vmem:[%s0 + $0x60] sm:$0xff]
  %v35 = vld [vmem:[%s0 + $0x68] sm:$0xff]
  %v36 = vld [vmem:[%s0 + $0x78] sm:$0xff]
  %v37 = vld [vmem:[%s0 + $0x80] sm:$0xff]
  %v38 = vld [vmem:[%s0 + $0x90] sm:$0xff]
  %v39 = vld [vmem:[%s0 + $0x98] sm:$0xff]
  %v40 = vld [vmem:[%s0 + $0xa8] sm:$0xff]
  %v41 = vld [vmem:[%s0 + $0xb0] sm:$0xff]
  %v42 = vld [vmem:[%s0 + $0xc0] sm:$0xff]
  %v43 = vld [vmem:[%s0 + $0xc8] sm:$0xff]
  %v44 = vld [vmem:[%s0 + $0xd8] sm:$0xff]
  %v45 = vld [vmem:[%s0 + $0xe0] sm:$0xff]
  %v46 = vld [vmem:[%s0 + $0xf0] sm:$0xff]
  %v47 = vld [vmem:[%s0 + $0xf8] sm:$0xff]
  %v48 = vld [vmem:[%s0 + $0x108] sm:$0xff]
  %v49 = vld [vmem:[%s0 + $0x110] sm:$0xff]
  %v50 = vld [vmem:[%s0 + $0x120] sm:$0xff]
  %v51 = vld [vmem:[%s0 + $0x128] sm:$0xff]
  %v52 = vld [vmem:[%s0 + $0x138] sm:$0xff]
  %v53 = vld [vmem:[%s0 + $0x140] sm:$0xff]
  %v54 = vld [vmem:[%s0 + $0x150] sm:$0xff]
  %v55 = vld [vmem:[%s0 + $0x158] sm:$0xff]
  %v56 = vld [vmem:[%s0 + $0x168] sm:$0xff]
  %v57 = vld [vmem:[%s0 + $0x170] sm:$0xff]
  %v58 = vld [vmem:[%s0 + $0x1b0] sm:$0xff]
  %v59 = vld [vmem:[%s0 + $0x1b8] sm:$0xff]
  %v60 = vld [vmem:[%s0 + $0x1c8] sm:$0xff]
  %v61 = vld [vmem:[%s0 + $0x1d0] sm:$0xff]
  %v62 = vld [vmem:[%s0 + $0x1e0] sm:$0xff]
  %v63 = vld [vmem:[%s0 + $0x1e8] sm:$0xff]
  %v64 = vld [vmem:[%s0 + $0x1f8] sm:$0xff]
  %v65 = vld [vmem:[%s0 + $0x200] sm:$0xff]
  %v66 = vld [vmem:[%s0 + $0x210] sm:$0xff]
  %v67 = vld [vmem:[%s0 + $0x218] sm:$0xff]
  %v68 = vld [vmem:[%s0 + $0x228] sm:$0xff]
  %v69 = vld [vmem:[%s0 + $0x230] sm:$0xff]
  %v70 = vld [vmem:[%s0 + $0x240] sm:$0xff]
  %v71 = vld [vmem:[%s0 + $0x248] sm:$0xff]
  %v72 = vld [vmem:[%s0 + $0x258] sm:$0xff]
  %v73 = vld [vmem:[%s0 + $0x260] sm:$0xff]
  %v74 = vld [vmem:[%s0 + $0x270] sm:$0xff]
  %v75 = vld [vmem:[%s0 + $0x278] sm:$0xff]
  %v76 = vld [vmem:[%s0 + $0x288] sm:$0xff]
  %v77 = vld [vmem:[%s0 + $0x290] sm:$0xff]
  %v78 = vld [vmem:[%s0 + $0x2a0] sm:$0xff]
  %v79 = vld [vmem:[%s0 + $0x2a8] sm:$0xff]
  %v80 = vld [vmem:[%s0 + $0x2b8] sm:$0xff]
  %v81 = vld [vmem:[%s0 + $0x2c0] sm:$0xff]
  %v82 = vld [vmem:[%s0 + $0x2d0] sm:$0xff]
  %v83 = vld [vmem:[%s0 + $0x2d8] sm:$0xff]
  %v84 = vld [vmem:[%s0 + $0x2e8] sm:$0xff]
  %v85 = vld [vmem:[%s0 + $0x2f0] sm:$0xff]
  %v86 = vld [vmem:[%s0 + $0x300] sm:$0xff]
  %v87 = vld [vmem:[%s0 + $0x308] sm:$0xff]
  %v88 = vld [vmem:[%s0 + $0x318] sm:$0xff]
  %v89 = vld [vmem:[%s0 + $0x320] sm:$0xff]
  %v90 = vld [vmem:[%s0 + $0x360] sm:$0xff]
  %v91 = vld [vmem:[%s0 + $0x368] sm:$0xff]
  %v92 = vld [vmem:[%s0 + $0x378] sm:$0xff]
  %v93 = vld [vmem:[%s0 + $0x380] sm:$0xff]
  %v94 = vld [vmem:[%s0 + $0x390] sm:$0xff]
  %v95 = vld [vmem:[%s0 + $0x398] sm:$0xff]
  %v96 = vld [vmem:[%s0 + $0x3a8] sm:$0xff]
  %v97 = vld [vmem:[%s0 + $0x3b0] sm:$0xff]
  %v98 = vld [vmem:[%s0 + $0x3c0] sm:$0xff]
  %v99 = vld [vmem:[%s0 + $0x3c8] sm:$0xff]
  %v100 = vld [vmem:[%s0 + $0x3d8] sm:$0xff]
  %v101 = vld [vmem:[%s0 + $0x3e0] sm:$0xff]
  %v102 = vld [vmem:[%s0 + $0x3f0] sm:$0xff]
  %v103 = vld [vmem:[%s0 + $0x3f8] sm:$0xff]
  %v104 = vld [vmem:[%s0 + $0x408] sm:$0xff]
  %v105 = vld [vmem:[%s0 + $0x410] sm:$0xff]
  %v106 = vld [vmem:[%s0 + $0x420] sm:$0xff]
  %v107 = vld [vmem:[%s0 + $0x428] sm:$0xff]
  %v108 = vld [vmem:[%s0 + $0x438] sm:$0xff]
  %v109 = vld [vmem:[%s0 + $0x440] sm:$0xff]
  %v110 = vld [vmem:[%s0 + $0x450] sm:$0xff]
  %v111 = vld [vmem:[%s0 + $0x458] sm:$0xff]
  %v112 = vld [vmem:[%s0 + $0x468] sm:$0xff]
  %v113 = vld [vmem:[%s0 + $0x470] sm:$0xff]
  %v114 = vld [vmem:[%s0 + $0x480] sm:$0xff]
  %v115 = vld [vmem:[%s0 + $0x488] sm:$0xff]
  %v116 = vld [vmem:[%s0 + $0x498] sm:$0xff]
  %v117 = vld [vmem:[%s0 + $0x4a0] sm:$0xff]
  %v118 = vld [vmem:[%s0 + $0x4b0] sm:$0xff]
  %v119 = vld [vmem:[%s0 + $0x4b8] sm:$0xff]
  %v120 = vld [vmem:[%s0 + $0x4c8] sm:$0xff]
  %v121 = vld [vmem:[%s0 + $0x4d0] sm:$0xff]
  %v122 = vld [vmem:[%s0 + $0x510] sm:$0xff]
  %v123 = vld [vmem:[%s0 + $0x518] sm:$0xff]
  %v124 = vld [vmem:[%s0 + $0x528] sm:$0xff]
  %v125 = vld [vmem:[%s0 + $0x530] sm:$0xff]
  %v126 = vld [vmem:[%s0 + $0x540] sm:$0xff]
  %v127 = vld [vmem:[%s0 + $0x548] sm:$0xff]
  %v128 = vld [vmem:[%s0 + $0x558] sm:$0xff]
  %v129 = vld [vmem:[%s0 + $0x560] sm:$0xff]
  %v130 = vld [vmem:[%s0 + $0x570] sm:$0xff]
  %v131 = vld [vmem:[%s0 + $0x578] sm:$0xff]
  %v132 = vld [vmem:[%s0 + $0x588] sm:$0xff]
  %v133 = vld [vmem:[%s0 + $0x590] sm:$0xff]
  %v134 = vld [vmem:[%s0 + $0x5a0] sm:$0xff]
  %v135 = vld [vmem:[%s0 + $0x5a8] sm:$0xff]
  %v136 = vld [vmem:[%s0 + $0x5b8] sm:$0xff]
  %v137 = vld [vmem:[%s0 + $0x5c0] sm:$0xff]
  %v138 = vld [vmem:[%s0 + $0x5d0] sm:$0xff]
  %v139 = vld [vmem:[%s0 + $0x5d8] sm:$0xff]
  %v140 = vld [vmem:[%s0 + $0x5e8] sm:$0xff]
  %v141 = vld [vmem:[%s0 + $0x5f0] sm:$0xff]
  %v142 = vld [vmem:[%s0 + $0x600] sm:$0xff]
  %v143 = vld [vmem:[%s0 + $0x608] sm:$0xff]
  %v144 = vld [vmem:[%s0 + $0x618] sm:$0xff]
  %v145 = vld [vmem:[%s0 + $0x620] sm:$0xff]
  %v146 = vld [vmem:[%s0 + $0x630] sm:$0xff]
  %v147 = vld [vmem:[%s0 + $0x638] sm:$0xff]
  %v148 = vld [vmem:[%s0 + $0x648] sm:$0xff]
  %v149 = vld [vmem:[%s0 + $0x650] sm:$0xff]
  %v150 = vld [vmem:[%s0 + $0x660] sm:$0xff]
  %v151 = vld [vmem:[%s0 + $0x668] sm:$0xff]
  %v152 = vld [vmem:[%s0 + $0x678] sm:$0xff]
  %v153 = vld [vmem:[%s0 + $0x680] sm:$0xff]
  %v154 = vld [vmem:[%s0 + $0x1] sm:$0xff]
  %v155 = vld [vmem:[%s0 + $0x9] sm:$0xff]
  %v156 = vld [vmem:[%s0 + $0x19] sm:$0xff]
  %v157 = vld [vmem:[%s0 + $0x21] sm:$0xff]
  %v158 = vld [vmem:[%s0 + $0x31] sm:$0xff]
  %v159 = vld [vmem:[%s0 + $0x39] sm:$0xff]
  %v160 = vld [vmem:[%s0 + $0x49] sm:$0xff]
  %v161 = vld [vmem:[%s0 + $0x51] sm:$0xff]
  %v162 = vld [vmem:[%s0 + $0x61] sm:$0xff]
  %v163 = vld [vmem:[%s0 + $0x69] sm:$0xff]
  %v164 = vld [vmem:[%s0 + $0x79] sm:$0xff]
  %v165 = vld [vmem:[%s0 + $0x81] sm:$0xff]
  %v166 = vld [vmem:[%s0 + $0x91] sm:$0xff]
  %v167 = vld [vmem:[%s0 + $0x99] sm:$0xff]
  %v168 = vld [vmem:[%s0 + $0xa9] sm:$0xff]
  %v169 = vld [vmem:[%s0 + $0xb1] sm:$0xff]
  %v170 = vld [vmem:[%s0 + $0xc1] sm:$0xff]
  %v171 = vld [vmem:[%s0 + $0xc9] sm:$0xff]
  %v172 = vld [vmem:[%s0 + $0xd9] sm:$0xff]
  %v173 = vld [vmem:[%s0 + $0xe1] sm:$0xff]
  %v174 = vld [vmem:[%s0 + $0xf1] sm:$0xff]
  %v175 = vld [vmem:[%s0 + $0xf9] sm:$0xff]
  %v176 = vld [vmem:[%s0 + $0x109] sm:$0xff]
  %v177 = vld [vmem:[%s0 + $0x111] sm:$0xff]
  %v178 = vld [vmem:[%s0 + $0x121] sm:$0xff]
  %v179 = vld [vmem:[%s0 + $0x129] sm:$0xff]
  %v180 = vld [vmem:[%s0 + $0x139] sm:$0xff]
  %v181 = vld [vmem:[%s0 + $0x141] sm:$0xff]
  %v182 = vld [vmem:[%s0 + $0x151] sm:$0xff]
  %v183 = vld [vmem:[%s0 + $0x159] sm:$0xff]
  %v184 = vld [vmem:[%s0 + $0x169] sm:$0xff]
  %v185 = vld [vmem:[%s0 + $0x171] sm:$0xff]
  %v186 = vld [vmem:[%s0 + $0x1b1] sm:$0xff]
  %v187 = vld [vmem:[%s0 + $0x1b9] sm:$0xff]
  %v188 = vld [vmem:[%s0 + $0x1c9] sm:$0xff]
  %v189 = vld [vmem:[%s0 + $0x1d1] sm:$0xff]
  %v190 = vld [vmem:[%s0 + $0x1e1] sm:$0xff]
  %v191 = vld [vmem:[%s0 + $0x1e9] sm:$0xff]
  %v192 = vld [vmem:[%s0 + $0x1f9] sm:$0xff]
  %v193 = vld [vmem:[%s0 + $0x201] sm:$0xff]
  %v194 = vld [vmem:[%s0 + $0x211] sm:$0xff]
  %v195 = vld [vmem:[%s0 + $0x219] sm:$0xff]
  %v196 = vld [vmem:[%s0 + $0x229] sm:$0xff]
  %v197 = vld [vmem:[%s0 + $0x231] sm:$0xff]
  %v198 = vld [vmem:[%s0 + $0x241] sm:$0xff]
  %v199 = vld [vmem:[%s0 + $0x249] sm:$0xff]
  %v200 = vld [vmem:[%s0 + $0x259] sm:$0xff]
  %v201 = vld [vmem:[%s0 + $0x261] sm:$0xff]
  %v202 = vld [vmem:[%s0 + $0x271] sm:$0xff]
  %v203 = vld [vmem:[%s0 + $0x279] sm:$0xff]
  %v204 = vld [vmem:[%s0 + $0x289] sm:$0xff]
  %v205 = vld [vmem:[%s0 + $0x291] sm:$0xff]
  %v206 = vld [vmem:[%s0 + $0x2a1] sm:$0xff]
  %v207 = vld [vmem:[%s0 + $0x2a9] sm:$0xff]
  %v208 = vld [vmem:[%s0 + $0x2b9] sm:$0xff]
  %v209 = vld [vmem:[%s0 + $0x2c1] sm:$0xff]
  %v210 = vld [vmem:[%s0 + $0x2d1] sm:$0xff]
  %v211 = vld [vmem:[%s0 + $0x2d9] sm:$0xff]
  %v212 = vld [vmem:[%s0 + $0x2e9] sm:$0xff]
  %v213 = vld [vmem:[%s0 + $0x2f1] sm:$0xff]
  %v214 = vld [vmem:[%s0 + $0x301] sm:$0xff]
  %v215 = vld [vmem:[%s0 + $0x309] sm:$0xff]
  %v216 = vld [vmem:[%s0 + $0x319] sm:$0xff]
  %v217 = vld [vmem:[%s0 + $0x321] sm:$0xff]
  %v218 = vld [vmem:[%s0 + $0x361] sm:$0xff]
  %v219 = vld [vmem:[%s0 + $0x369] sm:$0xff]
  %v220 = vld [vmem:[%s0 + $0x379] sm:$0xff]
  %v221 = vld [vmem:[%s0 + $0x381] sm:$0xff]
  %v222 = vld [vmem:[%s0 + $0x391] sm:$0xff]
  %v223 = vld [vmem:[%s0 + $0x399] sm:$0xff]
  %v224 = vld [vmem:[%s0 + $0x3a9] sm:$0xff]
  %v225 = vld [vmem:[%s0 + $0x3b1] sm:$0xff]
  %v226 = vld [vmem:[%s0 + $0x3c1] sm:$0xff]
  %v227 = vld [vmem:[%s0 + $0x3c9] sm:$0xff]
  %v228 = vld [vmem:[%s0 + $0x3d9] sm:$0xff]
  %v229 = vld [vmem:[%s0 + $0x3e1] sm:$0xff]
  %v230 = vld [vmem:[%s0 + $0x3f1] sm:$0xff]
  %v231 = vld [vmem:[%s0 + $0x3f9] sm:$0xff]
  %v232 = vld [vmem:[%s0 + $0x409] sm:$0xff]
  %v233 = vld [vmem:[%s0 + $0x411] sm:$0xff]
  %v234 = vld [vmem:[%s0 + $0x421] sm:$0xff]
  %v235 = vld [vmem:[%s0 + $0x429] sm:$0xff]
  %v236 = vld [vmem:[%s0 + $0x439] sm:$0xff]
  %v237 = vld [vmem:[%s0 + $0x441] sm:$0xff]
  %v238 = vld [vmem:[%s0 + $0x451] sm:$0xff]
  %v239 = vld [vmem:[%s0 + $0x459] sm:$0xff]
  %v240 = vld [vmem:[%s0 + $0x469] sm:$0xff]
  %v241 = vld [vmem:[%s0 + $0x471] sm:$0xff]
  %v242 = vld [vmem:[%s0 + $0x481] sm:$0xff]
  %v243 = vld [vmem:[%s0 + $0x489] sm:$0xff]
  %v244 = vld [vmem:[%s0 + $0x499] sm:$0xff]
  %v245 = vld [vmem:[%s0 + $0x4a1] sm:$0xff]
  %v246 = vld [vmem:[%s0 + $0x4b1] sm:$0xff]
  %v247 = vld [vmem:[%s0 + $0x4b9] sm:$0xff]
  %v248 = vld [vmem:[%s0 + $0x4c9] sm:$0xff]
  %v249 = vld [vmem:[%s0 + $0x4d1] sm:$0xff]
  %v250 = vld [vmem:[%s0 + $0x511] sm:$0xff]
  %v251 = vld [vmem:[%s0 + $0x519] sm:$0xff]
  %v252 = vld [vmem:[%s0 + $0x529] sm:$0xff]
  %v253 = vld [vmem:[%s0 + $0x531] sm:$0xff]
  %v254 = vld [vmem:[%s0 + $0x541] sm:$0xff]
  %v255 = vld [vmem:[%s0 + $0x549] sm:$0xff]
  %v256 = vld [vmem:[%s0 + $0x559] sm:$0xff]
  %v257 = vld [vmem:[%s0 + $0x561] sm:$0xff]
  %v258 = vld [vmem:[%s0 + $0x571] sm:$0xff]
  %v259 = vld [vmem:[%s0 + $0x579] sm:$0xff]
  %v260 = vld [vmem:[%s0 + $0x589] sm:$0xff]
  %v261 = vld [vmem:[%s0 + $0x591] sm:$0xff]
  %v262 = vld [vmem:[%s0 + $0x5a1] sm:$0xff]
  %v263 = vld [vmem:[%s0 + $0x5a9] sm:$0xff]
  %v264 = vld [vmem:[%s0 + $0x5b9] sm:$0xff]
  %v265 = vld [vmem:[%s0 + $0x5c1] sm:$0xff]
  %v266 = vld [vmem:[%s0 + $0x5d1] sm:$0xff]
  %v267 = vld [vmem:[%s0 + $0x5d9] sm:$0xff]
  %v268 = vld [vmem:[%s0 + $0x5e9] sm:$0xff]
  %v269 = vld [vmem:[%s0 + $0x5f1] sm:$0xff]
  %v270 = vld [vmem:[%s0 + $0x601] sm:$0xff]
  %v271 = vld [vmem:[%s0 + $0x609] sm:$0xff]
  %v272 = vld [vmem:[%s0 + $0x619] sm:$0xff]
  %v273 = vld [vmem:[%s0 + $0x621] sm:$0xff]
  %v274 = vld [vmem:[%s0 + $0x631] sm:$0xff]
  %v275 = vld [vmem:[%s0 + $0x639] sm:$0xff]
  %v276 = vld [vmem:[%s0 + $0x649] sm:$0xff]
  %v277 = vld [vmem:[%s0 + $0x651] sm:$0xff]
  %v278 = vld [vmem:[%s0 + $0x661] sm:$0xff]
  %v279 = vld [vmem:[%s0 + $0x669] sm:$0xff]
  %v280 = vld [vmem:[%s0 + $0x679] sm:$0xff]
  %v281 = vld [vmem:[%s0 + $0x681] sm:$0xff]
  %v282 = vld [vmem:[%s0 + $0x2] sm:$0xff]
  %v283 = vld [vmem:[%s0 + $0xa] sm:$0xff]
  %v284 = vld [vmem:[%s0 + $0x1a] sm:$0xff]
  %v285 = vld [vmem:[%s0 + $0x22] sm:$0xff]
  %v286 = vld [vmem:[%s0 + $0x32] sm:$0xff]
  %v287 = vld [vmem:[%s0 + $0x3a] sm:$0xff]
  %v288 = vld [vmem:[%s0 + $0x4a] sm:$0xff]
  %v289 = vld [vmem:[%s0 + $0x52] sm:$0xff]
  %v290 = vld [vmem:[%s0 + $0x62] sm:$0xff]
  %v291 = vld [vmem:[%s0 + $0x6a] sm:$0xff]
  %v292 = vld [vmem:[%s0 + $0x7a] sm:$0xff]
  %v293 = vld [vmem:[%s0 + $0x82] sm:$0xff]
  %v294 = vld [vmem:[%s0 + $0x92] sm:$0xff]
  %v295 = vld [vmem:[%s0 + $0x9a] sm:$0xff]
  %v296 = vld [vmem:[%s0 + $0xaa] sm:$0xff]
  %v297 = vld [vmem:[%s0 + $0xb2] sm:$0xff]
  %v298 = vld [vmem:[%s0 + $0xc2] sm:$0xff]
  %v299 = vld [vmem:[%s0 + $0xca] sm:$0xff]
  %v300 = vld [vmem:[%s0 + $0xda] sm:$0xff]
  %v301 = vld [vmem:[%s0 + $0xe2] sm:$0xff]
  %v302 = vld [vmem:[%s0 + $0xf2] sm:$0xff]
  %v303 = vld [vmem:[%s0 + $0xfa] sm:$0xff]
  %v304 = vld [vmem:[%s0 + $0x10a] sm:$0xff]
  %v305 = vld [vmem:[%s0 + $0x112] sm:$0xff]
  %v306 = vld [vmem:[%s0 + $0x122] sm:$0xff]
  %v307 = vld [vmem:[%s0 + $0x12a] sm:$0xff]
  %v308 = vld [vmem:[%s0 + $0x13a] sm:$0xff]
  %v309 = vld [vmem:[%s0 + $0x142] sm:$0xff]
  %v310 = vld [vmem:[%s0 + $0x152] sm:$0xff]
  %v311 = vld [vmem:[%s0 + $0x15a] sm:$0xff]
  %v312 = vld [vmem:[%s0 + $0x16a] sm:$0xff]
  %v313 = vld [vmem:[%s0 + $0x172] sm:$0xff]
  %v314 = vld [vmem:[%s0 + $0x1b2] sm:$0xff]
  %v315 = vld [vmem:[%s0 + $0x1ba] sm:$0xff]
  %v316 = vld [vmem:[%s0 + $0x1ca] sm:$0xff]
  %v317 = vld [vmem:[%s0 + $0x1d2] sm:$0xff]
  %v318 = vld [vmem:[%s0 + $0x1e2] sm:$0xff]
  %v319 = vld [vmem:[%s0 + $0x1ea] sm:$0xff]
  %v320 = vld [vmem:[%s0 + $0x1fa] sm:$0xff]
  %v321 = vld [vmem:[%s0 + $0x202] sm:$0xff]
  %v322 = vld [vmem:[%s0 + $0x212] sm:$0xff]
  %v323 = vld [vmem:[%s0 + $0x21a] sm:$0xff]
  %v324 = vld [vmem:[%s0 + $0x22a] sm:$0xff]
  %v325 = vld [vmem:[%s0 + $0x232] sm:$0xff]
  %v326 = vld [vmem:[%s0 + $0x242] sm:$0xff]
  %v327 = vld [vmem:[%s0 + $0x24a] sm:$0xff]
  %v328 = vld [vmem:[%s0 + $0x25a] sm:$0xff]
  %v329 = vld [vmem:[%s0 + $0x262] sm:$0xff]
  %v330 = vld [vmem:[%s0 + $0x272] sm:$0xff]
  %v331 = vld [vmem:[%s0 + $0x27a] sm:$0xff]
  %v332 = vld [vmem:[%s0 + $0x28a] sm:$0xff]
  %v333 = vld [vmem:[%s0 + $0x292] sm:$0xff]
  %v334 = vld [vmem:[%s0 + $0x2a2] sm:$0xff]
  %v335 = vld [vmem:[%s0 + $0x2aa] sm:$0xff]
  %v336 = vld [vmem:[%s0 + $0x2ba] sm:$0xff]
  %v337 = vld [vmem:[%s0 + $0x2c2] sm:$0xff]
  %v338 = vld [vmem:[%s0 + $0x2d2] sm:$0xff]
  %v339 = vld [vmem:[%s0 + $0x2da] sm:$0xff]
  %v340 = vld [vmem:[%s0 + $0x2ea] sm:$0xff]
  %v341 = vld [vmem:[%s0 + $0x2f2] sm:$0xff]
  %v342 = vld [vmem:[%s0 + $0x302] sm:$0xff]
  %v343 = vld [vmem:[%s0 + $0x30a] sm:$0xff]
  %v344 = vld [vmem:[%s0 + $0x31a] sm:$0xff]
  %v345 = vld [vmem:[%s0 + $0x322] sm:$0xff]
  %v346 = vld [vmem:[%s0 + $0x362] sm:$0xff]
  %v347 = vld [vmem:[%s0 + $0x36a] sm:$0xff]
  %v348 = vld [vmem:[%s0 + $0x37a] sm:$0xff]
  %v349 = vld [vmem:[%s0 + $0x382] sm:$0xff]
  %v350 = vld [vmem:[%s0 + $0x392] sm:$0xff]
  %v351 = vld [vmem:[%s0 + $0x39a] sm:$0xff]
  %v352 = vld [vmem:[%s0 + $0x3aa] sm:$0xff]
  %v353 = vld [vmem:[%s0 + $0x3b2] sm:$0xff]
  %v354 = vld [vmem:[%s0 + $0x3c2] sm:$0xff]
  %v355 = vld [vmem:[%s0 + $0x3ca] sm:$0xff]
  %v356 = vld [vmem:[%s0 + $0x3da] sm:$0xff]
  %v357 = vld [vmem:[%s0 + $0x3e2] sm:$0xff]
  %v358 = vld [vmem:[%s0 + $0x3f2] sm:$0xff]
  %v359 = vld [vmem:[%s0 + $0x3fa] sm:$0xff]
  %v360 = vld [vmem:[%s0 + $0x40a] sm:$0xff]
  %v361 = vld [vmem:[%s0 + $0x412] sm:$0xff]
  %v362 = vld [vmem:[%s0 + $0x422] sm:$0xff]
  %v363 = vld [vmem:[%s0 + $0x42a] sm:$0xff]
  %v364 = vld [vmem:[%s0 + $0x43a] sm:$0xff]
  %v365 = vld [vmem:[%s0 + $0x442] sm:$0xff]
  %v366 = vld [vmem:[%s0 + $0x452] sm:$0xff]
  %v367 = vld [vmem:[%s0 + $0x45a] sm:$0xff]
  %v368 = vld [vmem:[%s0 + $0x46a] sm:$0xff]
  %v369 = vld [vmem:[%s0 + $0x472] sm:$0xff]
  %v370 = vld [vmem:[%s0 + $0x482] sm:$0xff]
  %v371 = vld [vmem:[%s0 + $0x48a] sm:$0xff]
  %v372 = vld [vmem:[%s0 + $0x49a] sm:$0xff]
  %v373 = vld [vmem:[%s0 + $0x4a2] sm:$0xff]
  %v374 = vld [vmem:[%s0 + $0x4b2] sm:$0xff]
  %v375 = vld [vmem:[%s0 + $0x4ba] sm:$0xff]
  %v376 = vld [vmem:[%s0 + $0x4ca] sm:$0xff]
  %v377 = vld [vmem:[%s0 + $0x4d2] sm:$0xff]
  %v378 = vld [vmem:[%s0 + $0x512] sm:$0xff]
  %v379 = vld [vmem:[%s0 + $0x51a] sm:$0xff]
  %v380 = vld [vmem:[%s0 + $0x52a] sm:$0xff]
  %v381 = vld [vmem:[%s0 + $0x532] sm:$0xff]
  %v382 = vld [vmem:[%s0 + $0x542] sm:$0xff]
  %v383 = vld [vmem:[%s0 + $0x54a] sm:$0xff]
  %v384 = vld [vmem:[%s0 + $0x55a] sm:$0xff]
  %v385 = vld [vmem:[%s0 + $0x562] sm:$0xff]
  %v386 = vld [vmem:[%s0 + $0x572] sm:$0xff]
  %v387 = vld [vmem:[%s0 + $0x57a] sm:$0xff]
  %v388 = vld [vmem:[%s0 + $0x58a] sm:$0xff]
  %v389 = vld [vmem:[%s0 + $0x592] sm:$0xff]
  %v390 = vld [vmem:[%s0 + $0x5a2] sm:$0xff]
  %v391 = vld [vmem:[%s0 + $0x5aa] sm:$0xff]
  %v392 = vld [vmem:[%s0 + $0x5ba] sm:$0xff]
  %v393 = vld [vmem:[%s0 + $0x5c2] sm:$0xff]
  %v394 = vld [vmem:[%s0 + $0x5d2] sm:$0xff]
  %v395 = vld [vmem:[%s0 + $0x5da] sm:$0xff]
  %v396 = vld [vmem:[%s0 + $0x5ea] sm:$0xff]
  %v397 = vld [vmem:[%s0 + $0x5f2] sm:$0xff]
  %v398 = vld [vmem:[%s0 + $0x602] sm:$0xff]
  %v399 = vld [vmem:[%s0 + $0x60a] sm:$0xff]
  %v400 = vld [vmem:[%s0 + $0x61a] sm:$0xff]
  %v401 = vld [vmem:[%s0 + $0x622] sm:$0xff]
  %v402 = vld [vmem:[%s0 + $0x632] sm:$0xff]
  %v403 = vld [vmem:[%s0 + $0x63a] sm:$0xff]
  %v404 = vld [vmem:[%s0 + $0x64a] sm:$0xff]
  %v405 = vld [vmem:[%s0 + $0x652] sm:$0xff]
  %v406 = vld [vmem:[%s0 + $0x662] sm:$0xff]
  %v407 = vld [vmem:[%s0 + $0x66a] sm:$0xff]
  %v408 = vld [vmem:[%s0 + $0x67a] sm:$0xff]
  %v409 = vld [vmem:[%s0 + $0x682] sm:$0xff]
  %s410 = scalar_lea.vmem %s0, 24
  %v411 = vld [vmem:[%s410] sm:$0xff]
  %v412 = vld [vmem:[%s410 + $0x8] sm:$0xff]
  %v413 = vld [vmem:[%s410 + $0x18] sm:$0xff]
  %v414 = vld [vmem:[%s410 + $0x20] sm:$0xff]
  %v415 = vld [vmem:[%s410 + $0x30] sm:$0xff]
  %v416 = vld [vmem:[%s410 + $0x38] sm:$0xff]
  %v417 = vld [vmem:[%s410 + $0x48] sm:$0xff]
  %v418 = vld [vmem:[%s410 + $0x50] sm:$0xff]
  %v419 = vld [vmem:[%s410 + $0x60] sm:$0xff]
  %v420 = vld [vmem:[%s410 + $0x68] sm:$0xff]
  %v421 = vld [vmem:[%s410 + $0x78] sm:$0xff]
  %v422 = vld [vmem:[%s410 + $0x80] sm:$0xff]
  %v423 = vld [vmem:[%s410 + $0x90] sm:$0xff]
  %v424 = vld [vmem:[%s410 + $0x98] sm:$0xff]
  %v425 = vld [vmem:[%s410 + $0xa8] sm:$0xff]
  %v426 = vld [vmem:[%s410 + $0xb0] sm:$0xff]
  %v427 = vld [vmem:[%s410 + $0xc0] sm:$0xff]
  %v428 = vld [vmem:[%s410 + $0xc8] sm:$0xff]
  %v429 = vld [vmem:[%s410 + $0xd8] sm:$0xff]
  %v430 = vld [vmem:[%s410 + $0xe0] sm:$0xff]
  %v431 = vld [vmem:[%s410 + $0xf0] sm:$0xff]
  %v432 = vld [vmem:[%s410 + $0xf8] sm:$0xff]
  %v433 = vld [vmem:[%s410 + $0x108] sm:$0xff]
  %v434 = vld [vmem:[%s410 + $0x110] sm:$0xff]
  %v435 = vld [vmem:[%s410 + $0x120] sm:$0xff]
  %v436 = vld [vmem:[%s410 + $0x128] sm:$0xff]
  %v437 = vld [vmem:[%s410 + $0x138] sm:$0xff]
  %v438 = vld [vmem:[%s410 + $0x140] sm:$0xff]
  %v439 = vld [vmem:[%s410 + $0x150] sm:$0xff]
  %v440 = vld [vmem:[%s410 + $0x158] sm:$0xff]
  %v441 = vld [vmem:[%s410 + $0x168] sm:$0xff]
  %v442 = vld [vmem:[%s410 + $0x170] sm:$0xff]
  %v443 = vld [vmem:[%s410 + $0x1b0] sm:$0xff]
  %v444 = vld [vmem:[%s410 + $0x1b8] sm:$0xff]
  %v445 = vld [vmem:[%s410 + $0x1c8] sm:$0xff]
  %v446 = vld [vmem:[%s410 + $0x1d0] sm:$0xff]
  %v447 = vld [vmem:[%s410 + $0x1e0] sm:$0xff]
  %v448 = vld [vmem:[%s410 + $0x1e8] sm:$0xff]
  %v449 = vld [vmem:[%s410 + $0x1f8] sm:$0xff]
  %v450 = vld [vmem:[%s410 + $0x200] sm:$0xff]
  %v451 = vld [vmem:[%s410 + $0x210] sm:$0xff]
  %v452 = vld [vmem:[%s410 + $0x218] sm:$0xff]
  %v453 = vld [vmem:[%s410 + $0x228] sm:$0xff]
  %v454 = vld [vmem:[%s410 + $0x230] sm:$0xff]
  %v455 = vld [vmem:[%s410 + $0x240] sm:$0xff]
  %v456 = vld [vmem:[%s410 + $0x248] sm:$0xff]
  %v457 = vld [vmem:[%s410 + $0x258] sm:$0xff]
  %v458 = vld [vmem:[%s410 + $0x260] sm:$0xff]
  %v459 = vld [vmem:[%s410 + $0x270] sm:$0xff]
  %v460 = vld [vmem:[%s410 + $0x278] sm:$0xff]
  %v461 = vld [vmem:[%s410 + $0x288] sm:$0xff]
  %v462 = vld [vmem:[%s410 + $0x290] sm:$0xff]
  %v463 = vld [vmem:[%s410 + $0x2a0] sm:$0xff]
  %v464 = vld [vmem:[%s410 + $0x2a8] sm:$0xff]
  %v465 = vld [vmem:[%s410 + $0x2b8] sm:$0xff]
  %v466 = vld [vmem:[%s410 + $0x2c0] sm:$0xff]
  %v467 = vld [vmem:[%s410 + $0x2d0] sm:$0xff]
  %v468 = vld [vmem:[%s410 + $0x2d8] sm:$0xff]
  %v469 = vld [vmem:[%s410 + $0x2e8] sm:$0xff]
  %v470 = vld [vmem:[%s410 + $0x2f0] sm:$0xff]
  %v471 = vld [vmem:[%s410 + $0x300] sm:$0xff]
  %v472 = vld [vmem:[%s410 + $0x308] sm:$0xff]
  %v473 = vld [vmem:[%s410 + $0x318] sm:$0xff]
  %v474 = vld [vmem:[%s410 + $0x320] sm:$0xff]
  %v475 = vld [vmem:[%s410 + $0x360] sm:$0xff]
  %v476 = vld [vmem:[%s410 + $0x368] sm:$0xff]
  %v477 = vld [vmem:[%s410 + $0x378] sm:$0xff]
  %v478 = vld [vmem:[%s410 + $0x380] sm:$0xff]
  %v479 = vld [vmem:[%s410 + $0x390] sm:$0xff]
  %v480 = vld [vmem:[%s410 + $0x398] sm:$0xff]
  %v481 = vld [vmem:[%s410 + $0x3a8] sm:$0xff]
  %v482 = vld [vmem:[%s410 + $0x3b0] sm:$0xff]
  %v483 = vld [vmem:[%s410 + $0x3c0] sm:$0xff]
  %v484 = vld [vmem:[%s410 + $0x3c8] sm:$0xff]
  %v485 = vld [vmem:[%s410 + $0x3d8] sm:$0xff]
  %v486 = vld [vmem:[%s410 + $0x3e0] sm:$0xff]
  %v487 = vld [vmem:[%s410 + $0x3f0] sm:$0xff]
  %v488 = vld [vmem:[%s410 + $0x3f8] sm:$0xff]
  %v489 = vld [vmem:[%s410 + $0x408] sm:$0xff]
  %v490 = vld [vmem:[%s410 + $0x410] sm:$0xff]
  %v491 = vld [vmem:[%s410 + $0x420] sm:$0xff]
  %v492 = vld [vmem:[%s410 + $0x428] sm:$0xff]
  %v493 = vld [vmem:[%s410 + $0x438] sm:$0xff]
  %v494 = vld [vmem:[%s410 + $0x440] sm:$0xff]
  %v495 = vld [vmem:[%s410 + $0x450] sm:$0xff]
  %v496 = vld [vmem:[%s410 + $0x458] sm:$0xff]
  %v497 = vld [vmem:[%s410 + $0x468] sm:$0xff]
  %v498 = vld [vmem:[%s410 + $0x470] sm:$0xff]
  %v499 = vld [vmem:[%s410 + $0x480] sm:$0xff]
  %v500 = vld [vmem:[%s410 + $0x488] sm:$0xff]
  %v501 = vld [vmem:[%s410 + $0x498] sm:$0xff]
  %v502 = vld [vmem:[%s410 + $0x4a0] sm:$0xff]
  %v503 = vld [vmem:[%s410 + $0x4b0] sm:$0xff]
  %v504 = vld [vmem:[%s410 + $0x4b8] sm:$0xff]
  %v505 = vld [vmem:[%s410 + $0x4c8] sm:$0xff]
  %v506 = vld [vmem:[%s410 + $0x4d0] sm:$0xff]
  %v507 = vld [vmem:[%s410 + $0x510] sm:$0xff]
  %v508 = vld [vmem:[%s410 + $0x518] sm:$0xff]
  %v509 = vld [vmem:[%s410 + $0x528] sm:$0xff]
  %v510 = vld [vmem:[%s410 + $0x530] sm:$0xff]
  %v511 = vld [vmem:[%s410 + $0x540] sm:$0xff]
  %v512 = vld [vmem:[%s410 + $0x548] sm:$0xff]
  %v513 = vld [vmem:[%s410 + $0x558] sm:$0xff]
  %v514 = vld [vmem:[%s410 + $0x560] sm:$0xff]
  %v515 = vld [vmem:[%s410 + $0x570] sm:$0xff]
  %v516 = vld [vmem:[%s410 + $0x578] sm:$0xff]
  %v517 = vld [vmem:[%s410 + $0x588] sm:$0xff]
  %v518 = vld [vmem:[%s410 + $0x590] sm:$0xff]
  %v519 = vld [vmem:[%s410 + $0x5a0] sm:$0xff]
  %v520 = vld [vmem:[%s410 + $0x5a8] sm:$0xff]
  %v521 = vld [vmem:[%s410 + $0x5b8] sm:$0xff]
  %v522 = vld [vmem:[%s410 + $0x5c0] sm:$0xff]
  %v523 = vld [vmem:[%s410 + $0x5d0] sm:$0xff]
  %v524 = vld [vmem:[%s410 + $0x5d8] sm:$0xff]
  %v525 = vld [vmem:[%s410 + $0x5e8] sm:$0xff]
  %v526 = vld [vmem:[%s410 + $0x5f0] sm:$0xff]
  %v527 = vld [vmem:[%s410 + $0x600] sm:$0xff]
  %v528 = vld [vmem:[%s410 + $0x608] sm:$0xff]
  %v529 = vld [vmem:[%s410 + $0x618] sm:$0xff]
  %v530 = vld [vmem:[%s410 + $0x620] sm:$0xff]
  %v531 = vld [vmem:[%s410 + $0x630] sm:$0xff]
  %v532 = vld [vmem:[%s410 + $0x638] sm:$0xff]
  %v533 = vld [vmem:[%s410 + $0x648] sm:$0xff]
  %v534 = vld [vmem:[%s410 + $0x650] sm:$0xff]
  %v535 = vld [vmem:[%s410 + $0x660] sm:$0xff]
  %v536 = vld [vmem:[%s410 + $0x668] sm:$0xff]
  %v537 = vld [vmem:[%s410 + $0x678] sm:$0xff]
  %v538 = vld [vmem:[%s410 + $0x680] sm:$0xff]
  %v539 = vld [vmem:[%s410 + $0x1] sm:$0xff]
  %v540 = vld [vmem:[%s410 + $0x9] sm:$0xff]
  %v541 = vld [vmem:[%s410 + $0x19] sm:$0xff]
  %v542 = vld [vmem:[%s410 + $0x21] sm:$0xff]
  %v543 = vld [vmem:[%s410 + $0x31] sm:$0xff]
  %v544 = vld [vmem:[%s410 + $0x39] sm:$0xff]
  %v545 = vld [vmem:[%s410 + $0x49] sm:$0xff]
  %v546 = vld [vmem:[%s410 + $0x51] sm:$0xff]
  %v547 = vld [vmem:[%s410 + $0x61] sm:$0xff]
  %v548 = vld [vmem:[%s410 + $0x69] sm:$0xff]
  %v549 = vld [vmem:[%s410 + $0x79] sm:$0xff]
  %v550 = vld [vmem:[%s410 + $0x81] sm:$0xff]
  %v551 = vld [vmem:[%s410 + $0x91] sm:$0xff]
  %v552 = vld [vmem:[%s410 + $0x99] sm:$0xff]
  %v553 = vld [vmem:[%s410 + $0xa9] sm:$0xff]
  %v554 = vld [vmem:[%s410 + $0xb1] sm:$0xff]
  %v555 = vld [vmem:[%s410 + $0xc1] sm:$0xff]
  %v556 = vld [vmem:[%s410 + $0xc9] sm:$0xff]
  %v557 = vld [vmem:[%s410 + $0xd9] sm:$0xff]
  %v558 = vld [vmem:[%s410 + $0xe1] sm:$0xff]
  %v559 = vld [vmem:[%s410 + $0xf1] sm:$0xff]
  %v560 = vld [vmem:[%s410 + $0xf9] sm:$0xff]
  %v561 = vld [vmem:[%s410 + $0x109] sm:$0xff]
  %v562 = vld [vmem:[%s410 + $0x111] sm:$0xff]
  %v563 = vld [vmem:[%s410 + $0x121] sm:$0xff]
  %v564 = vld [vmem:[%s410 + $0x129] sm:$0xff]
  %v565 = vld [vmem:[%s410 + $0x139] sm:$0xff]
  %v566 = vld [vmem:[%s410 + $0x141] sm:$0xff]
  %v567 = vld [vmem:[%s410 + $0x151] sm:$0xff]
  %v568 = vld [vmem:[%s410 + $0x159] sm:$0xff]
  %v569 = vld [vmem:[%s410 + $0x169] sm:$0xff]
  %v570 = vld [vmem:[%s410 + $0x171] sm:$0xff]
  %v571 = vld [vmem:[%s410 + $0x1b1] sm:$0xff]
  %v572 = vld [vmem:[%s410 + $0x1b9] sm:$0xff]
  %v573 = vld [vmem:[%s410 + $0x1c9] sm:$0xff]
  %v574 = vld [vmem:[%s410 + $0x1d1] sm:$0xff]
  %v575 = vld [vmem:[%s410 + $0x1e1] sm:$0xff]
  %v576 = vld [vmem:[%s410 + $0x1e9] sm:$0xff]
  %v577 = vld [vmem:[%s410 + $0x1f9] sm:$0xff]
  %v578 = vld [vmem:[%s410 + $0x201] sm:$0xff]
  %v579 = vld [vmem:[%s410 + $0x211] sm:$0xff]
  %v580 = vld [vmem:[%s410 + $0x219] sm:$0xff]
  %v581 = vld [vmem:[%s410 + $0x229] sm:$0xff]
  %v582 = vld [vmem:[%s410 + $0x231] sm:$0xff]
  %v583 = vld [vmem:[%s410 + $0x241] sm:$0xff]
  %v584 = vld [vmem:[%s410 + $0x249] sm:$0xff]
  %v585 = vld [vmem:[%s410 + $0x259] sm:$0xff]
  %v586 = vld [vmem:[%s410 + $0x261] sm:$0xff]
  %v587 = vld [vmem:[%s410 + $0x271] sm:$0xff]
  %v588 = vld [vmem:[%s410 + $0x279] sm:$0xff]
  %v589 = vld [vmem:[%s410 + $0x289] sm:$0xff]
  %v590 = vld [vmem:[%s410 + $0x291] sm:$0xff]
  %v591 = vld [vmem:[%s410 + $0x2a1] sm:$0xff]
  %v592 = vld [vmem:[%s410 + $0x2a9] sm:$0xff]
  %v593 = vld [vmem:[%s410 + $0x2b9] sm:$0xff]
  %v594 = vld [vmem:[%s410 + $0x2c1] sm:$0xff]
  %v595 = vld [vmem:[%s410 + $0x2d1] sm:$0xff]
  %v596 = vld [vmem:[%s410 + $0x2d9] sm:$0xff]
  %v597 = vld [vmem:[%s410 + $0x2e9] sm:$0xff]
  %v598 = vld [vmem:[%s410 + $0x2f1] sm:$0xff]
  %v599 = vld [vmem:[%s410 + $0x301] sm:$0xff]
  %v600 = vld [vmem:[%s410 + $0x309] sm:$0xff]
  %v601 = vld [vmem:[%s410 + $0x319] sm:$0xff]
  %v602 = vld [vmem:[%s410 + $0x321] sm:$0xff]
  %v603 = vld [vmem:[%s410 + $0x361] sm:$0xff]
  %v604 = vld [vmem:[%s410 + $0x369] sm:$0xff]
  %v605 = vld [vmem:[%s410 + $0x379] sm:$0xff]
  %v606 = vld [vmem:[%s410 + $0x381] sm:$0xff]
  %v607 = vld [vmem:[%s410 + $0x391] sm:$0xff]
  %v608 = vld [vmem:[%s410 + $0x399] sm:$0xff]
  %v609 = vld [vmem:[%s410 + $0x3a9] sm:$0xff]
  %v610 = vld [vmem:[%s410 + $0x3b1] sm:$0xff]
  %v611 = vld [vmem:[%s410 + $0x3c1] sm:$0xff]
  %v612 = vld [vmem:[%s410 + $0x3c9] sm:$0xff]
  %v613 = vld [vmem:[%s410 + $0x3d9] sm:$0xff]
  %v614 = vld [vmem:[%s410 + $0x3e1] sm:$0xff]
  %v615 = vld [vmem:[%s410 + $0x3f1] sm:$0xff]
  %v616 = vld [vmem:[%s410 + $0x3f9] sm:$0xff]
  %v617 = vld [vmem:[%s410 + $0x409] sm:$0xff]
  %v618 = vld [vmem:[%s410 + $0x411] sm:$0xff]
  %v619 = vld [vmem:[%s410 + $0x421] sm:$0xff]
  %v620 = vld [vmem:[%s410 + $0x429] sm:$0xff]
  %v621 = vld [vmem:[%s410 + $0x439] sm:$0xff]
  %v622 = vld [vmem:[%s410 + $0x441] sm:$0xff]
  %v623 = vld [vmem:[%s410 + $0x451] sm:$0xff]
  %v624 = vld [vmem:[%s410 + $0x459] sm:$0xff]
  %v625 = vld [vmem:[%s410 + $0x469] sm:$0xff]
  %v626 = vld [vmem:[%s410 + $0x471] sm:$0xff]
  %v627 = vld [vmem:[%s410 + $0x481] sm:$0xff]
  %v628 = vld [vmem:[%s410 + $0x489] sm:$0xff]
  %v629 = vld [vmem:[%s410 + $0x499] sm:$0xff]
  %v630 = vld [vmem:[%s410 + $0x4a1] sm:$0xff]
  %v631 = vld [vmem:[%s410 + $0x4b1] sm:$0xff]
  %v632 = vld [vmem:[%s410 + $0x4b9] sm:$0xff]
  %v633 = vld [vmem:[%s410 + $0x4c9] sm:$0xff]
  %v634 = vld [vmem:[%s410 + $0x4d1] sm:$0xff]
  %v635 = vld [vmem:[%s410 + $0x511] sm:$0xff]
  %v636 = vld [vmem:[%s410 + $0x519] sm:$0xff]
  %v637 = vld [vmem:[%s410 + $0x529] sm:$0xff]
  %v638 = vld [vmem:[%s410 + $0x531] sm:$0xff]
  %v639 = vld [vmem:[%s410 + $0x541] sm:$0xff]
  %v640 = vld [vmem:[%s410 + $0x549] sm:$0xff]
  %v641 = vld [vmem:[%s410 + $0x559] sm:$0xff]
  %v642 = vld [vmem:[%s410 + $0x561] sm:$0xff]
  %v643 = vld [vmem:[%s410 + $0x571] sm:$0xff]
  %v644 = vld [vmem:[%s410 + $0x579] sm:$0xff]
  %v645 = vld [vmem:[%s410 + $0x589] sm:$0xff]
  %v646 = vld [vmem:[%s410 + $0x591] sm:$0xff]
  %v647 = vld [vmem:[%s410 + $0x5a1] sm:$0xff]
  %v648 = vld [vmem:[%s410 + $0x5a9] sm:$0xff]
  %v649 = vld [vmem:[%s410 + $0x5b9] sm:$0xff]
  %v650 = vld [vmem:[%s410 + $0x5c1] sm:$0xff]
  %v651 = vld [vmem:[%s410 + $0x5d1] sm:$0xff]
  %v652 = vld [vmem:[%s410 + $0x5d9] sm:$0xff]
  %v653 = vld [vmem:[%s410 + $0x5e9] sm:$0xff]
  %v654 = vld [vmem:[%s410 + $0x5f1] sm:$0xff]
  %v655 = vld [vmem:[%s410 + $0x601] sm:$0xff]
  %v656 = vld [vmem:[%s410 + $0x609] sm:$0xff]
  %v657 = vld [vmem:[%s410 + $0x619] sm:$0xff]
  %v658 = vld [vmem:[%s410 + $0x621] sm:$0xff]
  %v659 = vld [vmem:[%s410 + $0x631] sm:$0xff]
  %v660 = vld [vmem:[%s410 + $0x639] sm:$0xff]
  %v661 = vld [vmem:[%s410 + $0x649] sm:$0xff]
  %v662 = vld [vmem:[%s410 + $0x651] sm:$0xff]
  %v663 = vld [vmem:[%s410 + $0x661] sm:$0xff]
  %v664 = vld [vmem:[%s410 + $0x669] sm:$0xff]
  %v665 = vld [vmem:[%s410 + $0x679] sm:$0xff]
  %v666 = vld [vmem:[%s410 + $0x681] sm:$0xff]
  %v667 = vld [vmem:[%s410 + $0x2] sm:$0xff]
  %v668 = vld [vmem:[%s410 + $0xa] sm:$0xff]
  %v669 = vld [vmem:[%s410 + $0x1a] sm:$0xff]
  %v670 = vld [vmem:[%s410 + $0x22] sm:$0xff]
  %v671 = vld [vmem:[%s410 + $0x32] sm:$0xff]
  %v672 = vld [vmem:[%s410 + $0x3a] sm:$0xff]
  %v673 = vld [vmem:[%s410 + $0x4a] sm:$0xff]
  %v674 = vld [vmem:[%s410 + $0x52] sm:$0xff]
  %v675 = vld [vmem:[%s410 + $0x62] sm:$0xff]
  %v676 = vld [vmem:[%s410 + $0x6a] sm:$0xff]
  %v677 = vld [vmem:[%s410 + $0x7a] sm:$0xff]
  %v678 = vld [vmem:[%s410 + $0x82] sm:$0xff]
  %v679 = vld [vmem:[%s410 + $0x92] sm:$0xff]
  %v680 = vld [vmem:[%s410 + $0x9a] sm:$0xff]
  %v681 = vld [vmem:[%s410 + $0xaa] sm:$0xff]
  %v682 = vld [vmem:[%s410 + $0xb2] sm:$0xff]
  %v683 = vld [vmem:[%s410 + $0xc2] sm:$0xff]
  %v684 = vld [vmem:[%s410 + $0xca] sm:$0xff]
  %v685 = vld [vmem:[%s410 + $0xda] sm:$0xff]
  %v686 = vld [vmem:[%s410 + $0xe2] sm:$0xff]
  %v687 = vld [vmem:[%s410 + $0xf2] sm:$0xff]
  %v688 = vld [vmem:[%s410 + $0xfa] sm:$0xff]
  %v689 = vld [vmem:[%s410 + $0x10a] sm:$0xff]
  %v690 = vld [vmem:[%s410 + $0x112] sm:$0xff]
  %v691 = vld [vmem:[%s410 + $0x122] sm:$0xff]
  %v692 = vld [vmem:[%s410 + $0x12a] sm:$0xff]
  %v693 = vld [vmem:[%s410 + $0x13a] sm:$0xff]
  %v694 = vld [vmem:[%s410 + $0x142] sm:$0xff]
  %v695 = vld [vmem:[%s410 + $0x152] sm:$0xff]
  %v696 = vld [vmem:[%s410 + $0x15a] sm:$0xff]
  %v697 = vld [vmem:[%s410 + $0x16a] sm:$0xff]
  %v698 = vld [vmem:[%s410 + $0x172] sm:$0xff]
  %v699 = vld [vmem:[%s410 + $0x1b2] sm:$0xff]
  %v700 = vld [vmem:[%s410 + $0x1ba] sm:$0xff]
  %v701 = vld [vmem:[%s410 + $0x1ca] sm:$0xff]
  %v702 = vld [vmem:[%s410 + $0x1d2] sm:$0xff]
  %v703 = vld [vmem:[%s410 + $0x1e2] sm:$0xff]
  %v704 = vld [vmem:[%s410 + $0x1ea] sm:$0xff]
  %v705 = vld [vmem:[%s410 + $0x1fa] sm:$0xff]
  %v706 = vld [vmem:[%s410 + $0x202] sm:$0xff]
  %v707 = vld [vmem:[%s410 + $0x212] sm:$0xff]
  %v708 = vld [vmem:[%s410 + $0x21a] sm:$0xff]
  %v709 = vld [vmem:[%s410 + $0x22a] sm:$0xff]
  %v710 = vld [vmem:[%s410 + $0x232] sm:$0xff]
  %v711 = vld [vmem:[%s410 + $0x242] sm:$0xff]
  %v712 = vld [vmem:[%s410 + $0x24a] sm:$0xff]
  %v713 = vld [vmem:[%s410 + $0x25a] sm:$0xff]
  %v714 = vld [vmem:[%s410 + $0x262] sm:$0xff]
  %v715 = vld [vmem:[%s410 + $0x272] sm:$0xff]
  %v716 = vld [vmem:[%s410 + $0x27a] sm:$0xff]
  %v717 = vld [vmem:[%s410 + $0x28a] sm:$0xff]
  %v718 = vld [vmem:[%s410 + $0x292] sm:$0xff]
  %v719 = vld [vmem:[%s410 + $0x2a2] sm:$0xff]
  %v720 = vld [vmem:[%s410 + $0x2aa] sm:$0xff]
  %v721 = vld [vmem:[%s410 + $0x2ba] sm:$0xff]
  %v722 = vld [vmem:[%s410 + $0x2c2] sm:$0xff]
  %v723 = vld [vmem:[%s410 + $0x2d2] sm:$0xff]
  %v724 = vld [vmem:[%s410 + $0x2da] sm:$0xff]
  %v725 = vld [vmem:[%s410 + $0x2ea] sm:$0xff]
  %v726 = vld [vmem:[%s410 + $0x2f2] sm:$0xff]
  %v727 = vld [vmem:[%s410 + $0x302] sm:$0xff]
  %v728 = vld [vmem:[%s410 + $0x30a] sm:$0xff]
  %v729 = vld [vmem:[%s410 + $0x31a] sm:$0xff]
  %v730 = vld [vmem:[%s410 + $0x322] sm:$0xff]
  %v731 = vld [vmem:[%s410 + $0x362] sm:$0xff]
  %v732 = vld [vmem:[%s410 + $0x36a] sm:$0xff]
  %v733 = vld [vmem:[%s410 + $0x37a] sm:$0xff]
  %v734 = vld [vmem:[%s410 + $0x382] sm:$0xff]
  %v735 = vld [vmem:[%s410 + $0x392] sm:$0xff]
  %v736 = vld [vmem:[%s410 + $0x39a] sm:$0xff]
  %v737 = vld [vmem:[%s410 + $0x3aa] sm:$0xff]
  %v738 = vld [vmem:[%s410 + $0x3b2] sm:$0xff]
  %v739 = vld [vmem:[%s410 + $0x3c2] sm:$0xff]
  %v740 = vld [vmem:[%s410 + $0x3ca] sm:$0xff]
  %v741 = vld [vmem:[%s410 + $0x3da] sm:$0xff]
  %v742 = vld [vmem:[%s410 + $0x3e2] sm:$0xff]
  %v743 = vld [vmem:[%s410 + $0x3f2] sm:$0xff]
  %v744 = vld [vmem:[%s410 + $0x3fa] sm:$0xff]
  %v745 = vld [vmem:[%s410 + $0x40a] sm:$0xff]
  %v746 = vld [vmem:[%s410 + $0x412] sm:$0xff]
  %v747 = vld [vmem:[%s410 + $0x422] sm:$0xff]
  %v748 = vld [vmem:[%s410 + $0x42a] sm:$0xff]
  %v749 = vld [vmem:[%s410 + $0x43a] sm:$0xff]
  %v750 = vld [vmem:[%s410 + $0x442] sm:$0xff]
  %v751 = vld [vmem:[%s410 + $0x452] sm:$0xff]
  %v752 = vld [vmem:[%s410 + $0x45a] sm:$0xff]
  %v753 = vld [vmem:[%s410 + $0x46a] sm:$0xff]
  %v754 = vld [vmem:[%s410 + $0x472] sm:$0xff]
  %v755 = vld [vmem:[%s410 + $0x482] sm:$0xff]
  %v756 = vld [vmem:[%s410 + $0x48a] sm:$0xff]
  %v757 = vld [vmem:[%s410 + $0x49a] sm:$0xff]
  %v758 = vld [vmem:[%s410 + $0x4a2] sm:$0xff]
  %v759 = vld [vmem:[%s410 + $0x4b2] sm:$0xff]
  %v760 = vld [vmem:[%s410 + $0x4ba] sm:$0xff]
  %v761 = vld [vmem:[%s410 + $0x4ca] sm:$0xff]
  %v762 = vld [vmem:[%s410 + $0x4d2] sm:$0xff]
  %v763 = vld [vmem:[%s410 + $0x512] sm:$0xff]
  %v764 = vld [vmem:[%s410 + $0x51a] sm:$0xff]
  %v765 = vld [vmem:[%s410 + $0x52a] sm:$0xff]
  %v766 = vld [vmem:[%s410 + $0x532] sm:$0xff]
  %v767 = vld [vmem:[%s410 + $0x542] sm:$0xff]
  %v768 = vld [vmem:[%s410 + $0x54a] sm:$0xff]
  %v769 = vld [vmem:[%s410 + $0x55a] sm:$0xff]
  %v770 = vld [vmem:[%s410 + $0x562] sm:$0xff]
  %v771 = vld [vmem:[%s410 + $0x572] sm:$0xff]
  %v772 = vld [vmem:[%s410 + $0x57a] sm:$0xff]
  %v773 = vld [vmem:[%s410 + $0x58a] sm:$0xff]
  %v774 = vld [vmem:[%s410 + $0x592] sm:$0xff]
  %v775 = vld [vmem:[%s410 + $0x5a2] sm:$0xff]
  %v776 = vld [vmem:[%s410 + $0x5aa] sm:$0xff]
  %v777 = vld [vmem:[%s410 + $0x5ba] sm:$0xff]
  %v778 = vld [vmem:[%s410 + $0x5c2] sm:$0xff]
  %v779 = vld [vmem:[%s410 + $0x5d2] sm:$0xff]
  %v780 = vld [vmem:[%s410 + $0x5da] sm:$0xff]
  %v781 = vld [vmem:[%s410 + $0x5ea] sm:$0xff]
  %v782 = vld [vmem:[%s410 + $0x5f2] sm:$0xff]
  %v783 = vld [vmem:[%s410 + $0x602] sm:$0xff]
  %v784 = vld [vmem:[%s410 + $0x60a] sm:$0xff]
  %v785 = vld [vmem:[%s410 + $0x61a] sm:$0xff]
  %v786 = vld [vmem:[%s410 + $0x622] sm:$0xff]
  %v787 = vld [vmem:[%s410 + $0x632] sm:$0xff]
  %v788 = vld [vmem:[%s410 + $0x63a] sm:$0xff]
  %v789 = vld [vmem:[%s410 + $0x64a] sm:$0xff]
  %v790 = vld [vmem:[%s410 + $0x652] sm:$0xff]
  %v791 = vld [vmem:[%s410 + $0x662] sm:$0xff]
  %v792 = vld [vmem:[%s410 + $0x66a] sm:$0xff]
  %v793 = vld [vmem:[%s410 + $0x67a] sm:$0xff]
  %v794 = vld [vmem:[%s410 + $0x682] sm:$0xff]
  %s795 = scalar_lea.vmem %s0, 48
  %v796 = vld [vmem:[%s795] sm:$0xff]
  %v797 = vld [vmem:[%s795 + $0x8] sm:$0xff]
  %v798 = vld [vmem:[%s795 + $0x18] sm:$0xff]
  %v799 = vld [vmem:[%s795 + $0x20] sm:$0xff]
  %v800 = vld [vmem:[%s795 + $0x30] sm:$0xff]
  %v801 = vld [vmem:[%s795 + $0x38] sm:$0xff]
  %v802 = vld [vmem:[%s795 + $0x48] sm:$0xff]
  %v803 = vld [vmem:[%s795 + $0x50] sm:$0xff]
  %v804 = vld [vmem:[%s795 + $0x60] sm:$0xff]
  %v805 = vld [vmem:[%s795 + $0x68] sm:$0xff]
  %v806 = vld [vmem:[%s795 + $0x78] sm:$0xff]
  %v807 = vld [vmem:[%s795 + $0x80] sm:$0xff]
  %v808 = vld [vmem:[%s795 + $0x90] sm:$0xff]
  %v809 = vld [vmem:[%s795 + $0x98] sm:$0xff]
  %v810 = vld [vmem:[%s795 + $0xa8] sm:$0xff]
  %v811 = vld [vmem:[%s795 + $0xb0] sm:$0xff]
  %v812 = vld [vmem:[%s795 + $0xc0] sm:$0xff]
  %v813 = vld [vmem:[%s795 + $0xc8] sm:$0xff]
  %v814 = vld [vmem:[%s795 + $0xd8] sm:$0xff]
  %v815 = vld [vmem:[%s795 + $0xe0] sm:$0xff]
  %v816 = vld [vmem:[%s795 + $0xf0] sm:$0xff]
  %v817 = vld [vmem:[%s795 + $0xf8] sm:$0xff]
  %v818 = vld [vmem:[%s795 + $0x108] sm:$0xff]
  %v819 = vld [vmem:[%s795 + $0x110] sm:$0xff]
  %v820 = vld [vmem:[%s795 + $0x120] sm:$0xff]
  %v821 = vld [vmem:[%s795 + $0x128] sm:$0xff]
  %v822 = vld [vmem:[%s795 + $0x138] sm:$0xff]
  %v823 = vld [vmem:[%s795 + $0x140] sm:$0xff]
  %v824 = vld [vmem:[%s795 + $0x150] sm:$0xff]
  %v825 = vld [vmem:[%s795 + $0x158] sm:$0xff]
  %v826 = vld [vmem:[%s795 + $0x168] sm:$0xff]
  %v827 = vld [vmem:[%s795 + $0x170] sm:$0xff]
  %v828 = vld [vmem:[%s795 + $0x1b0] sm:$0xff]
  %v829 = vld [vmem:[%s795 + $0x1b8] sm:$0xff]
  %v830 = vld [vmem:[%s795 + $0x1c8] sm:$0xff]
  %v831 = vld [vmem:[%s795 + $0x1d0] sm:$0xff]
  %v832 = vld [vmem:[%s795 + $0x1e0] sm:$0xff]
  %v833 = vld [vmem:[%s795 + $0x1e8] sm:$0xff]
  %v834 = vld [vmem:[%s795 + $0x1f8] sm:$0xff]
  %v835 = vld [vmem:[%s795 + $0x200] sm:$0xff]
  %v836 = vld [vmem:[%s795 + $0x210] sm:$0xff]
  %v837 = vld [vmem:[%s795 + $0x218] sm:$0xff]
  %v838 = vld [vmem:[%s795 + $0x228] sm:$0xff]
  %v839 = vld [vmem:[%s795 + $0x230] sm:$0xff]
  %v840 = vld [vmem:[%s795 + $0x240] sm:$0xff]
  %v841 = vld [vmem:[%s795 + $0x248] sm:$0xff]
  %v842 = vld [vmem:[%s795 + $0x258] sm:$0xff]
  %v843 = vld [vmem:[%s795 + $0x260] sm:$0xff]
  %v844 = vld [vmem:[%s795 + $0x270] sm:$0xff]
  %v845 = vld [vmem:[%s795 + $0x278] sm:$0xff]
  %v846 = vld [vmem:[%s795 + $0x288] sm:$0xff]
  %v847 = vld [vmem:[%s795 + $0x290] sm:$0xff]
  %v848 = vld [vmem:[%s795 + $0x2a0] sm:$0xff]
  %v849 = vld [vmem:[%s795 + $0x2a8] sm:$0xff]
  %v850 = vld [vmem:[%s795 + $0x2b8] sm:$0xff]
  %v851 = vld [vmem:[%s795 + $0x2c0] sm:$0xff]
  %v852 = vld [vmem:[%s795 + $0x2d0] sm:$0xff]
  %v853 = vld [vmem:[%s795 + $0x2d8] sm:$0xff]
  %v854 = vld [vmem:[%s795 + $0x2e8] sm:$0xff]
  %v855 = vld [vmem:[%s795 + $0x2f0] sm:$0xff]
  %v856 = vld [vmem:[%s795 + $0x300] sm:$0xff]
  %v857 = vld [vmem:[%s795 + $0x308] sm:$0xff]
  %v858 = vld [vmem:[%s795 + $0x318] sm:$0xff]
  %v859 = vld [vmem:[%s795 + $0x320] sm:$0xff]
  %v860 = vld [vmem:[%s795 + $0x360] sm:$0xff]
  %v861 = vld [vmem:[%s795 + $0x368] sm:$0xff]
  %v862 = vld [vmem:[%s795 + $0x378] sm:$0xff]
  %v863 = vld [vmem:[%s795 + $0x380] sm:$0xff]
  %v864 = vld [vmem:[%s795 + $0x390] sm:$0xff]
  %v865 = vld [vmem:[%s795 + $0x398] sm:$0xff]
  %v866 = vld [vmem:[%s795 + $0x3a8] sm:$0xff]
  %v867 = vld [vmem:[%s795 + $0x3b0] sm:$0xff]
  %v868 = vld [vmem:[%s795 + $0x3c0] sm:$0xff]
  %v869 = vld [vmem:[%s795 + $0x3c8] sm:$0xff]
  %v870 = vld [vmem:[%s795 + $0x3d8] sm:$0xff]
  %v871 = vld [vmem:[%s795 + $0x3e0] sm:$0xff]
  %v872 = vld [vmem:[%s795 + $0x3f0] sm:$0xff]
  %v873 = vld [vmem:[%s795 + $0x3f8] sm:$0xff]
  %v874 = vld [vmem:[%s795 + $0x408] sm:$0xff]
  %v875 = vld [vmem:[%s795 + $0x410] sm:$0xff]
  %v876 = vld [vmem:[%s795 + $0x420] sm:$0xff]
  %v877 = vld [vmem:[%s795 + $0x428] sm:$0xff]
  %v878 = vld [vmem:[%s795 + $0x438] sm:$0xff]
  %v879 = vld [vmem:[%s795 + $0x440] sm:$0xff]
  %v880 = vld [vmem:[%s795 + $0x450] sm:$0xff]
  %v881 = vld [vmem:[%s795 + $0x458] sm:$0xff]
  %v882 = vld [vmem:[%s795 + $0x468] sm:$0xff]
  %v883 = vld [vmem:[%s795 + $0x470] sm:$0xff]
  %v884 = vld [vmem:[%s795 + $0x480] sm:$0xff]
  %v885 = vld [vmem:[%s795 + $0x488] sm:$0xff]
  %v886 = vld [vmem:[%s795 + $0x498] sm:$0xff]
  %v887 = vld [vmem:[%s795 + $0x4a0] sm:$0xff]
  %v888 = vld [vmem:[%s795 + $0x4b0] sm:$0xff]
  %v889 = vld [vmem:[%s795 + $0x4b8] sm:$0xff]
  %v890 = vld [vmem:[%s795 + $0x4c8] sm:$0xff]
  %v891 = vld [vmem:[%s795 + $0x4d0] sm:$0xff]
  %v892 = vld [vmem:[%s795 + $0x510] sm:$0xff]
  %v893 = vld [vmem:[%s795 + $0x518] sm:$0xff]
  %v894 = vld [vmem:[%s795 + $0x528] sm:$0xff]
  %v895 = vld [vmem:[%s795 + $0x530] sm:$0xff]
  %v896 = vld [vmem:[%s795 + $0x540] sm:$0xff]
  %v897 = vld [vmem:[%s795 + $0x548] sm:$0xff]
  %v898 = vld [vmem:[%s795 + $0x558] sm:$0xff]
  %v899 = vld [vmem:[%s795 + $0x560] sm:$0xff]
  %v900 = vld [vmem:[%s795 + $0x570] sm:$0xff]
  %v901 = vld [vmem:[%s795 + $0x578] sm:$0xff]
  %v902 = vld [vmem:[%s795 + $0x588] sm:$0xff]
  %v903 = vld [vmem:[%s795 + $0x590] sm:$0xff]
  %v904 = vld [vmem:[%s795 + $0x5a0] sm:$0xff]
  %v905 = vld [vmem:[%s795 + $0x5a8] sm:$0xff]
  %v906 = vld [vmem:[%s795 + $0x5b8] sm:$0xff]
  %v907 = vld [vmem:[%s795 + $0x5c0] sm:$0xff]
  %v908 = vld [vmem:[%s795 + $0x5d0] sm:$0xff]
  %v909 = vld [vmem:[%s795 + $0x5d8] sm:$0xff]
  %v910 = vld [vmem:[%s795 + $0x5e8] sm:$0xff]
  %v911 = vld [vmem:[%s795 + $0x5f0] sm:$0xff]
  %v912 = vld [vmem:[%s795 + $0x600] sm:$0xff]
  %v913 = vld [vmem:[%s795 + $0x608] sm:$0xff]
  %v914 = vld [vmem:[%s795 + $0x618] sm:$0xff]
  %v915 = vld [vmem:[%s795 + $0x620] sm:$0xff]
  %v916 = vld [vmem:[%s795 + $0x630] sm:$0xff]
  %v917 = vld [vmem:[%s795 + $0x638] sm:$0xff]
  %v918 = vld [vmem:[%s795 + $0x648] sm:$0xff]
  %v919 = vld [vmem:[%s795 + $0x650] sm:$0xff]
  %v920 = vld [vmem:[%s795 + $0x660] sm:$0xff]
  %v921 = vld [vmem:[%s795 + $0x668] sm:$0xff]
  %v922 = vld [vmem:[%s795 + $0x678] sm:$0xff]
  %v923 = vld [vmem:[%s795 + $0x680] sm:$0xff]
  %v924 = vld [vmem:[%s795 + $0x1] sm:$0xff]
  %v925 = vld [vmem:[%s795 + $0x9] sm:$0xff]
  %v926 = vld [vmem:[%s795 + $0x19] sm:$0xff]
  %v927 = vld [vmem:[%s795 + $0x21] sm:$0xff]
  %v928 = vld [vmem:[%s795 + $0x31] sm:$0xff]
  %v929 = vld [vmem:[%s795 + $0x39] sm:$0xff]
  %v930 = vld [vmem:[%s795 + $0x49] sm:$0xff]
  %v931 = vld [vmem:[%s795 + $0x51] sm:$0xff]
  %v932 = vld [vmem:[%s795 + $0x61] sm:$0xff]
  %v933 = vld [vmem:[%s795 + $0x69] sm:$0xff]
  %v934 = vld [vmem:[%s795 + $0x79] sm:$0xff]
  %v935 = vld [vmem:[%s795 + $0x81] sm:$0xff]
  %v936 = vld [vmem:[%s795 + $0x91] sm:$0xff]
  %v937 = vld [vmem:[%s795 + $0x99] sm:$0xff]
  %v938 = vld [vmem:[%s795 + $0xa9] sm:$0xff]
  %v939 = vld [vmem:[%s795 + $0xb1] sm:$0xff]
  %v940 = vld [vmem:[%s795 + $0xc1] sm:$0xff]
  %v941 = vld [vmem:[%s795 + $0xc9] sm:$0xff]
  %v942 = vld [vmem:[%s795 + $0xd9] sm:$0xff]
  %v943 = vld [vmem:[%s795 + $0xe1] sm:$0xff]
  %v944 = vld [vmem:[%s795 + $0xf1] sm:$0xff]
  %v945 = vld [vmem:[%s795 + $0xf9] sm:$0xff]
  %v946 = vld [vmem:[%s795 + $0x109] sm:$0xff]
  %v947 = vld [vmem:[%s795 + $0x111] sm:$0xff]
  %v948 = vld [vmem:[%s795 + $0x121] sm:$0xff]
  %v949 = vld [vmem:[%s795 + $0x129] sm:$0xff]
  %v950 = vld [vmem:[%s795 + $0x139] sm:$0xff]
  %v951 = vld [vmem:[%s795 + $0x141] sm:$0xff]
  %v952 = vld [vmem:[%s795 + $0x151] sm:$0xff]
  %v953 = vld [vmem:[%s795 + $0x159] sm:$0xff]
  %v954 = vld [vmem:[%s795 + $0x169] sm:$0xff]
  %v955 = vld [vmem:[%s795 + $0x171] sm:$0xff]
  %v956 = vld [vmem:[%s795 + $0x1b1] sm:$0xff]
  %v957 = vld [vmem:[%s795 + $0x1b9] sm:$0xff]
  %v958 = vld [vmem:[%s795 + $0x1c9] sm:$0xff]
  %v959 = vld [vmem:[%s795 + $0x1d1] sm:$0xff]
  %v960 = vld [vmem:[%s795 + $0x1e1] sm:$0xff]
  %v961 = vld [vmem:[%s795 + $0x1e9] sm:$0xff]
  %v962 = vld [vmem:[%s795 + $0x1f9] sm:$0xff]
  %v963 = vld [vmem:[%s795 + $0x201] sm:$0xff]
  %v964 = vld [vmem:[%s795 + $0x211] sm:$0xff]
  %v965 = vld [vmem:[%s795 + $0x219] sm:$0xff]
  %v966 = vld [vmem:[%s795 + $0x229] sm:$0xff]
  %v967 = vld [vmem:[%s795 + $0x231] sm:$0xff]
  %v968 = vld [vmem:[%s795 + $0x241] sm:$0xff]
  %v969 = vld [vmem:[%s795 + $0x249] sm:$0xff]
  %v970 = vld [vmem:[%s795 + $0x259] sm:$0xff]
  %v971 = vld [vmem:[%s795 + $0x261] sm:$0xff]
  %v972 = vld [vmem:[%s795 + $0x271] sm:$0xff]
  %v973 = vld [vmem:[%s795 + $0x279] sm:$0xff]
  %v974 = vld [vmem:[%s795 + $0x289] sm:$0xff]
  %v975 = vld [vmem:[%s795 + $0x291] sm:$0xff]
  %v976 = vld [vmem:[%s795 + $0x2a1] sm:$0xff]
  %v977 = vld [vmem:[%s795 + $0x2a9] sm:$0xff]
  %v978 = vld [vmem:[%s795 + $0x2b9] sm:$0xff]
  %v979 = vld [vmem:[%s795 + $0x2c1] sm:$0xff]
  %v980 = vld [vmem:[%s795 + $0x2d1] sm:$0xff]
  %v981 = vld [vmem:[%s795 + $0x2d9] sm:$0xff]
  %v982 = vld [vmem:[%s795 + $0x2e9] sm:$0xff]
  %v983 = vld [vmem:[%s795 + $0x2f1] sm:$0xff]
  %v984 = vld [vmem:[%s795 + $0x301] sm:$0xff]
  %v985 = vld [vmem:[%s795 + $0x309] sm:$0xff]
  %v986 = vld [vmem:[%s795 + $0x319] sm:$0xff]
  %v987 = vld [vmem:[%s795 + $0x321] sm:$0xff]
  %v988 = vld [vmem:[%s795 + $0x361] sm:$0xff]
  %v989 = vld [vmem:[%s795 + $0x369] sm:$0xff]
  %v990 = vld [vmem:[%s795 + $0x379] sm:$0xff]
  %v991 = vld [vmem:[%s795 + $0x381] sm:$0xff]
  %v992 = vld [vmem:[%s795 + $0x391] sm:$0xff]
  %v993 = vld [vmem:[%s795 + $0x399] sm:$0xff]
  %v994 = vld [vmem:[%s795 + $0x3a9] sm:$0xff]
  %v995 = vld [vmem:[%s795 + $0x3b1] sm:$0xff]
  %v996 = vld [vmem:[%s795 + $0x3c1] sm:$0xff]
  %v997 = vld [vmem:[%s795 + $0x3c9] sm:$0xff]
  %v998 = vld [vmem:[%s795 + $0x3d9] sm:$0xff]
  %v999 = vld [vmem:[%s795 + $0x3e1] sm:$0xff]
  %v1000 = vld [vmem:[%s795 + $0x3f1] sm:$0xff]
  %v1001 = vld [vmem:[%s795 + $0x3f9] sm:$0xff]
  %v1002 = vld [vmem:[%s795 + $0x409] sm:$0xff]
  %v1003 = vld [vmem:[%s795 + $0x411] sm:$0xff]
  %v1004 = vld [vmem:[%s795 + $0x421] sm:$0xff]
  %v1005 = vld [vmem:[%s795 + $0x429] sm:$0xff]
  %v1006 = vld [vmem:[%s795 + $0x439] sm:$0xff]
  %v1007 = vld [vmem:[%s795 + $0x441] sm:$0xff]
  %v1008 = vld [vmem:[%s795 + $0x451] sm:$0xff]
  %v1009 = vld [vmem:[%s795 + $0x459] sm:$0xff]
  %v1010 = vld [vmem:[%s795 + $0x469] sm:$0xff]
  %v1011 = vld [vmem:[%s795 + $0x471] sm:$0xff]
  %v1012 = vld [vmem:[%s795 + $0x481] sm:$0xff]
  %v1013 = vld [vmem:[%s795 + $0x489] sm:$0xff]
  %v1014 = vld [vmem:[%s795 + $0x499] sm:$0xff]
  %v1015 = vld [vmem:[%s795 + $0x4a1] sm:$0xff]
  %v1016 = vld [vmem:[%s795 + $0x4b1] sm:$0xff]
  %v1017 = vld [vmem:[%s795 + $0x4b9] sm:$0xff]
  %v1018 = vld [vmem:[%s795 + $0x4c9] sm:$0xff]
  %v1019 = vld [vmem:[%s795 + $0x4d1] sm:$0xff]
  %v1020 = vld [vmem:[%s795 + $0x511] sm:$0xff]
  %v1021 = vld [vmem:[%s795 + $0x519] sm:$0xff]
  %v1022 = vld [vmem:[%s795 + $0x529] sm:$0xff]
  %v1023 = vld [vmem:[%s795 + $0x531] sm:$0xff]
  %v1024 = vld [vmem:[%s795 + $0x541] sm:$0xff]
  %v1025 = vld [vmem:[%s795 + $0x549] sm:$0xff]
  %v1026 = vld [vmem:[%s795 + $0x559] sm:$0xff]
  %v1027 = vld [vmem:[%s795 + $0x561] sm:$0xff]
  %v1028 = vld [vmem:[%s795 + $0x571] sm:$0xff]
  %v1029 = vld [vmem:[%s795 + $0x579] sm:$0xff]
  %v1030 = vld [vmem:[%s795 + $0x589] sm:$0xff]
  %v1031 = vld [vmem:[%s795 + $0x591] sm:$0xff]
  %v1032 = vld [vmem:[%s795 + $0x5a1] sm:$0xff]
  %v1033 = vld [vmem:[%s795 + $0x5a9] sm:$0xff]
  %v1034 = vld [vmem:[%s795 + $0x5b9] sm:$0xff]
  %v1035 = vld [vmem:[%s795 + $0x5c1] sm:$0xff]
  %v1036 = vld [vmem:[%s795 + $0x5d1] sm:$0xff]
  %v1037 = vld [vmem:[%s795 + $0x5d9] sm:$0xff]
  %v1038 = vld [vmem:[%s795 + $0x5e9] sm:$0xff]
  %v1039 = vld [vmem:[%s795 + $0x5f1] sm:$0xff]
  %v1040 = vld [vmem:[%s795 + $0x601] sm:$0xff]
  %v1041 = vld [vmem:[%s795 + $0x609] sm:$0xff]
  %v1042 = vld [vmem:[%s795 + $0x619] sm:$0xff]
  %v1043 = vld [vmem:[%s795 + $0x621] sm:$0xff]
  %v1044 = vld [vmem:[%s795 + $0x631] sm:$0xff]
  %v1045 = vld [vmem:[%s795 + $0x639] sm:$0xff]
  %v1046 = vld [vmem:[%s795 + $0x649] sm:$0xff]
  %v1047 = vld [vmem:[%s795 + $0x651] sm:$0xff]
  %v1048 = vld [vmem:[%s795 + $0x661] sm:$0xff]
  %v1049 = vld [vmem:[%s795 + $0x669] sm:$0xff]
  %v1050 = vld [vmem:[%s795 + $0x679] sm:$0xff]
  %v1051 = vld [vmem:[%s795 + $0x681] sm:$0xff]
  %v1052 = vld [vmem:[%s795 + $0x2] sm:$0xff]
  %v1053 = vld [vmem:[%s795 + $0xa] sm:$0xff]
  %v1054 = vld [vmem:[%s795 + $0x1a] sm:$0xff]
  %v1055 = vld [vmem:[%s795 + $0x22] sm:$0xff]
  %v1056 = vld [vmem:[%s795 + $0x32] sm:$0xff]
  %v1057 = vld [vmem:[%s795 + $0x3a] sm:$0xff]
  %v1058 = vld [vmem:[%s795 + $0x4a] sm:$0xff]
  %v1059 = vld [vmem:[%s795 + $0x52] sm:$0xff]
  %v1060 = vld [vmem:[%s795 + $0x62] sm:$0xff]
  %v1061 = vld [vmem:[%s795 + $0x6a] sm:$0xff]
  %v1062 = vld [vmem:[%s795 + $0x7a] sm:$0xff]
  %v1063 = vld [vmem:[%s795 + $0x82] sm:$0xff]
  %v1064 = vld [vmem:[%s795 + $0x92] sm:$0xff]
  %v1065 = vld [vmem:[%s795 + $0x9a] sm:$0xff]
  %v1066 = vld [vmem:[%s795 + $0xaa] sm:$0xff]
  %v1067 = vld [vmem:[%s795 + $0xb2] sm:$0xff]
  %v1068 = vld [vmem:[%s795 + $0xc2] sm:$0xff]
  %v1069 = vld [vmem:[%s795 + $0xca] sm:$0xff]
  %v1070 = vld [vmem:[%s795 + $0xda] sm:$0xff]
  %v1071 = vld [vmem:[%s795 + $0xe2] sm:$0xff]
  %v1072 = vld [vmem:[%s795 + $0xf2] sm:$0xff]
  %v1073 = vld [vmem:[%s795 + $0xfa] sm:$0xff]
  %v1074 = vld [vmem:[%s795 + $0x10a] sm:$0xff]
  %v1075 = vld [vmem:[%s795 + $0x112] sm:$0xff]
  %v1076 = vld [vmem:[%s795 + $0x122] sm:$0xff]
  %v1077 = vld [vmem:[%s795 + $0x12a] sm:$0xff]
  %v1078 = vld [vmem:[%s795 + $0x13a] sm:$0xff]
  %v1079 = vld [vmem:[%s795 + $0x142] sm:$0xff]
  %v1080 = vld [vmem:[%s795 + $0x152] sm:$0xff]
  %v1081 = vld [vmem:[%s795 + $0x15a] sm:$0xff]
  %v1082 = vld [vmem:[%s795 + $0x16a] sm:$0xff]
  %v1083 = vld [vmem:[%s795 + $0x172] sm:$0xff]
  %v1084 = vld [vmem:[%s795 + $0x1b2] sm:$0xff]
  %v1085 = vld [vmem:[%s795 + $0x1ba] sm:$0xff]
  %v1086 = vld [vmem:[%s795 + $0x1ca] sm:$0xff]
  %v1087 = vld [vmem:[%s795 + $0x1d2] sm:$0xff]
  %v1088 = vld [vmem:[%s795 + $0x1e2] sm:$0xff]
  %v1089 = vld [vmem:[%s795 + $0x1ea] sm:$0xff]
  %v1090 = vld [vmem:[%s795 + $0x1fa] sm:$0xff]
  %v1091 = vld [vmem:[%s795 + $0x202] sm:$0xff]
  %v1092 = vld [vmem:[%s795 + $0x212] sm:$0xff]
  %v1093 = vld [vmem:[%s795 + $0x21a] sm:$0xff]
  %v1094 = vld [vmem:[%s795 + $0x22a] sm:$0xff]
  %v1095 = vld [vmem:[%s795 + $0x232] sm:$0xff]
  %v1096 = vld [vmem:[%s795 + $0x242] sm:$0xff]
  %v1097 = vld [vmem:[%s795 + $0x24a] sm:$0xff]
  %v1098 = vld [vmem:[%s795 + $0x25a] sm:$0xff]
  %v1099 = vld [vmem:[%s795 + $0x262] sm:$0xff]
  %v1100 = vld [vmem:[%s795 + $0x272] sm:$0xff]
  %v1101 = vld [vmem:[%s795 + $0x27a] sm:$0xff]
  %v1102 = vld [vmem:[%s795 + $0x28a] sm:$0xff]
  %v1103 = vld [vmem:[%s795 + $0x292] sm:$0xff]
  %v1104 = vld [vmem:[%s795 + $0x2a2] sm:$0xff]
  %v1105 = vld [vmem:[%s795 + $0x2aa] sm:$0xff]
  %v1106 = vld [vmem:[%s795 + $0x2ba] sm:$0xff]
  %v1107 = vld [vmem:[%s795 + $0x2c2] sm:$0xff]
  %v1108 = vld [vmem:[%s795 + $0x2d2] sm:$0xff]
  %v1109 = vld [vmem:[%s795 + $0x2da] sm:$0xff]
  %v1110 = vld [vmem:[%s795 + $0x2ea] sm:$0xff]
  %v1111 = vld [vmem:[%s795 + $0x2f2] sm:$0xff]
  %v1112 = vld [vmem:[%s795 + $0x302] sm:$0xff]
  %v1113 = vld [vmem:[%s795 + $0x30a] sm:$0xff]
  %v1114 = vld [vmem:[%s795 + $0x31a] sm:$0xff]
  %v1115 = vld [vmem:[%s795 + $0x322] sm:$0xff]
  %v1116 = vld [vmem:[%s795 + $0x362] sm:$0xff]
  %v1117 = vld [vmem:[%s795 + $0x36a] sm:$0xff]
  %v1118 = vld [vmem:[%s795 + $0x37a] sm:$0xff]
  %v1119 = vld [vmem:[%s795 + $0x382] sm:$0xff]
  %v1120 = vld [vmem:[%s795 + $0x392] sm:$0xff]
  %v1121 = vld [vmem:[%s795 + $0x39a] sm:$0xff]
  %v1122 = vld [vmem:[%s795 + $0x3aa] sm:$0xff]
  %v1123 = vld [vmem:[%s795 + $0x3b2] sm:$0xff]
  %v1124 = vld [vmem:[%s795 + $0x3c2] sm:$0xff]
  %v1125 = vld [vmem:[%s795 + $0x3ca] sm:$0xff]
  %v1126 = vld [vmem:[%s795 + $0x3da] sm:$0xff]
  %v1127 = vld [vmem:[%s795 + $0x3e2] sm:$0xff]
  %v1128 = vld [vmem:[%s795 + $0x3f2] sm:$0xff]
  %v1129 = vld [vmem:[%s795 + $0x3fa] sm:$0xff]
  %v1130 = vld [vmem:[%s795 + $0x40a] sm:$0xff]
  %v1131 = vld [vmem:[%s795 + $0x412] sm:$0xff]
  %v1132 = vld [vmem:[%s795 + $0x422] sm:$0xff]
  %v1133 = vld [vmem:[%s795 + $0x42a] sm:$0xff]
  %v1134 = vld [vmem:[%s795 + $0x43a] sm:$0xff]
  %v1135 = vld [vmem:[%s795 + $0x442] sm:$0xff]
  %v1136 = vld [vmem:[%s795 + $0x452] sm:$0xff]
  %v1137 = vld [vmem:[%s795 + $0x45a] sm:$0xff]
  %v1138 = vld [vmem:[%s795 + $0x46a] sm:$0xff]
  %v1139 = vld [vmem:[%s795 + $0x472] sm:$0xff]
  %v1140 = vld [vmem:[%s795 + $0x482] sm:$0xff]
  %v1141 = vld [vmem:[%s795 + $0x48a] sm:$0xff]
  %v1142 = vld [vmem:[%s795 + $0x49a] sm:$0xff]
  %v1143 = vld [vmem:[%s795 + $0x4a2] sm:$0xff]
  %v1144 = vld [vmem:[%s795 + $0x4b2] sm:$0xff]
  %v1145 = vld [vmem:[%s795 + $0x4ba] sm:$0xff]
  %v1146 = vld [vmem:[%s795 + $0x4ca] sm:$0xff]
  %v1147 = vld [vmem:[%s795 + $0x4d2] sm:$0xff]
  %v1148 = vld [vmem:[%s795 + $0x512] sm:$0xff]
  %v1149 = vld [vmem:[%s795 + $0x51a] sm:$0xff]
  %v1150 = vld [vmem:[%s795 + $0x52a] sm:$0xff]
  %v1151 = vld [vmem:[%s795 + $0x532] sm:$0xff]
  %v1152 = vld [vmem:[%s795 + $0x542] sm:$0xff]
  %v1153 = vld [vmem:[%s795 + $0x54a] sm:$0xff]
  %v1154 = vld [vmem:[%s795 + $0x55a] sm:$0xff]
  %v1155 = vld [vmem:[%s795 + $0x562] sm:$0xff]
  %v1156 = vld [vmem:[%s795 + $0x572] sm:$0xff]
  %v1157 = vld [vmem:[%s795 + $0x57a] sm:$0xff]
  %v1158 = vld [vmem:[%s795 + $0x58a] sm:$0xff]
  %v1159 = vld [vmem:[%s795 + $0x592] sm:$0xff]
  %v1160 = vld [vmem:[%s795 + $0x5a2] sm:$0xff]
  %v1161 = vld [vmem:[%s795 + $0x5aa] sm:$0xff]
  %v1162 = vld [vmem:[%s795 + $0x5ba] sm:$0xff]
  %v1163 = vld [vmem:[%s795 + $0x5c2] sm:$0xff]
  %v1164 = vld [vmem:[%s795 + $0x5d2] sm:$0xff]
  %v1165 = vld [vmem:[%s795 + $0x5da] sm:$0xff]
  %v1166 = vld [vmem:[%s795 + $0x5ea] sm:$0xff]
  %v1167 = vld [vmem:[%s795 + $0x5f2] sm:$0xff]
  %v1168 = vld [vmem:[%s795 + $0x602] sm:$0xff]
  %v1169 = vld [vmem:[%s795 + $0x60a] sm:$0xff]
  %v1170 = vld [vmem:[%s795 + $0x61a] sm:$0xff]
  %v1171 = vld [vmem:[%s795 + $0x622] sm:$0xff]
  %v1172 = vld [vmem:[%s795 + $0x632] sm:$0xff]
  %v1173 = vld [vmem:[%s795 + $0x63a] sm:$0xff]
  %v1174 = vld [vmem:[%s795 + $0x64a] sm:$0xff]
  %v1175 = vld [vmem:[%s795 + $0x652] sm:$0xff]
  %v1176 = vld [vmem:[%s795 + $0x662] sm:$0xff]
  %v1177 = vld [vmem:[%s795 + $0x66a] sm:$0xff]
  %v1178 = vld [vmem:[%s795 + $0x67a] sm:$0xff]
  %v1179 = vld [vmem:[%s795 + $0x682] sm:$0xff]
  %1308 = vrot.lane.b32.xlu0 %v154, 4
  %v1309 = vpop.permute.xlu0 %1308
  %1310 = vrot.lane.b32.xlu0 %v155, 4
  %v1311 = vpop.permute.xlu0 %1310
  %1312 = vrot.lane.b32.xlu0 %v156, 4
  %v1313 = vpop.permute.xlu0 %1312
  %1314 = vrot.lane.b32.xlu0 %v157, 4
  %v1315 = vpop.permute.xlu0 %1314
  %1316 = vrot.lane.b32.xlu0 %v158, 4
  %v1317 = vpop.permute.xlu0 %1316
  %1318 = vrot.lane.b32.xlu0 %v159, 4
  %v1319 = vpop.permute.xlu0 %1318
  %1320 = vrot.lane.b32.xlu0 %v160, 4
  %v1321 = vpop.permute.xlu0 %1320
  %1322 = vrot.lane.b32.xlu0 %v161, 4
  %v1323 = vpop.permute.xlu0 %1322
  %1324 = vrot.lane.b32.xlu0 %v162, 4
  %v1325 = vpop.permute.xlu0 %1324
  %1326 = vrot.lane.b32.xlu0 %v163, 4
  %v1327 = vpop.permute.xlu0 %1326
  %1328 = vrot.lane.b32.xlu0 %v164, 4
  %v1329 = vpop.permute.xlu0 %1328
  %1330 = vrot.lane.b32.xlu0 %v165, 4
  %v1331 = vpop.permute.xlu0 %1330
  %1332 = vrot.lane.b32.xlu0 %v166, 4
  %v1333 = vpop.permute.xlu0 %1332
  %1334 = vrot.lane.b32.xlu0 %v167, 4
  %v1335 = vpop.permute.xlu0 %1334
  %1336 = vrot.lane.b32.xlu0 %v168, 4
  %v1337 = vpop.permute.xlu0 %1336
  %1338 = vrot.lane.b32.xlu0 %v169, 4
  %v1339 = vpop.permute.xlu0 %1338
  %1340 = vrot.lane.b32.xlu0 %v170, 4
  %v1341 = vpop.permute.xlu0 %1340
  %1342 = vrot.lane.b32.xlu0 %v171, 4
  %v1343 = vpop.permute.xlu0 %1342
  %1344 = vrot.lane.b32.xlu0 %v172, 4
  %v1345 = vpop.permute.xlu0 %1344
  %1346 = vrot.lane.b32.xlu0 %v173, 4
  %v1347 = vpop.permute.xlu0 %1346
  %1348 = vrot.lane.b32.xlu0 %v174, 4
  %v1349 = vpop.permute.xlu0 %1348
  %1350 = vrot.lane.b32.xlu0 %v175, 4
  %v1351 = vpop.permute.xlu0 %1350
  %1352 = vrot.lane.b32.xlu0 %v176, 4
  %v1353 = vpop.permute.xlu0 %1352
  %1354 = vrot.lane.b32.xlu0 %v177, 4
  %v1355 = vpop.permute.xlu0 %1354
  %1356 = vrot.lane.b32.xlu0 %v178, 4
  %v1357 = vpop.permute.xlu0 %1356
  %1358 = vrot.lane.b32.xlu0 %v179, 4
  %v1359 = vpop.permute.xlu0 %1358
  %1360 = vrot.lane.b32.xlu0 %v180, 4
  %v1361 = vpop.permute.xlu0 %1360
  %1362 = vrot.lane.b32.xlu0 %v181, 4
  %v1363 = vpop.permute.xlu0 %1362
  %1364 = vrot.lane.b32.xlu0 %v182, 4
  %v1365 = vpop.permute.xlu0 %1364
  %1366 = vrot.lane.b32.xlu0 %v183, 4
  %v1367 = vpop.permute.xlu0 %1366
  %1368 = vrot.lane.b32.xlu0 %v184, 4
  %v1369 = vpop.permute.xlu0 %1368
  %1370 = vrot.lane.b32.xlu0 %v185, 4
  %v1371 = vpop.permute.xlu0 %1370
  %1372 = vrot.lane.b32.xlu0 %v186, 4
  %v1373 = vpop.permute.xlu0 %1372
  %1374 = vrot.lane.b32.xlu0 %v187, 4
  %v1375 = vpop.permute.xlu0 %1374
  %1376 = vrot.lane.b32.xlu0 %v188, 4
  %v1377 = vpop.permute.xlu0 %1376
  %1378 = vrot.lane.b32.xlu0 %v189, 4
  %v1379 = vpop.permute.xlu0 %1378
  %1380 = vrot.lane.b32.xlu0 %v190, 4
  %v1381 = vpop.permute.xlu0 %1380
  %1382 = vrot.lane.b32.xlu0 %v191, 4
  %v1383 = vpop.permute.xlu0 %1382
  %1384 = vrot.lane.b32.xlu0 %v192, 4
  %v1385 = vpop.permute.xlu0 %1384
  %1386 = vrot.lane.b32.xlu0 %v193, 4
  %v1387 = vpop.permute.xlu0 %1386
  %1388 = vrot.lane.b32.xlu0 %v194, 4
  %v1389 = vpop.permute.xlu0 %1388
  %1390 = vrot.lane.b32.xlu0 %v195, 4
  %v1391 = vpop.permute.xlu0 %1390
  %1392 = vrot.lane.b32.xlu0 %v196, 4
  %v1393 = vpop.permute.xlu0 %1392
  %1394 = vrot.lane.b32.xlu0 %v197, 4
  %v1395 = vpop.permute.xlu0 %1394
  %1396 = vrot.lane.b32.xlu0 %v198, 4
  %v1397 = vpop.permute.xlu0 %1396
  %1398 = vrot.lane.b32.xlu0 %v199, 4
  %v1399 = vpop.permute.xlu0 %1398
  %1400 = vrot.lane.b32.xlu0 %v200, 4
  %v1401 = vpop.permute.xlu0 %1400
  %1402 = vrot.lane.b32.xlu0 %v201, 4
  %v1403 = vpop.permute.xlu0 %1402
  %1404 = vrot.lane.b32.xlu0 %v202, 4
  %v1405 = vpop.permute.xlu0 %1404
  %1406 = vrot.lane.b32.xlu0 %v203, 4
  %v1407 = vpop.permute.xlu0 %1406
  %1408 = vrot.lane.b32.xlu0 %v204, 4
  %v1409 = vpop.permute.xlu0 %1408
  %1410 = vrot.lane.b32.xlu0 %v205, 4
  %v1411 = vpop.permute.xlu0 %1410
  %1412 = vrot.lane.b32.xlu0 %v206, 4
  %v1413 = vpop.permute.xlu0 %1412
  %1414 = vrot.lane.b32.xlu0 %v207, 4
  %v1415 = vpop.permute.xlu0 %1414
  %1416 = vrot.lane.b32.xlu0 %v208, 4
  %v1417 = vpop.permute.xlu0 %1416
  %1418 = vrot.lane.b32.xlu0 %v209, 4
  %v1419 = vpop.permute.xlu0 %1418
  %1420 = vrot.lane.b32.xlu0 %v210, 4
  %v1421 = vpop.permute.xlu0 %1420
  %1422 = vrot.lane.b32.xlu0 %v211, 4
  %v1423 = vpop.permute.xlu0 %1422
  %1424 = vrot.lane.b32.xlu0 %v212, 4
  %v1425 = vpop.permute.xlu0 %1424
  %1426 = vrot.lane.b32.xlu0 %v213, 4
  %v1427 = vpop.permute.xlu0 %1426
  %1428 = vrot.lane.b32.xlu0 %v214, 4
  %v1429 = vpop.permute.xlu0 %1428
  %1430 = vrot.lane.b32.xlu0 %v215, 4
  %v1431 = vpop.permute.xlu0 %1430
  %1432 = vrot.lane.b32.xlu0 %v216, 4
  %v1433 = vpop.permute.xlu0 %1432
  %1434 = vrot.lane.b32.xlu0 %v217, 4
  %v1435 = vpop.permute.xlu0 %1434
  %1436 = vrot.lane.b32.xlu0 %v218, 4
  %v1437 = vpop.permute.xlu0 %1436
  %1438 = vrot.lane.b32.xlu0 %v219, 4
  %v1439 = vpop.permute.xlu0 %1438
  %1440 = vrot.lane.b32.xlu0 %v220, 4
  %v1441 = vpop.permute.xlu0 %1440
  %1442 = vrot.lane.b32.xlu0 %v221, 4
  %v1443 = vpop.permute.xlu0 %1442
  %1444 = vrot.lane.b32.xlu0 %v222, 4
  %v1445 = vpop.permute.xlu0 %1444
  %1446 = vrot.lane.b32.xlu0 %v223, 4
  %v1447 = vpop.permute.xlu0 %1446
  %1448 = vrot.lane.b32.xlu0 %v224, 4
  %v1449 = vpop.permute.xlu0 %1448
  %1450 = vrot.lane.b32.xlu0 %v225, 4
  %v1451 = vpop.permute.xlu0 %1450
  %1452 = vrot.lane.b32.xlu0 %v226, 4
  %v1453 = vpop.permute.xlu0 %1452
  %1454 = vrot.lane.b32.xlu0 %v227, 4
  %v1455 = vpop.permute.xlu0 %1454
  %1456 = vrot.lane.b32.xlu0 %v228, 4
  %v1457 = vpop.permute.xlu0 %1456
  %1458 = vrot.lane.b32.xlu0 %v229, 4
  %v1459 = vpop.permute.xlu0 %1458
  %1460 = vrot.lane.b32.xlu0 %v230, 4
  %v1461 = vpop.permute.xlu0 %1460
  %1462 = vrot.lane.b32.xlu0 %v231, 4
  %v1463 = vpop.permute.xlu0 %1462
  %1464 = vrot.lane.b32.xlu0 %v232, 4
  %v1465 = vpop.permute.xlu0 %1464
  %1466 = vrot.lane.b32.xlu0 %v233, 4
  %v1467 = vpop.permute.xlu0 %1466
  %1468 = vrot.lane.b32.xlu0 %v234, 4
  %v1469 = vpop.permute.xlu0 %1468
  %1470 = vrot.lane.b32.xlu0 %v235, 4
  %v1471 = vpop.permute.xlu0 %1470
  %1472 = vrot.lane.b32.xlu0 %v236, 4
  %v1473 = vpop.permute.xlu0 %1472
  %1474 = vrot.lane.b32.xlu0 %v237, 4
  %v1475 = vpop.permute.xlu0 %1474
  %1476 = vrot.lane.b32.xlu0 %v238, 4
  %v1477 = vpop.permute.xlu0 %1476
  %1478 = vrot.lane.b32.xlu0 %v239, 4
  %v1479 = vpop.permute.xlu0 %1478
  %1480 = vrot.lane.b32.xlu0 %v240, 4
  %v1481 = vpop.permute.xlu0 %1480
  %1482 = vrot.lane.b32.xlu0 %v241, 4
  %v1483 = vpop.permute.xlu0 %1482
  %1484 = vrot.lane.b32.xlu0 %v242, 4
  %v1485 = vpop.permute.xlu0 %1484
  %1486 = vrot.lane.b32.xlu0 %v243, 4
  %v1487 = vpop.permute.xlu0 %1486
  %1488 = vrot.lane.b32.xlu0 %v244, 4
  %v1489 = vpop.permute.xlu0 %1488
  %1490 = vrot.lane.b32.xlu0 %v245, 4
  %v1491 = vpop.permute.xlu0 %1490
  %1492 = vrot.lane.b32.xlu0 %v246, 4
  %v1493 = vpop.permute.xlu0 %1492
  %1494 = vrot.lane.b32.xlu0 %v247, 4
  %v1495 = vpop.permute.xlu0 %1494
  %1496 = vrot.lane.b32.xlu0 %v248, 4
  %v1497 = vpop.permute.xlu0 %1496
  %1498 = vrot.lane.b32.xlu0 %v249, 4
  %v1499 = vpop.permute.xlu0 %1498
  %1500 = vrot.lane.b32.xlu0 %v250, 4
  %v1501 = vpop.permute.xlu0 %1500
  %1502 = vrot.lane.b32.xlu0 %v251, 4
  %v1503 = vpop.permute.xlu0 %1502
  %1504 = vrot.lane.b32.xlu0 %v252, 4
  %v1505 = vpop.permute.xlu0 %1504
  %1506 = vrot.lane.b32.xlu0 %v253, 4
  %v1507 = vpop.permute.xlu0 %1506
  %1508 = vrot.lane.b32.xlu0 %v254, 4
  %v1509 = vpop.permute.xlu0 %1508
  %1510 = vrot.lane.b32.xlu0 %v255, 4
  %v1511 = vpop.permute.xlu0 %1510
  %1512 = vrot.lane.b32.xlu0 %v256, 4
  %v1513 = vpop.permute.xlu0 %1512
  %1514 = vrot.lane.b32.xlu0 %v257, 4
  %v1515 = vpop.permute.xlu0 %1514
  %1516 = vrot.lane.b32.xlu0 %v258, 4
  %v1517 = vpop.permute.xlu0 %1516
  %1518 = vrot.lane.b32.xlu0 %v259, 4
  %v1519 = vpop.permute.xlu0 %1518
  %1520 = vrot.lane.b32.xlu0 %v260, 4
  %v1521 = vpop.permute.xlu0 %1520
  %1522 = vrot.lane.b32.xlu0 %v261, 4
  %v1523 = vpop.permute.xlu0 %1522
  %1524 = vrot.lane.b32.xlu0 %v262, 4
  %v1525 = vpop.permute.xlu0 %1524
  %1526 = vrot.lane.b32.xlu0 %v263, 4
  %v1527 = vpop.permute.xlu0 %1526
  %1528 = vrot.lane.b32.xlu0 %v264, 4
  %v1529 = vpop.permute.xlu0 %1528
  %1530 = vrot.lane.b32.xlu0 %v265, 4
  %v1531 = vpop.permute.xlu0 %1530
  %1532 = vrot.lane.b32.xlu0 %v266, 4
  %v1533 = vpop.permute.xlu0 %1532
  %1534 = vrot.lane.b32.xlu0 %v267, 4
  %v1535 = vpop.permute.xlu0 %1534
  %1536 = vrot.lane.b32.xlu0 %v268, 4
  %v1537 = vpop.permute.xlu0 %1536
  %1538 = vrot.lane.b32.xlu0 %v269, 4
  %v1539 = vpop.permute.xlu0 %1538
  %1540 = vrot.lane.b32.xlu0 %v270, 4
  %v1541 = vpop.permute.xlu0 %1540
  %1542 = vrot.lane.b32.xlu0 %v271, 4
  %v1543 = vpop.permute.xlu0 %1542
  %1544 = vrot.lane.b32.xlu0 %v272, 4
  %v1545 = vpop.permute.xlu0 %1544
  %1546 = vrot.lane.b32.xlu0 %v273, 4
  %v1547 = vpop.permute.xlu0 %1546
  %1548 = vrot.lane.b32.xlu0 %v274, 4
  %v1549 = vpop.permute.xlu0 %1548
  %1550 = vrot.lane.b32.xlu0 %v275, 4
  %v1551 = vpop.permute.xlu0 %1550
  %1552 = vrot.lane.b32.xlu0 %v276, 4
  %v1553 = vpop.permute.xlu0 %1552
  %1554 = vrot.lane.b32.xlu0 %v277, 4
  %v1555 = vpop.permute.xlu0 %1554
  %1556 = vrot.lane.b32.xlu0 %v278, 4
  %v1557 = vpop.permute.xlu0 %1556
  %1558 = vrot.lane.b32.xlu0 %v279, 4
  %v1559 = vpop.permute.xlu0 %1558
  %1560 = vrot.lane.b32.xlu0 %v280, 4
  %v1561 = vpop.permute.xlu0 %1560
  %1562 = vrot.lane.b32.xlu0 %v281, 4
  %v1563 = vpop.permute.xlu0 %1562
  %1820 = vrot.lane.b32.xlu0 %v282, 8
  %v1821 = vpop.permute.xlu0 %1820
  %1822 = vrot.lane.b32.xlu0 %v283, 8
  %v1823 = vpop.permute.xlu0 %1822
  %1824 = vrot.lane.b32.xlu0 %v284, 8
  %v1825 = vpop.permute.xlu0 %1824
  %1826 = vrot.lane.b32.xlu0 %v285, 8
  %v1827 = vpop.permute.xlu0 %1826
  %1828 = vrot.lane.b32.xlu0 %v286, 8
  %v1829 = vpop.permute.xlu0 %1828
  %1830 = vrot.lane.b32.xlu0 %v287, 8
  %v1831 = vpop.permute.xlu0 %1830
  %1832 = vrot.lane.b32.xlu0 %v288, 8
  %v1833 = vpop.permute.xlu0 %1832
  %1834 = vrot.lane.b32.xlu0 %v289, 8
  %v1835 = vpop.permute.xlu0 %1834
  %1836 = vrot.lane.b32.xlu0 %v290, 8
  %v1837 = vpop.permute.xlu0 %1836
  %1838 = vrot.lane.b32.xlu0 %v291, 8
  %v1839 = vpop.permute.xlu0 %1838
  %1840 = vrot.lane.b32.xlu0 %v292, 8
  %v1841 = vpop.permute.xlu0 %1840
  %1842 = vrot.lane.b32.xlu0 %v293, 8
  %v1843 = vpop.permute.xlu0 %1842
  %1844 = vrot.lane.b32.xlu0 %v294, 8
  %v1845 = vpop.permute.xlu0 %1844
  %1846 = vrot.lane.b32.xlu0 %v295, 8
  %v1847 = vpop.permute.xlu0 %1846
  %1848 = vrot.lane.b32.xlu0 %v296, 8
  %v1849 = vpop.permute.xlu0 %1848
  %1850 = vrot.lane.b32.xlu0 %v297, 8
  %v1851 = vpop.permute.xlu0 %1850
  %1852 = vrot.lane.b32.xlu0 %v298, 8
  %v1853 = vpop.permute.xlu0 %1852
  %1854 = vrot.lane.b32.xlu0 %v299, 8
  %v1855 = vpop.permute.xlu0 %1854
  %1856 = vrot.lane.b32.xlu0 %v300, 8
  %v1857 = vpop.permute.xlu0 %1856
  %1858 = vrot.lane.b32.xlu0 %v301, 8
  %v1859 = vpop.permute.xlu0 %1858
  %1860 = vrot.lane.b32.xlu0 %v302, 8
  %v1861 = vpop.permute.xlu0 %1860
  %1862 = vrot.lane.b32.xlu0 %v303, 8
  %v1863 = vpop.permute.xlu0 %1862
  %1864 = vrot.lane.b32.xlu0 %v304, 8
  %v1865 = vpop.permute.xlu0 %1864
  %1866 = vrot.lane.b32.xlu0 %v305, 8
  %v1867 = vpop.permute.xlu0 %1866
  %1868 = vrot.lane.b32.xlu0 %v306, 8
  %v1869 = vpop.permute.xlu0 %1868
  %1870 = vrot.lane.b32.xlu0 %v307, 8
  %v1871 = vpop.permute.xlu0 %1870
  %1872 = vrot.lane.b32.xlu0 %v308, 8
  %v1873 = vpop.permute.xlu0 %1872
  %1874 = vrot.lane.b32.xlu0 %v309, 8
  %v1875 = vpop.permute.xlu0 %1874
  %1876 = vrot.lane.b32.xlu0 %v310, 8
  %v1877 = vpop.permute.xlu0 %1876
  %1878 = vrot.lane.b32.xlu0 %v311, 8
  %v1879 = vpop.permute.xlu0 %1878
  %1880 = vrot.lane.b32.xlu0 %v312, 8
  %v1881 = vpop.permute.xlu0 %1880
  %1882 = vrot.lane.b32.xlu0 %v313, 8
  %v1883 = vpop.permute.xlu0 %1882
  %1884 = vrot.lane.b32.xlu0 %v314, 8
  %v1885 = vpop.permute.xlu0 %1884
  %1886 = vrot.lane.b32.xlu0 %v315, 8
  %v1887 = vpop.permute.xlu0 %1886
  %1888 = vrot.lane.b32.xlu0 %v316, 8
  %v1889 = vpop.permute.xlu0 %1888
  %1890 = vrot.lane.b32.xlu0 %v317, 8
  %v1891 = vpop.permute.xlu0 %1890
  %1892 = vrot.lane.b32.xlu0 %v318, 8
  %v1893 = vpop.permute.xlu0 %1892
  %1894 = vrot.lane.b32.xlu0 %v319, 8
  %v1895 = vpop.permute.xlu0 %1894
  %1896 = vrot.lane.b32.xlu0 %v320, 8
  %v1897 = vpop.permute.xlu0 %1896
  %1898 = vrot.lane.b32.xlu0 %v321, 8
  %v1899 = vpop.permute.xlu0 %1898
  %1900 = vrot.lane.b32.xlu0 %v322, 8
  %v1901 = vpop.permute.xlu0 %1900
  %1902 = vrot.lane.b32.xlu0 %v323, 8
  %v1903 = vpop.permute.xlu0 %1902
  %1904 = vrot.lane.b32.xlu0 %v324, 8
  %v1905 = vpop.permute.xlu0 %1904
  %1906 = vrot.lane.b32.xlu0 %v325, 8
  %v1907 = vpop.permute.xlu0 %1906
  %1908 = vrot.lane.b32.xlu0 %v326, 8
  %v1909 = vpop.permute.xlu0 %1908
  %1910 = vrot.lane.b32.xlu0 %v327, 8
  %v1911 = vpop.permute.xlu0 %1910
  %1912 = vrot.lane.b32.xlu0 %v328, 8
  %v1913 = vpop.permute.xlu0 %1912
  %1914 = vrot.lane.b32.xlu0 %v329, 8
  %v1915 = vpop.permute.xlu0 %1914
  %1916 = vrot.lane.b32.xlu0 %v330, 8
  %v1917 = vpop.permute.xlu0 %1916
  %1918 = vrot.lane.b32.xlu0 %v331, 8
  %v1919 = vpop.permute.xlu0 %1918
  %1920 = vrot.lane.b32.xlu0 %v332, 8
  %v1921 = vpop.permute.xlu0 %1920
  %1922 = vrot.lane.b32.xlu0 %v333, 8
  %v1923 = vpop.permute.xlu0 %1922
  %1924 = vrot.lane.b32.xlu0 %v334, 8
  %v1925 = vpop.permute.xlu0 %1924
  %1926 = vrot.lane.b32.xlu0 %v335, 8
  %v1927 = vpop.permute.xlu0 %1926
  %1928 = vrot.lane.b32.xlu0 %v336, 8
  %v1929 = vpop.permute.xlu0 %1928
  %1930 = vrot.lane.b32.xlu0 %v337, 8
  %v1931 = vpop.permute.xlu0 %1930
  %1932 = vrot.lane.b32.xlu0 %v338, 8
  %v1933 = vpop.permute.xlu0 %1932
  %1934 = vrot.lane.b32.xlu0 %v339, 8
  %v1935 = vpop.permute.xlu0 %1934
  %1936 = vrot.lane.b32.xlu0 %v340, 8
  %v1937 = vpop.permute.xlu0 %1936
  %1938 = vrot.lane.b32.xlu0 %v341, 8
  %v1939 = vpop.permute.xlu0 %1938
  %1940 = vrot.lane.b32.xlu0 %v342, 8
  %v1941 = vpop.permute.xlu0 %1940
  %1942 = vrot.lane.b32.xlu0 %v343, 8
  %v1943 = vpop.permute.xlu0 %1942
  %1944 = vrot.lane.b32.xlu0 %v344, 8
  %v1945 = vpop.permute.xlu0 %1944
  %1946 = vrot.lane.b32.xlu0 %v345, 8
  %v1947 = vpop.permute.xlu0 %1946
  %1948 = vrot.lane.b32.xlu0 %v346, 8
  %v1949 = vpop.permute.xlu0 %1948
  %1950 = vrot.lane.b32.xlu0 %v347, 8
  %v1951 = vpop.permute.xlu0 %1950
  %1952 = vrot.lane.b32.xlu0 %v348, 8
  %v1953 = vpop.permute.xlu0 %1952
  %1954 = vrot.lane.b32.xlu0 %v349, 8
  %v1955 = vpop.permute.xlu0 %1954
  %1956 = vrot.lane.b32.xlu0 %v350, 8
  %v1957 = vpop.permute.xlu0 %1956
  %1958 = vrot.lane.b32.xlu0 %v351, 8
  %v1959 = vpop.permute.xlu0 %1958
  %1960 = vrot.lane.b32.xlu0 %v352, 8
  %v1961 = vpop.permute.xlu0 %1960
  %1962 = vrot.lane.b32.xlu0 %v353, 8
  %v1963 = vpop.permute.xlu0 %1962
  %1964 = vrot.lane.b32.xlu0 %v354, 8
  %v1965 = vpop.permute.xlu0 %1964
  %1966 = vrot.lane.b32.xlu0 %v355, 8
  %v1967 = vpop.permute.xlu0 %1966
  %1968 = vrot.lane.b32.xlu0 %v356, 8
  %v1969 = vpop.permute.xlu0 %1968
  %1970 = vrot.lane.b32.xlu0 %v357, 8
  %v1971 = vpop.permute.xlu0 %1970
  %1972 = vrot.lane.b32.xlu0 %v358, 8
  %v1973 = vpop.permute.xlu0 %1972
  %1974 = vrot.lane.b32.xlu0 %v359, 8
  %v1975 = vpop.permute.xlu0 %1974
  %1976 = vrot.lane.b32.xlu0 %v360, 8
  %v1977 = vpop.permute.xlu0 %1976
  %1978 = vrot.lane.b32.xlu0 %v361, 8
  %v1979 = vpop.permute.xlu0 %1978
  %1980 = vrot.lane.b32.xlu0 %v362, 8
  %v1981 = vpop.permute.xlu0 %1980
  %1982 = vrot.lane.b32.xlu0 %v363, 8
  %v1983 = vpop.permute.xlu0 %1982
  %1984 = vrot.lane.b32.xlu0 %v364, 8
  %v1985 = vpop.permute.xlu0 %1984
  %1986 = vrot.lane.b32.xlu0 %v365, 8
  %v1987 = vpop.permute.xlu0 %1986
  %1988 = vrot.lane.b32.xlu0 %v366, 8
  %v1989 = vpop.permute.xlu0 %1988
  %1990 = vrot.lane.b32.xlu0 %v367, 8
  %v1991 = vpop.permute.xlu0 %1990
  %1992 = vrot.lane.b32.xlu0 %v368, 8
  %v1993 = vpop.permute.xlu0 %1992
  %1994 = vrot.lane.b32.xlu0 %v369, 8
  %v1995 = vpop.permute.xlu0 %1994
  %1996 = vrot.lane.b32.xlu0 %v370, 8
  %v1997 = vpop.permute.xlu0 %1996
  %1998 = vrot.lane.b32.xlu0 %v371, 8
  %v1999 = vpop.permute.xlu0 %1998
  %2000 = vrot.lane.b32.xlu0 %v372, 8
  %v2001 = vpop.permute.xlu0 %2000
  %2002 = vrot.lane.b32.xlu0 %v373, 8
  %v2003 = vpop.permute.xlu0 %2002
  %2004 = vrot.lane.b32.xlu0 %v374, 8
  %v2005 = vpop.permute.xlu0 %2004
  %2006 = vrot.lane.b32.xlu0 %v375, 8
  %v2007 = vpop.permute.xlu0 %2006
  %2008 = vrot.lane.b32.xlu0 %v376, 8
  %v2009 = vpop.permute.xlu0 %2008
  %2010 = vrot.lane.b32.xlu0 %v377, 8
  %v2011 = vpop.permute.xlu0 %2010
  %2012 = vrot.lane.b32.xlu0 %v378, 8
  %v2013 = vpop.permute.xlu0 %2012
  %2014 = vrot.lane.b32.xlu0 %v379, 8
  %v2015 = vpop.permute.xlu0 %2014
  %2016 = vrot.lane.b32.xlu0 %v380, 8
  %v2017 = vpop.permute.xlu0 %2016
  %2018 = vrot.lane.b32.xlu0 %v381, 8
  %v2019 = vpop.permute.xlu0 %2018
  %2020 = vrot.lane.b32.xlu0 %v382, 8
  %v2021 = vpop.permute.xlu0 %2020
  %2022 = vrot.lane.b32.xlu0 %v383, 8
  %v2023 = vpop.permute.xlu0 %2022
  %2024 = vrot.lane.b32.xlu0 %v384, 8
  %v2025 = vpop.permute.xlu0 %2024
  %2026 = vrot.lane.b32.xlu0 %v385, 8
  %v2027 = vpop.permute.xlu0 %2026
  %2028 = vrot.lane.b32.xlu0 %v386, 8
  %v2029 = vpop.permute.xlu0 %2028
  %2030 = vrot.lane.b32.xlu0 %v387, 8
  %v2031 = vpop.permute.xlu0 %2030
  %2032 = vrot.lane.b32.xlu0 %v388, 8
  %v2033 = vpop.permute.xlu0 %2032
  %2034 = vrot.lane.b32.xlu0 %v389, 8
  %v2035 = vpop.permute.xlu0 %2034
  %2036 = vrot.lane.b32.xlu0 %v390, 8
  %v2037 = vpop.permute.xlu0 %2036
  %2038 = vrot.lane.b32.xlu0 %v391, 8
  %v2039 = vpop.permute.xlu0 %2038
  %2040 = vrot.lane.b32.xlu0 %v392, 8
  %v2041 = vpop.permute.xlu0 %2040
  %2042 = vrot.lane.b32.xlu0 %v393, 8
  %v2043 = vpop.permute.xlu0 %2042
  %2044 = vrot.lane.b32.xlu0 %v394, 8
  %v2045 = vpop.permute.xlu0 %2044
  %2046 = vrot.lane.b32.xlu0 %v395, 8
  %v2047 = vpop.permute.xlu0 %2046
  %2048 = vrot.lane.b32.xlu0 %v396, 8
  %v2049 = vpop.permute.xlu0 %2048
  %2050 = vrot.lane.b32.xlu0 %v397, 8
  %v2051 = vpop.permute.xlu0 %2050
  %2052 = vrot.lane.b32.xlu0 %v398, 8
  %v2053 = vpop.permute.xlu0 %2052
  %2054 = vrot.lane.b32.xlu0 %v399, 8
  %v2055 = vpop.permute.xlu0 %2054
  %2056 = vrot.lane.b32.xlu0 %v400, 8
  %v2057 = vpop.permute.xlu0 %2056
  %2058 = vrot.lane.b32.xlu0 %v401, 8
  %v2059 = vpop.permute.xlu0 %2058
  %2060 = vrot.lane.b32.xlu0 %v402, 8
  %v2061 = vpop.permute.xlu0 %2060
  %2062 = vrot.lane.b32.xlu0 %v403, 8
  %v2063 = vpop.permute.xlu0 %2062
  %2064 = vrot.lane.b32.xlu0 %v404, 8
  %v2065 = vpop.permute.xlu0 %2064
  %2066 = vrot.lane.b32.xlu0 %v405, 8
  %v2067 = vpop.permute.xlu0 %2066
  %2068 = vrot.lane.b32.xlu0 %v406, 8
  %v2069 = vpop.permute.xlu0 %2068
  %2070 = vrot.lane.b32.xlu0 %v407, 8
  %v2071 = vpop.permute.xlu0 %2070
  %2072 = vrot.lane.b32.xlu0 %v408, 8
  %v2073 = vpop.permute.xlu0 %2072
  %2074 = vrot.lane.b32.xlu0 %v409, 8
  %v2075 = vpop.permute.xlu0 %2074
  %2332 = vrot.lane.b32.xlu0 %v411, 12
  %v2333 = vpop.permute.xlu0 %2332
  %2334 = vrot.lane.b32.xlu0 %v412, 12
  %v2335 = vpop.permute.xlu0 %2334
  %2336 = vrot.lane.b32.xlu0 %v413, 12
  %v2337 = vpop.permute.xlu0 %2336
  %2338 = vrot.lane.b32.xlu0 %v414, 12
  %v2339 = vpop.permute.xlu0 %2338
  %2340 = vrot.lane.b32.xlu0 %v415, 12
  %v2341 = vpop.permute.xlu0 %2340
  %2342 = vrot.lane.b32.xlu0 %v416, 12
  %v2343 = vpop.permute.xlu0 %2342
  %2344 = vrot.lane.b32.xlu0 %v417, 12
  %v2345 = vpop.permute.xlu0 %2344
  %2346 = vrot.lane.b32.xlu0 %v418, 12
  %v2347 = vpop.permute.xlu0 %2346
  %2348 = vrot.lane.b32.xlu0 %v419, 12
  %v2349 = vpop.permute.xlu0 %2348
  %2350 = vrot.lane.b32.xlu0 %v420, 12
  %v2351 = vpop.permute.xlu0 %2350
  %2352 = vrot.lane.b32.xlu0 %v421, 12
  %v2353 = vpop.permute.xlu0 %2352
  %2354 = vrot.lane.b32.xlu0 %v422, 12
  %v2355 = vpop.permute.xlu0 %2354
  %2356 = vrot.lane.b32.xlu0 %v423, 12
  %v2357 = vpop.permute.xlu0 %2356
  %2358 = vrot.lane.b32.xlu0 %v424, 12
  %v2359 = vpop.permute.xlu0 %2358
  %2360 = vrot.lane.b32.xlu0 %v425, 12
  %v2361 = vpop.permute.xlu0 %2360
  %2362 = vrot.lane.b32.xlu0 %v426, 12
  %v2363 = vpop.permute.xlu0 %2362
  %2364 = vrot.lane.b32.xlu0 %v427, 12
  %v2365 = vpop.permute.xlu0 %2364
  %2366 = vrot.lane.b32.xlu0 %v428, 12
  %v2367 = vpop.permute.xlu0 %2366
  %2368 = vrot.lane.b32.xlu0 %v429, 12
  %v2369 = vpop.permute.xlu0 %2368
  %2370 = vrot.lane.b32.xlu0 %v430, 12
  %v2371 = vpop.permute.xlu0 %2370
  %2372 = vrot.lane.b32.xlu0 %v431, 12
  %v2373 = vpop.permute.xlu0 %2372
  %2374 = vrot.lane.b32.xlu0 %v432, 12
  %v2375 = vpop.permute.xlu0 %2374
  %2376 = vrot.lane.b32.xlu0 %v433, 12
  %v2377 = vpop.permute.xlu0 %2376
  %2378 = vrot.lane.b32.xlu0 %v434, 12
  %v2379 = vpop.permute.xlu0 %2378
  %2380 = vrot.lane.b32.xlu0 %v435, 12
  %v2381 = vpop.permute.xlu0 %2380
  %2382 = vrot.lane.b32.xlu0 %v436, 12
  %v2383 = vpop.permute.xlu0 %2382
  %2384 = vrot.lane.b32.xlu0 %v437, 12
  %v2385 = vpop.permute.xlu0 %2384
  %2386 = vrot.lane.b32.xlu0 %v438, 12
  %v2387 = vpop.permute.xlu0 %2386
  %2388 = vrot.lane.b32.xlu0 %v439, 12
  %v2389 = vpop.permute.xlu0 %2388
  %2390 = vrot.lane.b32.xlu0 %v440, 12
  %v2391 = vpop.permute.xlu0 %2390
  %2392 = vrot.lane.b32.xlu0 %v441, 12
  %v2393 = vpop.permute.xlu0 %2392
  %2394 = vrot.lane.b32.xlu0 %v442, 12
  %v2395 = vpop.permute.xlu0 %2394
  %2396 = vrot.lane.b32.xlu0 %v443, 12
  %v2397 = vpop.permute.xlu0 %2396
  %2398 = vrot.lane.b32.xlu0 %v444, 12
  %v2399 = vpop.permute.xlu0 %2398
  %2400 = vrot.lane.b32.xlu0 %v445, 12
  %v2401 = vpop.permute.xlu0 %2400
  %2402 = vrot.lane.b32.xlu0 %v446, 12
  %v2403 = vpop.permute.xlu0 %2402
  %2404 = vrot.lane.b32.xlu0 %v447, 12
  %v2405 = vpop.permute.xlu0 %2404
  %2406 = vrot.lane.b32.xlu0 %v448, 12
  %v2407 = vpop.permute.xlu0 %2406
  %2408 = vrot.lane.b32.xlu0 %v449, 12
  %v2409 = vpop.permute.xlu0 %2408
  %2410 = vrot.lane.b32.xlu0 %v450, 12
  %v2411 = vpop.permute.xlu0 %2410
  %2412 = vrot.lane.b32.xlu0 %v451, 12
  %v2413 = vpop.permute.xlu0 %2412
  %2414 = vrot.lane.b32.xlu0 %v452, 12
  %v2415 = vpop.permute.xlu0 %2414
  %2416 = vrot.lane.b32.xlu0 %v453, 12
  %v2417 = vpop.permute.xlu0 %2416
  %2418 = vrot.lane.b32.xlu0 %v454, 12
  %v2419 = vpop.permute.xlu0 %2418
  %2420 = vrot.lane.b32.xlu0 %v455, 12
  %v2421 = vpop.permute.xlu0 %2420
  %2422 = vrot.lane.b32.xlu0 %v456, 12
  %v2423 = vpop.permute.xlu0 %2422
  %2424 = vrot.lane.b32.xlu0 %v457, 12
  %v2425 = vpop.permute.xlu0 %2424
  %2426 = vrot.lane.b32.xlu0 %v458, 12
  %v2427 = vpop.permute.xlu0 %2426
  %2428 = vrot.lane.b32.xlu0 %v459, 12
  %v2429 = vpop.permute.xlu0 %2428
  %2430 = vrot.lane.b32.xlu0 %v460, 12
  %v2431 = vpop.permute.xlu0 %2430
  %2432 = vrot.lane.b32.xlu0 %v461, 12
  %v2433 = vpop.permute.xlu0 %2432
  %2434 = vrot.lane.b32.xlu0 %v462, 12
  %v2435 = vpop.permute.xlu0 %2434
  %2436 = vrot.lane.b32.xlu0 %v463, 12
  %v2437 = vpop.permute.xlu0 %2436
  %2438 = vrot.lane.b32.xlu0 %v464, 12
  %v2439 = vpop.permute.xlu0 %2438
  %2440 = vrot.lane.b32.xlu0 %v465, 12
  %v2441 = vpop.permute.xlu0 %2440
  %2442 = vrot.lane.b32.xlu0 %v466, 12
  %v2443 = vpop.permute.xlu0 %2442
  %2444 = vrot.lane.b32.xlu0 %v467, 12
  %v2445 = vpop.permute.xlu0 %2444
  %2446 = vrot.lane.b32.xlu0 %v468, 12
  %v2447 = vpop.permute.xlu0 %2446
  %2448 = vrot.lane.b32.xlu0 %v469, 12
  %v2449 = vpop.permute.xlu0 %2448
  %2450 = vrot.lane.b32.xlu0 %v470, 12
  %v2451 = vpop.permute.xlu0 %2450
  %2452 = vrot.lane.b32.xlu0 %v471, 12
  %v2453 = vpop.permute.xlu0 %2452
  %2454 = vrot.lane.b32.xlu0 %v472, 12
  %v2455 = vpop.permute.xlu0 %2454
  %2456 = vrot.lane.b32.xlu0 %v473, 12
  %v2457 = vpop.permute.xlu0 %2456
  %2458 = vrot.lane.b32.xlu0 %v474, 12
  %v2459 = vpop.permute.xlu0 %2458
  %2460 = vrot.lane.b32.xlu0 %v475, 12
  %v2461 = vpop.permute.xlu0 %2460
  %2462 = vrot.lane.b32.xlu0 %v476, 12
  %v2463 = vpop.permute.xlu0 %2462
  %2464 = vrot.lane.b32.xlu0 %v477, 12
  %v2465 = vpop.permute.xlu0 %2464
  %2466 = vrot.lane.b32.xlu0 %v478, 12
  %v2467 = vpop.permute.xlu0 %2466
  %2468 = vrot.lane.b32.xlu0 %v479, 12
  %v2469 = vpop.permute.xlu0 %2468
  %2470 = vrot.lane.b32.xlu0 %v480, 12
  %v2471 = vpop.permute.xlu0 %2470
  %2472 = vrot.lane.b32.xlu0 %v481, 12
  %v2473 = vpop.permute.xlu0 %2472
  %2474 = vrot.lane.b32.xlu0 %v482, 12
  %v2475 = vpop.permute.xlu0 %2474
  %2476 = vrot.lane.b32.xlu0 %v483, 12
  %v2477 = vpop.permute.xlu0 %2476
  %2478 = vrot.lane.b32.xlu0 %v484, 12
  %v2479 = vpop.permute.xlu0 %2478
  %2480 = vrot.lane.b32.xlu0 %v485, 12
  %v2481 = vpop.permute.xlu0 %2480
  %2482 = vrot.lane.b32.xlu0 %v486, 12
  %v2483 = vpop.permute.xlu0 %2482
  %2484 = vrot.lane.b32.xlu0 %v487, 12
  %v2485 = vpop.permute.xlu0 %2484
  %2486 = vrot.lane.b32.xlu0 %v488, 12
  %v2487 = vpop.permute.xlu0 %2486
  %2488 = vrot.lane.b32.xlu0 %v489, 12
  %v2489 = vpop.permute.xlu0 %2488
  %2490 = vrot.lane.b32.xlu0 %v490, 12
  %v2491 = vpop.permute.xlu0 %2490
  %2492 = vrot.lane.b32.xlu0 %v491, 12
  %v2493 = vpop.permute.xlu0 %2492
  %2494 = vrot.lane.b32.xlu0 %v492, 12
  %v2495 = vpop.permute.xlu0 %2494
  %2496 = vrot.lane.b32.xlu0 %v493, 12
  %v2497 = vpop.permute.xlu0 %2496
  %2498 = vrot.lane.b32.xlu0 %v494, 12
  %v2499 = vpop.permute.xlu0 %2498
  %2500 = vrot.lane.b32.xlu0 %v495, 12
  %v2501 = vpop.permute.xlu0 %2500
  %2502 = vrot.lane.b32.xlu0 %v496, 12
  %v2503 = vpop.permute.xlu0 %2502
  %2504 = vrot.lane.b32.xlu0 %v497, 12
  %v2505 = vpop.permute.xlu0 %2504
  %2506 = vrot.lane.b32.xlu0 %v498, 12
  %v2507 = vpop.permute.xlu0 %2506
  %2508 = vrot.lane.b32.xlu0 %v499, 12
  %v2509 = vpop.permute.xlu0 %2508
  %2510 = vrot.lane.b32.xlu0 %v500, 12
  %v2511 = vpop.permute.xlu0 %2510
  %2512 = vrot.lane.b32.xlu0 %v501, 12
  %v2513 = vpop.permute.xlu0 %2512
  %2514 = vrot.lane.b32.xlu0 %v502, 12
  %v2515 = vpop.permute.xlu0 %2514
  %2516 = vrot.lane.b32.xlu0 %v503, 12
  %v2517 = vpop.permute.xlu0 %2516
  %2518 = vrot.lane.b32.xlu0 %v504, 12
  %v2519 = vpop.permute.xlu0 %2518
  %2520 = vrot.lane.b32.xlu0 %v505, 12
  %v2521 = vpop.permute.xlu0 %2520
  %2522 = vrot.lane.b32.xlu0 %v506, 12
  %v2523 = vpop.permute.xlu0 %2522
  %2524 = vrot.lane.b32.xlu0 %v507, 12
  %v2525 = vpop.permute.xlu0 %2524
  %2526 = vrot.lane.b32.xlu0 %v508, 12
  %v2527 = vpop.permute.xlu0 %2526
  %2528 = vrot.lane.b32.xlu0 %v509, 12
  %v2529 = vpop.permute.xlu0 %2528
  %2530 = vrot.lane.b32.xlu0 %v510, 12
  %v2531 = vpop.permute.xlu0 %2530
  %2532 = vrot.lane.b32.xlu0 %v511, 12
  %v2533 = vpop.permute.xlu0 %2532
  %2534 = vrot.lane.b32.xlu0 %v512, 12
  %v2535 = vpop.permute.xlu0 %2534
  %2536 = vrot.lane.b32.xlu0 %v513, 12
  %v2537 = vpop.permute.xlu0 %2536
  %2538 = vrot.lane.b32.xlu0 %v514, 12
  %v2539 = vpop.permute.xlu0 %2538
  %2540 = vrot.lane.b32.xlu0 %v515, 12
  %v2541 = vpop.permute.xlu0 %2540
  %2542 = vrot.lane.b32.xlu0 %v516, 12
  %v2543 = vpop.permute.xlu0 %2542
  %2544 = vrot.lane.b32.xlu0 %v517, 12
  %v2545 = vpop.permute.xlu0 %2544
  %2546 = vrot.lane.b32.xlu0 %v518, 12
  %v2547 = vpop.permute.xlu0 %2546
  %2548 = vrot.lane.b32.xlu0 %v519, 12
  %v2549 = vpop.permute.xlu0 %2548
  %2550 = vrot.lane.b32.xlu0 %v520, 12
  %v2551 = vpop.permute.xlu0 %2550
  %2552 = vrot.lane.b32.xlu0 %v521, 12
  %v2553 = vpop.permute.xlu0 %2552
  %2554 = vrot.lane.b32.xlu0 %v522, 12
  %v2555 = vpop.permute.xlu0 %2554
  %2556 = vrot.lane.b32.xlu0 %v523, 12
  %v2557 = vpop.permute.xlu0 %2556
  %2558 = vrot.lane.b32.xlu0 %v524, 12
  %v2559 = vpop.permute.xlu0 %2558
  %2560 = vrot.lane.b32.xlu0 %v525, 12
  %v2561 = vpop.permute.xlu0 %2560
  %2562 = vrot.lane.b32.xlu0 %v526, 12
  %v2563 = vpop.permute.xlu0 %2562
  %2564 = vrot.lane.b32.xlu0 %v527, 12
  %v2565 = vpop.permute.xlu0 %2564
  %2566 = vrot.lane.b32.xlu0 %v528, 12
  %v2567 = vpop.permute.xlu0 %2566
  %2568 = vrot.lane.b32.xlu0 %v529, 12
  %v2569 = vpop.permute.xlu0 %2568
  %2570 = vrot.lane.b32.xlu0 %v530, 12
  %v2571 = vpop.permute.xlu0 %2570
  %2572 = vrot.lane.b32.xlu0 %v531, 12
  %v2573 = vpop.permute.xlu0 %2572
  %2574 = vrot.lane.b32.xlu0 %v532, 12
  %v2575 = vpop.permute.xlu0 %2574
  %2576 = vrot.lane.b32.xlu0 %v533, 12
  %v2577 = vpop.permute.xlu0 %2576
  %2578 = vrot.lane.b32.xlu0 %v534, 12
  %v2579 = vpop.permute.xlu0 %2578
  %2580 = vrot.lane.b32.xlu0 %v535, 12
  %v2581 = vpop.permute.xlu0 %2580
  %2582 = vrot.lane.b32.xlu0 %v536, 12
  %v2583 = vpop.permute.xlu0 %2582
  %2584 = vrot.lane.b32.xlu0 %v537, 12
  %v2585 = vpop.permute.xlu0 %2584
  %2586 = vrot.lane.b32.xlu0 %v538, 12
  %v2587 = vpop.permute.xlu0 %2586
  %2844 = vrot.lane.b32.xlu0 %v539, 16
  %v2845 = vpop.permute.xlu0 %2844
  %2846 = vrot.lane.b32.xlu0 %v540, 16
  %v2847 = vpop.permute.xlu0 %2846
  %2848 = vrot.lane.b32.xlu0 %v541, 16
  %v2849 = vpop.permute.xlu0 %2848
  %2850 = vrot.lane.b32.xlu0 %v542, 16
  %v2851 = vpop.permute.xlu0 %2850
  %2852 = vrot.lane.b32.xlu0 %v543, 16
  %v2853 = vpop.permute.xlu0 %2852
  %2854 = vrot.lane.b32.xlu0 %v544, 16
  %v2855 = vpop.permute.xlu0 %2854
  %2856 = vrot.lane.b32.xlu0 %v545, 16
  %v2857 = vpop.permute.xlu0 %2856
  %2858 = vrot.lane.b32.xlu0 %v546, 16
  %v2859 = vpop.permute.xlu0 %2858
  %2860 = vrot.lane.b32.xlu0 %v547, 16
  %v2861 = vpop.permute.xlu0 %2860
  %2862 = vrot.lane.b32.xlu0 %v548, 16
  %v2863 = vpop.permute.xlu0 %2862
  %2864 = vrot.lane.b32.xlu0 %v549, 16
  %v2865 = vpop.permute.xlu0 %2864
  %2866 = vrot.lane.b32.xlu0 %v550, 16
  %v2867 = vpop.permute.xlu0 %2866
  %2868 = vrot.lane.b32.xlu0 %v551, 16
  %v2869 = vpop.permute.xlu0 %2868
  %2870 = vrot.lane.b32.xlu0 %v552, 16
  %v2871 = vpop.permute.xlu0 %2870
  %2872 = vrot.lane.b32.xlu0 %v553, 16
  %v2873 = vpop.permute.xlu0 %2872
  %2874 = vrot.lane.b32.xlu0 %v554, 16
  %v2875 = vpop.permute.xlu0 %2874
  %2876 = vrot.lane.b32.xlu0 %v555, 16
  %v2877 = vpop.permute.xlu0 %2876
  %2878 = vrot.lane.b32.xlu0 %v556, 16
  %v2879 = vpop.permute.xlu0 %2878
  %2880 = vrot.lane.b32.xlu0 %v557, 16
  %v2881 = vpop.permute.xlu0 %2880
  %2882 = vrot.lane.b32.xlu0 %v558, 16
  %v2883 = vpop.permute.xlu0 %2882
  %2884 = vrot.lane.b32.xlu0 %v559, 16
  %v2885 = vpop.permute.xlu0 %2884
  %2886 = vrot.lane.b32.xlu0 %v560, 16
  %v2887 = vpop.permute.xlu0 %2886
  %2888 = vrot.lane.b32.xlu0 %v561, 16
  %v2889 = vpop.permute.xlu0 %2888
  %2890 = vrot.lane.b32.xlu0 %v562, 16
  %v2891 = vpop.permute.xlu0 %2890
  %2892 = vrot.lane.b32.xlu0 %v563, 16
  %v2893 = vpop.permute.xlu0 %2892
  %2894 = vrot.lane.b32.xlu0 %v564, 16
  %v2895 = vpop.permute.xlu0 %2894
  %2896 = vrot.lane.b32.xlu0 %v565, 16
  %v2897 = vpop.permute.xlu0 %2896
  %2898 = vrot.lane.b32.xlu0 %v566, 16
  %v2899 = vpop.permute.xlu0 %2898
  %2900 = vrot.lane.b32.xlu0 %v567, 16
  %v2901 = vpop.permute.xlu0 %2900
  %2902 = vrot.lane.b32.xlu0 %v568, 16
  %v2903 = vpop.permute.xlu0 %2902
  %2904 = vrot.lane.b32.xlu0 %v569, 16
  %v2905 = vpop.permute.xlu0 %2904
  %2906 = vrot.lane.b32.xlu0 %v570, 16
  %v2907 = vpop.permute.xlu0 %2906
  %2908 = vrot.lane.b32.xlu0 %v571, 16
  %v2909 = vpop.permute.xlu0 %2908
  %2910 = vrot.lane.b32.xlu0 %v572, 16
  %v2911 = vpop.permute.xlu0 %2910
  %2912 = vrot.lane.b32.xlu0 %v573, 16
  %v2913 = vpop.permute.xlu0 %2912
  %2914 = vrot.lane.b32.xlu0 %v574, 16
  %v2915 = vpop.permute.xlu0 %2914
  %2916 = vrot.lane.b32.xlu0 %v575, 16
  %v2917 = vpop.permute.xlu0 %2916
  %2918 = vrot.lane.b32.xlu0 %v576, 16
  %v2919 = vpop.permute.xlu0 %2918
  %2920 = vrot.lane.b32.xlu0 %v577, 16
  %v2921 = vpop.permute.xlu0 %2920
  %2922 = vrot.lane.b32.xlu0 %v578, 16
  %v2923 = vpop.permute.xlu0 %2922
  %2924 = vrot.lane.b32.xlu0 %v579, 16
  %v2925 = vpop.permute.xlu0 %2924
  %2926 = vrot.lane.b32.xlu0 %v580, 16
  %v2927 = vpop.permute.xlu0 %2926
  %2928 = vrot.lane.b32.xlu0 %v581, 16
  %v2929 = vpop.permute.xlu0 %2928
  %2930 = vrot.lane.b32.xlu0 %v582, 16
  %v2931 = vpop.permute.xlu0 %2930
  %2932 = vrot.lane.b32.xlu0 %v583, 16
  %v2933 = vpop.permute.xlu0 %2932
  %2934 = vrot.lane.b32.xlu0 %v584, 16
  %v2935 = vpop.permute.xlu0 %2934
  %2936 = vrot.lane.b32.xlu0 %v585, 16
  %v2937 = vpop.permute.xlu0 %2936
  %2938 = vrot.lane.b32.xlu0 %v586, 16
  %v2939 = vpop.permute.xlu0 %2938
  %2940 = vrot.lane.b32.xlu0 %v587, 16
  %v2941 = vpop.permute.xlu0 %2940
  %2942 = vrot.lane.b32.xlu0 %v588, 16
  %v2943 = vpop.permute.xlu0 %2942
  %2944 = vrot.lane.b32.xlu0 %v589, 16
  %v2945 = vpop.permute.xlu0 %2944
  %2946 = vrot.lane.b32.xlu0 %v590, 16
  %v2947 = vpop.permute.xlu0 %2946
  %2948 = vrot.lane.b32.xlu0 %v591, 16
  %v2949 = vpop.permute.xlu0 %2948
  %2950 = vrot.lane.b32.xlu0 %v592, 16
  %v2951 = vpop.permute.xlu0 %2950
  %2952 = vrot.lane.b32.xlu0 %v593, 16
  %v2953 = vpop.permute.xlu0 %2952
  %2954 = vrot.lane.b32.xlu0 %v594, 16
  %v2955 = vpop.permute.xlu0 %2954
  %2956 = vrot.lane.b32.xlu0 %v595, 16
  %v2957 = vpop.permute.xlu0 %2956
  %2958 = vrot.lane.b32.xlu0 %v596, 16
  %v2959 = vpop.permute.xlu0 %2958
  %2960 = vrot.lane.b32.xlu0 %v597, 16
  %v2961 = vpop.permute.xlu0 %2960
  %2962 = vrot.lane.b32.xlu0 %v598, 16
  %v2963 = vpop.permute.xlu0 %2962
  %2964 = vrot.lane.b32.xlu0 %v599, 16
  %v2965 = vpop.permute.xlu0 %2964
  %2966 = vrot.lane.b32.xlu0 %v600, 16
  %v2967 = vpop.permute.xlu0 %2966
  %2968 = vrot.lane.b32.xlu0 %v601, 16
  %v2969 = vpop.permute.xlu0 %2968
  %2970 = vrot.lane.b32.xlu0 %v602, 16
  %v2971 = vpop.permute.xlu0 %2970
  %2972 = vrot.lane.b32.xlu0 %v603, 16
  %v2973 = vpop.permute.xlu0 %2972
  %2974 = vrot.lane.b32.xlu0 %v604, 16
  %v2975 = vpop.permute.xlu0 %2974
  %2976 = vrot.lane.b32.xlu0 %v605, 16
  %v2977 = vpop.permute.xlu0 %2976
  %2978 = vrot.lane.b32.xlu0 %v606, 16
  %v2979 = vpop.permute.xlu0 %2978
  %2980 = vrot.lane.b32.xlu0 %v607, 16
  %v2981 = vpop.permute.xlu0 %2980
  %2982 = vrot.lane.b32.xlu0 %v608, 16
  %v2983 = vpop.permute.xlu0 %2982
  %2984 = vrot.lane.b32.xlu0 %v609, 16
  %v2985 = vpop.permute.xlu0 %2984
  %2986 = vrot.lane.b32.xlu0 %v610, 16
  %v2987 = vpop.permute.xlu0 %2986
  %2988 = vrot.lane.b32.xlu0 %v611, 16
  %v2989 = vpop.permute.xlu0 %2988
  %2990 = vrot.lane.b32.xlu0 %v612, 16
  %v2991 = vpop.permute.xlu0 %2990
  %2992 = vrot.lane.b32.xlu0 %v613, 16
  %v2993 = vpop.permute.xlu0 %2992
  %2994 = vrot.lane.b32.xlu0 %v614, 16
  %v2995 = vpop.permute.xlu0 %2994
  %2996 = vrot.lane.b32.xlu0 %v615, 16
  %v2997 = vpop.permute.xlu0 %2996
  %2998 = vrot.lane.b32.xlu0 %v616, 16
  %v2999 = vpop.permute.xlu0 %2998
  %3000 = vrot.lane.b32.xlu0 %v617, 16
  %v3001 = vpop.permute.xlu0 %3000
  %3002 = vrot.lane.b32.xlu0 %v618, 16
  %v3003 = vpop.permute.xlu0 %3002
  %3004 = vrot.lane.b32.xlu0 %v619, 16
  %v3005 = vpop.permute.xlu0 %3004
  %3006 = vrot.lane.b32.xlu0 %v620, 16
  %v3007 = vpop.permute.xlu0 %3006
  %3008 = vrot.lane.b32.xlu0 %v621, 16
  %v3009 = vpop.permute.xlu0 %3008
  %3010 = vrot.lane.b32.xlu0 %v622, 16
  %v3011 = vpop.permute.xlu0 %3010
  %3012 = vrot.lane.b32.xlu0 %v623, 16
  %v3013 = vpop.permute.xlu0 %3012
  %3014 = vrot.lane.b32.xlu0 %v624, 16
  %v3015 = vpop.permute.xlu0 %3014
  %3016 = vrot.lane.b32.xlu0 %v625, 16
  %v3017 = vpop.permute.xlu0 %3016
  %3018 = vrot.lane.b32.xlu0 %v626, 16
  %v3019 = vpop.permute.xlu0 %3018
  %3020 = vrot.lane.b32.xlu0 %v627, 16
  %v3021 = vpop.permute.xlu0 %3020
  %3022 = vrot.lane.b32.xlu0 %v628, 16
  %v3023 = vpop.permute.xlu0 %3022
  %3024 = vrot.lane.b32.xlu0 %v629, 16
  %v3025 = vpop.permute.xlu0 %3024
  %3026 = vrot.lane.b32.xlu0 %v630, 16
  %v3027 = vpop.permute.xlu0 %3026
  %3028 = vrot.lane.b32.xlu0 %v631, 16
  %v3029 = vpop.permute.xlu0 %3028
  %3030 = vrot.lane.b32.xlu0 %v632, 16
  %v3031 = vpop.permute.xlu0 %3030
  %3032 = vrot.lane.b32.xlu0 %v633, 16
  %v3033 = vpop.permute.xlu0 %3032
  %3034 = vrot.lane.b32.xlu0 %v634, 16
  %v3035 = vpop.permute.xlu0 %3034
  %3036 = vrot.lane.b32.xlu0 %v635, 16
  %v3037 = vpop.permute.xlu0 %3036
  %3038 = vrot.lane.b32.xlu0 %v636, 16
  %v3039 = vpop.permute.xlu0 %3038
  %3040 = vrot.lane.b32.xlu0 %v637, 16
  %v3041 = vpop.permute.xlu0 %3040
  %3042 = vrot.lane.b32.xlu0 %v638, 16
  %v3043 = vpop.permute.xlu0 %3042
  %3044 = vrot.lane.b32.xlu0 %v639, 16
  %v3045 = vpop.permute.xlu0 %3044
  %3046 = vrot.lane.b32.xlu0 %v640, 16
  %v3047 = vpop.permute.xlu0 %3046
  %3048 = vrot.lane.b32.xlu0 %v641, 16
  %v3049 = vpop.permute.xlu0 %3048
  %3050 = vrot.lane.b32.xlu0 %v642, 16
  %v3051 = vpop.permute.xlu0 %3050
  %3052 = vrot.lane.b32.xlu0 %v643, 16
  %v3053 = vpop.permute.xlu0 %3052
  %3054 = vrot.lane.b32.xlu0 %v644, 16
  %v3055 = vpop.permute.xlu0 %3054
  %3056 = vrot.lane.b32.xlu0 %v645, 16
  %v3057 = vpop.permute.xlu0 %3056
  %3058 = vrot.lane.b32.xlu0 %v646, 16
  %v3059 = vpop.permute.xlu0 %3058
  %3060 = vrot.lane.b32.xlu0 %v647, 16
  %v3061 = vpop.permute.xlu0 %3060
  %3062 = vrot.lane.b32.xlu0 %v648, 16
  %v3063 = vpop.permute.xlu0 %3062
  %3064 = vrot.lane.b32.xlu0 %v649, 16
  %v3065 = vpop.permute.xlu0 %3064
  %3066 = vrot.lane.b32.xlu0 %v650, 16
  %v3067 = vpop.permute.xlu0 %3066
  %3068 = vrot.lane.b32.xlu0 %v651, 16
  %v3069 = vpop.permute.xlu0 %3068
  %3070 = vrot.lane.b32.xlu0 %v652, 16
  %v3071 = vpop.permute.xlu0 %3070
  %3072 = vrot.lane.b32.xlu0 %v653, 16
  %v3073 = vpop.permute.xlu0 %3072
  %3074 = vrot.lane.b32.xlu0 %v654, 16
  %v3075 = vpop.permute.xlu0 %3074
  %3076 = vrot.lane.b32.xlu0 %v655, 16
  %v3077 = vpop.permute.xlu0 %3076
  %3078 = vrot.lane.b32.xlu0 %v656, 16
  %v3079 = vpop.permute.xlu0 %3078
  %3080 = vrot.lane.b32.xlu0 %v657, 16
  %v3081 = vpop.permute.xlu0 %3080
  %3082 = vrot.lane.b32.xlu0 %v658, 16
  %v3083 = vpop.permute.xlu0 %3082
  %3084 = vrot.lane.b32.xlu0 %v659, 16
  %v3085 = vpop.permute.xlu0 %3084
  %3086 = vrot.lane.b32.xlu0 %v660, 16
  %v3087 = vpop.permute.xlu0 %3086
  %3088 = vrot.lane.b32.xlu0 %v661, 16
  %v3089 = vpop.permute.xlu0 %3088
  %3090 = vrot.lane.b32.xlu0 %v662, 16
  %v3091 = vpop.permute.xlu0 %3090
  %3092 = vrot.lane.b32.xlu0 %v663, 16
  %v3093 = vpop.permute.xlu0 %3092
  %3094 = vrot.lane.b32.xlu0 %v664, 16
  %v3095 = vpop.permute.xlu0 %3094
  %3096 = vrot.lane.b32.xlu0 %v665, 16
  %v3097 = vpop.permute.xlu0 %3096
  %3098 = vrot.lane.b32.xlu0 %v666, 16
  %v3099 = vpop.permute.xlu0 %3098
  %3356 = vrot.lane.b32.xlu0 %v667, 20
  %v3357 = vpop.permute.xlu0 %3356
  %3358 = vrot.lane.b32.xlu0 %v668, 20
  %v3359 = vpop.permute.xlu0 %3358
  %3360 = vrot.lane.b32.xlu0 %v669, 20
  %v3361 = vpop.permute.xlu0 %3360
  %3362 = vrot.lane.b32.xlu0 %v670, 20
  %v3363 = vpop.permute.xlu0 %3362
  %3364 = vrot.lane.b32.xlu0 %v671, 20
  %v3365 = vpop.permute.xlu0 %3364
  %3366 = vrot.lane.b32.xlu0 %v672, 20
  %v3367 = vpop.permute.xlu0 %3366
  %3368 = vrot.lane.b32.xlu0 %v673, 20
  %v3369 = vpop.permute.xlu0 %3368
  %3370 = vrot.lane.b32.xlu0 %v674, 20
  %v3371 = vpop.permute.xlu0 %3370
  %3372 = vrot.lane.b32.xlu0 %v675, 20
  %v3373 = vpop.permute.xlu0 %3372
  %3374 = vrot.lane.b32.xlu0 %v676, 20
  %v3375 = vpop.permute.xlu0 %3374
  %3376 = vrot.lane.b32.xlu0 %v677, 20
  %v3377 = vpop.permute.xlu0 %3376
  %3378 = vrot.lane.b32.xlu0 %v678, 20
  %v3379 = vpop.permute.xlu0 %3378
  %3380 = vrot.lane.b32.xlu0 %v679, 20
  %v3381 = vpop.permute.xlu0 %3380
  %3382 = vrot.lane.b32.xlu0 %v680, 20
  %v3383 = vpop.permute.xlu0 %3382
  %3384 = vrot.lane.b32.xlu0 %v681, 20
  %v3385 = vpop.permute.xlu0 %3384
  %3386 = vrot.lane.b32.xlu0 %v682, 20
  %v3387 = vpop.permute.xlu0 %3386
  %3388 = vrot.lane.b32.xlu0 %v683, 20
  %v3389 = vpop.permute.xlu0 %3388
  %3390 = vrot.lane.b32.xlu0 %v684, 20
  %v3391 = vpop.permute.xlu0 %3390
  %3392 = vrot.lane.b32.xlu0 %v685, 20
  %v3393 = vpop.permute.xlu0 %3392
  %3394 = vrot.lane.b32.xlu0 %v686, 20
  %v3395 = vpop.permute.xlu0 %3394
  %3396 = vrot.lane.b32.xlu0 %v687, 20
  %v3397 = vpop.permute.xlu0 %3396
  %3398 = vrot.lane.b32.xlu0 %v688, 20
  %v3399 = vpop.permute.xlu0 %3398
  %3400 = vrot.lane.b32.xlu0 %v689, 20
  %v3401 = vpop.permute.xlu0 %3400
  %3402 = vrot.lane.b32.xlu0 %v690, 20
  %v3403 = vpop.permute.xlu0 %3402
  %3404 = vrot.lane.b32.xlu0 %v691, 20
  %v3405 = vpop.permute.xlu0 %3404
  %3406 = vrot.lane.b32.xlu0 %v692, 20
  %v3407 = vpop.permute.xlu0 %3406
  %3408 = vrot.lane.b32.xlu0 %v693, 20
  %v3409 = vpop.permute.xlu0 %3408
  %3410 = vrot.lane.b32.xlu0 %v694, 20
  %v3411 = vpop.permute.xlu0 %3410
  %3412 = vrot.lane.b32.xlu0 %v695, 20
  %v3413 = vpop.permute.xlu0 %3412
  %3414 = vrot.lane.b32.xlu0 %v696, 20
  %v3415 = vpop.permute.xlu0 %3414
  %3416 = vrot.lane.b32.xlu0 %v697, 20
  %v3417 = vpop.permute.xlu0 %3416
  %3418 = vrot.lane.b32.xlu0 %v698, 20
  %v3419 = vpop.permute.xlu0 %3418
  %3420 = vrot.lane.b32.xlu0 %v699, 20
  %v3421 = vpop.permute.xlu0 %3420
  %3422 = vrot.lane.b32.xlu0 %v700, 20
  %v3423 = vpop.permute.xlu0 %3422
  %3424 = vrot.lane.b32.xlu0 %v701, 20
  %v3425 = vpop.permute.xlu0 %3424
  %3426 = vrot.lane.b32.xlu0 %v702, 20
  %v3427 = vpop.permute.xlu0 %3426
  %3428 = vrot.lane.b32.xlu0 %v703, 20
  %v3429 = vpop.permute.xlu0 %3428
  %3430 = vrot.lane.b32.xlu0 %v704, 20
  %v3431 = vpop.permute.xlu0 %3430
  %3432 = vrot.lane.b32.xlu0 %v705, 20
  %v3433 = vpop.permute.xlu0 %3432
  %3434 = vrot.lane.b32.xlu0 %v706, 20
  %v3435 = vpop.permute.xlu0 %3434
  %3436 = vrot.lane.b32.xlu0 %v707, 20
  %v3437 = vpop.permute.xlu0 %3436
  %3438 = vrot.lane.b32.xlu0 %v708, 20
  %v3439 = vpop.permute.xlu0 %3438
  %3440 = vrot.lane.b32.xlu0 %v709, 20
  %v3441 = vpop.permute.xlu0 %3440
  %3442 = vrot.lane.b32.xlu0 %v710, 20
  %v3443 = vpop.permute.xlu0 %3442
  %3444 = vrot.lane.b32.xlu0 %v711, 20
  %v3445 = vpop.permute.xlu0 %3444
  %3446 = vrot.lane.b32.xlu0 %v712, 20
  %v3447 = vpop.permute.xlu0 %3446
  %3448 = vrot.lane.b32.xlu0 %v713, 20
  %v3449 = vpop.permute.xlu0 %3448
  %3450 = vrot.lane.b32.xlu0 %v714, 20
  %v3451 = vpop.permute.xlu0 %3450
  %3452 = vrot.lane.b32.xlu0 %v715, 20
  %v3453 = vpop.permute.xlu0 %3452
  %3454 = vrot.lane.b32.xlu0 %v716, 20
  %v3455 = vpop.permute.xlu0 %3454
  %3456 = vrot.lane.b32.xlu0 %v717, 20
  %v3457 = vpop.permute.xlu0 %3456
  %3458 = vrot.lane.b32.xlu0 %v718, 20
  %v3459 = vpop.permute.xlu0 %3458
  %3460 = vrot.lane.b32.xlu0 %v719, 20
  %v3461 = vpop.permute.xlu0 %3460
  %3462 = vrot.lane.b32.xlu0 %v720, 20
  %v3463 = vpop.permute.xlu0 %3462
  %3464 = vrot.lane.b32.xlu0 %v721, 20
  %v3465 = vpop.permute.xlu0 %3464
  %3466 = vrot.lane.b32.xlu0 %v722, 20
  %v3467 = vpop.permute.xlu0 %3466
  %3468 = vrot.lane.b32.xlu0 %v723, 20
  %v3469 = vpop.permute.xlu0 %3468
  %3470 = vrot.lane.b32.xlu0 %v724, 20
  %v3471 = vpop.permute.xlu0 %3470
  %3472 = vrot.lane.b32.xlu0 %v725, 20
  %v3473 = vpop.permute.xlu0 %3472
  %3474 = vrot.lane.b32.xlu0 %v726, 20
  %v3475 = vpop.permute.xlu0 %3474
  %3476 = vrot.lane.b32.xlu0 %v727, 20
  %v3477 = vpop.permute.xlu0 %3476
  %3478 = vrot.lane.b32.xlu0 %v728, 20
  %v3479 = vpop.permute.xlu0 %3478
  %3480 = vrot.lane.b32.xlu0 %v729, 20
  %v3481 = vpop.permute.xlu0 %3480
  %3482 = vrot.lane.b32.xlu0 %v730, 20
  %v3483 = vpop.permute.xlu0 %3482
  %3484 = vrot.lane.b32.xlu0 %v731, 20
  %v3485 = vpop.permute.xlu0 %3484
  %3486 = vrot.lane.b32.xlu0 %v732, 20
  %v3487 = vpop.permute.xlu0 %3486
  %3488 = vrot.lane.b32.xlu0 %v733, 20
  %v3489 = vpop.permute.xlu0 %3488
  %3490 = vrot.lane.b32.xlu0 %v734, 20
  %v3491 = vpop.permute.xlu0 %3490
  %3492 = vrot.lane.b32.xlu0 %v735, 20
  %v3493 = vpop.permute.xlu0 %3492
  %3494 = vrot.lane.b32.xlu0 %v736, 20
  %v3495 = vpop.permute.xlu0 %3494
  %3496 = vrot.lane.b32.xlu0 %v737, 20
  %v3497 = vpop.permute.xlu0 %3496
  %3498 = vrot.lane.b32.xlu0 %v738, 20
  %v3499 = vpop.permute.xlu0 %3498
  %3500 = vrot.lane.b32.xlu0 %v739, 20
  %v3501 = vpop.permute.xlu0 %3500
  %3502 = vrot.lane.b32.xlu0 %v740, 20
  %v3503 = vpop.permute.xlu0 %3502
  %3504 = vrot.lane.b32.xlu0 %v741, 20
  %v3505 = vpop.permute.xlu0 %3504
  %3506 = vrot.lane.b32.xlu0 %v742, 20
  %v3507 = vpop.permute.xlu0 %3506
  %3508 = vrot.lane.b32.xlu0 %v743, 20
  %v3509 = vpop.permute.xlu0 %3508
  %3510 = vrot.lane.b32.xlu0 %v744, 20
  %v3511 = vpop.permute.xlu0 %3510
  %3512 = vrot.lane.b32.xlu0 %v745, 20
  %v3513 = vpop.permute.xlu0 %3512
  %3514 = vrot.lane.b32.xlu0 %v746, 20
  %v3515 = vpop.permute.xlu0 %3514
  %3516 = vrot.lane.b32.xlu0 %v747, 20
  %v3517 = vpop.permute.xlu0 %3516
  %3518 = vrot.lane.b32.xlu0 %v748, 20
  %v3519 = vpop.permute.xlu0 %3518
  %3520 = vrot.lane.b32.xlu0 %v749, 20
  %v3521 = vpop.permute.xlu0 %3520
  %3522 = vrot.lane.b32.xlu0 %v750, 20
  %v3523 = vpop.permute.xlu0 %3522
  %3524 = vrot.lane.b32.xlu0 %v751, 20
  %v3525 = vpop.permute.xlu0 %3524
  %3526 = vrot.lane.b32.xlu0 %v752, 20
  %v3527 = vpop.permute.xlu0 %3526
  %3528 = vrot.lane.b32.xlu0 %v753, 20
  %v3529 = vpop.permute.xlu0 %3528
  %3530 = vrot.lane.b32.xlu0 %v754, 20
  %v3531 = vpop.permute.xlu0 %3530
  %3532 = vrot.lane.b32.xlu0 %v755, 20
  %v3533 = vpop.permute.xlu0 %3532
  %3534 = vrot.lane.b32.xlu0 %v756, 20
  %v3535 = vpop.permute.xlu0 %3534
  %3536 = vrot.lane.b32.xlu0 %v757, 20
  %v3537 = vpop.permute.xlu0 %3536
  %3538 = vrot.lane.b32.xlu0 %v758, 20
  %v3539 = vpop.permute.xlu0 %3538
  %3540 = vrot.lane.b32.xlu0 %v759, 20
  %v3541 = vpop.permute.xlu0 %3540
  %3542 = vrot.lane.b32.xlu0 %v760, 20
  %v3543 = vpop.permute.xlu0 %3542
  %3544 = vrot.lane.b32.xlu0 %v761, 20
  %v3545 = vpop.permute.xlu0 %3544
  %3546 = vrot.lane.b32.xlu0 %v762, 20
  %v3547 = vpop.permute.xlu0 %3546
  %3548 = vrot.lane.b32.xlu0 %v763, 20
  %v3549 = vpop.permute.xlu0 %3548
  %3550 = vrot.lane.b32.xlu0 %v764, 20
  %v3551 = vpop.permute.xlu0 %3550
  %3552 = vrot.lane.b32.xlu0 %v765, 20
  %v3553 = vpop.permute.xlu0 %3552
  %3554 = vrot.lane.b32.xlu0 %v766, 20
  %v3555 = vpop.permute.xlu0 %3554
  %3556 = vrot.lane.b32.xlu0 %v767, 20
  %v3557 = vpop.permute.xlu0 %3556
  %3558 = vrot.lane.b32.xlu0 %v768, 20
  %v3559 = vpop.permute.xlu0 %3558
  %3560 = vrot.lane.b32.xlu0 %v769, 20
  %v3561 = vpop.permute.xlu0 %3560
  %3562 = vrot.lane.b32.xlu0 %v770, 20
  %v3563 = vpop.permute.xlu0 %3562
  %3564 = vrot.lane.b32.xlu0 %v771, 20
  %v3565 = vpop.permute.xlu0 %3564
  %3566 = vrot.lane.b32.xlu0 %v772, 20
  %v3567 = vpop.permute.xlu0 %3566
  %3568 = vrot.lane.b32.xlu0 %v773, 20
  %v3569 = vpop.permute.xlu0 %3568
  %3570 = vrot.lane.b32.xlu0 %v774, 20
  %v3571 = vpop.permute.xlu0 %3570
  %3572 = vrot.lane.b32.xlu0 %v775, 20
  %v3573 = vpop.permute.xlu0 %3572
  %3574 = vrot.lane.b32.xlu0 %v776, 20
  %v3575 = vpop.permute.xlu0 %3574
  %3576 = vrot.lane.b32.xlu0 %v777, 20
  %v3577 = vpop.permute.xlu0 %3576
  %3578 = vrot.lane.b32.xlu0 %v778, 20
  %v3579 = vpop.permute.xlu0 %3578
  %3580 = vrot.lane.b32.xlu0 %v779, 20
  %v3581 = vpop.permute.xlu0 %3580
  %3582 = vrot.lane.b32.xlu0 %v780, 20
  %v3583 = vpop.permute.xlu0 %3582
  %3584 = vrot.lane.b32.xlu0 %v781, 20
  %v3585 = vpop.permute.xlu0 %3584
  %3586 = vrot.lane.b32.xlu0 %v782, 20
  %v3587 = vpop.permute.xlu0 %3586
  %3588 = vrot.lane.b32.xlu0 %v783, 20
  %v3589 = vpop.permute.xlu0 %3588
  %3590 = vrot.lane.b32.xlu0 %v784, 20
  %v3591 = vpop.permute.xlu0 %3590
  %3592 = vrot.lane.b32.xlu0 %v785, 20
  %v3593 = vpop.permute.xlu0 %3592
  %3594 = vrot.lane.b32.xlu0 %v786, 20
  %v3595 = vpop.permute.xlu0 %3594
  %3596 = vrot.lane.b32.xlu0 %v787, 20
  %v3597 = vpop.permute.xlu0 %3596
  %3598 = vrot.lane.b32.xlu0 %v788, 20
  %v3599 = vpop.permute.xlu0 %3598
  %3600 = vrot.lane.b32.xlu0 %v789, 20
  %v3601 = vpop.permute.xlu0 %3600
  %3602 = vrot.lane.b32.xlu0 %v790, 20
  %v3603 = vpop.permute.xlu0 %3602
  %3604 = vrot.lane.b32.xlu0 %v791, 20
  %v3605 = vpop.permute.xlu0 %3604
  %3606 = vrot.lane.b32.xlu0 %v792, 20
  %v3607 = vpop.permute.xlu0 %3606
  %3608 = vrot.lane.b32.xlu0 %v793, 20
  %v3609 = vpop.permute.xlu0 %3608
  %3610 = vrot.lane.b32.xlu0 %v794, 20
  %v3611 = vpop.permute.xlu0 %3610
  %3868 = vrot.lane.b32.xlu0 %v796, 24
  %v3869 = vpop.permute.xlu0 %3868
  %3870 = vrot.lane.b32.xlu0 %v797, 24
  %v3871 = vpop.permute.xlu0 %3870
  %3872 = vrot.lane.b32.xlu0 %v798, 24
  %v3873 = vpop.permute.xlu0 %3872
  %3874 = vrot.lane.b32.xlu0 %v799, 24
  %v3875 = vpop.permute.xlu0 %3874
  %3876 = vrot.lane.b32.xlu0 %v800, 24
  %v3877 = vpop.permute.xlu0 %3876
  %3878 = vrot.lane.b32.xlu0 %v801, 24
  %v3879 = vpop.permute.xlu0 %3878
  %3880 = vrot.lane.b32.xlu0 %v802, 24
  %v3881 = vpop.permute.xlu0 %3880
  %3882 = vrot.lane.b32.xlu0 %v803, 24
  %v3883 = vpop.permute.xlu0 %3882
  %3884 = vrot.lane.b32.xlu0 %v804, 24
  %v3885 = vpop.permute.xlu0 %3884
  %3886 = vrot.lane.b32.xlu0 %v805, 24
  %v3887 = vpop.permute.xlu0 %3886
  %3888 = vrot.lane.b32.xlu0 %v806, 24
  %v3889 = vpop.permute.xlu0 %3888
  %3890 = vrot.lane.b32.xlu0 %v807, 24
  %v3891 = vpop.permute.xlu0 %3890
  %3892 = vrot.lane.b32.xlu0 %v808, 24
  %v3893 = vpop.permute.xlu0 %3892
  %3894 = vrot.lane.b32.xlu0 %v809, 24
  %v3895 = vpop.permute.xlu0 %3894
  %3896 = vrot.lane.b32.xlu0 %v810, 24
  %v3897 = vpop.permute.xlu0 %3896
  %3898 = vrot.lane.b32.xlu0 %v811, 24
  %v3899 = vpop.permute.xlu0 %3898
  %3900 = vrot.lane.b32.xlu0 %v812, 24
  %v3901 = vpop.permute.xlu0 %3900
  %3902 = vrot.lane.b32.xlu0 %v813, 24
  %v3903 = vpop.permute.xlu0 %3902
  %3904 = vrot.lane.b32.xlu0 %v814, 24
  %v3905 = vpop.permute.xlu0 %3904
  %3906 = vrot.lane.b32.xlu0 %v815, 24
  %v3907 = vpop.permute.xlu0 %3906
  %3908 = vrot.lane.b32.xlu0 %v816, 24
  %v3909 = vpop.permute.xlu0 %3908
  %3910 = vrot.lane.b32.xlu0 %v817, 24
  %v3911 = vpop.permute.xlu0 %3910
  %3912 = vrot.lane.b32.xlu0 %v818, 24
  %v3913 = vpop.permute.xlu0 %3912
  %3914 = vrot.lane.b32.xlu0 %v819, 24
  %v3915 = vpop.permute.xlu0 %3914
  %3916 = vrot.lane.b32.xlu0 %v820, 24
  %v3917 = vpop.permute.xlu0 %3916
  %3918 = vrot.lane.b32.xlu0 %v821, 24
  %v3919 = vpop.permute.xlu0 %3918
  %3920 = vrot.lane.b32.xlu0 %v822, 24
  %v3921 = vpop.permute.xlu0 %3920
  %3922 = vrot.lane.b32.xlu0 %v823, 24
  %v3923 = vpop.permute.xlu0 %3922
  %3924 = vrot.lane.b32.xlu0 %v824, 24
  %v3925 = vpop.permute.xlu0 %3924
  %3926 = vrot.lane.b32.xlu0 %v825, 24
  %v3927 = vpop.permute.xlu0 %3926
  %3928 = vrot.lane.b32.xlu0 %v826, 24
  %v3929 = vpop.permute.xlu0 %3928
  %3930 = vrot.lane.b32.xlu0 %v827, 24
  %v3931 = vpop.permute.xlu0 %3930
  %3932 = vrot.lane.b32.xlu0 %v828, 24
  %v3933 = vpop.permute.xlu0 %3932
  %3934 = vrot.lane.b32.xlu0 %v829, 24
  %v3935 = vpop.permute.xlu0 %3934
  %3936 = vrot.lane.b32.xlu0 %v830, 24
  %v3937 = vpop.permute.xlu0 %3936
  %3938 = vrot.lane.b32.xlu0 %v831, 24
  %v3939 = vpop.permute.xlu0 %3938
  %3940 = vrot.lane.b32.xlu0 %v832, 24
  %v3941 = vpop.permute.xlu0 %3940
  %3942 = vrot.lane.b32.xlu0 %v833, 24
  %v3943 = vpop.permute.xlu0 %3942
  %3944 = vrot.lane.b32.xlu0 %v834, 24
  %v3945 = vpop.permute.xlu0 %3944
  %3946 = vrot.lane.b32.xlu0 %v835, 24
  %v3947 = vpop.permute.xlu0 %3946
  %3948 = vrot.lane.b32.xlu0 %v836, 24
  %v3949 = vpop.permute.xlu0 %3948
  %3950 = vrot.lane.b32.xlu0 %v837, 24
  %v3951 = vpop.permute.xlu0 %3950
  %3952 = vrot.lane.b32.xlu0 %v838, 24
  %v3953 = vpop.permute.xlu0 %3952
  %3954 = vrot.lane.b32.xlu0 %v839, 24
  %v3955 = vpop.permute.xlu0 %3954
  %3956 = vrot.lane.b32.xlu0 %v840, 24
  %v3957 = vpop.permute.xlu0 %3956
  %3958 = vrot.lane.b32.xlu0 %v841, 24
  %v3959 = vpop.permute.xlu0 %3958
  %3960 = vrot.lane.b32.xlu0 %v842, 24
  %v3961 = vpop.permute.xlu0 %3960
  %3962 = vrot.lane.b32.xlu0 %v843, 24
  %v3963 = vpop.permute.xlu0 %3962
  %3964 = vrot.lane.b32.xlu0 %v844, 24
  %v3965 = vpop.permute.xlu0 %3964
  %3966 = vrot.lane.b32.xlu0 %v845, 24
  %v3967 = vpop.permute.xlu0 %3966
  %3968 = vrot.lane.b32.xlu0 %v846, 24
  %v3969 = vpop.permute.xlu0 %3968
  %3970 = vrot.lane.b32.xlu0 %v847, 24
  %v3971 = vpop.permute.xlu0 %3970
  %3972 = vrot.lane.b32.xlu0 %v848, 24
  %v3973 = vpop.permute.xlu0 %3972
  %3974 = vrot.lane.b32.xlu0 %v849, 24
  %v3975 = vpop.permute.xlu0 %3974
  %3976 = vrot.lane.b32.xlu0 %v850, 24
  %v3977 = vpop.permute.xlu0 %3976
  %3978 = vrot.lane.b32.xlu0 %v851, 24
  %v3979 = vpop.permute.xlu0 %3978
  %3980 = vrot.lane.b32.xlu0 %v852, 24
  %v3981 = vpop.permute.xlu0 %3980
  %3982 = vrot.lane.b32.xlu0 %v853, 24
  %v3983 = vpop.permute.xlu0 %3982
  %3984 = vrot.lane.b32.xlu0 %v854, 24
  %v3985 = vpop.permute.xlu0 %3984
  %3986 = vrot.lane.b32.xlu0 %v855, 24
  %v3987 = vpop.permute.xlu0 %3986
  %3988 = vrot.lane.b32.xlu0 %v856, 24
  %v3989 = vpop.permute.xlu0 %3988
  %3990 = vrot.lane.b32.xlu0 %v857, 24
  %v3991 = vpop.permute.xlu0 %3990
  %3992 = vrot.lane.b32.xlu0 %v858, 24
  %v3993 = vpop.permute.xlu0 %3992
  %3994 = vrot.lane.b32.xlu0 %v859, 24
  %v3995 = vpop.permute.xlu0 %3994
  %3996 = vrot.lane.b32.xlu0 %v860, 24
  %v3997 = vpop.permute.xlu0 %3996
  %3998 = vrot.lane.b32.xlu0 %v861, 24
  %v3999 = vpop.permute.xlu0 %3998
  %4000 = vrot.lane.b32.xlu0 %v862, 24
  %v4001 = vpop.permute.xlu0 %4000
  %4002 = vrot.lane.b32.xlu0 %v863, 24
  %v4003 = vpop.permute.xlu0 %4002
  %4004 = vrot.lane.b32.xlu0 %v864, 24
  %v4005 = vpop.permute.xlu0 %4004
  %4006 = vrot.lane.b32.xlu0 %v865, 24
  %v4007 = vpop.permute.xlu0 %4006
  %4008 = vrot.lane.b32.xlu0 %v866, 24
  %v4009 = vpop.permute.xlu0 %4008
  %4010 = vrot.lane.b32.xlu0 %v867, 24
  %v4011 = vpop.permute.xlu0 %4010
  %4012 = vrot.lane.b32.xlu0 %v868, 24
  %v4013 = vpop.permute.xlu0 %4012
  %4014 = vrot.lane.b32.xlu0 %v869, 24
  %v4015 = vpop.permute.xlu0 %4014
  %4016 = vrot.lane.b32.xlu0 %v870, 24
  %v4017 = vpop.permute.xlu0 %4016
  %4018 = vrot.lane.b32.xlu0 %v871, 24
  %v4019 = vpop.permute.xlu0 %4018
  %4020 = vrot.lane.b32.xlu0 %v872, 24
  %v4021 = vpop.permute.xlu0 %4020
  %4022 = vrot.lane.b32.xlu0 %v873, 24
  %v4023 = vpop.permute.xlu0 %4022
  %4024 = vrot.lane.b32.xlu0 %v874, 24
  %v4025 = vpop.permute.xlu0 %4024
  %4026 = vrot.lane.b32.xlu0 %v875, 24
  %v4027 = vpop.permute.xlu0 %4026
  %4028 = vrot.lane.b32.xlu0 %v876, 24
  %v4029 = vpop.permute.xlu0 %4028
  %4030 = vrot.lane.b32.xlu0 %v877, 24
  %v4031 = vpop.permute.xlu0 %4030
  %4032 = vrot.lane.b32.xlu0 %v878, 24
  %v4033 = vpop.permute.xlu0 %4032
  %4034 = vrot.lane.b32.xlu0 %v879, 24
  %v4035 = vpop.permute.xlu0 %4034
  %4036 = vrot.lane.b32.xlu0 %v880, 24
  %v4037 = vpop.permute.xlu0 %4036
  %4038 = vrot.lane.b32.xlu0 %v881, 24
  %v4039 = vpop.permute.xlu0 %4038
  %4040 = vrot.lane.b32.xlu0 %v882, 24
  %v4041 = vpop.permute.xlu0 %4040
  %4042 = vrot.lane.b32.xlu0 %v883, 24
  %v4043 = vpop.permute.xlu0 %4042
  %4044 = vrot.lane.b32.xlu0 %v884, 24
  %v4045 = vpop.permute.xlu0 %4044
  %4046 = vrot.lane.b32.xlu0 %v885, 24
  %v4047 = vpop.permute.xlu0 %4046
  %4048 = vrot.lane.b32.xlu0 %v886, 24
  %v4049 = vpop.permute.xlu0 %4048
  %4050 = vrot.lane.b32.xlu0 %v887, 24
  %v4051 = vpop.permute.xlu0 %4050
  %4052 = vrot.lane.b32.xlu0 %v888, 24
  %v4053 = vpop.permute.xlu0 %4052
  %4054 = vrot.lane.b32.xlu0 %v889, 24
  %v4055 = vpop.permute.xlu0 %4054
  %4056 = vrot.lane.b32.xlu0 %v890, 24
  %v4057 = vpop.permute.xlu0 %4056
  %4058 = vrot.lane.b32.xlu0 %v891, 24
  %v4059 = vpop.permute.xlu0 %4058
  %4060 = vrot.lane.b32.xlu0 %v892, 24
  %v4061 = vpop.permute.xlu0 %4060
  %4062 = vrot.lane.b32.xlu0 %v893, 24
  %v4063 = vpop.permute.xlu0 %4062
  %4064 = vrot.lane.b32.xlu0 %v894, 24
  %v4065 = vpop.permute.xlu0 %4064
  %4066 = vrot.lane.b32.xlu0 %v895, 24
  %v4067 = vpop.permute.xlu0 %4066
  %4068 = vrot.lane.b32.xlu0 %v896, 24
  %v4069 = vpop.permute.xlu0 %4068
  %4070 = vrot.lane.b32.xlu0 %v897, 24
  %v4071 = vpop.permute.xlu0 %4070
  %4072 = vrot.lane.b32.xlu0 %v898, 24
  %v4073 = vpop.permute.xlu0 %4072
  %4074 = vrot.lane.b32.xlu0 %v899, 24
  %v4075 = vpop.permute.xlu0 %4074
  %4076 = vrot.lane.b32.xlu0 %v900, 24
  %v4077 = vpop.permute.xlu0 %4076
  %4078 = vrot.lane.b32.xlu0 %v901, 24
  %v4079 = vpop.permute.xlu0 %4078
  %4080 = vrot.lane.b32.xlu0 %v902, 24
  %v4081 = vpop.permute.xlu0 %4080
  %4082 = vrot.lane.b32.xlu0 %v903, 24
  %v4083 = vpop.permute.xlu0 %4082
  %4084 = vrot.lane.b32.xlu0 %v904, 24
  %v4085 = vpop.permute.xlu0 %4084
  %4086 = vrot.lane.b32.xlu0 %v905, 24
  %v4087 = vpop.permute.xlu0 %4086
  %4088 = vrot.lane.b32.xlu0 %v906, 24
  %v4089 = vpop.permute.xlu0 %4088
  %4090 = vrot.lane.b32.xlu0 %v907, 24
  %v4091 = vpop.permute.xlu0 %4090
  %4092 = vrot.lane.b32.xlu0 %v908, 24
  %v4093 = vpop.permute.xlu0 %4092
  %4094 = vrot.lane.b32.xlu0 %v909, 24
  %v4095 = vpop.permute.xlu0 %4094
  %4096 = vrot.lane.b32.xlu0 %v910, 24
  %v4097 = vpop.permute.xlu0 %4096
  %4098 = vrot.lane.b32.xlu0 %v911, 24
  %v4099 = vpop.permute.xlu0 %4098
  %4100 = vrot.lane.b32.xlu0 %v912, 24
  %v4101 = vpop.permute.xlu0 %4100
  %4102 = vrot.lane.b32.xlu0 %v913, 24
  %v4103 = vpop.permute.xlu0 %4102
  %4104 = vrot.lane.b32.xlu0 %v914, 24
  %v4105 = vpop.permute.xlu0 %4104
  %4106 = vrot.lane.b32.xlu0 %v915, 24
  %v4107 = vpop.permute.xlu0 %4106
  %4108 = vrot.lane.b32.xlu0 %v916, 24
  %v4109 = vpop.permute.xlu0 %4108
  %4110 = vrot.lane.b32.xlu0 %v917, 24
  %v4111 = vpop.permute.xlu0 %4110
  %4112 = vrot.lane.b32.xlu0 %v918, 24
  %v4113 = vpop.permute.xlu0 %4112
  %4114 = vrot.lane.b32.xlu0 %v919, 24
  %v4115 = vpop.permute.xlu0 %4114
  %4116 = vrot.lane.b32.xlu0 %v920, 24
  %v4117 = vpop.permute.xlu0 %4116
  %4118 = vrot.lane.b32.xlu0 %v921, 24
  %v4119 = vpop.permute.xlu0 %4118
  %4120 = vrot.lane.b32.xlu0 %v922, 24
  %v4121 = vpop.permute.xlu0 %4120
  %4122 = vrot.lane.b32.xlu0 %v923, 24
  %v4123 = vpop.permute.xlu0 %4122
  %4380 = vrot.lane.b32.xlu0 %v924, 28
  %v4381 = vpop.permute.xlu0 %4380
  %4382 = vrot.lane.b32.xlu0 %v925, 28
  %v4383 = vpop.permute.xlu0 %4382
  %4384 = vrot.lane.b32.xlu0 %v926, 28
  %v4385 = vpop.permute.xlu0 %4384
  %4386 = vrot.lane.b32.xlu0 %v927, 28
  %v4387 = vpop.permute.xlu0 %4386
  %4388 = vrot.lane.b32.xlu0 %v928, 28
  %v4389 = vpop.permute.xlu0 %4388
  %4390 = vrot.lane.b32.xlu0 %v929, 28
  %v4391 = vpop.permute.xlu0 %4390
  %4392 = vrot.lane.b32.xlu0 %v930, 28
  %v4393 = vpop.permute.xlu0 %4392
  %4394 = vrot.lane.b32.xlu0 %v931, 28
  %v4395 = vpop.permute.xlu0 %4394
  %4396 = vrot.lane.b32.xlu0 %v932, 28
  %v4397 = vpop.permute.xlu0 %4396
  %4398 = vrot.lane.b32.xlu0 %v933, 28
  %v4399 = vpop.permute.xlu0 %4398
  %4400 = vrot.lane.b32.xlu0 %v934, 28
  %v4401 = vpop.permute.xlu0 %4400
  %4402 = vrot.lane.b32.xlu0 %v935, 28
  %v4403 = vpop.permute.xlu0 %4402
  %4404 = vrot.lane.b32.xlu0 %v936, 28
  %v4405 = vpop.permute.xlu0 %4404
  %4406 = vrot.lane.b32.xlu0 %v937, 28
  %v4407 = vpop.permute.xlu0 %4406
  %4408 = vrot.lane.b32.xlu0 %v938, 28
  %v4409 = vpop.permute.xlu0 %4408
  %4410 = vrot.lane.b32.xlu0 %v939, 28
  %v4411 = vpop.permute.xlu0 %4410
  %4412 = vrot.lane.b32.xlu0 %v940, 28
  %v4413 = vpop.permute.xlu0 %4412
  %4414 = vrot.lane.b32.xlu0 %v941, 28
  %v4415 = vpop.permute.xlu0 %4414
  %4416 = vrot.lane.b32.xlu0 %v942, 28
  %v4417 = vpop.permute.xlu0 %4416
  %4418 = vrot.lane.b32.xlu0 %v943, 28
  %v4419 = vpop.permute.xlu0 %4418
  %4420 = vrot.lane.b32.xlu0 %v944, 28
  %v4421 = vpop.permute.xlu0 %4420
  %4422 = vrot.lane.b32.xlu0 %v945, 28
  %v4423 = vpop.permute.xlu0 %4422
  %4424 = vrot.lane.b32.xlu0 %v946, 28
  %v4425 = vpop.permute.xlu0 %4424
  %4426 = vrot.lane.b32.xlu0 %v947, 28
  %v4427 = vpop.permute.xlu0 %4426
  %4428 = vrot.lane.b32.xlu0 %v948, 28
  %v4429 = vpop.permute.xlu0 %4428
  %4430 = vrot.lane.b32.xlu0 %v949, 28
  %v4431 = vpop.permute.xlu0 %4430
  %4432 = vrot.lane.b32.xlu0 %v950, 28
  %v4433 = vpop.permute.xlu0 %4432
  %4434 = vrot.lane.b32.xlu0 %v951, 28
  %v4435 = vpop.permute.xlu0 %4434
  %4436 = vrot.lane.b32.xlu0 %v952, 28
  %v4437 = vpop.permute.xlu0 %4436
  %4438 = vrot.lane.b32.xlu0 %v953, 28
  %v4439 = vpop.permute.xlu0 %4438
  %4440 = vrot.lane.b32.xlu0 %v954, 28
  %v4441 = vpop.permute.xlu0 %4440
  %4442 = vrot.lane.b32.xlu0 %v955, 28
  %v4443 = vpop.permute.xlu0 %4442
  %4444 = vrot.lane.b32.xlu0 %v956, 28
  %v4445 = vpop.permute.xlu0 %4444
  %4446 = vrot.lane.b32.xlu0 %v957, 28
  %v4447 = vpop.permute.xlu0 %4446
  %4448 = vrot.lane.b32.xlu0 %v958, 28
  %v4449 = vpop.permute.xlu0 %4448
  %4450 = vrot.lane.b32.xlu0 %v959, 28
  %v4451 = vpop.permute.xlu0 %4450
  %4452 = vrot.lane.b32.xlu0 %v960, 28
  %v4453 = vpop.permute.xlu0 %4452
  %4454 = vrot.lane.b32.xlu0 %v961, 28
  %v4455 = vpop.permute.xlu0 %4454
  %4456 = vrot.lane.b32.xlu0 %v962, 28
  %v4457 = vpop.permute.xlu0 %4456
  %4458 = vrot.lane.b32.xlu0 %v963, 28
  %v4459 = vpop.permute.xlu0 %4458
  %4460 = vrot.lane.b32.xlu0 %v964, 28
  %v4461 = vpop.permute.xlu0 %4460
  %4462 = vrot.lane.b32.xlu0 %v965, 28
  %v4463 = vpop.permute.xlu0 %4462
  %4464 = vrot.lane.b32.xlu0 %v966, 28
  %v4465 = vpop.permute.xlu0 %4464
  %4466 = vrot.lane.b32.xlu0 %v967, 28
  %v4467 = vpop.permute.xlu0 %4466
  %4468 = vrot.lane.b32.xlu0 %v968, 28
  %v4469 = vpop.permute.xlu0 %4468
  %4470 = vrot.lane.b32.xlu0 %v969, 28
  %v4471 = vpop.permute.xlu0 %4470
  %4472 = vrot.lane.b32.xlu0 %v970, 28
  %v4473 = vpop.permute.xlu0 %4472
  %4474 = vrot.lane.b32.xlu0 %v971, 28
  %v4475 = vpop.permute.xlu0 %4474
  %4476 = vrot.lane.b32.xlu0 %v972, 28
  %v4477 = vpop.permute.xlu0 %4476
  %4478 = vrot.lane.b32.xlu0 %v973, 28
  %v4479 = vpop.permute.xlu0 %4478
  %4480 = vrot.lane.b32.xlu0 %v974, 28
  %v4481 = vpop.permute.xlu0 %4480
  %4482 = vrot.lane.b32.xlu0 %v975, 28
  %v4483 = vpop.permute.xlu0 %4482
  %4484 = vrot.lane.b32.xlu0 %v976, 28
  %v4485 = vpop.permute.xlu0 %4484
  %4486 = vrot.lane.b32.xlu0 %v977, 28
  %v4487 = vpop.permute.xlu0 %4486
  %4488 = vrot.lane.b32.xlu0 %v978, 28
  %v4489 = vpop.permute.xlu0 %4488
  %4490 = vrot.lane.b32.xlu0 %v979, 28
  %v4491 = vpop.permute.xlu0 %4490
  %4492 = vrot.lane.b32.xlu0 %v980, 28
  %v4493 = vpop.permute.xlu0 %4492
  %4494 = vrot.lane.b32.xlu0 %v981, 28
  %v4495 = vpop.permute.xlu0 %4494
  %4496 = vrot.lane.b32.xlu0 %v982, 28
  %v4497 = vpop.permute.xlu0 %4496
  %4498 = vrot.lane.b32.xlu0 %v983, 28
  %v4499 = vpop.permute.xlu0 %4498
  %4500 = vrot.lane.b32.xlu0 %v984, 28
  %v4501 = vpop.permute.xlu0 %4500
  %4502 = vrot.lane.b32.xlu0 %v985, 28
  %v4503 = vpop.permute.xlu0 %4502
  %4504 = vrot.lane.b32.xlu0 %v986, 28
  %v4505 = vpop.permute.xlu0 %4504
  %4506 = vrot.lane.b32.xlu0 %v987, 28
  %v4507 = vpop.permute.xlu0 %4506
  %4508 = vrot.lane.b32.xlu0 %v988, 28
  %v4509 = vpop.permute.xlu0 %4508
  %4510 = vrot.lane.b32.xlu0 %v989, 28
  %v4511 = vpop.permute.xlu0 %4510
  %4512 = vrot.lane.b32.xlu0 %v990, 28
  %v4513 = vpop.permute.xlu0 %4512
  %4514 = vrot.lane.b32.xlu0 %v991, 28
  %v4515 = vpop.permute.xlu0 %4514
  %4516 = vrot.lane.b32.xlu0 %v992, 28
  %v4517 = vpop.permute.xlu0 %4516
  %4518 = vrot.lane.b32.xlu0 %v993, 28
  %v4519 = vpop.permute.xlu0 %4518
  %4520 = vrot.lane.b32.xlu0 %v994, 28
  %v4521 = vpop.permute.xlu0 %4520
  %4522 = vrot.lane.b32.xlu0 %v995, 28
  %v4523 = vpop.permute.xlu0 %4522
  %4524 = vrot.lane.b32.xlu0 %v996, 28
  %v4525 = vpop.permute.xlu0 %4524
  %4526 = vrot.lane.b32.xlu0 %v997, 28
  %v4527 = vpop.permute.xlu0 %4526
  %4528 = vrot.lane.b32.xlu0 %v998, 28
  %v4529 = vpop.permute.xlu0 %4528
  %4530 = vrot.lane.b32.xlu0 %v999, 28
  %v4531 = vpop.permute.xlu0 %4530
  %4532 = vrot.lane.b32.xlu0 %v1000, 28
  %v4533 = vpop.permute.xlu0 %4532
  %4534 = vrot.lane.b32.xlu0 %v1001, 28
  %v4535 = vpop.permute.xlu0 %4534
  %4536 = vrot.lane.b32.xlu0 %v1002, 28
  %v4537 = vpop.permute.xlu0 %4536
  %4538 = vrot.lane.b32.xlu0 %v1003, 28
  %v4539 = vpop.permute.xlu0 %4538
  %4540 = vrot.lane.b32.xlu0 %v1004, 28
  %v4541 = vpop.permute.xlu0 %4540
  %4542 = vrot.lane.b32.xlu0 %v1005, 28
  %v4543 = vpop.permute.xlu0 %4542
  %4544 = vrot.lane.b32.xlu0 %v1006, 28
  %v4545 = vpop.permute.xlu0 %4544
  %4546 = vrot.lane.b32.xlu0 %v1007, 28
  %v4547 = vpop.permute.xlu0 %4546
  %4548 = vrot.lane.b32.xlu0 %v1008, 28
  %v4549 = vpop.permute.xlu0 %4548
  %4550 = vrot.lane.b32.xlu0 %v1009, 28
  %v4551 = vpop.permute.xlu0 %4550
  %4552 = vrot.lane.b32.xlu0 %v1010, 28
  %v4553 = vpop.permute.xlu0 %4552
  %4554 = vrot.lane.b32.xlu0 %v1011, 28
  %v4555 = vpop.permute.xlu0 %4554
  %4556 = vrot.lane.b32.xlu0 %v1012, 28
  %v4557 = vpop.permute.xlu0 %4556
  %4558 = vrot.lane.b32.xlu0 %v1013, 28
  %v4559 = vpop.permute.xlu0 %4558
  %4560 = vrot.lane.b32.xlu0 %v1014, 28
  %v4561 = vpop.permute.xlu0 %4560
  %4562 = vrot.lane.b32.xlu0 %v1015, 28
  %v4563 = vpop.permute.xlu0 %4562
  %4564 = vrot.lane.b32.xlu0 %v1016, 28
  %v4565 = vpop.permute.xlu0 %4564
  %4566 = vrot.lane.b32.xlu0 %v1017, 28
  %v4567 = vpop.permute.xlu0 %4566
  %4568 = vrot.lane.b32.xlu0 %v1018, 28
  %v4569 = vpop.permute.xlu0 %4568
  %4570 = vrot.lane.b32.xlu0 %v1019, 28
  %v4571 = vpop.permute.xlu0 %4570
  %4572 = vrot.lane.b32.xlu0 %v1020, 28
  %v4573 = vpop.permute.xlu0 %4572
  %4574 = vrot.lane.b32.xlu0 %v1021, 28
  %v4575 = vpop.permute.xlu0 %4574
  %4576 = vrot.lane.b32.xlu0 %v1022, 28
  %v4577 = vpop.permute.xlu0 %4576
  %4578 = vrot.lane.b32.xlu0 %v1023, 28
  %v4579 = vpop.permute.xlu0 %4578
  %4580 = vrot.lane.b32.xlu0 %v1024, 28
  %v4581 = vpop.permute.xlu0 %4580
  %4582 = vrot.lane.b32.xlu0 %v1025, 28
  %v4583 = vpop.permute.xlu0 %4582
  %4584 = vrot.lane.b32.xlu0 %v1026, 28
  %v4585 = vpop.permute.xlu0 %4584
  %4586 = vrot.lane.b32.xlu0 %v1027, 28
  %v4587 = vpop.permute.xlu0 %4586
  %4588 = vrot.lane.b32.xlu0 %v1028, 28
  %v4589 = vpop.permute.xlu0 %4588
  %4590 = vrot.lane.b32.xlu0 %v1029, 28
  %v4591 = vpop.permute.xlu0 %4590
  %4592 = vrot.lane.b32.xlu0 %v1030, 28
  %v4593 = vpop.permute.xlu0 %4592
  %4594 = vrot.lane.b32.xlu0 %v1031, 28
  %v4595 = vpop.permute.xlu0 %4594
  %4596 = vrot.lane.b32.xlu0 %v1032, 28
  %v4597 = vpop.permute.xlu0 %4596
  %4598 = vrot.lane.b32.xlu0 %v1033, 28
  %v4599 = vpop.permute.xlu0 %4598
  %4600 = vrot.lane.b32.xlu0 %v1034, 28
  %v4601 = vpop.permute.xlu0 %4600
  %4602 = vrot.lane.b32.xlu0 %v1035, 28
  %v4603 = vpop.permute.xlu0 %4602
  %4604 = vrot.lane.b32.xlu0 %v1036, 28
  %v4605 = vpop.permute.xlu0 %4604
  %4606 = vrot.lane.b32.xlu0 %v1037, 28
  %v4607 = vpop.permute.xlu0 %4606
  %4608 = vrot.lane.b32.xlu0 %v1038, 28
  %v4609 = vpop.permute.xlu0 %4608
  %4610 = vrot.lane.b32.xlu0 %v1039, 28
  %v4611 = vpop.permute.xlu0 %4610
  %4612 = vrot.lane.b32.xlu0 %v1040, 28
  %v4613 = vpop.permute.xlu0 %4612
  %4614 = vrot.lane.b32.xlu0 %v1041, 28
  %v4615 = vpop.permute.xlu0 %4614
  %4616 = vrot.lane.b32.xlu0 %v1042, 28
  %v4617 = vpop.permute.xlu0 %4616
  %4618 = vrot.lane.b32.xlu0 %v1043, 28
  %v4619 = vpop.permute.xlu0 %4618
  %4620 = vrot.lane.b32.xlu0 %v1044, 28
  %v4621 = vpop.permute.xlu0 %4620
  %4622 = vrot.lane.b32.xlu0 %v1045, 28
  %v4623 = vpop.permute.xlu0 %4622
  %4624 = vrot.lane.b32.xlu0 %v1046, 28
  %v4625 = vpop.permute.xlu0 %4624
  %4626 = vrot.lane.b32.xlu0 %v1047, 28
  %v4627 = vpop.permute.xlu0 %4626
  %4628 = vrot.lane.b32.xlu0 %v1048, 28
  %v4629 = vpop.permute.xlu0 %4628
  %4630 = vrot.lane.b32.xlu0 %v1049, 28
  %v4631 = vpop.permute.xlu0 %4630
  %4632 = vrot.lane.b32.xlu0 %v1050, 28
  %v4633 = vpop.permute.xlu0 %4632
  %4634 = vrot.lane.b32.xlu0 %v1051, 28
  %v4635 = vpop.permute.xlu0 %4634
  %4892 = vrot.lane.b32.xlu0 %v1052, 32
  %v4893 = vpop.permute.xlu0 %4892
  %4894 = vrot.lane.b32.xlu0 %v1053, 32
  %v4895 = vpop.permute.xlu0 %4894
  %4896 = vrot.lane.b32.xlu0 %v1054, 32
  %v4897 = vpop.permute.xlu0 %4896
  %4898 = vrot.lane.b32.xlu0 %v1055, 32
  %v4899 = vpop.permute.xlu0 %4898
  %4900 = vrot.lane.b32.xlu0 %v1056, 32
  %v4901 = vpop.permute.xlu0 %4900
  %4902 = vrot.lane.b32.xlu0 %v1057, 32
  %v4903 = vpop.permute.xlu0 %4902
  %4904 = vrot.lane.b32.xlu0 %v1058, 32
  %v4905 = vpop.permute.xlu0 %4904
  %4906 = vrot.lane.b32.xlu0 %v1059, 32
  %v4907 = vpop.permute.xlu0 %4906
  %4908 = vrot.lane.b32.xlu0 %v1060, 32
  %v4909 = vpop.permute.xlu0 %4908
  %4910 = vrot.lane.b32.xlu0 %v1061, 32
  %v4911 = vpop.permute.xlu0 %4910
  %4912 = vrot.lane.b32.xlu0 %v1062, 32
  %v4913 = vpop.permute.xlu0 %4912
  %4914 = vrot.lane.b32.xlu0 %v1063, 32
  %v4915 = vpop.permute.xlu0 %4914
  %4916 = vrot.lane.b32.xlu0 %v1064, 32
  %v4917 = vpop.permute.xlu0 %4916
  %4918 = vrot.lane.b32.xlu0 %v1065, 32
  %v4919 = vpop.permute.xlu0 %4918
  %4920 = vrot.lane.b32.xlu0 %v1066, 32
  %v4921 = vpop.permute.xlu0 %4920
  %4922 = vrot.lane.b32.xlu0 %v1067, 32
  %v4923 = vpop.permute.xlu0 %4922
  %4924 = vrot.lane.b32.xlu0 %v1068, 32
  %v4925 = vpop.permute.xlu0 %4924
  %4926 = vrot.lane.b32.xlu0 %v1069, 32
  %v4927 = vpop.permute.xlu0 %4926
  %4928 = vrot.lane.b32.xlu0 %v1070, 32
  %v4929 = vpop.permute.xlu0 %4928
  %4930 = vrot.lane.b32.xlu0 %v1071, 32
  %v4931 = vpop.permute.xlu0 %4930
  %4932 = vrot.lane.b32.xlu0 %v1072, 32
  %v4933 = vpop.permute.xlu0 %4932
  %4934 = vrot.lane.b32.xlu0 %v1073, 32
  %v4935 = vpop.permute.xlu0 %4934
  %4936 = vrot.lane.b32.xlu0 %v1074, 32
  %v4937 = vpop.permute.xlu0 %4936
  %4938 = vrot.lane.b32.xlu0 %v1075, 32
  %v4939 = vpop.permute.xlu0 %4938
  %4940 = vrot.lane.b32.xlu0 %v1076, 32
  %v4941 = vpop.permute.xlu0 %4940
  %4942 = vrot.lane.b32.xlu0 %v1077, 32
  %v4943 = vpop.permute.xlu0 %4942
  %4944 = vrot.lane.b32.xlu0 %v1078, 32
  %v4945 = vpop.permute.xlu0 %4944
  %4946 = vrot.lane.b32.xlu0 %v1079, 32
  %v4947 = vpop.permute.xlu0 %4946
  %4948 = vrot.lane.b32.xlu0 %v1080, 32
  %v4949 = vpop.permute.xlu0 %4948
  %4950 = vrot.lane.b32.xlu0 %v1081, 32
  %v4951 = vpop.permute.xlu0 %4950
  %4952 = vrot.lane.b32.xlu0 %v1082, 32
  %v4953 = vpop.permute.xlu0 %4952
  %4954 = vrot.lane.b32.xlu0 %v1083, 32
  %v4955 = vpop.permute.xlu0 %4954
  %4956 = vrot.lane.b32.xlu0 %v1084, 32
  %v4957 = vpop.permute.xlu0 %4956
  %4958 = vrot.lane.b32.xlu0 %v1085, 32
  %v4959 = vpop.permute.xlu0 %4958
  %4960 = vrot.lane.b32.xlu0 %v1086, 32
  %v4961 = vpop.permute.xlu0 %4960
  %4962 = vrot.lane.b32.xlu0 %v1087, 32
  %v4963 = vpop.permute.xlu0 %4962
  %4964 = vrot.lane.b32.xlu0 %v1088, 32
  %v4965 = vpop.permute.xlu0 %4964
  %4966 = vrot.lane.b32.xlu0 %v1089, 32
  %v4967 = vpop.permute.xlu0 %4966
  %4968 = vrot.lane.b32.xlu0 %v1090, 32
  %v4969 = vpop.permute.xlu0 %4968
  %4970 = vrot.lane.b32.xlu0 %v1091, 32
  %v4971 = vpop.permute.xlu0 %4970
  %4972 = vrot.lane.b32.xlu0 %v1092, 32
  %v4973 = vpop.permute.xlu0 %4972
  %4974 = vrot.lane.b32.xlu0 %v1093, 32
  %v4975 = vpop.permute.xlu0 %4974
  %4976 = vrot.lane.b32.xlu0 %v1094, 32
  %v4977 = vpop.permute.xlu0 %4976
  %4978 = vrot.lane.b32.xlu0 %v1095, 32
  %v4979 = vpop.permute.xlu0 %4978
  %4980 = vrot.lane.b32.xlu0 %v1096, 32
  %v4981 = vpop.permute.xlu0 %4980
  %4982 = vrot.lane.b32.xlu0 %v1097, 32
  %v4983 = vpop.permute.xlu0 %4982
  %4984 = vrot.lane.b32.xlu0 %v1098, 32
  %v4985 = vpop.permute.xlu0 %4984
  %4986 = vrot.lane.b32.xlu0 %v1099, 32
  %v4987 = vpop.permute.xlu0 %4986
  %4988 = vrot.lane.b32.xlu0 %v1100, 32
  %v4989 = vpop.permute.xlu0 %4988
  %4990 = vrot.lane.b32.xlu0 %v1101, 32
  %v4991 = vpop.permute.xlu0 %4990
  %4992 = vrot.lane.b32.xlu0 %v1102, 32
  %v4993 = vpop.permute.xlu0 %4992
  %4994 = vrot.lane.b32.xlu0 %v1103, 32
  %v4995 = vpop.permute.xlu0 %4994
  %4996 = vrot.lane.b32.xlu0 %v1104, 32
  %v4997 = vpop.permute.xlu0 %4996
  %4998 = vrot.lane.b32.xlu0 %v1105, 32
  %v4999 = vpop.permute.xlu0 %4998
  %5000 = vrot.lane.b32.xlu0 %v1106, 32
  %v5001 = vpop.permute.xlu0 %5000
  %5002 = vrot.lane.b32.xlu0 %v1107, 32
  %v5003 = vpop.permute.xlu0 %5002
  %5004 = vrot.lane.b32.xlu0 %v1108, 32
  %v5005 = vpop.permute.xlu0 %5004
  %5006 = vrot.lane.b32.xlu0 %v1109, 32
  %v5007 = vpop.permute.xlu0 %5006
  %5008 = vrot.lane.b32.xlu0 %v1110, 32
  %v5009 = vpop.permute.xlu0 %5008
  %5010 = vrot.lane.b32.xlu0 %v1111, 32
  %v5011 = vpop.permute.xlu0 %5010
  %5012 = vrot.lane.b32.xlu0 %v1112, 32
  %v5013 = vpop.permute.xlu0 %5012
  %5014 = vrot.lane.b32.xlu0 %v1113, 32
  %v5015 = vpop.permute.xlu0 %5014
  %5016 = vrot.lane.b32.xlu0 %v1114, 32
  %v5017 = vpop.permute.xlu0 %5016
  %5018 = vrot.lane.b32.xlu0 %v1115, 32
  %v5019 = vpop.permute.xlu0 %5018
  %5020 = vrot.lane.b32.xlu0 %v1116, 32
  %v5021 = vpop.permute.xlu0 %5020
  %5022 = vrot.lane.b32.xlu0 %v1117, 32
  %v5023 = vpop.permute.xlu0 %5022
  %5024 = vrot.lane.b32.xlu0 %v1118, 32
  %v5025 = vpop.permute.xlu0 %5024
  %5026 = vrot.lane.b32.xlu0 %v1119, 32
  %v5027 = vpop.permute.xlu0 %5026
  %5028 = vrot.lane.b32.xlu0 %v1120, 32
  %v5029 = vpop.permute.xlu0 %5028
  %5030 = vrot.lane.b32.xlu0 %v1121, 32
  %v5031 = vpop.permute.xlu0 %5030
  %5032 = vrot.lane.b32.xlu0 %v1122, 32
  %v5033 = vpop.permute.xlu0 %5032
  %5034 = vrot.lane.b32.xlu0 %v1123, 32
  %v5035 = vpop.permute.xlu0 %5034
  %5036 = vrot.lane.b32.xlu0 %v1124, 32
  %v5037 = vpop.permute.xlu0 %5036
  %5038 = vrot.lane.b32.xlu0 %v1125, 32
  %v5039 = vpop.permute.xlu0 %5038
  %5040 = vrot.lane.b32.xlu0 %v1126, 32
  %v5041 = vpop.permute.xlu0 %5040
  %5042 = vrot.lane.b32.xlu0 %v1127, 32
  %v5043 = vpop.permute.xlu0 %5042
  %5044 = vrot.lane.b32.xlu0 %v1128, 32
  %v5045 = vpop.permute.xlu0 %5044
  %5046 = vrot.lane.b32.xlu0 %v1129, 32
  %v5047 = vpop.permute.xlu0 %5046
  %5048 = vrot.lane.b32.xlu0 %v1130, 32
  %v5049 = vpop.permute.xlu0 %5048
  %5050 = vrot.lane.b32.xlu0 %v1131, 32
  %v5051 = vpop.permute.xlu0 %5050
  %5052 = vrot.lane.b32.xlu0 %v1132, 32
  %v5053 = vpop.permute.xlu0 %5052
  %5054 = vrot.lane.b32.xlu0 %v1133, 32
  %v5055 = vpop.permute.xlu0 %5054
  %5056 = vrot.lane.b32.xlu0 %v1134, 32
  %v5057 = vpop.permute.xlu0 %5056
  %5058 = vrot.lane.b32.xlu0 %v1135, 32
  %v5059 = vpop.permute.xlu0 %5058
  %5060 = vrot.lane.b32.xlu0 %v1136, 32
  %v5061 = vpop.permute.xlu0 %5060
  %5062 = vrot.lane.b32.xlu0 %v1137, 32
  %v5063 = vpop.permute.xlu0 %5062
  %5064 = vrot.lane.b32.xlu0 %v1138, 32
  %v5065 = vpop.permute.xlu0 %5064
  %5066 = vrot.lane.b32.xlu0 %v1139, 32
  %v5067 = vpop.permute.xlu0 %5066
  %5068 = vrot.lane.b32.xlu0 %v1140, 32
  %v5069 = vpop.permute.xlu0 %5068
  %5070 = vrot.lane.b32.xlu0 %v1141, 32
  %v5071 = vpop.permute.xlu0 %5070
  %5072 = vrot.lane.b32.xlu0 %v1142, 32
  %v5073 = vpop.permute.xlu0 %5072
  %5074 = vrot.lane.b32.xlu0 %v1143, 32
  %v5075 = vpop.permute.xlu0 %5074
  %5076 = vrot.lane.b32.xlu0 %v1144, 32
  %v5077 = vpop.permute.xlu0 %5076
  %5078 = vrot.lane.b32.xlu0 %v1145, 32
  %v5079 = vpop.permute.xlu0 %5078
  %5080 = vrot.lane.b32.xlu0 %v1146, 32
  %v5081 = vpop.permute.xlu0 %5080
  %5082 = vrot.lane.b32.xlu0 %v1147, 32
  %v5083 = vpop.permute.xlu0 %5082
  %5084 = vrot.lane.b32.xlu0 %v1148, 32
  %v5085 = vpop.permute.xlu0 %5084
  %5086 = vrot.lane.b32.xlu0 %v1149, 32
  %v5087 = vpop.permute.xlu0 %5086
  %5088 = vrot.lane.b32.xlu0 %v1150, 32
  %v5089 = vpop.permute.xlu0 %5088
  %5090 = vrot.lane.b32.xlu0 %v1151, 32
  %v5091 = vpop.permute.xlu0 %5090
  %5092 = vrot.lane.b32.xlu0 %v1152, 32
  %v5093 = vpop.permute.xlu0 %5092
  %5094 = vrot.lane.b32.xlu0 %v1153, 32
  %v5095 = vpop.permute.xlu0 %5094
  %5096 = vrot.lane.b32.xlu0 %v1154, 32
  %v5097 = vpop.permute.xlu0 %5096
  %5098 = vrot.lane.b32.xlu0 %v1155, 32
  %v5099 = vpop.permute.xlu0 %5098
  %5100 = vrot.lane.b32.xlu0 %v1156, 32
  %v5101 = vpop.permute.xlu0 %5100
  %5102 = vrot.lane.b32.xlu0 %v1157, 32
  %v5103 = vpop.permute.xlu0 %5102
  %5104 = vrot.lane.b32.xlu0 %v1158, 32
  %v5105 = vpop.permute.xlu0 %5104
  %5106 = vrot.lane.b32.xlu0 %v1159, 32
  %v5107 = vpop.permute.xlu0 %5106
  %5108 = vrot.lane.b32.xlu0 %v1160, 32
  %v5109 = vpop.permute.xlu0 %5108
  %5110 = vrot.lane.b32.xlu0 %v1161, 32
  %v5111 = vpop.permute.xlu0 %5110
  %5112 = vrot.lane.b32.xlu0 %v1162, 32
  %v5113 = vpop.permute.xlu0 %5112
  %5114 = vrot.lane.b32.xlu0 %v1163, 32
  %v5115 = vpop.permute.xlu0 %5114
  %5116 = vrot.lane.b32.xlu0 %v1164, 32
  %v5117 = vpop.permute.xlu0 %5116
  %5118 = vrot.lane.b32.xlu0 %v1165, 32
  %v5119 = vpop.permute.xlu0 %5118
  %5120 = vrot.lane.b32.xlu0 %v1166, 32
  %v5121 = vpop.permute.xlu0 %5120
  %5122 = vrot.lane.b32.xlu0 %v1167, 32
  %v5123 = vpop.permute.xlu0 %5122
  %5124 = vrot.lane.b32.xlu0 %v1168, 32
  %v5125 = vpop.permute.xlu0 %5124
  %5126 = vrot.lane.b32.xlu0 %v1169, 32
  %v5127 = vpop.permute.xlu0 %5126
  %5128 = vrot.lane.b32.xlu0 %v1170, 32
  %v5129 = vpop.permute.xlu0 %5128
  %5130 = vrot.lane.b32.xlu0 %v1171, 32
  %v5131 = vpop.permute.xlu0 %5130
  %5132 = vrot.lane.b32.xlu0 %v1172, 32
  %v5133 = vpop.permute.xlu0 %5132
  %5134 = vrot.lane.b32.xlu0 %v1173, 32
  %v5135 = vpop.permute.xlu0 %5134
  %5136 = vrot.lane.b32.xlu0 %v1174, 32
  %v5137 = vpop.permute.xlu0 %5136
  %5138 = vrot.lane.b32.xlu0 %v1175, 32
  %v5139 = vpop.permute.xlu0 %5138
  %5140 = vrot.lane.b32.xlu0 %v1176, 32
  %v5141 = vpop.permute.xlu0 %5140
  %5142 = vrot.lane.b32.xlu0 %v1177, 32
  %v5143 = vpop.permute.xlu0 %5142
  %5144 = vrot.lane.b32.xlu0 %v1178, 32
  %v5145 = vpop.permute.xlu0 %5144
  %5146 = vrot.lane.b32.xlu0 %v1179, 32
  %v5147 = vpop.permute.xlu0 %5146
  %vm5276 = vcmask 31744
  %v5277 = vsel %vm5276, %v26, %v1309
  %v5278 = vsel %vm5276, %v27, %v1311
  %v5279 = vsel %vm5276, %v28, %v1313
  %v5280 = vsel %vm5276, %v29, %v1315
  %v5281 = vsel %vm5276, %v30, %v1317
  %v5282 = vsel %vm5276, %v31, %v1319
  %v5283 = vsel %vm5276, %v32, %v1321
  %v5284 = vsel %vm5276, %v33, %v1323
  %v5285 = vsel %vm5276, %v34, %v1325
  %v5286 = vsel %vm5276, %v35, %v1327
  %v5287 = vsel %vm5276, %v36, %v1329
  %v5288 = vsel %vm5276, %v37, %v1331
  %v5289 = vsel %vm5276, %v38, %v1333
  %v5290 = vsel %vm5276, %v39, %v1335
  %v5291 = vsel %vm5276, %v40, %v1337
  %v5292 = vsel %vm5276, %v41, %v1339
  %v5293 = vsel %vm5276, %v42, %v1341
  %v5294 = vsel %vm5276, %v43, %v1343
  %v5295 = vsel %vm5276, %v44, %v1345
  %v5296 = vsel %vm5276, %v45, %v1347
  %v5297 = vsel %vm5276, %v46, %v1349
  %v5298 = vsel %vm5276, %v47, %v1351
  %v5299 = vsel %vm5276, %v48, %v1353
  %v5300 = vsel %vm5276, %v49, %v1355
  %v5301 = vsel %vm5276, %v50, %v1357
  %v5302 = vsel %vm5276, %v51, %v1359
  %v5303 = vsel %vm5276, %v52, %v1361
  %v5304 = vsel %vm5276, %v53, %v1363
  %v5305 = vsel %vm5276, %v54, %v1365
  %v5306 = vsel %vm5276, %v55, %v1367
  %v5307 = vsel %vm5276, %v56, %v1369
  %v5308 = vsel %vm5276, %v57, %v1371
  %v5309 = vsel %vm5276, %v58, %v1373
  %v5310 = vsel %vm5276, %v59, %v1375
  %v5311 = vsel %vm5276, %v60, %v1377
  %v5312 = vsel %vm5276, %v61, %v1379
  %v5313 = vsel %vm5276, %v62, %v1381
  %v5314 = vsel %vm5276, %v63, %v1383
  %v5315 = vsel %vm5276, %v64, %v1385
  %v5316 = vsel %vm5276, %v65, %v1387
  %v5317 = vsel %vm5276, %v66, %v1389
  %v5318 = vsel %vm5276, %v67, %v1391
  %v5319 = vsel %vm5276, %v68, %v1393
  %v5320 = vsel %vm5276, %v69, %v1395
  %v5321 = vsel %vm5276, %v70, %v1397
  %v5322 = vsel %vm5276, %v71, %v1399
  %v5323 = vsel %vm5276, %v72, %v1401
  %v5324 = vsel %vm5276, %v73, %v1403
  %v5325 = vsel %vm5276, %v74, %v1405
  %v5326 = vsel %vm5276, %v75, %v1407
  %v5327 = vsel %vm5276, %v76, %v1409
  %v5328 = vsel %vm5276, %v77, %v1411
  %v5329 = vsel %vm5276, %v78, %v1413
  %v5330 = vsel %vm5276, %v79, %v1415
  %v5331 = vsel %vm5276, %v80, %v1417
  %v5332 = vsel %vm5276, %v81, %v1419
  %v5333 = vsel %vm5276, %v82, %v1421
  %v5334 = vsel %vm5276, %v83, %v1423
  %v5335 = vsel %vm5276, %v84, %v1425
  %v5336 = vsel %vm5276, %v85, %v1427
  %v5337 = vsel %vm5276, %v86, %v1429
  %v5338 = vsel %vm5276, %v87, %v1431
  %v5339 = vsel %vm5276, %v88, %v1433
  %v5340 = vsel %vm5276, %v89, %v1435
  %v5341 = vsel %vm5276, %v90, %v1437
  %v5342 = vsel %vm5276, %v91, %v1439
  %v5343 = vsel %vm5276, %v92, %v1441
  %v5344 = vsel %vm5276, %v93, %v1443
  %v5345 = vsel %vm5276, %v94, %v1445
  %v5346 = vsel %vm5276, %v95, %v1447
  %v5347 = vsel %vm5276, %v96, %v1449
  %v5348 = vsel %vm5276, %v97, %v1451
  %v5349 = vsel %vm5276, %v98, %v1453
  %v5350 = vsel %vm5276, %v99, %v1455
  %v5351 = vsel %vm5276, %v100, %v1457
  %v5352 = vsel %vm5276, %v101, %v1459
  %v5353 = vsel %vm5276, %v102, %v1461
  %v5354 = vsel %vm5276, %v103, %v1463
  %v5355 = vsel %vm5276, %v104, %v1465
  %v5356 = vsel %vm5276, %v105, %v1467
  %v5357 = vsel %vm5276, %v106, %v1469
  %v5358 = vsel %vm5276, %v107, %v1471
  %v5359 = vsel %vm5276, %v108, %v1473
  %v5360 = vsel %vm5276, %v109, %v1475
  %v5361 = vsel %vm5276, %v110, %v1477
  %v5362 = vsel %vm5276, %v111, %v1479
  %v5363 = vsel %vm5276, %v112, %v1481
  %v5364 = vsel %vm5276, %v113, %v1483
  %v5365 = vsel %vm5276, %v114, %v1485
  %v5366 = vsel %vm5276, %v115, %v1487
  %v5367 = vsel %vm5276, %v116, %v1489
  %v5368 = vsel %vm5276, %v117, %v1491
  %v5369 = vsel %vm5276, %v118, %v1493
  %v5370 = vsel %vm5276, %v119, %v1495
  %v5371 = vsel %vm5276, %v120, %v1497
  %v5372 = vsel %vm5276, %v121, %v1499
  %v5373 = vsel %vm5276, %v122, %v1501
  %v5374 = vsel %vm5276, %v123, %v1503
  %v5375 = vsel %vm5276, %v124, %v1505
  %v5376 = vsel %vm5276, %v125, %v1507
  %v5377 = vsel %vm5276, %v126, %v1509
  %v5378 = vsel %vm5276, %v127, %v1511
  %v5379 = vsel %vm5276, %v128, %v1513
  %v5380 = vsel %vm5276, %v129, %v1515
  %v5381 = vsel %vm5276, %v130, %v1517
  %v5382 = vsel %vm5276, %v131, %v1519
  %v5383 = vsel %vm5276, %v132, %v1521
  %v5384 = vsel %vm5276, %v133, %v1523
  %v5385 = vsel %vm5276, %v134, %v1525
  %v5386 = vsel %vm5276, %v135, %v1527
  %v5387 = vsel %vm5276, %v136, %v1529
  %v5388 = vsel %vm5276, %v137, %v1531
  %v5389 = vsel %vm5276, %v138, %v1533
  %v5390 = vsel %vm5276, %v139, %v1535
  %v5391 = vsel %vm5276, %v140, %v1537
  %v5392 = vsel %vm5276, %v141, %v1539
  %v5393 = vsel %vm5276, %v142, %v1541
  %v5394 = vsel %vm5276, %v143, %v1543
  %v5395 = vsel %vm5276, %v144, %v1545
  %v5396 = vsel %vm5276, %v145, %v1547
  %v5397 = vsel %vm5276, %v146, %v1549
  %v5398 = vsel %vm5276, %v147, %v1551
  %v5399 = vsel %vm5276, %v148, %v1553
  %v5400 = vsel %vm5276, %v149, %v1555
  %v5401 = vsel %vm5276, %v150, %v1557
  %v5402 = vsel %vm5276, %v151, %v1559
  %v5403 = vsel %vm5276, %v152, %v1561
  %v5404 = vsel %vm5276, %v153, %v1563
  %vm5405 = vcmask 64512
  %v5406 = vsel %vm5405, %v5277, %v1821
  %v5407 = vsel %vm5405, %v5278, %v1823
  %v5408 = vsel %vm5405, %v5279, %v1825
  %v5409 = vsel %vm5405, %v5280, %v1827
  %v5410 = vsel %vm5405, %v5281, %v1829
  %v5411 = vsel %vm5405, %v5282, %v1831
  %v5412 = vsel %vm5405, %v5283, %v1833
  %v5413 = vsel %vm5405, %v5284, %v1835
  %v5414 = vsel %vm5405, %v5285, %v1837
  %v5415 = vsel %vm5405, %v5286, %v1839
  %v5416 = vsel %vm5405, %v5287, %v1841
  %v5417 = vsel %vm5405, %v5288, %v1843
  %v5418 = vsel %vm5405, %v5289, %v1845
  %v5419 = vsel %vm5405, %v5290, %v1847
  %v5420 = vsel %vm5405, %v5291, %v1849
  %v5421 = vsel %vm5405, %v5292, %v1851
  %v5422 = vsel %vm5405, %v5293, %v1853
  %v5423 = vsel %vm5405, %v5294, %v1855
  %v5424 = vsel %vm5405, %v5295, %v1857
  %v5425 = vsel %vm5405, %v5296, %v1859
  %v5426 = vsel %vm5405, %v5297, %v1861
  %v5427 = vsel %vm5405, %v5298, %v1863
  %v5428 = vsel %vm5405, %v5299, %v1865
  %v5429 = vsel %vm5405, %v5300, %v1867
  %v5430 = vsel %vm5405, %v5301, %v1869
  %v5431 = vsel %vm5405, %v5302, %v1871
  %v5432 = vsel %vm5405, %v5303, %v1873
  %v5433 = vsel %vm5405, %v5304, %v1875
  %v5434 = vsel %vm5405, %v5305, %v1877
  %v5435 = vsel %vm5405, %v5306, %v1879
  %v5436 = vsel %vm5405, %v5307, %v1881
  %v5437 = vsel %vm5405, %v5308, %v1883
  %v5438 = vsel %vm5405, %v5309, %v1885
  %v5439 = vsel %vm5405, %v5310, %v1887
  %v5440 = vsel %vm5405, %v5311, %v1889
  %v5441 = vsel %vm5405, %v5312, %v1891
  %v5442 = vsel %vm5405, %v5313, %v1893
  %v5443 = vsel %vm5405, %v5314, %v1895
  %v5444 = vsel %vm5405, %v5315, %v1897
  %v5445 = vsel %vm5405, %v5316, %v1899
  %v5446 = vsel %vm5405, %v5317, %v1901
  %v5447 = vsel %vm5405, %v5318, %v1903
  %v5448 = vsel %vm5405, %v5319, %v1905
  %v5449 = vsel %vm5405, %v5320, %v1907
  %v5450 = vsel %vm5405, %v5321, %v1909
  %v5451 = vsel %vm5405, %v5322, %v1911
  %v5452 = vsel %vm5405, %v5323, %v1913
  %v5453 = vsel %vm5405, %v5324, %v1915
  %v5454 = vsel %vm5405, %v5325, %v1917
  %v5455 = vsel %vm5405, %v5326, %v1919
  %v5456 = vsel %vm5405, %v5327, %v1921
  %v5457 = vsel %vm5405, %v5328, %v1923
  %v5458 = vsel %vm5405, %v5329, %v1925
  %v5459 = vsel %vm5405, %v5330, %v1927
  %v5460 = vsel %vm5405, %v5331, %v1929
  %v5461 = vsel %vm5405, %v5332, %v1931
  %v5462 = vsel %vm5405, %v5333, %v1933
  %v5463 = vsel %vm5405, %v5334, %v1935
  %v5464 = vsel %vm5405, %v5335, %v1937
  %v5465 = vsel %vm5405, %v5336, %v1939
  %v5466 = vsel %vm5405, %v5337, %v1941
  %v5467 = vsel %vm5405, %v5338, %v1943
  %v5468 = vsel %vm5405, %v5339, %v1945
  %v5469 = vsel %vm5405, %v5340, %v1947
  %v5470 = vsel %vm5405, %v5341, %v1949
  %v5471 = vsel %vm5405, %v5342, %v1951
  %v5472 = vsel %vm5405, %v5343, %v1953
  %v5473 = vsel %vm5405, %v5344, %v1955
  %v5474 = vsel %vm5405, %v5345, %v1957
  %v5475 = vsel %vm5405, %v5346, %v1959
  %v5476 = vsel %vm5405, %v5347, %v1961
  %v5477 = vsel %vm5405, %v5348, %v1963
  %v5478 = vsel %vm5405, %v5349, %v1965
  %v5479 = vsel %vm5405, %v5350, %v1967
  %v5480 = vsel %vm5405, %v5351, %v1969
  %v5481 = vsel %vm5405, %v5352, %v1971
  %v5482 = vsel %vm5405, %v5353, %v1973
  %v5483 = vsel %vm5405, %v5354, %v1975
  %v5484 = vsel %vm5405, %v5355, %v1977
  %v5485 = vsel %vm5405, %v5356, %v1979
  %v5486 = vsel %vm5405, %v5357, %v1981
  %v5487 = vsel %vm5405, %v5358, %v1983
  %v5488 = vsel %vm5405, %v5359, %v1985
  %v5489 = vsel %vm5405, %v5360, %v1987
  %v5490 = vsel %vm5405, %v5361, %v1989
  %v5491 = vsel %vm5405, %v5362, %v1991
  %v5492 = vsel %vm5405, %v5363, %v1993
  %v5493 = vsel %vm5405, %v5364, %v1995
  %v5494 = vsel %vm5405, %v5365, %v1997
  %v5495 = vsel %vm5405, %v5366, %v1999
  %v5496 = vsel %vm5405, %v5367, %v2001
  %v5497 = vsel %vm5405, %v5368, %v2003
  %v5498 = vsel %vm5405, %v5369, %v2005
  %v5499 = vsel %vm5405, %v5370, %v2007
  %v5500 = vsel %vm5405, %v5371, %v2009
  %v5501 = vsel %vm5405, %v5372, %v2011
  %v5502 = vsel %vm5405, %v5373, %v2013
  %v5503 = vsel %vm5405, %v5374, %v2015
  %v5504 = vsel %vm5405, %v5375, %v2017
  %v5505 = vsel %vm5405, %v5376, %v2019
  %v5506 = vsel %vm5405, %v5377, %v2021
  %v5507 = vsel %vm5405, %v5378, %v2023
  %v5508 = vsel %vm5405, %v5379, %v2025
  %v5509 = vsel %vm5405, %v5380, %v2027
  %v5510 = vsel %vm5405, %v5381, %v2029
  %v5511 = vsel %vm5405, %v5382, %v2031
  %v5512 = vsel %vm5405, %v5383, %v2033
  %v5513 = vsel %vm5405, %v5384, %v2035
  %v5514 = vsel %vm5405, %v5385, %v2037
  %v5515 = vsel %vm5405, %v5386, %v2039
  %v5516 = vsel %vm5405, %v5387, %v2041
  %v5517 = vsel %vm5405, %v5388, %v2043
  %v5518 = vsel %vm5405, %v5389, %v2045
  %v5519 = vsel %vm5405, %v5390, %v2047
  %v5520 = vsel %vm5405, %v5391, %v2049
  %v5521 = vsel %vm5405, %v5392, %v2051
  %v5522 = vsel %vm5405, %v5393, %v2053
  %v5523 = vsel %vm5405, %v5394, %v2055
  %v5524 = vsel %vm5405, %v5395, %v2057
  %v5525 = vsel %vm5405, %v5396, %v2059
  %v5526 = vsel %vm5405, %v5397, %v2061
  %v5527 = vsel %vm5405, %v5398, %v2063
  %v5528 = vsel %vm5405, %v5399, %v2065
  %v5529 = vsel %vm5405, %v5400, %v2067
  %v5530 = vsel %vm5405, %v5401, %v2069
  %v5531 = vsel %vm5405, %v5402, %v2071
  %v5532 = vsel %vm5405, %v5403, %v2073
  %v5533 = vsel %vm5405, %v5404, %v2075
  %vm5534 = vcmask 97280
  %v5535 = vsel %vm5534, %v5406, %v2333
  %v5536 = vsel %vm5534, %v5407, %v2335
  %v5537 = vsel %vm5534, %v5408, %v2337
  %v5538 = vsel %vm5534, %v5409, %v2339
  %v5539 = vsel %vm5534, %v5410, %v2341
  %v5540 = vsel %vm5534, %v5411, %v2343
  %v5541 = vsel %vm5534, %v5412, %v2345
  %v5542 = vsel %vm5534, %v5413, %v2347
  %v5543 = vsel %vm5534, %v5414, %v2349
  %v5544 = vsel %vm5534, %v5415, %v2351
  %v5545 = vsel %vm5534, %v5416, %v2353
  %v5546 = vsel %vm5534, %v5417, %v2355
  %v5547 = vsel %vm5534, %v5418, %v2357
  %v5548 = vsel %vm5534, %v5419, %v2359
  %v5549 = vsel %vm5534, %v5420, %v2361
  %v5550 = vsel %vm5534, %v5421, %v2363
  %v5551 = vsel %vm5534, %v5422, %v2365
  %v5552 = vsel %vm5534, %v5423, %v2367
  %v5553 = vsel %vm5534, %v5424, %v2369
  %v5554 = vsel %vm5534, %v5425, %v2371
  %v5555 = vsel %vm5534, %v5426, %v2373
  %v5556 = vsel %vm5534, %v5427, %v2375
  %v5557 = vsel %vm5534, %v5428, %v2377
  %v5558 = vsel %vm5534, %v5429, %v2379
  %v5559 = vsel %vm5534, %v5430, %v2381
  %v5560 = vsel %vm5534, %v5431, %v2383
  %v5561 = vsel %vm5534, %v5432, %v2385
  %v5562 = vsel %vm5534, %v5433, %v2387
  %v5563 = vsel %vm5534, %v5434, %v2389
  %v5564 = vsel %vm5534, %v5435, %v2391
  %v5565 = vsel %vm5534, %v5436, %v2393
  %v5566 = vsel %vm5534, %v5437, %v2395
  %v5567 = vsel %vm5534, %v5438, %v2397
  %v5568 = vsel %vm5534, %v5439, %v2399
  %v5569 = vsel %vm5534, %v5440, %v2401
  %v5570 = vsel %vm5534, %v5441, %v2403
  %v5571 = vsel %vm5534, %v5442, %v2405
  %v5572 = vsel %vm5534, %v5443, %v2407
  %v5573 = vsel %vm5534, %v5444, %v2409
  %v5574 = vsel %vm5534, %v5445, %v2411
  %v5575 = vsel %vm5534, %v5446, %v2413
  %v5576 = vsel %vm5534, %v5447, %v2415
  %v5577 = vsel %vm5534, %v5448, %v2417
  %v5578 = vsel %vm5534, %v5449, %v2419
  %v5579 = vsel %vm5534, %v5450, %v2421
  %v5580 = vsel %vm5534, %v5451, %v2423
  %v5581 = vsel %vm5534, %v5452, %v2425
  %v5582 = vsel %vm5534, %v5453, %v2427
  %v5583 = vsel %vm5534, %v5454, %v2429
  %v5584 = vsel %vm5534, %v5455, %v2431
  %v5585 = vsel %vm5534, %v5456, %v2433
  %v5586 = vsel %vm5534, %v5457, %v2435
  %v5587 = vsel %vm5534, %v5458, %v2437
  %v5588 = vsel %vm5534, %v5459, %v2439
  %v5589 = vsel %vm5534, %v5460, %v2441
  %v5590 = vsel %vm5534, %v5461, %v2443
  %v5591 = vsel %vm5534, %v5462, %v2445
  %v5592 = vsel %vm5534, %v5463, %v2447
  %v5593 = vsel %vm5534, %v5464, %v2449
  %v5594 = vsel %vm5534, %v5465, %v2451
  %v5595 = vsel %vm5534, %v5466, %v2453
  %v5596 = vsel %vm5534, %v5467, %v2455
  %v5597 = vsel %vm5534, %v5468, %v2457
  %v5598 = vsel %vm5534, %v5469, %v2459
  %v5599 = vsel %vm5534, %v5470, %v2461
  %v5600 = vsel %vm5534, %v5471, %v2463
  %v5601 = vsel %vm5534, %v5472, %v2465
  %v5602 = vsel %vm5534, %v5473, %v2467
  %v5603 = vsel %vm5534, %v5474, %v2469
  %v5604 = vsel %vm5534, %v5475, %v2471
  %v5605 = vsel %vm5534, %v5476, %v2473
  %v5606 = vsel %vm5534, %v5477, %v2475
  %v5607 = vsel %vm5534, %v5478, %v2477
  %v5608 = vsel %vm5534, %v5479, %v2479
  %v5609 = vsel %vm5534, %v5480, %v2481
  %v5610 = vsel %vm5534, %v5481, %v2483
  %v5611 = vsel %vm5534, %v5482, %v2485
  %v5612 = vsel %vm5534, %v5483, %v2487
  %v5613 = vsel %vm5534, %v5484, %v2489
  %v5614 = vsel %vm5534, %v5485, %v2491
  %v5615 = vsel %vm5534, %v5486, %v2493
  %v5616 = vsel %vm5534, %v5487, %v2495
  %v5617 = vsel %vm5534, %v5488, %v2497
  %v5618 = vsel %vm5534, %v5489, %v2499
  %v5619 = vsel %vm5534, %v5490, %v2501
  %v5620 = vsel %vm5534, %v5491, %v2503
  %v5621 = vsel %vm5534, %v5492, %v2505
  %v5622 = vsel %vm5534, %v5493, %v2507
  %v5623 = vsel %vm5534, %v5494, %v2509
  %v5624 = vsel %vm5534, %v5495, %v2511
  %v5625 = vsel %vm5534, %v5496, %v2513
  %v5626 = vsel %vm5534, %v5497, %v2515
  %v5627 = vsel %vm5534, %v5498, %v2517
  %v5628 = vsel %vm5534, %v5499, %v2519
  %v5629 = vsel %vm5534, %v5500, %v2521
  %v5630 = vsel %vm5534, %v5501, %v2523
  %v5631 = vsel %vm5534, %v5502, %v2525
  %v5632 = vsel %vm5534, %v5503, %v2527
  %v5633 = vsel %vm5534, %v5504, %v2529
  %v5634 = vsel %vm5534, %v5505, %v2531
  %v5635 = vsel %vm5534, %v5506, %v2533
  %v5636 = vsel %vm5534, %v5507, %v2535
  %v5637 = vsel %vm5534, %v5508, %v2537
  %v5638 = vsel %vm5534, %v5509, %v2539
  %v5639 = vsel %vm5534, %v5510, %v2541
  %v5640 = vsel %vm5534, %v5511, %v2543
  %v5641 = vsel %vm5534, %v5512, %v2545
  %v5642 = vsel %vm5534, %v5513, %v2547
  %v5643 = vsel %vm5534, %v5514, %v2549
  %v5644 = vsel %vm5534, %v5515, %v2551
  %v5645 = vsel %vm5534, %v5516, %v2553
  %v5646 = vsel %vm5534, %v5517, %v2555
  %v5647 = vsel %vm5534, %v5518, %v2557
  %v5648 = vsel %vm5534, %v5519, %v2559
  %v5649 = vsel %vm5534, %v5520, %v2561
  %v5650 = vsel %vm5534, %v5521, %v2563
  %v5651 = vsel %vm5534, %v5522, %v2565
  %v5652 = vsel %vm5534, %v5523, %v2567
  %v5653 = vsel %vm5534, %v5524, %v2569
  %v5654 = vsel %vm5534, %v5525, %v2571
  %v5655 = vsel %vm5534, %v5526, %v2573
  %v5656 = vsel %vm5534, %v5527, %v2575
  %v5657 = vsel %vm5534, %v5528, %v2577
  %v5658 = vsel %vm5534, %v5529, %v2579
  %v5659 = vsel %vm5534, %v5530, %v2581
  %v5660 = vsel %vm5534, %v5531, %v2583
  %v5661 = vsel %vm5534, %v5532, %v2585
  %v5662 = vsel %vm5534, %v5533, %v2587
  %vm5663 = vcmask 130048
  %v5664 = vsel %vm5663, %v5535, %v2845
  %v5665 = vsel %vm5663, %v5536, %v2847
  %v5666 = vsel %vm5663, %v5537, %v2849
  %v5667 = vsel %vm5663, %v5538, %v2851
  %v5668 = vsel %vm5663, %v5539, %v2853
  %v5669 = vsel %vm5663, %v5540, %v2855
  %v5670 = vsel %vm5663, %v5541, %v2857
  %v5671 = vsel %vm5663, %v5542, %v2859
  %v5672 = vsel %vm5663, %v5543, %v2861
  %v5673 = vsel %vm5663, %v5544, %v2863
  %v5674 = vsel %vm5663, %v5545, %v2865
  %v5675 = vsel %vm5663, %v5546, %v2867
  %v5676 = vsel %vm5663, %v5547, %v2869
  %v5677 = vsel %vm5663, %v5548, %v2871
  %v5678 = vsel %vm5663, %v5549, %v2873
  %v5679 = vsel %vm5663, %v5550, %v2875
  %v5680 = vsel %vm5663, %v5551, %v2877
  %v5681 = vsel %vm5663, %v5552, %v2879
  %v5682 = vsel %vm5663, %v5553, %v2881
  %v5683 = vsel %vm5663, %v5554, %v2883
  %v5684 = vsel %vm5663, %v5555, %v2885
  %v5685 = vsel %vm5663, %v5556, %v2887
  %v5686 = vsel %vm5663, %v5557, %v2889
  %v5687 = vsel %vm5663, %v5558, %v2891
  %v5688 = vsel %vm5663, %v5559, %v2893
  %v5689 = vsel %vm5663, %v5560, %v2895
  %v5690 = vsel %vm5663, %v5561, %v2897
  %v5691 = vsel %vm5663, %v5562, %v2899
  %v5692 = vsel %vm5663, %v5563, %v2901
  %v5693 = vsel %vm5663, %v5564, %v2903
  %v5694 = vsel %vm5663, %v5565, %v2905
  %v5695 = vsel %vm5663, %v5566, %v2907
  %v5696 = vsel %vm5663, %v5567, %v2909
  %v5697 = vsel %vm5663, %v5568, %v2911
  %v5698 = vsel %vm5663, %v5569, %v2913
  %v5699 = vsel %vm5663, %v5570, %v2915
  %v5700 = vsel %vm5663, %v5571, %v2917
  %v5701 = vsel %vm5663, %v5572, %v2919
  %v5702 = vsel %vm5663, %v5573, %v2921
  %v5703 = vsel %vm5663, %v5574, %v2923
  %v5704 = vsel %vm5663, %v5575, %v2925
  %v5705 = vsel %vm5663, %v5576, %v2927
  %v5706 = vsel %vm5663, %v5577, %v2929
  %v5707 = vsel %vm5663, %v5578, %v2931
  %v5708 = vsel %vm5663, %v5579, %v2933
  %v5709 = vsel %vm5663, %v5580, %v2935
  %v5710 = vsel %vm5663, %v5581, %v2937
  %v5711 = vsel %vm5663, %v5582, %v2939
  %v5712 = vsel %vm5663, %v5583, %v2941
  %v5713 = vsel %vm5663, %v5584, %v2943
  %v5714 = vsel %vm5663, %v5585, %v2945
  %v5715 = vsel %vm5663, %v5586, %v2947
  %v5716 = vsel %vm5663, %v5587, %v2949
  %v5717 = vsel %vm5663, %v5588, %v2951
  %v5718 = vsel %vm5663, %v5589, %v2953
  %v5719 = vsel %vm5663, %v5590, %v2955
  %v5720 = vsel %vm5663, %v5591, %v2957
  %v5721 = vsel %vm5663, %v5592, %v2959
  %v5722 = vsel %vm5663, %v5593, %v2961
  %v5723 = vsel %vm5663, %v5594, %v2963
  %v5724 = vsel %vm5663, %v5595, %v2965
  %v5725 = vsel %vm5663, %v5596, %v2967
  %v5726 = vsel %vm5663, %v5597, %v2969
  %v5727 = vsel %vm5663, %v5598, %v2971
  %v5728 = vsel %vm5663, %v5599, %v2973
  %v5729 = vsel %vm5663, %v5600, %v2975
  %v5730 = vsel %vm5663, %v5601, %v2977
  %v5731 = vsel %vm5663, %v5602, %v2979
  %v5732 = vsel %vm5663, %v5603, %v2981
  %v5733 = vsel %vm5663, %v5604, %v2983
  %v5734 = vsel %vm5663, %v5605, %v2985
  %v5735 = vsel %vm5663, %v5606, %v2987
  %v5736 = vsel %vm5663, %v5607, %v2989
  %v5737 = vsel %vm5663, %v5608, %v2991
  %v5738 = vsel %vm5663, %v5609, %v2993
  %v5739 = vsel %vm5663, %v5610, %v2995
  %v5740 = vsel %vm5663, %v5611, %v2997
  %v5741 = vsel %vm5663, %v5612, %v2999
  %v5742 = vsel %vm5663, %v5613, %v3001
  %v5743 = vsel %vm5663, %v5614, %v3003
  %v5744 = vsel %vm5663, %v5615, %v3005
  %v5745 = vsel %vm5663, %v5616, %v3007
  %v5746 = vsel %vm5663, %v5617, %v3009
  %v5747 = vsel %vm5663, %v5618, %v3011
  %v5748 = vsel %vm5663, %v5619, %v3013
  %v5749 = vsel %vm5663, %v5620, %v3015
  %v5750 = vsel %vm5663, %v5621, %v3017
  %v5751 = vsel %vm5663, %v5622, %v3019
  %v5752 = vsel %vm5663, %v5623, %v3021
  %v5753 = vsel %vm5663, %v5624, %v3023
  %v5754 = vsel %vm5663, %v5625, %v3025
  %v5755 = vsel %vm5663, %v5626, %v3027
  %v5756 = vsel %vm5663, %v5627, %v3029
  %v5757 = vsel %vm5663, %v5628, %v3031
  %v5758 = vsel %vm5663, %v5629, %v3033
  %v5759 = vsel %vm5663, %v5630, %v3035
  %v5760 = vsel %vm5663, %v5631, %v3037
  %v5761 = vsel %vm5663, %v5632, %v3039
  %v5762 = vsel %vm5663, %v5633, %v3041
  %v5763 = vsel %vm5663, %v5634, %v3043
  %v5764 = vsel %vm5663, %v5635, %v3045
  %v5765 = vsel %vm5663, %v5636, %v3047
  %v5766 = vsel %vm5663, %v5637, %v3049
  %v5767 = vsel %vm5663, %v5638, %v3051
  %v5768 = vsel %vm5663, %v5639, %v3053
  %v5769 = vsel %vm5663, %v5640, %v3055
  %v5770 = vsel %vm5663, %v5641, %v3057
  %v5771 = vsel %vm5663, %v5642, %v3059
  %v5772 = vsel %vm5663, %v5643, %v3061
  %v5773 = vsel %vm5663, %v5644, %v3063
  %v5774 = vsel %vm5663, %v5645, %v3065
  %v5775 = vsel %vm5663, %v5646, %v3067
  %v5776 = vsel %vm5663, %v5647, %v3069
  %v5777 = vsel %vm5663, %v5648, %v3071
  %v5778 = vsel %vm5663, %v5649, %v3073
  %v5779 = vsel %vm5663, %v5650, %v3075
  %v5780 = vsel %vm5663, %v5651, %v3077
  %v5781 = vsel %vm5663, %v5652, %v3079
  %v5782 = vsel %vm5663, %v5653, %v3081
  %v5783 = vsel %vm5663, %v5654, %v3083
  %v5784 = vsel %vm5663, %v5655, %v3085
  %v5785 = vsel %vm5663, %v5656, %v3087
  %v5786 = vsel %vm5663, %v5657, %v3089
  %v5787 = vsel %vm5663, %v5658, %v3091
  %v5788 = vsel %vm5663, %v5659, %v3093
  %v5789 = vsel %vm5663, %v5660, %v3095
  %v5790 = vsel %vm5663, %v5661, %v3097
  %v5791 = vsel %vm5663, %v5662, %v3099
  %vm5792 = vcmask 162816
  %v5793 = vsel %vm5792, %v5664, %v3357
  %v5794 = vsel %vm5792, %v5665, %v3359
  %v5795 = vsel %vm5792, %v5666, %v3361
  %v5796 = vsel %vm5792, %v5667, %v3363
  %v5797 = vsel %vm5792, %v5668, %v3365
  %v5798 = vsel %vm5792, %v5669, %v3367
  %v5799 = vsel %vm5792, %v5670, %v3369
  %v5800 = vsel %vm5792, %v5671, %v3371
  %v5801 = vsel %vm5792, %v5672, %v3373
  %v5802 = vsel %vm5792, %v5673, %v3375
  %v5803 = vsel %vm5792, %v5674, %v3377
  %v5804 = vsel %vm5792, %v5675, %v3379
  %v5805 = vsel %vm5792, %v5676, %v3381
  %v5806 = vsel %vm5792, %v5677, %v3383
  %v5807 = vsel %vm5792, %v5678, %v3385
  %v5808 = vsel %vm5792, %v5679, %v3387
  %v5809 = vsel %vm5792, %v5680, %v3389
  %v5810 = vsel %vm5792, %v5681, %v3391
  %v5811 = vsel %vm5792, %v5682, %v3393
  %v5812 = vsel %vm5792, %v5683, %v3395
  %v5813 = vsel %vm5792, %v5684, %v3397
  %v5814 = vsel %vm5792, %v5685, %v3399
  %v5815 = vsel %vm5792, %v5686, %v3401
  %v5816 = vsel %vm5792, %v5687, %v3403
  %v5817 = vsel %vm5792, %v5688, %v3405
  %v5818 = vsel %vm5792, %v5689, %v3407
  %v5819 = vsel %vm5792, %v5690, %v3409
  %v5820 = vsel %vm5792, %v5691, %v3411
  %v5821 = vsel %vm5792, %v5692, %v3413
  %v5822 = vsel %vm5792, %v5693, %v3415
  %v5823 = vsel %vm5792, %v5694, %v3417
  %v5824 = vsel %vm5792, %v5695, %v3419
  %v5825 = vsel %vm5792, %v5696, %v3421
  %v5826 = vsel %vm5792, %v5697, %v3423
  %v5827 = vsel %vm5792, %v5698, %v3425
  %v5828 = vsel %vm5792, %v5699, %v3427
  %v5829 = vsel %vm5792, %v5700, %v3429
  %v5830 = vsel %vm5792, %v5701, %v3431
  %v5831 = vsel %vm5792, %v5702, %v3433
  %v5832 = vsel %vm5792, %v5703, %v3435
  %v5833 = vsel %vm5792, %v5704, %v3437
  %v5834 = vsel %vm5792, %v5705, %v3439
  %v5835 = vsel %vm5792, %v5706, %v3441
  %v5836 = vsel %vm5792, %v5707, %v3443
  %v5837 = vsel %vm5792, %v5708, %v3445
  %v5838 = vsel %vm5792, %v5709, %v3447
  %v5839 = vsel %vm5792, %v5710, %v3449
  %v5840 = vsel %vm5792, %v5711, %v3451
  %v5841 = vsel %vm5792, %v5712, %v3453
  %v5842 = vsel %vm5792, %v5713, %v3455
  %v5843 = vsel %vm5792, %v5714, %v3457
  %v5844 = vsel %vm5792, %v5715, %v3459
  %v5845 = vsel %vm5792, %v5716, %v3461
  %v5846 = vsel %vm5792, %v5717, %v3463
  %v5847 = vsel %vm5792, %v5718, %v3465
  %v5848 = vsel %vm5792, %v5719, %v3467
  %v5849 = vsel %vm5792, %v5720, %v3469
  %v5850 = vsel %vm5792, %v5721, %v3471
  %v5851 = vsel %vm5792, %v5722, %v3473
  %v5852 = vsel %vm5792, %v5723, %v3475
  %v5853 = vsel %vm5792, %v5724, %v3477
  %v5854 = vsel %vm5792, %v5725, %v3479
  %v5855 = vsel %vm5792, %v5726, %v3481
  %v5856 = vsel %vm5792, %v5727, %v3483
  %v5857 = vsel %vm5792, %v5728, %v3485
  %v5858 = vsel %vm5792, %v5729, %v3487
  %v5859 = vsel %vm5792, %v5730, %v3489
  %v5860 = vsel %vm5792, %v5731, %v3491
  %v5861 = vsel %vm5792, %v5732, %v3493
  %v5862 = vsel %vm5792, %v5733, %v3495
  %v5863 = vsel %vm5792, %v5734, %v3497
  %v5864 = vsel %vm5792, %v5735, %v3499
  %v5865 = vsel %vm5792, %v5736, %v3501
  %v5866 = vsel %vm5792, %v5737, %v3503
  %v5867 = vsel %vm5792, %v5738, %v3505
  %v5868 = vsel %vm5792, %v5739, %v3507
  %v5869 = vsel %vm5792, %v5740, %v3509
  %v5870 = vsel %vm5792, %v5741, %v3511
  %v5871 = vsel %vm5792, %v5742, %v3513
  %v5872 = vsel %vm5792, %v5743, %v3515
  %v5873 = vsel %vm5792, %v5744, %v3517
  %v5874 = vsel %vm5792, %v5745, %v3519
  %v5875 = vsel %vm5792, %v5746, %v3521
  %v5876 = vsel %vm5792, %v5747, %v3523
  %v5877 = vsel %vm5792, %v5748, %v3525
  %v5878 = vsel %vm5792, %v5749, %v3527
  %v5879 = vsel %vm5792, %v5750, %v3529
  %v5880 = vsel %vm5792, %v5751, %v3531
  %v5881 = vsel %vm5792, %v5752, %v3533
  %v5882 = vsel %vm5792, %v5753, %v3535
  %v5883 = vsel %vm5792, %v5754, %v3537
  %v5884 = vsel %vm5792, %v5755, %v3539
  %v5885 = vsel %vm5792, %v5756, %v3541
  %v5886 = vsel %vm5792, %v5757, %v3543
  %v5887 = vsel %vm5792, %v5758, %v3545
  %v5888 = vsel %vm5792, %v5759, %v3547
  %v5889 = vsel %vm5792, %v5760, %v3549
  %v5890 = vsel %vm5792, %v5761, %v3551
  %v5891 = vsel %vm5792, %v5762, %v3553
  %v5892 = vsel %vm5792, %v5763, %v3555
  %v5893 = vsel %vm5792, %v5764, %v3557
  %v5894 = vsel %vm5792, %v5765, %v3559
  %v5895 = vsel %vm5792, %v5766, %v3561
  %v5896 = vsel %vm5792, %v5767, %v3563
  %v5897 = vsel %vm5792, %v5768, %v3565
  %v5898 = vsel %vm5792, %v5769, %v3567
  %v5899 = vsel %vm5792, %v5770, %v3569
  %v5900 = vsel %vm5792, %v5771, %v3571
  %v5901 = vsel %vm5792, %v5772, %v3573
  %v5902 = vsel %vm5792, %v5773, %v3575
  %v5903 = vsel %vm5792, %v5774, %v3577
  %v5904 = vsel %vm5792, %v5775, %v3579
  %v5905 = vsel %vm5792, %v5776, %v3581
  %v5906 = vsel %vm5792, %v5777, %v3583
  %v5907 = vsel %vm5792, %v5778, %v3585
  %v5908 = vsel %vm5792, %v5779, %v3587
  %v5909 = vsel %vm5792, %v5780, %v3589
  %v5910 = vsel %vm5792, %v5781, %v3591
  %v5911 = vsel %vm5792, %v5782, %v3593
  %v5912 = vsel %vm5792, %v5783, %v3595
  %v5913 = vsel %vm5792, %v5784, %v3597
  %v5914 = vsel %vm5792, %v5785, %v3599
  %v5915 = vsel %vm5792, %v5786, %v3601
  %v5916 = vsel %vm5792, %v5787, %v3603
  %v5917 = vsel %vm5792, %v5788, %v3605
  %v5918 = vsel %vm5792, %v5789, %v3607
  %v5919 = vsel %vm5792, %v5790, %v3609
  %v5920 = vsel %vm5792, %v5791, %v3611
  %vm5921 = vcmask 195584
  %v5922 = vsel %vm5921, %v5793, %v3869
  %v5923 = vsel %vm5921, %v5794, %v3871
  %v5924 = vsel %vm5921, %v5795, %v3873
  %v5925 = vsel %vm5921, %v5796, %v3875
  %v5926 = vsel %vm5921, %v5797, %v3877
  %v5927 = vsel %vm5921, %v5798, %v3879
  %v5928 = vsel %vm5921, %v5799, %v3881
  %v5929 = vsel %vm5921, %v5800, %v3883
  %v5930 = vsel %vm5921, %v5801, %v3885
  %v5931 = vsel %vm5921, %v5802, %v3887
  %v5932 = vsel %vm5921, %v5803, %v3889
  %v5933 = vsel %vm5921, %v5804, %v3891
  %v5934 = vsel %vm5921, %v5805, %v3893
  %v5935 = vsel %vm5921, %v5806, %v3895
  %v5936 = vsel %vm5921, %v5807, %v3897
  %v5937 = vsel %vm5921, %v5808, %v3899
  %v5938 = vsel %vm5921, %v5809, %v3901
  %v5939 = vsel %vm5921, %v5810, %v3903
  %v5940 = vsel %vm5921, %v5811, %v3905
  %v5941 = vsel %vm5921, %v5812, %v3907
  %v5942 = vsel %vm5921, %v5813, %v3909
  %v5943 = vsel %vm5921, %v5814, %v3911
  %v5944 = vsel %vm5921, %v5815, %v3913
  %v5945 = vsel %vm5921, %v5816, %v3915
  %v5946 = vsel %vm5921, %v5817, %v3917
  %v5947 = vsel %vm5921, %v5818, %v3919
  %v5948 = vsel %vm5921, %v5819, %v3921
  %v5949 = vsel %vm5921, %v5820, %v3923
  %v5950 = vsel %vm5921, %v5821, %v3925
  %v5951 = vsel %vm5921, %v5822, %v3927
  %v5952 = vsel %vm5921, %v5823, %v3929
  %v5953 = vsel %vm5921, %v5824, %v3931
  %v5954 = vsel %vm5921, %v5825, %v3933
  %v5955 = vsel %vm5921, %v5826, %v3935
  %v5956 = vsel %vm5921, %v5827, %v3937
  %v5957 = vsel %vm5921, %v5828, %v3939
  %v5958 = vsel %vm5921, %v5829, %v3941
  %v5959 = vsel %vm5921, %v5830, %v3943
  %v5960 = vsel %vm5921, %v5831, %v3945
  %v5961 = vsel %vm5921, %v5832, %v3947
  %v5962 = vsel %vm5921, %v5833, %v3949
  %v5963 = vsel %vm5921, %v5834, %v3951
  %v5964 = vsel %vm5921, %v5835, %v3953
  %v5965 = vsel %vm5921, %v5836, %v3955
  %v5966 = vsel %vm5921, %v5837, %v3957
  %v5967 = vsel %vm5921, %v5838, %v3959
  %v5968 = vsel %vm5921, %v5839, %v3961
  %v5969 = vsel %vm5921, %v5840, %v3963
  %v5970 = vsel %vm5921, %v5841, %v3965
  %v5971 = vsel %vm5921, %v5842, %v3967
  %v5972 = vsel %vm5921, %v5843, %v3969
  %v5973 = vsel %vm5921, %v5844, %v3971
  %v5974 = vsel %vm5921, %v5845, %v3973
  %v5975 = vsel %vm5921, %v5846, %v3975
  %v5976 = vsel %vm5921, %v5847, %v3977
  %v5977 = vsel %vm5921, %v5848, %v3979
  %v5978 = vsel %vm5921, %v5849, %v3981
  %v5979 = vsel %vm5921, %v5850, %v3983
  %v5980 = vsel %vm5921, %v5851, %v3985
  %v5981 = vsel %vm5921, %v5852, %v3987
  %v5982 = vsel %vm5921, %v5853, %v3989
  %v5983 = vsel %vm5921, %v5854, %v3991
  %v5984 = vsel %vm5921, %v5855, %v3993
  %v5985 = vsel %vm5921, %v5856, %v3995
  %v5986 = vsel %vm5921, %v5857, %v3997
  %v5987 = vsel %vm5921, %v5858, %v3999
  %v5988 = vsel %vm5921, %v5859, %v4001
  %v5989 = vsel %vm5921, %v5860, %v4003
  %v5990 = vsel %vm5921, %v5861, %v4005
  %v5991 = vsel %vm5921, %v5862, %v4007
  %v5992 = vsel %vm5921, %v5863, %v4009
  %v5993 = vsel %vm5921, %v5864, %v4011
  %v5994 = vsel %vm5921, %v5865, %v4013
  %v5995 = vsel %vm5921, %v5866, %v4015
  %v5996 = vsel %vm5921, %v5867, %v4017
  %v5997 = vsel %vm5921, %v5868, %v4019
  %v5998 = vsel %vm5921, %v5869, %v4021
  %v5999 = vsel %vm5921, %v5870, %v4023
  %v6000 = vsel %vm5921, %v5871, %v4025
  %v6001 = vsel %vm5921, %v5872, %v4027
  %v6002 = vsel %vm5921, %v5873, %v4029
  %v6003 = vsel %vm5921, %v5874, %v4031
  %v6004 = vsel %vm5921, %v5875, %v4033
  %v6005 = vsel %vm5921, %v5876, %v4035
  %v6006 = vsel %vm5921, %v5877, %v4037
  %v6007 = vsel %vm5921, %v5878, %v4039
  %v6008 = vsel %vm5921, %v5879, %v4041
  %v6009 = vsel %vm5921, %v5880, %v4043
  %v6010 = vsel %vm5921, %v5881, %v4045
  %v6011 = vsel %vm5921, %v5882, %v4047
  %v6012 = vsel %vm5921, %v5883, %v4049
  %v6013 = vsel %vm5921, %v5884, %v4051
  %v6014 = vsel %vm5921, %v5885, %v4053
  %v6015 = vsel %vm5921, %v5886, %v4055
  %v6016 = vsel %vm5921, %v5887, %v4057
  %v6017 = vsel %vm5921, %v5888, %v4059
  %v6018 = vsel %vm5921, %v5889, %v4061
  %v6019 = vsel %vm5921, %v5890, %v4063
  %v6020 = vsel %vm5921, %v5891, %v4065
  %v6021 = vsel %vm5921, %v5892, %v4067
  %v6022 = vsel %vm5921, %v5893, %v4069
  %v6023 = vsel %vm5921, %v5894, %v4071
  %v6024 = vsel %vm5921, %v5895, %v4073
  %v6025 = vsel %vm5921, %v5896, %v4075
  %v6026 = vsel %vm5921, %v5897, %v4077
  %v6027 = vsel %vm5921, %v5898, %v4079
  %v6028 = vsel %vm5921, %v5899, %v4081
  %v6029 = vsel %vm5921, %v5900, %v4083
  %v6030 = vsel %vm5921, %v5901, %v4085
  %v6031 = vsel %vm5921, %v5902, %v4087
  %v6032 = vsel %vm5921, %v5903, %v4089
  %v6033 = vsel %vm5921, %v5904, %v4091
  %v6034 = vsel %vm5921, %v5905, %v4093
  %v6035 = vsel %vm5921, %v5906, %v4095
  %v6036 = vsel %vm5921, %v5907, %v4097
  %v6037 = vsel %vm5921, %v5908, %v4099
  %v6038 = vsel %vm5921, %v5909, %v4101
  %v6039 = vsel %vm5921, %v5910, %v4103
  %v6040 = vsel %vm5921, %v5911, %v4105
  %v6041 = vsel %vm5921, %v5912, %v4107
  %v6042 = vsel %vm5921, %v5913, %v4109
  %v6043 = vsel %vm5921, %v5914, %v4111
  %v6044 = vsel %vm5921, %v5915, %v4113
  %v6045 = vsel %vm5921, %v5916, %v4115
  %v6046 = vsel %vm5921, %v5917, %v4117
  %v6047 = vsel %vm5921, %v5918, %v4119
  %v6048 = vsel %vm5921, %v5919, %v4121
  %v6049 = vsel %vm5921, %v5920, %v4123
  %vm6050 = vcmask 228352
  %v6051 = vsel %vm6050, %v5922, %v4381
  %v6052 = vsel %vm6050, %v5923, %v4383
  %v6053 = vsel %vm6050, %v5924, %v4385
  %v6054 = vsel %vm6050, %v5925, %v4387
  %v6055 = vsel %vm6050, %v5926, %v4389
  %v6056 = vsel %vm6050, %v5927, %v4391
  %v6057 = vsel %vm6050, %v5928, %v4393
  %v6058 = vsel %vm6050, %v5929, %v4395
  %v6059 = vsel %vm6050, %v5930, %v4397
  %v6060 = vsel %vm6050, %v5931, %v4399
  %v6061 = vsel %vm6050, %v5932, %v4401
  %v6062 = vsel %vm6050, %v5933, %v4403
  %v6063 = vsel %vm6050, %v5934, %v4405
  %v6064 = vsel %vm6050, %v5935, %v4407
  %v6065 = vsel %vm6050, %v5936, %v4409
  %v6066 = vsel %vm6050, %v5937, %v4411
  %v6067 = vsel %vm6050, %v5938, %v4413
  %v6068 = vsel %vm6050, %v5939, %v4415
  %v6069 = vsel %vm6050, %v5940, %v4417
  %v6070 = vsel %vm6050, %v5941, %v4419
  %v6071 = vsel %vm6050, %v5942, %v4421
  %v6072 = vsel %vm6050, %v5943, %v4423
  %v6073 = vsel %vm6050, %v5944, %v4425
  %v6074 = vsel %vm6050, %v5945, %v4427
  %v6075 = vsel %vm6050, %v5946, %v4429
  %v6076 = vsel %vm6050, %v5947, %v4431
  %v6077 = vsel %vm6050, %v5948, %v4433
  %v6078 = vsel %vm6050, %v5949, %v4435
  %v6079 = vsel %vm6050, %v5950, %v4437
  %v6080 = vsel %vm6050, %v5951, %v4439
  %v6081 = vsel %vm6050, %v5952, %v4441
  %v6082 = vsel %vm6050, %v5953, %v4443
  %v6083 = vsel %vm6050, %v5954, %v4445
  %v6084 = vsel %vm6050, %v5955, %v4447
  %v6085 = vsel %vm6050, %v5956, %v4449
  %v6086 = vsel %vm6050, %v5957, %v4451
  %v6087 = vsel %vm6050, %v5958, %v4453
  %v6088 = vsel %vm6050, %v5959, %v4455
  %v6089 = vsel %vm6050, %v5960, %v4457
  %v6090 = vsel %vm6050, %v5961, %v4459
  %v6091 = vsel %vm6050, %v5962, %v4461
  %v6092 = vsel %vm6050, %v5963, %v4463
  %v6093 = vsel %vm6050, %v5964, %v4465
  %v6094 = vsel %vm6050, %v5965, %v4467
  %v6095 = vsel %vm6050, %v5966, %v4469
  %v6096 = vsel %vm6050, %v5967, %v4471
  %v6097 = vsel %vm6050, %v5968, %v4473
  %v6098 = vsel %vm6050, %v5969, %v4475
  %v6099 = vsel %vm6050, %v5970, %v4477
  %v6100 = vsel %vm6050, %v5971, %v4479
  %v6101 = vsel %vm6050, %v5972, %v4481
  %v6102 = vsel %vm6050, %v5973, %v4483
  %v6103 = vsel %vm6050, %v5974, %v4485
  %v6104 = vsel %vm6050, %v5975, %v4487
  %v6105 = vsel %vm6050, %v5976, %v4489
  %v6106 = vsel %vm6050, %v5977, %v4491
  %v6107 = vsel %vm6050, %v5978, %v4493
  %v6108 = vsel %vm6050, %v5979, %v4495
  %v6109 = vsel %vm6050, %v5980, %v4497
  %v6110 = vsel %vm6050, %v5981, %v4499
  %v6111 = vsel %vm6050, %v5982, %v4501
  %v6112 = vsel %vm6050, %v5983, %v4503
  %v6113 = vsel %vm6050, %v5984, %v4505
  %v6114 = vsel %vm6050, %v5985, %v4507
  %v6115 = vsel %vm6050, %v5986, %v4509
  %v6116 = vsel %vm6050, %v5987, %v4511
  %v6117 = vsel %vm6050, %v5988, %v4513
  %v6118 = vsel %vm6050, %v5989, %v4515
  %v6119 = vsel %vm6050, %v5990, %v4517
  %v6120 = vsel %vm6050, %v5991, %v4519
  %v6121 = vsel %vm6050, %v5992, %v4521
  %v6122 = vsel %vm6050, %v5993, %v4523
  %v6123 = vsel %vm6050, %v5994, %v4525
  %v6124 = vsel %vm6050, %v5995, %v4527
  %v6125 = vsel %vm6050, %v5996, %v4529
  %v6126 = vsel %vm6050, %v5997, %v4531
  %v6127 = vsel %vm6050, %v5998, %v4533
  %v6128 = vsel %vm6050, %v5999, %v4535
  %v6129 = vsel %vm6050, %v6000, %v4537
  %v6130 = vsel %vm6050, %v6001, %v4539
  %v6131 = vsel %vm6050, %v6002, %v4541
  %v6132 = vsel %vm6050, %v6003, %v4543
  %v6133 = vsel %vm6050, %v6004, %v4545
  %v6134 = vsel %vm6050, %v6005, %v4547
  %v6135 = vsel %vm6050, %v6006, %v4549
  %v6136 = vsel %vm6050, %v6007, %v4551
  %v6137 = vsel %vm6050, %v6008, %v4553
  %v6138 = vsel %vm6050, %v6009, %v4555
  %v6139 = vsel %vm6050, %v6010, %v4557
  %v6140 = vsel %vm6050, %v6011, %v4559
  %v6141 = vsel %vm6050, %v6012, %v4561
  %v6142 = vsel %vm6050, %v6013, %v4563
  %v6143 = vsel %vm6050, %v6014, %v4565
  %v6144 = vsel %vm6050, %v6015, %v4567
  %v6145 = vsel %vm6050, %v6016, %v4569
  %v6146 = vsel %vm6050, %v6017, %v4571
  %v6147 = vsel %vm6050, %v6018, %v4573
  %v6148 = vsel %vm6050, %v6019, %v4575
  %v6149 = vsel %vm6050, %v6020, %v4577
  %v6150 = vsel %vm6050, %v6021, %v4579
  %v6151 = vsel %vm6050, %v6022, %v4581
  %v6152 = vsel %vm6050, %v6023, %v4583
  %v6153 = vsel %vm6050, %v6024, %v4585
  %v6154 = vsel %vm6050, %v6025, %v4587
  %v6155 = vsel %vm6050, %v6026, %v4589
  %v6156 = vsel %vm6050, %v6027, %v4591
  %v6157 = vsel %vm6050, %v6028, %v4593
  %v6158 = vsel %vm6050, %v6029, %v4595
  %v6159 = vsel %vm6050, %v6030, %v4597
  %v6160 = vsel %vm6050, %v6031, %v4599
  %v6161 = vsel %vm6050, %v6032, %v4601
  %v6162 = vsel %vm6050, %v6033, %v4603
  %v6163 = vsel %vm6050, %v6034, %v4605
  %v6164 = vsel %vm6050, %v6035, %v4607
  %v6165 = vsel %vm6050, %v6036, %v4609
  %v6166 = vsel %vm6050, %v6037, %v4611
  %v6167 = vsel %vm6050, %v6038, %v4613
  %v6168 = vsel %vm6050, %v6039, %v4615
  %v6169 = vsel %vm6050, %v6040, %v4617
  %v6170 = vsel %vm6050, %v6041, %v4619
  %v6171 = vsel %vm6050, %v6042, %v4621
  %v6172 = vsel %vm6050, %v6043, %v4623
  %v6173 = vsel %vm6050, %v6044, %v4625
  %v6174 = vsel %vm6050, %v6045, %v4627
  %v6175 = vsel %vm6050, %v6046, %v4629
  %v6176 = vsel %vm6050, %v6047, %v4631
  %v6177 = vsel %vm6050, %v6048, %v4633
  %v6178 = vsel %vm6050, %v6049, %v4635
  %vm6179 = vcmask 261120
  %v6180 = vsel %vm6179, %v6051, %v4893
  %v6181 = vsel %vm6179, %v6052, %v4895
  %v6182 = vsel %vm6179, %v6053, %v4897
  %v6183 = vsel %vm6179, %v6054, %v4899
  %v6184 = vsel %vm6179, %v6055, %v4901
  %v6185 = vsel %vm6179, %v6056, %v4903
  %v6186 = vsel %vm6179, %v6057, %v4905
  %v6187 = vsel %vm6179, %v6058, %v4907
  %v6188 = vsel %vm6179, %v6059, %v4909
  %v6189 = vsel %vm6179, %v6060, %v4911
  %v6190 = vsel %vm6179, %v6061, %v4913
  %v6191 = vsel %vm6179, %v6062, %v4915
  %v6192 = vsel %vm6179, %v6063, %v4917
  %v6193 = vsel %vm6179, %v6064, %v4919
  %v6194 = vsel %vm6179, %v6065, %v4921
  %v6195 = vsel %vm6179, %v6066, %v4923
  %v6196 = vsel %vm6179, %v6067, %v4925
  %v6197 = vsel %vm6179, %v6068, %v4927
  %v6198 = vsel %vm6179, %v6069, %v4929
  %v6199 = vsel %vm6179, %v6070, %v4931
  %v6200 = vsel %vm6179, %v6071, %v4933
  %v6201 = vsel %vm6179, %v6072, %v4935
  %v6202 = vsel %vm6179, %v6073, %v4937
  %v6203 = vsel %vm6179, %v6074, %v4939
  %v6204 = vsel %vm6179, %v6075, %v4941
  %v6205 = vsel %vm6179, %v6076, %v4943
  %v6206 = vsel %vm6179, %v6077, %v4945
  %v6207 = vsel %vm6179, %v6078, %v4947
  %v6208 = vsel %vm6179, %v6079, %v4949
  %v6209 = vsel %vm6179, %v6080, %v4951
  %v6210 = vsel %vm6179, %v6081, %v4953
  %v6211 = vsel %vm6179, %v6082, %v4955
  %v6212 = vsel %vm6179, %v6083, %v4957
  %v6213 = vsel %vm6179, %v6084, %v4959
  %v6214 = vsel %vm6179, %v6085, %v4961
  %v6215 = vsel %vm6179, %v6086, %v4963
  %v6216 = vsel %vm6179, %v6087, %v4965
  %v6217 = vsel %vm6179, %v6088, %v4967
  %v6218 = vsel %vm6179, %v6089, %v4969
  %v6219 = vsel %vm6179, %v6090, %v4971
  %v6220 = vsel %vm6179, %v6091, %v4973
  %v6221 = vsel %vm6179, %v6092, %v4975
  %v6222 = vsel %vm6179, %v6093, %v4977
  %v6223 = vsel %vm6179, %v6094, %v4979
  %v6224 = vsel %vm6179, %v6095, %v4981
  %v6225 = vsel %vm6179, %v6096, %v4983
  %v6226 = vsel %vm6179, %v6097, %v4985
  %v6227 = vsel %vm6179, %v6098, %v4987
  %v6228 = vsel %vm6179, %v6099, %v4989
  %v6229 = vsel %vm6179, %v6100, %v4991
  %v6230 = vsel %vm6179, %v6101, %v4993
  %v6231 = vsel %vm6179, %v6102, %v4995
  %v6232 = vsel %vm6179, %v6103, %v4997
  %v6233 = vsel %vm6179, %v6104, %v4999
  %v6234 = vsel %vm6179, %v6105, %v5001
  %v6235 = vsel %vm6179, %v6106, %v5003
  %v6236 = vsel %vm6179, %v6107, %v5005
  %v6237 = vsel %vm6179, %v6108, %v5007
  %v6238 = vsel %vm6179, %v6109, %v5009
  %v6239 = vsel %vm6179, %v6110, %v5011
  %v6240 = vsel %vm6179, %v6111, %v5013
  %v6241 = vsel %vm6179, %v6112, %v5015
  %v6242 = vsel %vm6179, %v6113, %v5017
  %v6243 = vsel %vm6179, %v6114, %v5019
  %v6244 = vsel %vm6179, %v6115, %v5021
  %v6245 = vsel %vm6179, %v6116, %v5023
  %v6246 = vsel %vm6179, %v6117, %v5025
  %v6247 = vsel %vm6179, %v6118, %v5027
  %v6248 = vsel %vm6179, %v6119, %v5029
  %v6249 = vsel %vm6179, %v6120, %v5031
  %v6250 = vsel %vm6179, %v6121, %v5033
  %v6251 = vsel %vm6179, %v6122, %v5035
  %v6252 = vsel %vm6179, %v6123, %v5037
  %v6253 = vsel %vm6179, %v6124, %v5039
  %v6254 = vsel %vm6179, %v6125, %v5041
  %v6255 = vsel %vm6179, %v6126, %v5043
  %v6256 = vsel %vm6179, %v6127, %v5045
  %v6257 = vsel %vm6179, %v6128, %v5047
  %v6258 = vsel %vm6179, %v6129, %v5049
  %v6259 = vsel %vm6179, %v6130, %v5051
  %v6260 = vsel %vm6179, %v6131, %v5053
  %v6261 = vsel %vm6179, %v6132, %v5055
  %v6262 = vsel %vm6179, %v6133, %v5057
  %v6263 = vsel %vm6179, %v6134, %v5059
  %v6264 = vsel %vm6179, %v6135, %v5061
  %v6265 = vsel %vm6179, %v6136, %v5063
  %v6266 = vsel %vm6179, %v6137, %v5065
  %v6267 = vsel %vm6179, %v6138, %v5067
  %v6268 = vsel %vm6179, %v6139, %v5069
  %v6269 = vsel %vm6179, %v6140, %v5071
  %v6270 = vsel %vm6179, %v6141, %v5073
  %v6271 = vsel %vm6179, %v6142, %v5075
  %v6272 = vsel %vm6179, %v6143, %v5077
  %v6273 = vsel %vm6179, %v6144, %v5079
  %v6274 = vsel %vm6179, %v6145, %v5081
  %v6275 = vsel %vm6179, %v6146, %v5083
  %v6276 = vsel %vm6179, %v6147, %v5085
  %v6277 = vsel %vm6179, %v6148, %v5087
  %v6278 = vsel %vm6179, %v6149, %v5089
  %v6279 = vsel %vm6179, %v6150, %v5091
  %v6280 = vsel %vm6179, %v6151, %v5093
  %v6281 = vsel %vm6179, %v6152, %v5095
  %v6282 = vsel %vm6179, %v6153, %v5097
  %v6283 = vsel %vm6179, %v6154, %v5099
  %v6284 = vsel %vm6179, %v6155, %v5101
  %v6285 = vsel %vm6179, %v6156, %v5103
  %v6286 = vsel %vm6179, %v6157, %v5105
  %v6287 = vsel %vm6179, %v6158, %v5107
  %v6288 = vsel %vm6179, %v6159, %v5109
  %v6289 = vsel %vm6179, %v6160, %v5111
  %v6290 = vsel %vm6179, %v6161, %v5113
  %v6291 = vsel %vm6179, %v6162, %v5115
  %v6292 = vsel %vm6179, %v6163, %v5117
  %v6293 = vsel %vm6179, %v6164, %v5119
  %v6294 = vsel %vm6179, %v6165, %v5121
  %v6295 = vsel %vm6179, %v6166, %v5123
  %v6296 = vsel %vm6179, %v6167, %v5125
  %v6297 = vsel %vm6179, %v6168, %v5127
  %v6298 = vsel %vm6179, %v6169, %v5129
  %v6299 = vsel %vm6179, %v6170, %v5131
  %v6300 = vsel %vm6179, %v6171, %v5133
  %v6301 = vsel %vm6179, %v6172, %v5135
  %v6302 = vsel %vm6179, %v6173, %v5137
  %v6303 = vsel %vm6179, %v6174, %v5139
  %v6304 = vsel %vm6179, %v6175, %v5141
  %v6305 = vsel %vm6179, %v6176, %v5143
  %v6306 = vsel %vm6179, %v6177, %v5145
  %v6307 = vsel %vm6179, %v6178, %v5147
  %v6308 = vld [vmem:[%s1] sm:$0xff]
  %v6309 = vld [vmem:[%s1 + $0x8] sm:$0xff]
  %v6310 = vld [vmem:[%s1 + $0x10] sm:$0xff]
  %v6311 = vld [vmem:[%s1 + $0x18] sm:$0xff]
  %v6312 = vld [vmem:[%s1 + $0x20] sm:$0xf]
  %v6313 = vld [vmem:[%s2] sm:$0x1]
  %v6315 = vlaneseq
  %v6316 = vshrl.u32 %v6315, 7
  %v6317 = vsub.s32 0, %v6316
  %v6318 = vrot.slane %v6313, %v6317
  %vm6320 = vcmask 293888
  %v6322 = vsel %vm6320, %v6180, 0
  %v6325 = vsel %vm6320, %v6181, 0
  %v6328 = vsel %vm6320, %v6182, 0
  %v6331 = vsel %vm6320, %v6183, 0
  %v6334 = vsel %vm6320, %v6184, 0
  %v6337 = vsel %vm6320, %v6185, 0
  %v6340 = vsel %vm6320, %v6186, 0
  %v6343 = vsel %vm6320, %v6187, 0
  %v6346 = vsel %vm6320, %v6188, 0
  %v6349 = vsel %vm6320, %v6189, 0
  %v6352 = vsel %vm6320, %v6190, 0
  %v6355 = vsel %vm6320, %v6191, 0
  %v6358 = vsel %vm6320, %v6192, 0
  %v6361 = vsel %vm6320, %v6193, 0
  %v6364 = vsel %vm6320, %v6194, 0
  %v6367 = vsel %vm6320, %v6195, 0
  %v6370 = vsel %vm6320, %v6196, 0
  %v6373 = vsel %vm6320, %v6197, 0
  %v6376 = vsel %vm6320, %v6198, 0
  %v6379 = vsel %vm6320, %v6199, 0
  %v6382 = vsel %vm6320, %v6200, 0
  %v6385 = vsel %vm6320, %v6201, 0
  %v6388 = vsel %vm6320, %v6202, 0
  %v6391 = vsel %vm6320, %v6203, 0
  %v6394 = vsel %vm6320, %v6204, 0
  %v6397 = vsel %vm6320, %v6205, 0
  %v6400 = vsel %vm6320, %v6206, 0
  %v6403 = vsel %vm6320, %v6207, 0
  %v6406 = vsel %vm6320, %v6208, 0
  %v6409 = vsel %vm6320, %v6209, 0
  %v6412 = vsel %vm6320, %v6210, 0
  %v6415 = vsel %vm6320, %v6211, 0
  %v6418 = vsel %vm6320, %v6212, 0
  %v6421 = vsel %vm6320, %v6213, 0
  %v6424 = vsel %vm6320, %v6214, 0
  %v6427 = vsel %vm6320, %v6215, 0
  %v6430 = vsel %vm6320, %v6216, 0
  %v6433 = vsel %vm6320, %v6217, 0
  %v6436 = vsel %vm6320, %v6218, 0
  %v6439 = vsel %vm6320, %v6219, 0
  %v6442 = vsel %vm6320, %v6220, 0
  %v6445 = vsel %vm6320, %v6221, 0
  %v6448 = vsel %vm6320, %v6222, 0
  %v6451 = vsel %vm6320, %v6223, 0
  %v6454 = vsel %vm6320, %v6224, 0
  %v6457 = vsel %vm6320, %v6225, 0
  %v6460 = vsel %vm6320, %v6226, 0
  %v6463 = vsel %vm6320, %v6227, 0
  %v6466 = vsel %vm6320, %v6228, 0
  %v6469 = vsel %vm6320, %v6229, 0
  %v6472 = vsel %vm6320, %v6230, 0
  %v6475 = vsel %vm6320, %v6231, 0
  %v6478 = vsel %vm6320, %v6232, 0
  %v6481 = vsel %vm6320, %v6233, 0
  %v6484 = vsel %vm6320, %v6234, 0
  %v6487 = vsel %vm6320, %v6235, 0
  %v6490 = vsel %vm6320, %v6236, 0
  %v6493 = vsel %vm6320, %v6237, 0
  %v6496 = vsel %vm6320, %v6238, 0
  %v6499 = vsel %vm6320, %v6239, 0
  %v6502 = vsel %vm6320, %v6240, 0
  %v6505 = vsel %vm6320, %v6241, 0
  %v6508 = vsel %vm6320, %v6242, 0
  %v6511 = vsel %vm6320, %v6243, 0
  %v6514 = vsel %vm6320, %v6244, 0
  %v6517 = vsel %vm6320, %v6245, 0
  %v6520 = vsel %vm6320, %v6246, 0
  %v6523 = vsel %vm6320, %v6247, 0
  %v6526 = vsel %vm6320, %v6248, 0
  %v6529 = vsel %vm6320, %v6249, 0
  %v6532 = vsel %vm6320, %v6250, 0
  %v6535 = vsel %vm6320, %v6251, 0
  %v6538 = vsel %vm6320, %v6252, 0
  %v6541 = vsel %vm6320, %v6253, 0
  %v6544 = vsel %vm6320, %v6254, 0
  %v6547 = vsel %vm6320, %v6255, 0
  %v6550 = vsel %vm6320, %v6256, 0
  %v6553 = vsel %vm6320, %v6257, 0
  %v6556 = vsel %vm6320, %v6258, 0
  %v6559 = vsel %vm6320, %v6259, 0
  %v6562 = vsel %vm6320, %v6260, 0
  %v6565 = vsel %vm6320, %v6261, 0
  %v6568 = vsel %vm6320, %v6262, 0
  %v6571 = vsel %vm6320, %v6263, 0
  %v6574 = vsel %vm6320, %v6264, 0
  %v6577 = vsel %vm6320, %v6265, 0
  %v6580 = vsel %vm6320, %v6266, 0
  %v6583 = vsel %vm6320, %v6267, 0
  %v6586 = vsel %vm6320, %v6268, 0
  %v6589 = vsel %vm6320, %v6269, 0
  %v6592 = vsel %vm6320, %v6270, 0
  %v6595 = vsel %vm6320, %v6271, 0
  %v6598 = vsel %vm6320, %v6272, 0
  %v6601 = vsel %vm6320, %v6273, 0
  %v6604 = vsel %vm6320, %v6274, 0
  %v6607 = vsel %vm6320, %v6275, 0
  %v6610 = vsel %vm6320, %v6276, 0
  %v6613 = vsel %vm6320, %v6277, 0
  %v6616 = vsel %vm6320, %v6278, 0
  %v6619 = vsel %vm6320, %v6279, 0
  %v6622 = vsel %vm6320, %v6280, 0
  %v6625 = vsel %vm6320, %v6281, 0
  %v6628 = vsel %vm6320, %v6282, 0
  %v6631 = vsel %vm6320, %v6283, 0
  %v6634 = vsel %vm6320, %v6284, 0
  %v6637 = vsel %vm6320, %v6285, 0
  %v6640 = vsel %vm6320, %v6286, 0
  %v6643 = vsel %vm6320, %v6287, 0
  %v6646 = vsel %vm6320, %v6288, 0
  %v6649 = vsel %vm6320, %v6289, 0
  %v6652 = vsel %vm6320, %v6290, 0
  %v6655 = vsel %vm6320, %v6291, 0
  %v6658 = vsel %vm6320, %v6292, 0
  %v6661 = vsel %vm6320, %v6293, 0
  %v6664 = vsel %vm6320, %v6294, 0
  %v6667 = vsel %vm6320, %v6295, 0
  %v6670 = vsel %vm6320, %v6296, 0
  %v6673 = vsel %vm6320, %v6297, 0
  %v6676 = vsel %vm6320, %v6298, 0
  %v6679 = vsel %vm6320, %v6299, 0
  %v6682 = vsel %vm6320, %v6300, 0
  %v6685 = vsel %vm6320, %v6301, 0
  %v6688 = vsel %vm6320, %v6302, 0
  %v6691 = vsel %vm6320, %v6303, 0
  %v6694 = vsel %vm6320, %v6304, 0
  %v6697 = vsel %vm6320, %v6305, 0
  %v6700 = vsel %vm6320, %v6306, 0
  %v6703 = vsel %vm6320, %v6307, 0
  %vm6705 = vcmask 1043456
  %v6707 = vsel %vm6705, %v6312, 0
  %6709 = vmatprep.subr.mxu0 0.0
  %6710 = vmatpush1.msra.mxu0 %v6308
  %6711 = vmatprep.subr.mxu0 0.0
  %6712 = vmatpush1.msra.mxu0 %v6309
  %6713 = vmatprep.subr.mxu0 0.0
  %6714 = vmatpush1.msra.mxu0 %v6310
  %6715 = vmatprep.subr.mxu0 0.0
  %6716 = vmatpush1.msra.mxu0 %v6311
  %6717 = vmatprep.subr.mxu0 0.0
  %6718 = vmatpush1.msra.mxu0 %v6707
  %6719 = vmatprep.subr.mxu0 0.0
  %6720 = vmatpush1.msra.mxu0 0.0
  %6721 = vmatprep.subr.mxu0 0.0
  %6722 = vmatpush1.msra.mxu0 0.0
  %6723 = vmatprep.subr.mxu0 0.0
  %6724 = vmatpush1.msra.mxu0 0.0
  %6725 = vmatprep.subr.mxu0 0.0
  %6726 = vmatpush1.msra.mxu0 0.0
  %6727 = vmatprep.subr.mxu0 0.0
  %6728 = vmatpush1.msra.mxu0 0.0
  %6729 = vmatprep.subr.mxu0 0.0
  %6730 = vmatpush1.msra.mxu0 0.0
  %6731 = vmatprep.subr.mxu0 0.0
  %6732 = vmatpush1.msra.mxu0 0.0
  %6733 = vmatprep.subr.mxu0 0.0
  %6734 = vmatpush1.msra.mxu0 0.0
  %6735 = vmatprep.subr.mxu0 0.0
  %6736 = vmatpush1.msra.mxu0 0.0
  %6737 = vmatprep.subr.mxu0 0.0
  %6738 = vmatpush1.msra.mxu0 0.0
  %6739 = vmatprep.subr.mxu0 0.0
  %6740 = vmatpush1.msra.mxu0 0.0
  %6741 = vmatprep.subr.mxu0 0.0
  %6742 = vmatpush1.msra.mxu0 0.0
  %6743 = vmatprep.subr.mxu0 0.0
  %6744 = vmatpush1.msra.mxu0 0.0
  %6745 = vmatprep.subr.mxu0 0.0
  %6746 = vmatpush1.msra.mxu0 0.0
  %6747 = vmatprep.subr.mxu0 0.0
  %6748 = vmatpush1.msra.mxu0 0.0
  %6749 = vmatprep.subr.mxu0 0.0
  %6750 = vmatpush1.msra.mxu0 0.0
  %6751 = vmatprep.subr.mxu0 0.0
  %6752 = vmatpush1.msra.mxu0 0.0
  %6753 = vmatprep.subr.mxu0 0.0
  %6754 = vmatpush1.msra.mxu0 0.0
  %6755 = vmatprep.subr.mxu0 0.0
  %6756 = vmatpush1.msra.mxu0 0.0
  %6757 = vmatprep.subr.mxu0 0.0
  %6758 = vmatpush1.msra.mxu0 0.0
  %6759 = vmatprep.subr.mxu0 0.0
  %6760 = vmatpush1.msra.mxu0 0.0
  %6761 = vmatprep.subr.mxu0 0.0
  %6762 = vmatpush1.msra.mxu0 0.0
  %6763 = vmatprep.subr.mxu0 0.0
  %6764 = vmatpush1.msra.mxu0 0.0
  %6765 = vmatprep.subr.mxu0 0.0
  %6766 = vmatpush1.msra.mxu0 0.0
  %6767 = vmatprep.subr.mxu0 0.0
  %6768 = vmatpush1.msra.mxu0 0.0
  %6769 = vmatprep.subr.mxu0 0.0
  %6770 = vmatpush1.msra.mxu0 0.0
  %6771 = vmatprep.subr.mxu0 0.0
  %6772 = vmatpush1.msra.mxu0 0.0
  %6773 = vmatprep.mubr.f32.mxu0 0.0
  %6774 = vmatmul.mubr.f32.gmra.mrb[0].mxu0 %v6322
  %v6775 = vpop.f32.mrb[0].mxu0
  %v6776 = vadd.f32 %v6318, %v6775
  %v6777 = vpop.f32.mrb[0].mxu0
  %6778 = vmatprep.mubr.f32.mxu0 0.0
  %6779 = vmatmul.mubr.f32.gmra.mrb[0].mxu0 %v6325
  %v6780 = vpop.f32.mrb[0].mxu0
  %v6781 = vadd.f32 %v6318, %v6780
  %v6782 = vpop.f32.mrb[0].mxu0
  %6783 = vmatprep.mubr.f32.mxu0 0.0
  %6784 = vmatmul.mubr.f32.gmra.mrb[0].mxu0 %v6328
  %v6785 = vpop.f32.mrb[0].mxu0
  %v6786 = vadd.f32 %v6318, %v6785
  %v6787 = vpop.f32.mrb[0].mxu0
  %6788 = vmatprep.mubr.f32.mxu0 0.0
  %6789 = vmatmul.mubr.f32.gmra.mrb[0].mxu0 %v6331
  %v6790 = vpop.f32.mrb[0].mxu0
  %v6791 = vadd.f32 %v6318, %v6790
  %v6792 = vpop.f32.mrb[0].mxu0
  %6793 = vmatprep.mubr.f32.mxu0 0.0
  %6794 = vmatmul.mubr.f32.gmra.mrb[0].mxu0 %v6334
  %v6795 = vpop.f32.mrb[0].mxu0
  %v6796 = vadd.f32 %v6318, %v6795
  %v6797 = vpop.f32.mrb[0].mxu0
  %6798 = vmatprep.mubr.f32.mxu0 0.0
  %6799 = vmatmul.mubr.f32.gmra.mrb[0].mxu0 %v6337
  %v6800 = vpop.f32.mrb[0].mxu0
  %v6801 = vadd.f32 %v6318, %v6800
  %v6802 = vpop.f32.mrb[0].mxu0
  %6803 = vmatprep.mubr.f32.mxu0 0.0
  %6804 = vmatmul.mubr.f32.gmra.mrb[0].mxu0 %v6340
  %v6805 = vpop.f32.mrb[0].mxu0
  %v6806 = vadd.f32 %v6318, %v6805
  %v6807 = vpop.f32.mrb[0].mxu0
  %6808 = vmatprep.mubr.f32.mxu0 0.0
  %6809 = vmatmul.mubr.f32.gmra.mrb[0].mxu0 %v6343
  %v6810 = vpop.f32.mrb[0].mxu0
  %v6811 = vadd.f32 %v6318, %v6810
  %v6812 = vpop.f32.mrb[0].mxu0
  %6813 = vmatprep.mubr.f32.mxu0 0.0
  %6814 = vmatmul.mubr.f32.gmra.mrb[0].mxu0 %v6346
  %v6815 = vpop.f32.mrb[0].mxu0
  %v6816 = vadd.f32 %v6318, %v6815
  %v6817 = vpop.f32.mrb[0].mxu0
  %6818 = vmatprep.mubr.f32.mxu0 0.0
  %6819 = vmatmul.mubr.f32.gmra.mrb[0].mxu0 %v6349
  %v6820 = vpop.f32.mrb[0].mxu0
  %v6821 = vadd.f32 %v6318, %v6820
  %v6822 = vpop.f32.mrb[0].mxu0
  %6823 = vmatprep.mubr.f32.mxu0 0.0
  %6824 = vmatmul.mubr.f32.gmra.mrb[0].mxu0 %v6352
  %v6825 = vpop.f32.mrb[0].mxu0
  %v6826 = vadd.f32 %v6318, %v6825
  %v6827 = vpop.f32.mrb[0].mxu0
  %6828 = vmatprep.mubr.f32.mxu0 0.0
  %6829 = vmatmul.mubr.f32.gmra.mrb[0].mxu0 %v6355
  %v6830 = vpop.f32.mrb[0].mxu0
  %v6831 = vadd.f32 %v6318, %v6830
  %v6832 = vpop.f32.mrb[0].mxu0
  %6833 = vmatprep.mubr.f32.mxu0 0.0
  %6834 = vmatmul.mubr.f32.gmra.mrb[0].mxu0 %v6358
  %v6835 = vpop.f32.mrb[0].mxu0
  %v6836 = vadd.f32 %v6318, %v6835
  %v6837 = vpop.f32.mrb[0].mxu0
  %6838 = vmatprep.mubr.f32.mxu0 0.0
  %6839 = vmatmul.mubr.f32.gmra.mrb[0].mxu0 %v6361
  %v6840 = vpop.f32.mrb[0].mxu0
  %v6841 = vadd.f32 %v6318, %v6840
  %v6842 = vpop.f32.mrb[0].mxu0
  %6843 = vmatprep.mubr.f32.mxu0 0.0
  %6844 = vmatmul.mubr.f32.gmra.mrb[0].mxu0 %v6364
  %v6845 = vpop.f32.mrb[0].mxu0
  %v6846 = vadd.f32 %v6318, %v6845
  %v6847 = vpop.f32.mrb[0].mxu0
  %6848 = vmatprep.mubr.f32.mxu0 0.0
  %6849 = vmatmul.mubr.f32.gmra.mrb[0].mxu0 %v6367
  %v6850 = vpop.f32.mrb[0].mxu0
  %v6851 = vadd.f32 %v6318, %v6850
  %v6852 = vpop.f32.mrb[0].mxu0
  %6853 = vmatprep.mubr.f32.mxu0 0.0
  %6854 = vmatmul.mubr.f32.gmra.mrb[0].mxu0 %v6370
  %v6855 = vpop.f32.mrb[0].mxu0
  %v6856 = vadd.f32 %v6318, %v6855
  %v6857 = vpop.f32.mrb[0].mxu0
  %6858 = vmatprep.mubr.f32.mxu0 0.0
  %6859 = vmatmul.mubr.f32.gmra.mrb[0].mxu0 %v6373
  %v6860 = vpop.f32.mrb[0].mxu0
  %v6861 = vadd.f32 %v6318, %v6860
  %v6862 = vpop.f32.mrb[0].mxu0
  %6863 = vmatprep.mubr.f32.mxu0 0.0
  %6864 = vmatmul.mubr.f32.gmra.mrb[0].mxu0 %v6376
  %v6865 = vpop.f32.mrb[0].mxu0
  %v6866 = vadd.f32 %v6318, %v6865
  %v6867 = vpop.f32.mrb[0].mxu0
  %6868 = vmatprep.mubr.f32.mxu0 0.0
  %6869 = vmatmul.mubr.f32.gmra.mrb[0].mxu0 %v6379
  %v6870 = vpop.f32.mrb[0].mxu0
  %v6871 = vadd.f32 %v6318, %v6870
  %v6872 = vpop.f32.mrb[0].mxu0
  %6873 = vmatprep.mubr.f32.mxu0 0.0
  %6874 = vmatmul.mubr.f32.gmra.mrb[0].mxu0 %v6382
  %v6875 = vpop.f32.mrb[0].mxu0
  %v6876 = vadd.f32 %v6318, %v6875
  %v6877 = vpop.f32.mrb[0].mxu0
  %6878 = vmatprep.mubr.f32.mxu0 0.0
  %6879 = vmatmul.mubr.f32.gmra.mrb[0].mxu0 %v6385
  %v6880 = vpop.f32.mrb[0].mxu0
  %v6881 = vadd.f32 %v6318, %v6880
  %v6882 = vpop.f32.mrb[0].mxu0
  %6883 = vmatprep.mubr.f32.mxu0 0.0
  %6884 = vmatmul.mubr.f32.gmra.mrb[0].mxu0 %v6388
  %v6885 = vpop.f32.mrb[0].mxu0
  %v6886 = vadd.f32 %v6318, %v6885
  %v6887 = vpop.f32.mrb[0].mxu0
  %6888 = vmatprep.mubr.f32.mxu0 0.0
  %6889 = vmatmul.mubr.f32.gmra.mrb[0].mxu0 %v6391
  %v6890 = vpop.f32.mrb[0].mxu0
  %v6891 = vadd.f32 %v6318, %v6890
  %v6892 = vpop.f32.mrb[0].mxu0
  %6893 = vmatprep.mubr.f32.mxu0 0.0
  %6894 = vmatmul.mubr.f32.gmra.mrb[0].mxu0 %v6394
  %v6895 = vpop.f32.mrb[0].mxu0
  %v6896 = vadd.f32 %v6318, %v6895
  %v6897 = vpop.f32.mrb[0].mxu0
  %6898 = vmatprep.mubr.f32.mxu0 0.0
  %6899 = vmatmul.mubr.f32.gmra.mrb[0].mxu0 %v6397
  %v6900 = vpop.f32.mrb[0].mxu0
  %v6901 = vadd.f32 %v6318, %v6900
  %v6902 = vpop.f32.mrb[0].mxu0
  %6903 = vmatprep.mubr.f32.mxu0 0.0
  %6904 = vmatmul.mubr.f32.gmra.mrb[0].mxu0 %v6400
  %v6905 = vpop.f32.mrb[0].mxu0
  %v6906 = vadd.f32 %v6318, %v6905
  %v6907 = vpop.f32.mrb[0].mxu0
  %6908 = vmatprep.mubr.f32.mxu0 0.0
  %6909 = vmatmul.mubr.f32.gmra.mrb[0].mxu0 %v6403
  %v6910 = vpop.f32.mrb[0].mxu0
  %v6911 = vadd.f32 %v6318, %v6910
  %v6912 = vpop.f32.mrb[0].mxu0
  %6913 = vmatprep.mubr.f32.mxu0 0.0
  %6914 = vmatmul.mubr.f32.gmra.mrb[0].mxu0 %v6406
  %v6915 = vpop.f32.mrb[0].mxu0
  %v6916 = vadd.f32 %v6318, %v6915
  %v6917 = vpop.f32.mrb[0].mxu0
  %6918 = vmatprep.mubr.f32.mxu0 0.0
  %6919 = vmatmul.mubr.f32.gmra.mrb[0].mxu0 %v6409
  %v6920 = vpop.f32.mrb[0].mxu0
  %v6921 = vadd.f32 %v6318, %v6920
  %v6922 = vpop.f32.mrb[0].mxu0
  %6923 = vmatprep.mubr.f32.mxu0 0.0
  %6924 = vmatmul.mubr.f32.gmra.mrb[0].mxu0 %v6412
  %v6925 = vpop.f32.mrb[0].mxu0
  %v6926 = vadd.f32 %v6318, %v6925
  %v6927 = vpop.f32.mrb[0].mxu0
  %6928 = vmatprep.mubr.f32.mxu0 0.0
  %6929 = vmatmul.mubr.f32.gmra.mrb[0].mxu0 %v6415
  %v6930 = vpop.f32.mrb[0].mxu0
  %v6931 = vadd.f32 %v6318, %v6930
  %v6932 = vpop.f32.mrb[0].mxu0
  %6933 = vmatprep.mubr.f32.mxu0 0.0
  %6934 = vmatmul.mubr.f32.gmra.mrb[0].mxu0 %v6418
  %v6935 = vpop.f32.mrb[0].mxu0
  %v6936 = vadd.f32 %v6318, %v6935
  %v6937 = vpop.f32.mrb[0].mxu0
  %6938 = vmatprep.mubr.f32.mxu0 0.0
  %6939 = vmatmul.mubr.f32.gmra.mrb[0].mxu0 %v6421
  %v6940 = vpop.f32.mrb[0].mxu0
  %v6941 = vadd.f32 %v6318, %v6940
  %v6942 = vpop.f32.mrb[0].mxu0
  %6943 = vmatprep.mubr.f32.mxu0 0.0
  %6944 = vmatmul.mubr.f32.gmra.mrb[0].mxu0 %v6424
  %v6945 = vpop.f32.mrb[0].mxu0
  %v6946 = vadd.f32 %v6318, %v6945
  %v6947 = vpop.f32.mrb[0].mxu0
  %6948 = vmatprep.mubr.f32.mxu0 0.0
  %6949 = vmatmul.mubr.f32.gmra.mrb[0].mxu0 %v6427
  %v6950 = vpop.f32.mrb[0].mxu0
  %v6951 = vadd.f32 %v6318, %v6950
  %v6952 = vpop.f32.mrb[0].mxu0
  %6953 = vmatprep.mubr.f32.mxu0 0.0
  %6954 = vmatmul.mubr.f32.gmra.mrb[0].mxu0 %v6430
  %v6955 = vpop.f32.mrb[0].mxu0
  %v6956 = vadd.f32 %v6318, %v6955
  %v6957 = vpop.f32.mrb[0].mxu0
  %6958 = vmatprep.mubr.f32.mxu0 0.0
  %6959 = vmatmul.mubr.f32.gmra.mrb[0].mxu0 %v6433
  %v6960 = vpop.f32.mrb[0].mxu0
  %v6961 = vadd.f32 %v6318, %v6960
  %v6962 = vpop.f32.mrb[0].mxu0
  %6963 = vmatprep.mubr.f32.mxu0 0.0
  %6964 = vmatmul.mubr.f32.gmra.mrb[0].mxu0 %v6436
  %v6965 = vpop.f32.mrb[0].mxu0
  %v6966 = vadd.f32 %v6318, %v6965
  %v6967 = vpop.f32.mrb[0].mxu0
  %6968 = vmatprep.mubr.f32.mxu0 0.0
  %6969 = vmatmul.mubr.f32.gmra.mrb[0].mxu0 %v6439
  %v6970 = vpop.f32.mrb[0].mxu0
  %v6971 = vadd.f32 %v6318, %v6970
  %v6972 = vpop.f32.mrb[0].mxu0
  %6973 = vmatprep.mubr.f32.mxu0 0.0
  %6974 = vmatmul.mubr.f32.gmra.mrb[0].mxu0 %v6442
  %v6975 = vpop.f32.mrb[0].mxu0
  %v6976 = vadd.f32 %v6318, %v6975
  %v6977 = vpop.f32.mrb[0].mxu0
  %6978 = vmatprep.mubr.f32.mxu0 0.0
  %6979 = vmatmul.mubr.f32.gmra.mrb[0].mxu0 %v6445
  %v6980 = vpop.f32.mrb[0].mxu0
  %v6981 = vadd.f32 %v6318, %v6980
  %v6982 = vpop.f32.mrb[0].mxu0
  %6983 = vmatprep.mubr.f32.mxu0 0.0
  %6984 = vmatmul.mubr.f32.gmra.mrb[0].mxu0 %v6448
  %v6985 = vpop.f32.mrb[0].mxu0
  %v6986 = vadd.f32 %v6318, %v6985
  %v6987 = vpop.f32.mrb[0].mxu0
  %6988 = vmatprep.mubr.f32.mxu0 0.0
  %6989 = vmatmul.mubr.f32.gmra.mrb[0].mxu0 %v6451
  %v6990 = vpop.f32.mrb[0].mxu0
  %v6991 = vadd.f32 %v6318, %v6990
  %v6992 = vpop.f32.mrb[0].mxu0
  %6993 = vmatprep.mubr.f32.mxu0 0.0
  %6994 = vmatmul.mubr.f32.gmra.mrb[0].mxu0 %v6454
  %v6995 = vpop.f32.mrb[0].mxu0
  %v6996 = vadd.f32 %v6318, %v6995
  %v6997 = vpop.f32.mrb[0].mxu0
  %6998 = vmatprep.mubr.f32.mxu0 0.0
  %6999 = vmatmul.mubr.f32.gmra.mrb[0].mxu0 %v6457
  %v7000 = vpop.f32.mrb[0].mxu0
  %v7001 = vadd.f32 %v6318, %v7000
  %v7002 = vpop.f32.mrb[0].mxu0
  %7003 = vmatprep.mubr.f32.mxu0 0.0
  %7004 = vmatmul.mubr.f32.gmra.mrb[0].mxu0 %v6460
  %v7005 = vpop.f32.mrb[0].mxu0
  %v7006 = vadd.f32 %v6318, %v7005
  %v7007 = vpop.f32.mrb[0].mxu0
  %7008 = vmatprep.mubr.f32.mxu0 0.0
  %7009 = vmatmul.mubr.f32.gmra.mrb[0].mxu0 %v6463
  %v7010 = vpop.f32.mrb[0].mxu0
  %v7011 = vadd.f32 %v6318, %v7010
  %v7012 = vpop.f32.mrb[0].mxu0
  %7013 = vmatprep.mubr.f32.mxu0 0.0
  %7014 = vmatmul.mubr.f32.gmra.mrb[0].mxu0 %v6466
  %v7015 = vpop.f32.mrb[0].mxu0
  %v7016 = vadd.f32 %v6318, %v7015
  %v7017 = vpop.f32.mrb[0].mxu0
  %7018 = vmatprep.mubr.f32.mxu0 0.0
  %7019 = vmatmul.mubr.f32.gmra.mrb[0].mxu0 %v6469
  %v7020 = vpop.f32.mrb[0].mxu0
  %v7021 = vadd.f32 %v6318, %v7020
  %v7022 = vpop.f32.mrb[0].mxu0
  %7023 = vmatprep.mubr.f32.mxu0 0.0
  %7024 = vmatmul.mubr.f32.gmra.mrb[0].mxu0 %v6472
  %v7025 = vpop.f32.mrb[0].mxu0
  %v7026 = vadd.f32 %v6318, %v7025
  %v7027 = vpop.f32.mrb[0].mxu0
  %7028 = vmatprep.mubr.f32.mxu0 0.0
  %7029 = vmatmul.mubr.f32.gmra.mrb[0].mxu0 %v6475
  %v7030 = vpop.f32.mrb[0].mxu0
  %v7031 = vadd.f32 %v6318, %v7030
  %v7032 = vpop.f32.mrb[0].mxu0
  %7033 = vmatprep.mubr.f32.mxu0 0.0
  %7034 = vmatmul.mubr.f32.gmra.mrb[0].mxu0 %v6478
  %v7035 = vpop.f32.mrb[0].mxu0
  %v7036 = vadd.f32 %v6318, %v7035
  %v7037 = vpop.f32.mrb[0].mxu0
  %7038 = vmatprep.mubr.f32.mxu0 0.0
  %7039 = vmatmul.mubr.f32.gmra.mrb[0].mxu0 %v6481
  %v7040 = vpop.f32.mrb[0].mxu0
  %v7041 = vadd.f32 %v6318, %v7040
  %v7042 = vpop.f32.mrb[0].mxu0
  %7043 = vmatprep.mubr.f32.mxu0 0.0
  %7044 = vmatmul.mubr.f32.gmra.mrb[0].mxu0 %v6484
  %v7045 = vpop.f32.mrb[0].mxu0
  %v7046 = vadd.f32 %v6318, %v7045
  %v7047 = vpop.f32.mrb[0].mxu0
  %7048 = vmatprep.mubr.f32.mxu0 0.0
  %7049 = vmatmul.mubr.f32.gmra.mrb[0].mxu0 %v6487
  %v7050 = vpop.f32.mrb[0].mxu0
  %v7051 = vadd.f32 %v6318, %v7050
  %v7052 = vpop.f32.mrb[0].mxu0
  %7053 = vmatprep.mubr.f32.mxu0 0.0
  %7054 = vmatmul.mubr.f32.gmra.mrb[0].mxu0 %v6490
  %v7055 = vpop.f32.mrb[0].mxu0
  %v7056 = vadd.f32 %v6318, %v7055
  %v7057 = vpop.f32.mrb[0].mxu0
  %7058 = vmatprep.mubr.f32.mxu0 0.0
  %7059 = vmatmul.mubr.f32.gmra.mrb[0].mxu0 %v6493
  %v7060 = vpop.f32.mrb[0].mxu0
  %v7061 = vadd.f32 %v6318, %v7060
  %v7062 = vpop.f32.mrb[0].mxu0
  %7063 = vmatprep.mubr.f32.mxu0 0.0
  %7064 = vmatmul.mubr.f32.gmra.mrb[0].mxu0 %v6496
  %v7065 = vpop.f32.mrb[0].mxu0
  %v7066 = vadd.f32 %v6318, %v7065
  %v7067 = vpop.f32.mrb[0].mxu0
  %7068 = vmatprep.mubr.f32.mxu0 0.0
  %7069 = vmatmul.mubr.f32.gmra.mrb[0].mxu0 %v6499
  %v7070 = vpop.f32.mrb[0].mxu0
  %v7071 = vadd.f32 %v6318, %v7070
  %v7072 = vpop.f32.mrb[0].mxu0
  %7073 = vmatprep.mubr.f32.mxu0 0.0
  %7074 = vmatmul.mubr.f32.gmra.mrb[0].mxu0 %v6502
  %v7075 = vpop.f32.mrb[0].mxu0
  %v7076 = vadd.f32 %v6318, %v7075
  %v7077 = vpop.f32.mrb[0].mxu0
  %7078 = vmatprep.mubr.f32.mxu0 0.0
  %7079 = vmatmul.mubr.f32.gmra.mrb[0].mxu0 %v6505
  %v7080 = vpop.f32.mrb[0].mxu0
  %v7081 = vadd.f32 %v6318, %v7080
  %v7082 = vpop.f32.mrb[0].mxu0
  %7083 = vmatprep.mubr.f32.mxu0 0.0
  %7084 = vmatmul.mubr.f32.gmra.mrb[0].mxu0 %v6508
  %v7085 = vpop.f32.mrb[0].mxu0
  %v7086 = vadd.f32 %v6318, %v7085
  %v7087 = vpop.f32.mrb[0].mxu0
  %7088 = vmatprep.mubr.f32.mxu0 0.0
  %7089 = vmatmul.mubr.f32.gmra.mrb[0].mxu0 %v6511
  %v7090 = vpop.f32.mrb[0].mxu0
  %v7091 = vadd.f32 %v6318, %v7090
  %v7092 = vpop.f32.mrb[0].mxu0
  %7093 = vmatprep.mubr.f32.mxu0 0.0
  %7094 = vmatmul.mubr.f32.gmra.mrb[0].mxu0 %v6514
  %v7095 = vpop.f32.mrb[0].mxu0
  %v7096 = vadd.f32 %v6318, %v7095
  %v7097 = vpop.f32.mrb[0].mxu0
  %7098 = vmatprep.mubr.f32.mxu0 0.0
  %7099 = vmatmul.mubr.f32.gmra.mrb[0].mxu0 %v6517
  %v7100 = vpop.f32.mrb[0].mxu0
  %v7101 = vadd.f32 %v6318, %v7100
  %v7102 = vpop.f32.mrb[0].mxu0
  %7103 = vmatprep.mubr.f32.mxu0 0.0
  %7104 = vmatmul.mubr.f32.gmra.mrb[0].mxu0 %v6520
  %v7105 = vpop.f32.mrb[0].mxu0
  %v7106 = vadd.f32 %v6318, %v7105
  %v7107 = vpop.f32.mrb[0].mxu0
  %7108 = vmatprep.mubr.f32.mxu0 0.0
  %7109 = vmatmul.mubr.f32.gmra.mrb[0].mxu0 %v6523
  %v7110 = vpop.f32.mrb[0].mxu0
  %v7111 = vadd.f32 %v6318, %v7110
  %v7112 = vpop.f32.mrb[0].mxu0
  %7113 = vmatprep.mubr.f32.mxu0 0.0
  %7114 = vmatmul.mubr.f32.gmra.mrb[0].mxu0 %v6526
  %v7115 = vpop.f32.mrb[0].mxu0
  %v7116 = vadd.f32 %v6318, %v7115
  %v7117 = vpop.f32.mrb[0].mxu0
  %7118 = vmatprep.mubr.f32.mxu0 0.0
  %7119 = vmatmul.mubr.f32.gmra.mrb[0].mxu0 %v6529
  %v7120 = vpop.f32.mrb[0].mxu0
  %v7121 = vadd.f32 %v6318, %v7120
  %v7122 = vpop.f32.mrb[0].mxu0
  %7123 = vmatprep.mubr.f32.mxu0 0.0
  %7124 = vmatmul.mubr.f32.gmra.mrb[0].mxu0 %v6532
  %v7125 = vpop.f32.mrb[0].mxu0
  %v7126 = vadd.f32 %v6318, %v7125
  %v7127 = vpop.f32.mrb[0].mxu0
  %7128 = vmatprep.mubr.f32.mxu0 0.0
  %7129 = vmatmul.mubr.f32.gmra.mrb[0].mxu0 %v6535
  %v7130 = vpop.f32.mrb[0].mxu0
  %v7131 = vadd.f32 %v6318, %v7130
  %v7132 = vpop.f32.mrb[0].mxu0
  %7133 = vmatprep.mubr.f32.mxu0 0.0
  %7134 = vmatmul.mubr.f32.gmra.mrb[0].mxu0 %v6538
  %v7135 = vpop.f32.mrb[0].mxu0
  %v7136 = vadd.f32 %v6318, %v7135
  %v7137 = vpop.f32.mrb[0].mxu0
  %7138 = vmatprep.mubr.f32.mxu0 0.0
  %7139 = vmatmul.mubr.f32.gmra.mrb[0].mxu0 %v6541
  %v7140 = vpop.f32.mrb[0].mxu0
  %v7141 = vadd.f32 %v6318, %v7140
  %v7142 = vpop.f32.mrb[0].mxu0
  %7143 = vmatprep.mubr.f32.mxu0 0.0
  %7144 = vmatmul.mubr.f32.gmra.mrb[0].mxu0 %v6544
  %v7145 = vpop.f32.mrb[0].mxu0
  %v7146 = vadd.f32 %v6318, %v7145
  %v7147 = vpop.f32.mrb[0].mxu0
  %7148 = vmatprep.mubr.f32.mxu0 0.0
  %7149 = vmatmul.mubr.f32.gmra.mrb[0].mxu0 %v6547
  %v7150 = vpop.f32.mrb[0].mxu0
  %v7151 = vadd.f32 %v6318, %v7150
  %v7152 = vpop.f32.mrb[0].mxu0
  %7153 = vmatprep.mubr.f32.mxu0 0.0
  %7154 = vmatmul.mubr.f32.gmra.mrb[0].mxu0 %v6550
  %v7155 = vpop.f32.mrb[0].mxu0
  %v7156 = vadd.f32 %v6318, %v7155
  %v7157 = vpop.f32.mrb[0].mxu0
  %7158 = vmatprep.mubr.f32.mxu0 0.0
  %7159 = vmatmul.mubr.f32.gmra.mrb[0].mxu0 %v6553
  %v7160 = vpop.f32.mrb[0].mxu0
  %v7161 = vadd.f32 %v6318, %v7160
  %v7162 = vpop.f32.mrb[0].mxu0
  %7163 = vmatprep.mubr.f32.mxu0 0.0
  %7164 = vmatmul.mubr.f32.gmra.mrb[0].mxu0 %v6556
  %v7165 = vpop.f32.mrb[0].mxu0
  %v7166 = vadd.f32 %v6318, %v7165
  %v7167 = vpop.f32.mrb[0].mxu0
  %7168 = vmatprep.mubr.f32.mxu0 0.0
  %7169 = vmatmul.mubr.f32.gmra.mrb[0].mxu0 %v6559
  %v7170 = vpop.f32.mrb[0].mxu0
  %v7171 = vadd.f32 %v6318, %v7170
  %v7172 = vpop.f32.mrb[0].mxu0
  %7173 = vmatprep.mubr.f32.mxu0 0.0
  %7174 = vmatmul.mubr.f32.gmra.mrb[0].mxu0 %v6562
  %v7175 = vpop.f32.mrb[0].mxu0
  %v7176 = vadd.f32 %v6318, %v7175
  %v7177 = vpop.f32.mrb[0].mxu0
  %7178 = vmatprep.mubr.f32.mxu0 0.0
  %7179 = vmatmul.mubr.f32.gmra.mrb[0].mxu0 %v6565
  %v7180 = vpop.f32.mrb[0].mxu0
  %v7181 = vadd.f32 %v6318, %v7180
  %v7182 = vpop.f32.mrb[0].mxu0
  %7183 = vmatprep.mubr.f32.mxu0 0.0
  %7184 = vmatmul.mubr.f32.gmra.mrb[0].mxu0 %v6568
  %v7185 = vpop.f32.mrb[0].mxu0
  %v7186 = vadd.f32 %v6318, %v7185
  %v7187 = vpop.f32.mrb[0].mxu0
  %7188 = vmatprep.mubr.f32.mxu0 0.0
  %7189 = vmatmul.mubr.f32.gmra.mrb[0].mxu0 %v6571
  %v7190 = vpop.f32.mrb[0].mxu0
  %v7191 = vadd.f32 %v6318, %v7190
  %v7192 = vpop.f32.mrb[0].mxu0
  %7193 = vmatprep.mubr.f32.mxu0 0.0
  %7194 = vmatmul.mubr.f32.gmra.mrb[0].mxu0 %v6574
  %v7195 = vpop.f32.mrb[0].mxu0
  %v7196 = vadd.f32 %v6318, %v7195
  %v7197 = vpop.f32.mrb[0].mxu0
  %7198 = vmatprep.mubr.f32.mxu0 0.0
  %7199 = vmatmul.mubr.f32.gmra.mrb[0].mxu0 %v6577
  %v7200 = vpop.f32.mrb[0].mxu0
  %v7201 = vadd.f32 %v6318, %v7200
  %v7202 = vpop.f32.mrb[0].mxu0
  %7203 = vmatprep.mubr.f32.mxu0 0.0
  %7204 = vmatmul.mubr.f32.gmra.mrb[0].mxu0 %v6580
  %v7205 = vpop.f32.mrb[0].mxu0
  %v7206 = vadd.f32 %v6318, %v7205
  %v7207 = vpop.f32.mrb[0].mxu0
  %7208 = vmatprep.mubr.f32.mxu0 0.0
  %7209 = vmatmul.mubr.f32.gmra.mrb[0].mxu0 %v6583
  %v7210 = vpop.f32.mrb[0].mxu0
  %v7211 = vadd.f32 %v6318, %v7210
  %v7212 = vpop.f32.mrb[0].mxu0
  %7213 = vmatprep.mubr.f32.mxu0 0.0
  %7214 = vmatmul.mubr.f32.gmra.mrb[0].mxu0 %v6586
  %v7215 = vpop.f32.mrb[0].mxu0
  %v7216 = vadd.f32 %v6318, %v7215
  %v7217 = vpop.f32.mrb[0].mxu0
  %7218 = vmatprep.mubr.f32.mxu0 0.0
  %7219 = vmatmul.mubr.f32.gmra.mrb[0].mxu0 %v6589
  %v7220 = vpop.f32.mrb[0].mxu0
  %v7221 = vadd.f32 %v6318, %v7220
  %v7222 = vpop.f32.mrb[0].mxu0
  %7223 = vmatprep.mubr.f32.mxu0 0.0
  %7224 = vmatmul.mubr.f32.gmra.mrb[0].mxu0 %v6592
  %v7225 = vpop.f32.mrb[0].mxu0
  %v7226 = vadd.f32 %v6318, %v7225
  %v7227 = vpop.f32.mrb[0].mxu0
  %7228 = vmatprep.mubr.f32.mxu0 0.0
  %7229 = vmatmul.mubr.f32.gmra.mrb[0].mxu0 %v6595
  %v7230 = vpop.f32.mrb[0].mxu0
  %v7231 = vadd.f32 %v6318, %v7230
  %v7232 = vpop.f32.mrb[0].mxu0
  %7233 = vmatprep.mubr.f32.mxu0 0.0
  %7234 = vmatmul.mubr.f32.gmra.mrb[0].mxu0 %v6598
  %v7235 = vpop.f32.mrb[0].mxu0
  %v7236 = vadd.f32 %v6318, %v7235
  %v7237 = vpop.f32.mrb[0].mxu0
  %7238 = vmatprep.mubr.f32.mxu0 0.0
  %7239 = vmatmul.mubr.f32.gmra.mrb[0].mxu0 %v6601
  %v7240 = vpop.f32.mrb[0].mxu0
  %v7241 = vadd.f32 %v6318, %v7240
  %v7242 = vpop.f32.mrb[0].mxu0
  %7243 = vmatprep.mubr.f32.mxu0 0.0
  %7244 = vmatmul.mubr.f32.gmra.mrb[0].mxu0 %v6604
  %v7245 = vpop.f32.mrb[0].mxu0
  %v7246 = vadd.f32 %v6318, %v7245
  %v7247 = vpop.f32.mrb[0].mxu0
  %7248 = vmatprep.mubr.f32.mxu0 0.0
  %7249 = vmatmul.mubr.f32.gmra.mrb[0].mxu0 %v6607
  %v7250 = vpop.f32.mrb[0].mxu0
  %v7251 = vadd.f32 %v6318, %v7250
  %v7252 = vpop.f32.mrb[0].mxu0
  %7253 = vmatprep.mubr.f32.mxu0 0.0
  %7254 = vmatmul.mubr.f32.gmra.mrb[0].mxu0 %v6610
  %v7255 = vpop.f32.mrb[0].mxu0
  %v7256 = vadd.f32 %v6318, %v7255
  %v7257 = vpop.f32.mrb[0].mxu0
  %7258 = vmatprep.mubr.f32.mxu0 0.0
  %7259 = vmatmul.mubr.f32.gmra.mrb[0].mxu0 %v6613
  %v7260 = vpop.f32.mrb[0].mxu0
  %v7261 = vadd.f32 %v6318, %v7260
  %v7262 = vpop.f32.mrb[0].mxu0
  %7263 = vmatprep.mubr.f32.mxu0 0.0
  %7264 = vmatmul.mubr.f32.gmra.mrb[0].mxu0 %v6616
  %v7265 = vpop.f32.mrb[0].mxu0
  %v7266 = vadd.f32 %v6318, %v7265
  %v7267 = vpop.f32.mrb[0].mxu0
  %7268 = vmatprep.mubr.f32.mxu0 0.0
  %7269 = vmatmul.mubr.f32.gmra.mrb[0].mxu0 %v6619
  %v7270 = vpop.f32.mrb[0].mxu0
  %v7271 = vadd.f32 %v6318, %v7270
  %v7272 = vpop.f32.mrb[0].mxu0
  %7273 = vmatprep.mubr.f32.mxu0 0.0
  %7274 = vmatmul.mubr.f32.gmra.mrb[0].mxu0 %v6622
  %v7275 = vpop.f32.mrb[0].mxu0
  %v7276 = vadd.f32 %v6318, %v7275
  %v7277 = vpop.f32.mrb[0].mxu0
  %7278 = vmatprep.mubr.f32.mxu0 0.0
  %7279 = vmatmul.mubr.f32.gmra.mrb[0].mxu0 %v6625
  %v7280 = vpop.f32.mrb[0].mxu0
  %v7281 = vadd.f32 %v6318, %v7280
  %v7282 = vpop.f32.mrb[0].mxu0
  %7283 = vmatprep.mubr.f32.mxu0 0.0
  %7284 = vmatmul.mubr.f32.gmra.mrb[0].mxu0 %v6628
  %v7285 = vpop.f32.mrb[0].mxu0
  %v7286 = vadd.f32 %v6318, %v7285
  %v7287 = vpop.f32.mrb[0].mxu0
  %7288 = vmatprep.mubr.f32.mxu0 0.0
  %7289 = vmatmul.mubr.f32.gmra.mrb[0].mxu0 %v6631
  %v7290 = vpop.f32.mrb[0].mxu0
  %v7291 = vadd.f32 %v6318, %v7290
  %v7292 = vpop.f32.mrb[0].mxu0
  %7293 = vmatprep.mubr.f32.mxu0 0.0
  %7294 = vmatmul.mubr.f32.gmra.mrb[0].mxu0 %v6634
  %v7295 = vpop.f32.mrb[0].mxu0
  %v7296 = vadd.f32 %v6318, %v7295
  %v7297 = vpop.f32.mrb[0].mxu0
  %7298 = vmatprep.mubr.f32.mxu0 0.0
  %7299 = vmatmul.mubr.f32.gmra.mrb[0].mxu0 %v6637
  %v7300 = vpop.f32.mrb[0].mxu0
  %v7301 = vadd.f32 %v6318, %v7300
  %v7302 = vpop.f32.mrb[0].mxu0
  %7303 = vmatprep.mubr.f32.mxu0 0.0
  %7304 = vmatmul.mubr.f32.gmra.mrb[0].mxu0 %v6640
  %v7305 = vpop.f32.mrb[0].mxu0
  %v7306 = vadd.f32 %v6318, %v7305
  %v7307 = vpop.f32.mrb[0].mxu0
  %7308 = vmatprep.mubr.f32.mxu0 0.0
  %7309 = vmatmul.mubr.f32.gmra.mrb[0].mxu0 %v6643
  %v7310 = vpop.f32.mrb[0].mxu0
  %v7311 = vadd.f32 %v6318, %v7310
  %v7312 = vpop.f32.mrb[0].mxu0
  %7313 = vmatprep.mubr.f32.mxu0 0.0
  %7314 = vmatmul.mubr.f32.gmra.mrb[0].mxu0 %v6646
  %v7315 = vpop.f32.mrb[0].mxu0
  %v7316 = vadd.f32 %v6318, %v7315
  %v7317 = vpop.f32.mrb[0].mxu0
  %7318 = vmatprep.mubr.f32.mxu0 0.0
  %7319 = vmatmul.mubr.f32.gmra.mrb[0].mxu0 %v6649
  %v7320 = vpop.f32.mrb[0].mxu0
  %v7321 = vadd.f32 %v6318, %v7320
  %v7322 = vpop.f32.mrb[0].mxu0
  %7323 = vmatprep.mubr.f32.mxu0 0.0
  %7324 = vmatmul.mubr.f32.gmra.mrb[0].mxu0 %v6652
  %v7325 = vpop.f32.mrb[0].mxu0
  %v7326 = vadd.f32 %v6318, %v7325
  %v7327 = vpop.f32.mrb[0].mxu0
  %7328 = vmatprep.mubr.f32.mxu0 0.0
  %7329 = vmatmul.mubr.f32.gmra.mrb[0].mxu0 %v6655
  %v7330 = vpop.f32.mrb[0].mxu0
  %v7331 = vadd.f32 %v6318, %v7330
  %v7332 = vpop.f32.mrb[0].mxu0
  %7333 = vmatprep.mubr.f32.mxu0 0.0
  %7334 = vmatmul.mubr.f32.gmra.mrb[0].mxu0 %v6658
  %v7335 = vpop.f32.mrb[0].mxu0
  %v7336 = vadd.f32 %v6318, %v7335
  %v7337 = vpop.f32.mrb[0].mxu0
  %7338 = vmatprep.mubr.f32.mxu0 0.0
  %7339 = vmatmul.mubr.f32.gmra.mrb[0].mxu0 %v6661
  %v7340 = vpop.f32.mrb[0].mxu0
  %v7341 = vadd.f32 %v6318, %v7340
  %v7342 = vpop.f32.mrb[0].mxu0
  %7343 = vmatprep.mubr.f32.mxu0 0.0
  %7344 = vmatmul.mubr.f32.gmra.mrb[0].mxu0 %v6664
  %v7345 = vpop.f32.mrb[0].mxu0
  %v7346 = vadd.f32 %v6318, %v7345
  %v7347 = vpop.f32.mrb[0].mxu0
  %7348 = vmatprep.mubr.f32.mxu0 0.0
  %7349 = vmatmul.mubr.f32.gmra.mrb[0].mxu0 %v6667
  %v7350 = vpop.f32.mrb[0].mxu0
  %v7351 = vadd.f32 %v6318, %v7350
  %v7352 = vpop.f32.mrb[0].mxu0
  %7353 = vmatprep.mubr.f32.mxu0 0.0
  %7354 = vmatmul.mubr.f32.gmra.mrb[0].mxu0 %v6670
  %v7355 = vpop.f32.mrb[0].mxu0
  %v7356 = vadd.f32 %v6318, %v7355
  %v7357 = vpop.f32.mrb[0].mxu0
  %7358 = vmatprep.mubr.f32.mxu0 0.0
  %7359 = vmatmul.mubr.f32.gmra.mrb[0].mxu0 %v6673
  %v7360 = vpop.f32.mrb[0].mxu0
  %v7361 = vadd.f32 %v6318, %v7360
  %v7362 = vpop.f32.mrb[0].mxu0
  %7363 = vmatprep.mubr.f32.mxu0 0.0
  %7364 = vmatmul.mubr.f32.gmra.mrb[0].mxu0 %v6676
  %v7365 = vpop.f32.mrb[0].mxu0
  %v7366 = vadd.f32 %v6318, %v7365
  %v7367 = vpop.f32.mrb[0].mxu0
  %7368 = vmatprep.mubr.f32.mxu0 0.0
  %7369 = vmatmul.mubr.f32.gmra.mrb[0].mxu0 %v6679
  %v7370 = vpop.f32.mrb[0].mxu0
  %v7371 = vadd.f32 %v6318, %v7370
  %v7372 = vpop.f32.mrb[0].mxu0
  %7373 = vmatprep.mubr.f32.mxu0 0.0
  %7374 = vmatmul.mubr.f32.gmra.mrb[0].mxu0 %v6682
  %v7375 = vpop.f32.mrb[0].mxu0
  %v7376 = vadd.f32 %v6318, %v7375
  %v7377 = vpop.f32.mrb[0].mxu0
  %7378 = vmatprep.mubr.f32.mxu0 0.0
  %7379 = vmatmul.mubr.f32.gmra.mrb[0].mxu0 %v6685
  %v7380 = vpop.f32.mrb[0].mxu0
  %v7381 = vadd.f32 %v6318, %v7380
  %v7382 = vpop.f32.mrb[0].mxu0
  %7383 = vmatprep.mubr.f32.mxu0 0.0
  %7384 = vmatmul.mubr.f32.gmra.mrb[0].mxu0 %v6688
  %v7385 = vpop.f32.mrb[0].mxu0
  %v7386 = vadd.f32 %v6318, %v7385
  %v7387 = vpop.f32.mrb[0].mxu0
  %7388 = vmatprep.mubr.f32.mxu0 0.0
  %7389 = vmatmul.mubr.f32.gmra.mrb[0].mxu0 %v6691
  %v7390 = vpop.f32.mrb[0].mxu0
  %v7391 = vadd.f32 %v6318, %v7390
  %v7392 = vpop.f32.mrb[0].mxu0
  %7393 = vmatprep.mubr.f32.mxu0 0.0
  %7394 = vmatmul.mubr.f32.gmra.mrb[0].mxu0 %v6694
  %v7395 = vpop.f32.mrb[0].mxu0
  %v7396 = vadd.f32 %v6318, %v7395
  %v7397 = vpop.f32.mrb[0].mxu0
  %7398 = vmatprep.mubr.f32.mxu0 0.0
  %7399 = vmatmul.mubr.f32.gmra.mrb[0].mxu0 %v6697
  %v7400 = vpop.f32.mrb[0].mxu0
  %v7401 = vadd.f32 %v6318, %v7400
  %v7402 = vpop.f32.mrb[0].mxu0
  %7403 = vmatprep.mubr.f32.mxu0 0.0
  %7404 = vmatmul.mubr.f32.gmra.mrb[0].mxu0 %v6700
  %v7405 = vpop.f32.mrb[0].mxu0
  %v7406 = vadd.f32 %v6318, %v7405
  %v7407 = vpop.f32.mrb[0].mxu0
  %7408 = vmatprep.mubr.f32.mxu0 0.0
  %7409 = vmatmul.mubr.f32.gmra.mrb[0].mxu0 %v6703
  %v7410 = vpop.f32.mrb[0].mxu0
  %v7411 = vadd.f32 %v6318, %v7410
  %v7412 = vpop.f32.mrb[0].mxu0
  %7413 = vdwg.mxu0
  %v7414 = vmax.f32 %v6776, 0.0
  %v7415 = vmax.f32 %v6781, 0.0
  %v7416 = vmax.f32 %v6786, 0.0
  %v7417 = vmax.f32 %v6791, 0.0
  %v7418 = vmax.f32 %v6796, 0.0
  %v7419 = vmax.f32 %v6801, 0.0
  %v7420 = vmax.f32 %v6806, 0.0
  %v7421 = vmax.f32 %v6811, 0.0
  %v7422 = vmax.f32 %v6816, 0.0
  %v7423 = vmax.f32 %v6821, 0.0
  %v7424 = vmax.f32 %v6826, 0.0
  %v7425 = vmax.f32 %v6831, 0.0
  %v7426 = vmax.f32 %v6836, 0.0
  %v7427 = vmax.f32 %v6841, 0.0
  %v7428 = vmax.f32 %v6846, 0.0
  %v7429 = vmax.f32 %v6851, 0.0
  %v7430 = vmax.f32 %v6856, 0.0
  %v7431 = vmax.f32 %v6861, 0.0
  %v7432 = vmax.f32 %v6866, 0.0
  %v7433 = vmax.f32 %v6871, 0.0
  %v7434 = vmax.f32 %v6876, 0.0
  %v7435 = vmax.f32 %v6881, 0.0
  %v7436 = vmax.f32 %v6886, 0.0
  %v7437 = vmax.f32 %v6891, 0.0
  %v7438 = vmax.f32 %v6896, 0.0
  %v7439 = vmax.f32 %v6901, 0.0
  %v7440 = vmax.f32 %v6906, 0.0
  %v7441 = vmax.f32 %v6911, 0.0
  %v7442 = vmax.f32 %v6916, 0.0
  %v7443 = vmax.f32 %v6921, 0.0
  %v7444 = vmax.f32 %v6926, 0.0
  %v7445 = vmax.f32 %v6931, 0.0
  %v7446 = vmax.f32 %v6936, 0.0
  %v7447 = vmax.f32 %v6941, 0.0
  %v7448 = vmax.f32 %v6946, 0.0
  %v7449 = vmax.f32 %v6951, 0.0
  %v7450 = vmax.f32 %v6956, 0.0
  %v7451 = vmax.f32 %v6961, 0.0
  %v7452 = vmax.f32 %v6966, 0.0
  %v7453 = vmax.f32 %v6971, 0.0
  %v7454 = vmax.f32 %v6976, 0.0
  %v7455 = vmax.f32 %v6981, 0.0
  %v7456 = vmax.f32 %v6986, 0.0
  %v7457 = vmax.f32 %v6991, 0.0
  %v7458 = vmax.f32 %v6996, 0.0
  %v7459 = vmax.f32 %v7001, 0.0
  %v7460 = vmax.f32 %v7006, 0.0
  %v7461 = vmax.f32 %v7011, 0.0
  %v7462 = vmax.f32 %v7016, 0.0
  %v7463 = vmax.f32 %v7021, 0.0
  %v7464 = vmax.f32 %v7026, 0.0
  %v7465 = vmax.f32 %v7031, 0.0
  %v7466 = vmax.f32 %v7036, 0.0
  %v7467 = vmax.f32 %v7041, 0.0
  %v7468 = vmax.f32 %v7046, 0.0
  %v7469 = vmax.f32 %v7051, 0.0
  %v7470 = vmax.f32 %v7056, 0.0
  %v7471 = vmax.f32 %v7061, 0.0
  %v7472 = vmax.f32 %v7066, 0.0
  %v7473 = vmax.f32 %v7071, 0.0
  %v7474 = vmax.f32 %v7076, 0.0
  %v7475 = vmax.f32 %v7081, 0.0
  %v7476 = vmax.f32 %v7086, 0.0
  %v7477 = vmax.f32 %v7091, 0.0
  %v7478 = vmax.f32 %v7096, 0.0
  %v7479 = vmax.f32 %v7101, 0.0
  %v7480 = vmax.f32 %v7106, 0.0
  %v7481 = vmax.f32 %v7111, 0.0
  %v7482 = vmax.f32 %v7116, 0.0
  %v7483 = vmax.f32 %v7121, 0.0
  %v7484 = vmax.f32 %v7126, 0.0
  %v7485 = vmax.f32 %v7131, 0.0
  %v7486 = vmax.f32 %v7136, 0.0
  %v7487 = vmax.f32 %v7141, 0.0
  %v7488 = vmax.f32 %v7146, 0.0
  %v7489 = vmax.f32 %v7151, 0.0
  %v7490 = vmax.f32 %v7156, 0.0
  %v7491 = vmax.f32 %v7161, 0.0
  %v7492 = vmax.f32 %v7166, 0.0
  %v7493 = vmax.f32 %v7171, 0.0
  %v7494 = vmax.f32 %v7176, 0.0
  %v7495 = vmax.f32 %v7181, 0.0
  %v7496 = vmax.f32 %v7186, 0.0
  %v7497 = vmax.f32 %v7191, 0.0
  %v7498 = vmax.f32 %v7196, 0.0
  %v7499 = vmax.f32 %v7201, 0.0
  %v7500 = vmax.f32 %v7206, 0.0
  %v7501 = vmax.f32 %v7211, 0.0
  %v7502 = vmax.f32 %v7216, 0.0
  %v7503 = vmax.f32 %v7221, 0.0
  %v7504 = vmax.f32 %v7226, 0.0
  %v7505 = vmax.f32 %v7231, 0.0
  %v7506 = vmax.f32 %v7236, 0.0
  %v7507 = vmax.f32 %v7241, 0.0
  %v7508 = vmax.f32 %v7246, 0.0
  %v7509 = vmax.f32 %v7251, 0.0
  %v7510 = vmax.f32 %v7256, 0.0
  %v7511 = vmax.f32 %v7261, 0.0
  %v7512 = vmax.f32 %v7266, 0.0
  %v7513 = vmax.f32 %v7271, 0.0
  %v7514 = vmax.f32 %v7276, 0.0
  %v7515 = vmax.f32 %v7281, 0.0
  %v7516 = vmax.f32 %v7286, 0.0
  %v7517 = vmax.f32 %v7291, 0.0
  %v7518 = vmax.f32 %v7296, 0.0
  %v7519 = vmax.f32 %v7301, 0.0
  %v7520 = vmax.f32 %v7306, 0.0
  %v7521 = vmax.f32 %v7311, 0.0
  %v7522 = vmax.f32 %v7316, 0.0
  %v7523 = vmax.f32 %v7321, 0.0
  %v7524 = vmax.f32 %v7326, 0.0
  %v7525 = vmax.f32 %v7331, 0.0
  %v7526 = vmax.f32 %v7336, 0.0
  %v7527 = vmax.f32 %v7341, 0.0
  %v7528 = vmax.f32 %v7346, 0.0
  %v7529 = vmax.f32 %v7351, 0.0
  %v7530 = vmax.f32 %v7356, 0.0
  %v7531 = vmax.f32 %v7361, 0.0
  %v7532 = vmax.f32 %v7366, 0.0
  %v7533 = vmax.f32 %v7371, 0.0
  %v7534 = vmax.f32 %v7376, 0.0
  %v7535 = vmax.f32 %v7381, 0.0
  %v7536 = vmax.f32 %v7386, 0.0
  %v7537 = vmax.f32 %v7391, 0.0
  %v7538 = vmax.f32 %v7396, 0.0
  %v7539 = vmax.f32 %v7401, 0.0
  %v7540 = vmax.f32 %v7406, 0.0
  %v7541 = vmax.f32 %v7411, 0.0
  %v7542 = vmax.f32 %v7414, %v7416
  %v7543 = vmax.f32 %v7415, %v7417
  %v7544 = vmax.f32 %v7418, %v7420
  %v7545 = vmax.f32 %v7419, %v7421
  %v7546 = vmax.f32 %v7422, %v7424
  %v7547 = vmax.f32 %v7423, %v7425
  %v7548 = vmax.f32 %v7426, %v7428
  %v7549 = vmax.f32 %v7427, %v7429
  %v7550 = vmax.f32 %v7430, %v7432
  %v7551 = vmax.f32 %v7431, %v7433
  %v7552 = vmax.f32 %v7434, %v7436
  %v7553 = vmax.f32 %v7435, %v7437
  %v7554 = vmax.f32 %v7438, %v7440
  %v7555 = vmax.f32 %v7439, %v7441
  %v7556 = vmax.f32 %v7442, %v7444
  %v7557 = vmax.f32 %v7443, %v7445
  %v7558 = vmax.f32 %v7446, %v7448
  %v7559 = vmax.f32 %v7447, %v7449
  %v7560 = vmax.f32 %v7450, %v7452
  %v7561 = vmax.f32 %v7451, %v7453
  %v7562 = vmax.f32 %v7454, %v7456
  %v7563 = vmax.f32 %v7455, %v7457
  %v7564 = vmax.f32 %v7458, %v7460
  %v7565 = vmax.f32 %v7459, %v7461
  %v7566 = vmax.f32 %v7462, %v7464
  %v7567 = vmax.f32 %v7463, %v7465
  %v7568 = vmax.f32 %v7466, %v7468
  %v7569 = vmax.f32 %v7467, %v7469
  %v7570 = vmax.f32 %v7470, %v7472
  %v7571 = vmax.f32 %v7471, %v7473
  %v7572 = vmax.f32 %v7474, %v7476
  %v7573 = vmax.f32 %v7475, %v7477
  %v7574 = vmax.f32 %v7478, %v7480
  %v7575 = vmax.f32 %v7479, %v7481
  %v7576 = vmax.f32 %v7482, %v7484
  %v7577 = vmax.f32 %v7483, %v7485
  %v7578 = vmax.f32 %v7486, %v7488
  %v7579 = vmax.f32 %v7487, %v7489
  %v7580 = vmax.f32 %v7490, %v7492
  %v7581 = vmax.f32 %v7491, %v7493
  %v7582 = vmax.f32 %v7494, %v7496
  %v7583 = vmax.f32 %v7495, %v7497
  %v7584 = vmax.f32 %v7498, %v7500
  %v7585 = vmax.f32 %v7499, %v7501
  %v7586 = vmax.f32 %v7502, %v7504
  %v7587 = vmax.f32 %v7503, %v7505
  %v7588 = vmax.f32 %v7506, %v7508
  %v7589 = vmax.f32 %v7507, %v7509
  %v7590 = vmax.f32 %v7510, %v7512
  %v7591 = vmax.f32 %v7511, %v7513
  %v7592 = vmax.f32 %v7514, %v7516
  %v7593 = vmax.f32 %v7515, %v7517
  %v7594 = vmax.f32 %v7518, %v7520
  %v7595 = vmax.f32 %v7519, %v7521
  %v7596 = vmax.f32 %v7522, %v7524
  %v7597 = vmax.f32 %v7523, %v7525
  %v7598 = vmax.f32 %v7526, %v7528
  %v7599 = vmax.f32 %v7527, %v7529
  %v7600 = vmax.f32 %v7530, %v7532
  %v7601 = vmax.f32 %v7531, %v7533
  %v7602 = vmax.f32 %v7534, %v7536
  %v7603 = vmax.f32 %v7535, %v7537
  %v7604 = vmax.f32 %v7538, %v7540
  %v7605 = vmax.f32 %v7539, %v7541
  %v7606 = vlaneseq
  %v7607 = vshrl.u32 %v7606, 7
  %v7608 = vadd.s32 %v7607, 8
  %v7609 = vadd.s32 %v7607, 16
  %v7610 = vadd.s32 %v7607, 24
  %v7611 = vadd.s32 %v7607, 32
  %v7612 = vadd.s32 %v7607, 40
  %v7613 = vadd.s32 %v7607, 48
  %v7614 = vadd.s32 %v7607, 56
  %v7615 = vadd.s32 %v7607, 64
  %v7616 = vadd.s32 %v7607, 72
  %v7617 = vadd.s32 %v7607, 80
  %v7618 = vadd.s32 %v7607, 88
  %v7619 = vadd.s32 %v7607, 96
  %v7620 = vadd.s32 %v7607, 104
  %v7621 = vadd.s32 %v7607, 112
  %v7622 = vadd.s32 %v7607, 120
  %v7623 = vadd.s32 %v7607, 128
  %v7624 = vadd.s32 %v7607, 136
  %v7625 = vadd.s32 %v7607, 144
  %v7626 = vadd.s32 %v7607, 152
  %v7627 = vadd.s32 %v7607, 160
  %v7628 = vadd.s32 %v7607, 168
  %v7629 = vadd.s32 %v7607, 176
  %v7630 = vadd.s32 %v7607, 184
  %v7631 = vadd.s32 %v7607, 192
  %v7632 = vadd.s32 %v7607, 200
  %v7633 = vadd.s32 %v7607, 208
  %v7634 = vadd.s32 %v7607, 216
  %v7635 = vadd.s32 %v7607, 224
  %v7636 = vadd.s32 %v7607, 232
  %v7637 = vadd.s32 %v7607, 240
  %v7638 = vadd.s32 %v7607, 248
  %v7639 = vlaneseq
  %v7640 = vand.u32 %v7639, 127
  %v7641 = vadd.s32 %v7640, 128
  %v7642 = vadd.s32 %v7640, 256
  %v7643 = vadd.s32 %v7640, 384
  %v7644 = vmul.u32 %v7607, 2
  %v7645 = vmul.u32 %v7608, 2
  %v7646 = vmul.u32 %v7609, 2
  %v7647 = vmul.u32 %v7610, 2
  %v7648 = vmul.u32 %v7611, 2
  %v7649 = vmul.u32 %v7612, 2
  %v7650 = vmul.u32 %v7613, 2
  %v7651 = vmul.u32 %v7614, 2
  %v7652 = vmul.u32 %v7615, 2
  %v7653 = vmul.u32 %v7616, 2
  %v7654 = vmul.u32 %v7617, 2
  %v7655 = vmul.u32 %v7618, 2
  %v7656 = vmul.u32 %v7619, 2
  %v7657 = vmul.u32 %v7620, 2
  %v7658 = vmul.u32 %v7621, 2
  %v7659 = vmul.u32 %v7622, 2
  %v7660 = vmul.u32 %v7623, 2
  %v7661 = vmul.u32 %v7624, 2
  %v7662 = vmul.u32 %v7625, 2
  %v7663 = vmul.u32 %v7626, 2
  %v7664 = vmul.u32 %v7627, 2
  %v7665 = vmul.u32 %v7628, 2
  %v7666 = vmul.u32 %v7629, 2
  %v7667 = vmul.u32 %v7630, 2
  %v7668 = vmul.u32 %v7631, 2
  %v7669 = vmul.u32 %v7632, 2
  %v7670 = vmul.u32 %v7633, 2
  %v7671 = vmul.u32 %v7634, 2
  %v7672 = vmul.u32 %v7635, 2
  %v7673 = vmul.u32 %v7636, 2
  %v7674 = vmul.u32 %v7637, 2
  %v7675 = vmul.u32 %v7638, 2
  %vm7676 = vcmp.eq.s32.totalorder %v7640, %v7644
  %vm7677 = vcmp.eq.s32.totalorder %v7641, %v7644
  %vm7678 = vcmp.eq.s32.totalorder %v7642, %v7644
  %vm7679 = vcmp.eq.s32.totalorder %v7643, %v7644
  %vm7680 = vcmp.eq.s32.totalorder %v7640, %v7645
  %vm7681 = vcmp.eq.s32.totalorder %v7641, %v7645
  %vm7682 = vcmp.eq.s32.totalorder %v7642, %v7645
  %vm7683 = vcmp.eq.s32.totalorder %v7643, %v7645
  %vm7684 = vcmp.eq.s32.totalorder %v7640, %v7646
  %vm7685 = vcmp.eq.s32.totalorder %v7641, %v7646
  %vm7686 = vcmp.eq.s32.totalorder %v7642, %v7646
  %vm7687 = vcmp.eq.s32.totalorder %v7643, %v7646
  %vm7688 = vcmp.eq.s32.totalorder %v7640, %v7647
  %vm7689 = vcmp.eq.s32.totalorder %v7641, %v7647
  %vm7690 = vcmp.eq.s32.totalorder %v7642, %v7647
  %vm7691 = vcmp.eq.s32.totalorder %v7643, %v7647
  %vm7692 = vcmp.eq.s32.totalorder %v7640, %v7648
  %vm7693 = vcmp.eq.s32.totalorder %v7641, %v7648
  %vm7694 = vcmp.eq.s32.totalorder %v7642, %v7648
  %vm7695 = vcmp.eq.s32.totalorder %v7643, %v7648
  %vm7696 = vcmp.eq.s32.totalorder %v7640, %v7649
  %vm7697 = vcmp.eq.s32.totalorder %v7641, %v7649
  %vm7698 = vcmp.eq.s32.totalorder %v7642, %v7649
  %vm7699 = vcmp.eq.s32.totalorder %v7643, %v7649
  %vm7700 = vcmp.eq.s32.totalorder %v7640, %v7650
  %vm7701 = vcmp.eq.s32.totalorder %v7641, %v7650
  %vm7702 = vcmp.eq.s32.totalorder %v7642, %v7650
  %vm7703 = vcmp.eq.s32.totalorder %v7643, %v7650
  %vm7704 = vcmp.eq.s32.totalorder %v7640, %v7651
  %vm7705 = vcmp.eq.s32.totalorder %v7641, %v7651
  %vm7706 = vcmp.eq.s32.totalorder %v7642, %v7651
  %vm7707 = vcmp.eq.s32.totalorder %v7643, %v7651
  %vm7708 = vcmp.eq.s32.totalorder %v7640, %v7652
  %vm7709 = vcmp.eq.s32.totalorder %v7641, %v7652
  %vm7710 = vcmp.eq.s32.totalorder %v7642, %v7652
  %vm7711 = vcmp.eq.s32.totalorder %v7643, %v7652
  %vm7712 = vcmp.eq.s32.totalorder %v7640, %v7653
  %vm7713 = vcmp.eq.s32.totalorder %v7641, %v7653
  %vm7714 = vcmp.eq.s32.totalorder %v7642, %v7653
  %vm7715 = vcmp.eq.s32.totalorder %v7643, %v7653
  %vm7716 = vcmp.eq.s32.totalorder %v7640, %v7654
  %vm7717 = vcmp.eq.s32.totalorder %v7641, %v7654
  %vm7718 = vcmp.eq.s32.totalorder %v7642, %v7654
  %vm7719 = vcmp.eq.s32.totalorder %v7643, %v7654
  %vm7720 = vcmp.eq.s32.totalorder %v7640, %v7655
  %vm7721 = vcmp.eq.s32.totalorder %v7641, %v7655
  %vm7722 = vcmp.eq.s32.totalorder %v7642, %v7655
  %vm7723 = vcmp.eq.s32.totalorder %v7643, %v7655
  %vm7724 = vcmp.eq.s32.totalorder %v7640, %v7656
  %vm7725 = vcmp.eq.s32.totalorder %v7641, %v7656
  %vm7726 = vcmp.eq.s32.totalorder %v7642, %v7656
  %vm7727 = vcmp.eq.s32.totalorder %v7643, %v7656
  %vm7728 = vcmp.eq.s32.totalorder %v7640, %v7657
  %vm7729 = vcmp.eq.s32.totalorder %v7641, %v7657
  %vm7730 = vcmp.eq.s32.totalorder %v7642, %v7657
  %vm7731 = vcmp.eq.s32.totalorder %v7643, %v7657
  %vm7732 = vcmp.eq.s32.totalorder %v7640, %v7658
  %vm7733 = vcmp.eq.s32.totalorder %v7641, %v7658
  %vm7734 = vcmp.eq.s32.totalorder %v7642, %v7658
  %vm7735 = vcmp.eq.s32.totalorder %v7643, %v7658
  %vm7736 = vcmp.eq.s32.totalorder %v7640, %v7659
  %vm7737 = vcmp.eq.s32.totalorder %v7641, %v7659
  %vm7738 = vcmp.eq.s32.totalorder %v7642, %v7659
  %vm7739 = vcmp.eq.s32.totalorder %v7643, %v7659
  %vm7740 = vcmp.eq.s32.totalorder %v7640, %v7660
  %vm7741 = vcmp.eq.s32.totalorder %v7641, %v7660
  %vm7742 = vcmp.eq.s32.totalorder %v7642, %v7660
  %vm7743 = vcmp.eq.s32.totalorder %v7643, %v7660
  %vm7744 = vcmp.eq.s32.totalorder %v7640, %v7661
  %vm7745 = vcmp.eq.s32.totalorder %v7641, %v7661
  %vm7746 = vcmp.eq.s32.totalorder %v7642, %v7661
  %vm7747 = vcmp.eq.s32.totalorder %v7643, %v7661
  %vm7748 = vcmp.eq.s32.totalorder %v7640, %v7662
  %vm7749 = vcmp.eq.s32.totalorder %v7641, %v7662
  %vm7750 = vcmp.eq.s32.totalorder %v7642, %v7662
  %vm7751 = vcmp.eq.s32.totalorder %v7643, %v7662
  %vm7752 = vcmp.eq.s32.totalorder %v7640, %v7663
  %vm7753 = vcmp.eq.s32.totalorder %v7641, %v7663
  %vm7754 = vcmp.eq.s32.totalorder %v7642, %v7663
  %vm7755 = vcmp.eq.s32.totalorder %v7643, %v7663
  %vm7756 = vcmp.eq.s32.totalorder %v7640, %v7664
  %vm7757 = vcmp.eq.s32.totalorder %v7641, %v7664
  %vm7758 = vcmp.eq.s32.totalorder %v7642, %v7664
  %vm7759 = vcmp.eq.s32.totalorder %v7643, %v7664
  %vm7760 = vcmp.eq.s32.totalorder %v7640, %v7665
  %vm7761 = vcmp.eq.s32.totalorder %v7641, %v7665
  %vm7762 = vcmp.eq.s32.totalorder %v7642, %v7665
  %vm7763 = vcmp.eq.s32.totalorder %v7643, %v7665
  %vm7764 = vcmp.eq.s32.totalorder %v7640, %v7666
  %vm7765 = vcmp.eq.s32.totalorder %v7641, %v7666
  %vm7766 = vcmp.eq.s32.totalorder %v7642, %v7666
  %vm7767 = vcmp.eq.s32.totalorder %v7643, %v7666
  %vm7768 = vcmp.eq.s32.totalorder %v7640, %v7667
  %vm7769 = vcmp.eq.s32.totalorder %v7641, %v7667
  %vm7770 = vcmp.eq.s32.totalorder %v7642, %v7667
  %vm7771 = vcmp.eq.s32.totalorder %v7643, %v7667
  %vm7772 = vcmp.eq.s32.totalorder %v7640, %v7668
  %vm7773 = vcmp.eq.s32.totalorder %v7641, %v7668
  %vm7774 = vcmp.eq.s32.totalorder %v7642, %v7668
  %vm7775 = vcmp.eq.s32.totalorder %v7643, %v7668
  %vm7776 = vcmp.eq.s32.totalorder %v7640, %v7669
  %vm7777 = vcmp.eq.s32.totalorder %v7641, %v7669
  %vm7778 = vcmp.eq.s32.totalorder %v7642, %v7669
  %vm7779 = vcmp.eq.s32.totalorder %v7643, %v7669
  %vm7780 = vcmp.eq.s32.totalorder %v7640, %v7670
  %vm7781 = vcmp.eq.s32.totalorder %v7641, %v7670
  %vm7782 = vcmp.eq.s32.totalorder %v7642, %v7670
  %vm7783 = vcmp.eq.s32.totalorder %v7643, %v7670
  %vm7784 = vcmp.eq.s32.totalorder %v7640, %v7671
  %vm7785 = vcmp.eq.s32.totalorder %v7641, %v7671
  %vm7786 = vcmp.eq.s32.totalorder %v7642, %v7671
  %vm7787 = vcmp.eq.s32.totalorder %v7643, %v7671
  %vm7788 = vcmp.eq.s32.totalorder %v7640, %v7672
  %vm7789 = vcmp.eq.s32.totalorder %v7641, %v7672
  %vm7790 = vcmp.eq.s32.totalorder %v7642, %v7672
  %vm7791 = vcmp.eq.s32.totalorder %v7643, %v7672
  %vm7792 = vcmp.eq.s32.totalorder %v7640, %v7673
  %vm7793 = vcmp.eq.s32.totalorder %v7641, %v7673
  %vm7794 = vcmp.eq.s32.totalorder %v7642, %v7673
  %vm7795 = vcmp.eq.s32.totalorder %v7643, %v7673
  %vm7796 = vcmp.eq.s32.totalorder %v7640, %v7674
  %vm7797 = vcmp.eq.s32.totalorder %v7641, %v7674
  %vm7798 = vcmp.eq.s32.totalorder %v7642, %v7674
  %vm7799 = vcmp.eq.s32.totalorder %v7643, %v7674
  %vm7800 = vcmp.eq.s32.totalorder %v7640, %v7675
  %vm7801 = vcmp.eq.s32.totalorder %v7641, %v7675
  %vm7802 = vcmp.eq.s32.totalorder %v7642, %v7675
  %vm7803 = vcmp.eq.s32.totalorder %v7643, %v7675
  %v7804 = vsel %vm7676, 1, 0
  %v7805 = vsel %vm7677, 1, 0
  %v7806 = vsel %vm7678, 1, 0
  %v7807 = vsel %vm7679, 1, 0
  %v7808 = vsel %vm7680, 1, 0
  %v7809 = vsel %vm7681, 1, 0
  %v7810 = vsel %vm7682, 1, 0
  %v7811 = vsel %vm7683, 1, 0
  %v7812 = vsel %vm7684, 1, 0
  %v7813 = vsel %vm7685, 1, 0
  %v7814 = vsel %vm7686, 1, 0
  %v7815 = vsel %vm7687, 1, 0
  %v7816 = vsel %vm7688, 1, 0
  %v7817 = vsel %vm7689, 1, 0
  %v7818 = vsel %vm7690, 1, 0
  %v7819 = vsel %vm7691, 1, 0
  %v7820 = vsel %vm7692, 1, 0
  %v7821 = vsel %vm7693, 1, 0
  %v7822 = vsel %vm7694, 1, 0
  %v7823 = vsel %vm7695, 1, 0
  %v7824 = vsel %vm7696, 1, 0
  %v7825 = vsel %vm7697, 1, 0
  %v7826 = vsel %vm7698, 1, 0
  %v7827 = vsel %vm7699, 1, 0
  %v7828 = vsel %vm7700, 1, 0
  %v7829 = vsel %vm7701, 1, 0
  %v7830 = vsel %vm7702, 1, 0
  %v7831 = vsel %vm7703, 1, 0
  %v7832 = vsel %vm7704, 1, 0
  %v7833 = vsel %vm7705, 1, 0
  %v7834 = vsel %vm7706, 1, 0
  %v7835 = vsel %vm7707, 1, 0
  %v7836 = vsel %vm7708, 1, 0
  %v7837 = vsel %vm7709, 1, 0
  %v7838 = vsel %vm7710, 1, 0
  %v7839 = vsel %vm7711, 1, 0
  %v7840 = vsel %vm7712, 1, 0
  %v7841 = vsel %vm7713, 1, 0
  %v7842 = vsel %vm7714, 1, 0
  %v7843 = vsel %vm7715, 1, 0
  %v7844 = vsel %vm7716, 1, 0
  %v7845 = vsel %vm7717, 1, 0
  %v7846 = vsel %vm7718, 1, 0
  %v7847 = vsel %vm7719, 1, 0
  %v7848 = vsel %vm7720, 1, 0
  %v7849 = vsel %vm7721, 1, 0
  %v7850 = vsel %vm7722, 1, 0
  %v7851 = vsel %vm7723, 1, 0
  %v7852 = vsel %vm7724, 1, 0
  %v7853 = vsel %vm7725, 1, 0
  %v7854 = vsel %vm7726, 1, 0
  %v7855 = vsel %vm7727, 1, 0
  %v7856 = vsel %vm7728, 1, 0
  %v7857 = vsel %vm7729, 1, 0
  %v7858 = vsel %vm7730, 1, 0
  %v7859 = vsel %vm7731, 1, 0
  %v7860 = vsel %vm7732, 1, 0
  %v7861 = vsel %vm7733, 1, 0
  %v7862 = vsel %vm7734, 1, 0
  %v7863 = vsel %vm7735, 1, 0
  %v7864 = vsel %vm7736, 1, 0
  %v7865 = vsel %vm7737, 1, 0
  %v7866 = vsel %vm7738, 1, 0
  %v7867 = vsel %vm7739, 1, 0
  %v7868 = vsel %vm7740, 1, 0
  %v7869 = vsel %vm7741, 1, 0
  %v7870 = vsel %vm7742, 1, 0
  %v7871 = vsel %vm7743, 1, 0
  %v7872 = vsel %vm7744, 1, 0
  %v7873 = vsel %vm7745, 1, 0
  %v7874 = vsel %vm7746, 1, 0
  %v7875 = vsel %vm7747, 1, 0
  %v7876 = vsel %vm7748, 1, 0
  %v7877 = vsel %vm7749, 1, 0
  %v7878 = vsel %vm7750, 1, 0
  %v7879 = vsel %vm7751, 1, 0
  %v7880 = vsel %vm7752, 1, 0
  %v7881 = vsel %vm7753, 1, 0
  %v7882 = vsel %vm7754, 1, 0
  %v7883 = vsel %vm7755, 1, 0
  %v7884 = vsel %vm7756, 1, 0
  %v7885 = vsel %vm7757, 1, 0
  %v7886 = vsel %vm7758, 1, 0
  %v7887 = vsel %vm7759, 1, 0
  %v7888 = vsel %vm7760, 1, 0
  %v7889 = vsel %vm7761, 1, 0
  %v7890 = vsel %vm7762, 1, 0
  %v7891 = vsel %vm7763, 1, 0
  %v7892 = vsel %vm7764, 1, 0
  %v7893 = vsel %vm7765, 1, 0
  %v7894 = vsel %vm7766, 1, 0
  %v7895 = vsel %vm7767, 1, 0
  %v7896 = vsel %vm7768, 1, 0
  %v7897 = vsel %vm7769, 1, 0
  %v7898 = vsel %vm7770, 1, 0
  %v7899 = vsel %vm7771, 1, 0
  %v7900 = vsel %vm7772, 1, 0
  %v7901 = vsel %vm7773, 1, 0
  %v7902 = vsel %vm7774, 1, 0
  %v7903 = vsel %vm7775, 1, 0
  %v7904 = vsel %vm7776, 1, 0
  %v7905 = vsel %vm7777, 1, 0
  %v7906 = vsel %vm7778, 1, 0
  %v7907 = vsel %vm7779, 1, 0
  %v7908 = vsel %vm7780, 1, 0
  %v7909 = vsel %vm7781, 1, 0
  %v7910 = vsel %vm7782, 1, 0
  %v7911 = vsel %vm7783, 1, 0
  %v7912 = vsel %vm7784, 1, 0
  %v7913 = vsel %vm7785, 1, 0
  %v7914 = vsel %vm7786, 1, 0
  %v7915 = vsel %vm7787, 1, 0
  %v7916 = vsel %vm7788, 1, 0
  %v7917 = vsel %vm7789, 1, 0
  %v7918 = vsel %vm7790, 1, 0
  %v7919 = vsel %vm7791, 1, 0
  %v7920 = vsel %vm7792, 1, 0
  %v7921 = vsel %vm7793, 1, 0
  %v7922 = vsel %vm7794, 1, 0
  %v7923 = vsel %vm7795, 1, 0
  %v7924 = vsel %vm7796, 1, 0
  %v7925 = vsel %vm7797, 1, 0
  %v7926 = vsel %vm7798, 1, 0
  %v7927 = vsel %vm7799, 1, 0
  %v7928 = vsel %vm7800, 1, 0
  %v7929 = vsel %vm7801, 1, 0
  %v7930 = vsel %vm7802, 1, 0
  %v7931 = vsel %vm7803, 1, 0
  %v7932 = vcvt.s32.f32 %v7804
  %v7933 = vcvt.s32.f32 %v7805
  %v7934 = vcvt.s32.f32 %v7806
  %v7935 = vcvt.s32.f32 %v7807
  %v7936 = vcvt.s32.f32 %v7808
  %v7937 = vcvt.s32.f32 %v7809
  %v7938 = vcvt.s32.f32 %v7810
  %v7939 = vcvt.s32.f32 %v7811
  %v7940 = vcvt.s32.f32 %v7812
  %v7941 = vcvt.s32.f32 %v7813
  %v7942 = vcvt.s32.f32 %v7814
  %v7943 = vcvt.s32.f32 %v7815
  %v7944 = vcvt.s32.f32 %v7816
  %v7945 = vcvt.s32.f32 %v7817
  %v7946 = vcvt.s32.f32 %v7818
  %v7947 = vcvt.s32.f32 %v7819
  %v7948 = vcvt.s32.f32 %v7820
  %v7949 = vcvt.s32.f32 %v7821
  %v7950 = vcvt.s32.f32 %v7822
  %v7951 = vcvt.s32.f32 %v7823
  %v7952 = vcvt.s32.f32 %v7824
  %v7953 = vcvt.s32.f32 %v7825
  %v7954 = vcvt.s32.f32 %v7826
  %v7955 = vcvt.s32.f32 %v7827
  %v7956 = vcvt.s32.f32 %v7828
  %v7957 = vcvt.s32.f32 %v7829
  %v7958 = vcvt.s32.f32 %v7830
  %v7959 = vcvt.s32.f32 %v7831
  %v7960 = vcvt.s32.f32 %v7832
  %v7961 = vcvt.s32.f32 %v7833
  %v7962 = vcvt.s32.f32 %v7834
  %v7963 = vcvt.s32.f32 %v7835
  %v7964 = vcvt.s32.f32 %v7836
  %v7965 = vcvt.s32.f32 %v7837
  %v7966 = vcvt.s32.f32 %v7838
  %v7967 = vcvt.s32.f32 %v7839
  %v7968 = vcvt.s32.f32 %v7840
  %v7969 = vcvt.s32.f32 %v7841
  %v7970 = vcvt.s32.f32 %v7842
  %v7971 = vcvt.s32.f32 %v7843
  %v7972 = vcvt.s32.f32 %v7844
  %v7973 = vcvt.s32.f32 %v7845
  %v7974 = vcvt.s32.f32 %v7846
  %v7975 = vcvt.s32.f32 %v7847
  %v7976 = vcvt.s32.f32 %v7848
  %v7977 = vcvt.s32.f32 %v7849
  %v7978 = vcvt.s32.f32 %v7850
  %v7979 = vcvt.s32.f32 %v7851
  %v7980 = vcvt.s32.f32 %v7852
  %v7981 = vcvt.s32.f32 %v7853
  %v7982 = vcvt.s32.f32 %v7854
  %v7983 = vcvt.s32.f32 %v7855
  %v7984 = vcvt.s32.f32 %v7856
  %v7985 = vcvt.s32.f32 %v7857
  %v7986 = vcvt.s32.f32 %v7858
  %v7987 = vcvt.s32.f32 %v7859
  %v7988 = vcvt.s32.f32 %v7860
  %v7989 = vcvt.s32.f32 %v7861
  %v7990 = vcvt.s32.f32 %v7862
  %v7991 = vcvt.s32.f32 %v7863
  %v7992 = vcvt.s32.f32 %v7864
  %v7993 = vcvt.s32.f32 %v7865
  %v7994 = vcvt.s32.f32 %v7866
  %v7995 = vcvt.s32.f32 %v7867
  %v7996 = vcvt.s32.f32 %v7868
  %v7997 = vcvt.s32.f32 %v7869
  %v7998 = vcvt.s32.f32 %v7870
  %v7999 = vcvt.s32.f32 %v7871
  %v8000 = vcvt.s32.f32 %v7872
  %v8001 = vcvt.s32.f32 %v7873
  %v8002 = vcvt.s32.f32 %v7874
  %v8003 = vcvt.s32.f32 %v7875
  %v8004 = vcvt.s32.f32 %v7876
  %v8005 = vcvt.s32.f32 %v7877
  %v8006 = vcvt.s32.f32 %v7878
  %v8007 = vcvt.s32.f32 %v7879
  %v8008 = vcvt.s32.f32 %v7880
  %v8009 = vcvt.s32.f32 %v7881
  %v8010 = vcvt.s32.f32 %v7882
  %v8011 = vcvt.s32.f32 %v7883
  %v8012 = vcvt.s32.f32 %v7884
  %v8013 = vcvt.s32.f32 %v7885
  %v8014 = vcvt.s32.f32 %v7886
  %v8015 = vcvt.s32.f32 %v7887
  %v8016 = vcvt.s32.f32 %v7888
  %v8017 = vcvt.s32.f32 %v7889
  %v8018 = vcvt.s32.f32 %v7890
  %v8019 = vcvt.s32.f32 %v7891
  %v8020 = vcvt.s32.f32 %v7892
  %v8021 = vcvt.s32.f32 %v7893
  %v8022 = vcvt.s32.f32 %v7894
  %v8023 = vcvt.s32.f32 %v7895
  %v8024 = vcvt.s32.f32 %v7896
  %v8025 = vcvt.s32.f32 %v7897
  %v8026 = vcvt.s32.f32 %v7898
  %v8027 = vcvt.s32.f32 %v7899
  %v8028 = vcvt.s32.f32 %v7900
  %v8029 = vcvt.s32.f32 %v7901
  %v8030 = vcvt.s32.f32 %v7902
  %v8031 = vcvt.s32.f32 %v7903
  %v8032 = vcvt.s32.f32 %v7904
  %v8033 = vcvt.s32.f32 %v7905
  %v8034 = vcvt.s32.f32 %v7906
  %v8035 = vcvt.s32.f32 %v7907
  %v8036 = vcvt.s32.f32 %v7908
  %v8037 = vcvt.s32.f32 %v7909
  %v8038 = vcvt.s32.f32 %v7910
  %v8039 = vcvt.s32.f32 %v7911
  %v8040 = vcvt.s32.f32 %v7912
  %v8041 = vcvt.s32.f32 %v7913
  %v8042 = vcvt.s32.f32 %v7914
  %v8043 = vcvt.s32.f32 %v7915
  %v8044 = vcvt.s32.f32 %v7916
  %v8045 = vcvt.s32.f32 %v7917
  %v8046 = vcvt.s32.f32 %v7918
  %v8047 = vcvt.s32.f32 %v7919
  %v8048 = vcvt.s32.f32 %v7920
  %v8049 = vcvt.s32.f32 %v7921
  %v8050 = vcvt.s32.f32 %v7922
  %v8051 = vcvt.s32.f32 %v7923
  %v8052 = vcvt.s32.f32 %v7924
  %v8053 = vcvt.s32.f32 %v7925
  %v8054 = vcvt.s32.f32 %v7926
  %v8055 = vcvt.s32.f32 %v7927
  %v8056 = vcvt.s32.f32 %v7928
  %v8057 = vcvt.s32.f32 %v7929
  %v8058 = vcvt.s32.f32 %v7930
  %v8059 = vcvt.s32.f32 %v7931
  %v8060 = vadd.s32 %v7644, 1
  %v8061 = vadd.s32 %v7645, 1
  %v8062 = vadd.s32 %v7646, 1
  %v8063 = vadd.s32 %v7647, 1
  %v8064 = vadd.s32 %v7648, 1
  %v8065 = vadd.s32 %v7649, 1
  %v8066 = vadd.s32 %v7650, 1
  %v8067 = vadd.s32 %v7651, 1
  %v8068 = vadd.s32 %v7652, 1
  %v8069 = vadd.s32 %v7653, 1
  %v8070 = vadd.s32 %v7654, 1
  %v8071 = vadd.s32 %v7655, 1
  %v8072 = vadd.s32 %v7656, 1
  %v8073 = vadd.s32 %v7657, 1
  %v8074 = vadd.s32 %v7658, 1
  %v8075 = vadd.s32 %v7659, 1
  %v8076 = vadd.s32 %v7660, 1
  %v8077 = vadd.s32 %v7661, 1
  %v8078 = vadd.s32 %v7662, 1
  %v8079 = vadd.s32 %v7663, 1
  %v8080 = vadd.s32 %v7664, 1
  %v8081 = vadd.s32 %v7665, 1
  %v8082 = vadd.s32 %v7666, 1
  %v8083 = vadd.s32 %v7667, 1
  %v8084 = vadd.s32 %v7668, 1
  %v8085 = vadd.s32 %v7669, 1
  %v8086 = vadd.s32 %v7670, 1
  %v8087 = vadd.s32 %v7671, 1
  %v8088 = vadd.s32 %v7672, 1
  %v8089 = vadd.s32 %v7673, 1
  %v8090 = vadd.s32 %v7674, 1
  %v8091 = vadd.s32 %v7675, 1
  %vm8092 = vcmp.eq.s32.totalorder %v7640, %v8060
  %vm8093 = vcmp.eq.s32.totalorder %v7641, %v8060
  %vm8094 = vcmp.eq.s32.totalorder %v7642, %v8060
  %vm8095 = vcmp.eq.s32.totalorder %v7643, %v8060
  %vm8096 = vcmp.eq.s32.totalorder %v7640, %v8061
  %vm8097 = vcmp.eq.s32.totalorder %v7641, %v8061
  %vm8098 = vcmp.eq.s32.totalorder %v7642, %v8061
  %vm8099 = vcmp.eq.s32.totalorder %v7643, %v8061
  %vm8100 = vcmp.eq.s32.totalorder %v7640, %v8062
  %vm8101 = vcmp.eq.s32.totalorder %v7641, %v8062
  %vm8102 = vcmp.eq.s32.totalorder %v7642, %v8062
  %vm8103 = vcmp.eq.s32.totalorder %v7643, %v8062
  %vm8104 = vcmp.eq.s32.totalorder %v7640, %v8063
  %vm8105 = vcmp.eq.s32.totalorder %v7641, %v8063
  %vm8106 = vcmp.eq.s32.totalorder %v7642, %v8063
  %vm8107 = vcmp.eq.s32.totalorder %v7643, %v8063
  %vm8108 = vcmp.eq.s32.totalorder %v7640, %v8064
  %vm8109 = vcmp.eq.s32.totalorder %v7641, %v8064
  %vm8110 = vcmp.eq.s32.totalorder %v7642, %v8064
  %vm8111 = vcmp.eq.s32.totalorder %v7643, %v8064
  %vm8112 = vcmp.eq.s32.totalorder %v7640, %v8065
  %vm8113 = vcmp.eq.s32.totalorder %v7641, %v8065
  %vm8114 = vcmp.eq.s32.totalorder %v7642, %v8065
  %vm8115 = vcmp.eq.s32.totalorder %v7643, %v8065
  %vm8116 = vcmp.eq.s32.totalorder %v7640, %v8066
  %vm8117 = vcmp.eq.s32.totalorder %v7641, %v8066
  %vm8118 = vcmp.eq.s32.totalorder %v7642, %v8066
  %vm8119 = vcmp.eq.s32.totalorder %v7643, %v8066
  %vm8120 = vcmp.eq.s32.totalorder %v7640, %v8067
  %vm8121 = vcmp.eq.s32.totalorder %v7641, %v8067
  %vm8122 = vcmp.eq.s32.totalorder %v7642, %v8067
  %vm8123 = vcmp.eq.s32.totalorder %v7643, %v8067
  %vm8124 = vcmp.eq.s32.totalorder %v7640, %v8068
  %vm8125 = vcmp.eq.s32.totalorder %v7641, %v8068
  %vm8126 = vcmp.eq.s32.totalorder %v7642, %v8068
  %vm8127 = vcmp.eq.s32.totalorder %v7643, %v8068
  %vm8128 = vcmp.eq.s32.totalorder %v7640, %v8069
  %vm8129 = vcmp.eq.s32.totalorder %v7641, %v8069
  %vm8130 = vcmp.eq.s32.totalorder %v7642, %v8069
  %vm8131 = vcmp.eq.s32.totalorder %v7643, %v8069
  %vm8132 = vcmp.eq.s32.totalorder %v7640, %v8070
  %vm8133 = vcmp.eq.s32.totalorder %v7641, %v8070
  %vm8134 = vcmp.eq.s32.totalorder %v7642, %v8070
  %vm8135 = vcmp.eq.s32.totalorder %v7643, %v8070
  %vm8136 = vcmp.eq.s32.totalorder %v7640, %v8071
  %vm8137 = vcmp.eq.s32.totalorder %v7641, %v8071
  %vm8138 = vcmp.eq.s32.totalorder %v7642, %v8071
  %vm8139 = vcmp.eq.s32.totalorder %v7643, %v8071
  %vm8140 = vcmp.eq.s32.totalorder %v7640, %v8072
  %vm8141 = vcmp.eq.s32.totalorder %v7641, %v8072
  %vm8142 = vcmp.eq.s32.totalorder %v7642, %v8072
  %vm8143 = vcmp.eq.s32.totalorder %v7643, %v8072
  %vm8144 = vcmp.eq.s32.totalorder %v7640, %v8073
  %vm8145 = vcmp.eq.s32.totalorder %v7641, %v8073
  %vm8146 = vcmp.eq.s32.totalorder %v7642, %v8073
  %vm8147 = vcmp.eq.s32.totalorder %v7643, %v8073
  %vm8148 = vcmp.eq.s32.totalorder %v7640, %v8074
  %vm8149 = vcmp.eq.s32.totalorder %v7641, %v8074
  %vm8150 = vcmp.eq.s32.totalorder %v7642, %v8074
  %vm8151 = vcmp.eq.s32.totalorder %v7643, %v8074
  %vm8152 = vcmp.eq.s32.totalorder %v7640, %v8075
  %vm8153 = vcmp.eq.s32.totalorder %v7641, %v8075
  %vm8154 = vcmp.eq.s32.totalorder %v7642, %v8075
  %vm8155 = vcmp.eq.s32.totalorder %v7643, %v8075
  %vm8156 = vcmp.eq.s32.totalorder %v7640, %v8076
  %vm8157 = vcmp.eq.s32.totalorder %v7641, %v8076
  %vm8158 = vcmp.eq.s32.totalorder %v7642, %v8076
  %vm8159 = vcmp.eq.s32.totalorder %v7643, %v8076
  %vm8160 = vcmp.eq.s32.totalorder %v7640, %v8077
  %vm8161 = vcmp.eq.s32.totalorder %v7641, %v8077
  %vm8162 = vcmp.eq.s32.totalorder %v7642, %v8077
  %vm8163 = vcmp.eq.s32.totalorder %v7643, %v8077
  %vm8164 = vcmp.eq.s32.totalorder %v7640, %v8078
  %vm8165 = vcmp.eq.s32.totalorder %v7641, %v8078
  %vm8166 = vcmp.eq.s32.totalorder %v7642, %v8078
  %vm8167 = vcmp.eq.s32.totalorder %v7643, %v8078
  %vm8168 = vcmp.eq.s32.totalorder %v7640, %v8079
  %vm8169 = vcmp.eq.s32.totalorder %v7641, %v8079
  %vm8170 = vcmp.eq.s32.totalorder %v7642, %v8079
  %vm8171 = vcmp.eq.s32.totalorder %v7643, %v8079
  %vm8172 = vcmp.eq.s32.totalorder %v7640, %v8080
  %vm8173 = vcmp.eq.s32.totalorder %v7641, %v8080
  %vm8174 = vcmp.eq.s32.totalorder %v7642, %v8080
  %vm8175 = vcmp.eq.s32.totalorder %v7643, %v8080
  %vm8176 = vcmp.eq.s32.totalorder %v7640, %v8081
  %vm8177 = vcmp.eq.s32.totalorder %v7641, %v8081
  %vm8178 = vcmp.eq.s32.totalorder %v7642, %v8081
  %vm8179 = vcmp.eq.s32.totalorder %v7643, %v8081
  %vm8180 = vcmp.eq.s32.totalorder %v7640, %v8082
  %vm8181 = vcmp.eq.s32.totalorder %v7641, %v8082
  %vm8182 = vcmp.eq.s32.totalorder %v7642, %v8082
  %vm8183 = vcmp.eq.s32.totalorder %v7643, %v8082
  %vm8184 = vcmp.eq.s32.totalorder %v7640, %v8083
  %vm8185 = vcmp.eq.s32.totalorder %v7641, %v8083
  %vm8186 = vcmp.eq.s32.totalorder %v7642, %v8083
  %vm8187 = vcmp.eq.s32.totalorder %v7643, %v8083
  %vm8188 = vcmp.eq.s32.totalorder %v7640, %v8084
  %vm8189 = vcmp.eq.s32.totalorder %v7641, %v8084
  %vm8190 = vcmp.eq.s32.totalorder %v7642, %v8084
  %vm8191 = vcmp.eq.s32.totalorder %v7643, %v8084
  %vm8192 = vcmp.eq.s32.totalorder %v7640, %v8085
  %vm8193 = vcmp.eq.s32.totalorder %v7641, %v8085
  %vm8194 = vcmp.eq.s32.totalorder %v7642, %v8085
  %vm8195 = vcmp.eq.s32.totalorder %v7643, %v8085
  %vm8196 = vcmp.eq.s32.totalorder %v7640, %v8086
  %vm8197 = vcmp.eq.s32.totalorder %v7641, %v8086
  %vm8198 = vcmp.eq.s32.totalorder %v7642, %v8086
  %vm8199 = vcmp.eq.s32.totalorder %v7643, %v8086
  %vm8200 = vcmp.eq.s32.totalorder %v7640, %v8087
  %vm8201 = vcmp.eq.s32.totalorder %v7641, %v8087
  %vm8202 = vcmp.eq.s32.totalorder %v7642, %v8087
  %vm8203 = vcmp.eq.s32.totalorder %v7643, %v8087
  %vm8204 = vcmp.eq.s32.totalorder %v7640, %v8088
  %vm8205 = vcmp.eq.s32.totalorder %v7641, %v8088
  %vm8206 = vcmp.eq.s32.totalorder %v7642, %v8088
  %vm8207 = vcmp.eq.s32.totalorder %v7643, %v8088
  %vm8208 = vcmp.eq.s32.totalorder %v7640, %v8089
  %vm8209 = vcmp.eq.s32.totalorder %v7641, %v8089
  %vm8210 = vcmp.eq.s32.totalorder %v7642, %v8089
  %vm8211 = vcmp.eq.s32.totalorder %v7643, %v8089
  %vm8212 = vcmp.eq.s32.totalorder %v7640, %v8090
  %vm8213 = vcmp.eq.s32.totalorder %v7641, %v8090
  %vm8214 = vcmp.eq.s32.totalorder %v7642, %v8090
  %vm8215 = vcmp.eq.s32.totalorder %v7643, %v8090
  %vm8216 = vcmp.eq.s32.totalorder %v7640, %v8091
  %vm8217 = vcmp.eq.s32.totalorder %v7641, %v8091
  %vm8218 = vcmp.eq.s32.totalorder %v7642, %v8091
  %vm8219 = vcmp.eq.s32.totalorder %v7643, %v8091
  %v8220 = vsel %vm8092, 1, 0
  %v8221 = vsel %vm8093, 1, 0
  %v8222 = vsel %vm8094, 1, 0
  %v8223 = vsel %vm8095, 1, 0
  %v8224 = vsel %vm8096, 1, 0
  %v8225 = vsel %vm8097, 1, 0
  %v8226 = vsel %vm8098, 1, 0
  %v8227 = vsel %vm8099, 1, 0
  %v8228 = vsel %vm8100, 1, 0
  %v8229 = vsel %vm8101, 1, 0
  %v8230 = vsel %vm8102, 1, 0
  %v8231 = vsel %vm8103, 1, 0
  %v8232 = vsel %vm8104, 1, 0
  %v8233 = vsel %vm8105, 1, 0
  %v8234 = vsel %vm8106, 1, 0
  %v8235 = vsel %vm8107, 1, 0
  %v8236 = vsel %vm8108, 1, 0
  %v8237 = vsel %vm8109, 1, 0
  %v8238 = vsel %vm8110, 1, 0
  %v8239 = vsel %vm8111, 1, 0
  %v8240 = vsel %vm8112, 1, 0
  %v8241 = vsel %vm8113, 1, 0
  %v8242 = vsel %vm8114, 1, 0
  %v8243 = vsel %vm8115, 1, 0
  %v8244 = vsel %vm8116, 1, 0
  %v8245 = vsel %vm8117, 1, 0
  %v8246 = vsel %vm8118, 1, 0
  %v8247 = vsel %vm8119, 1, 0
  %v8248 = vsel %vm8120, 1, 0
  %v8249 = vsel %vm8121, 1, 0
  %v8250 = vsel %vm8122, 1, 0
  %v8251 = vsel %vm8123, 1, 0
  %v8252 = vsel %vm8124, 1, 0
  %v8253 = vsel %vm8125, 1, 0
  %v8254 = vsel %vm8126, 1, 0
  %v8255 = vsel %vm8127, 1, 0
  %v8256 = vsel %vm8128, 1, 0
  %v8257 = vsel %vm8129, 1, 0
  %v8258 = vsel %vm8130, 1, 0
  %v8259 = vsel %vm8131, 1, 0
  %v8260 = vsel %vm8132, 1, 0
  %v8261 = vsel %vm8133, 1, 0
  %v8262 = vsel %vm8134, 1, 0
  %v8263 = vsel %vm8135, 1, 0
  %v8264 = vsel %vm8136, 1, 0
  %v8265 = vsel %vm8137, 1, 0
  %v8266 = vsel %vm8138, 1, 0
  %v8267 = vsel %vm8139, 1, 0
  %v8268 = vsel %vm8140, 1, 0
  %v8269 = vsel %vm8141, 1, 0
  %v8270 = vsel %vm8142, 1, 0
  %v8271 = vsel %vm8143, 1, 0
  %v8272 = vsel %vm8144, 1, 0
  %v8273 = vsel %vm8145, 1, 0
  %v8274 = vsel %vm8146, 1, 0
  %v8275 = vsel %vm8147, 1, 0
  %v8276 = vsel %vm8148, 1, 0
  %v8277 = vsel %vm8149, 1, 0
  %v8278 = vsel %vm8150, 1, 0
  %v8279 = vsel %vm8151, 1, 0
  %v8280 = vsel %vm8152, 1, 0
  %v8281 = vsel %vm8153, 1, 0
  %v8282 = vsel %vm8154, 1, 0
  %v8283 = vsel %vm8155, 1, 0
  %v8284 = vsel %vm8156, 1, 0
  %v8285 = vsel %vm8157, 1, 0
  %v8286 = vsel %vm8158, 1, 0
  %v8287 = vsel %vm8159, 1, 0
  %v8288 = vsel %vm8160, 1, 0
  %v8289 = vsel %vm8161, 1, 0
  %v8290 = vsel %vm8162, 1, 0
  %v8291 = vsel %vm8163, 1, 0
  %v8292 = vsel %vm8164, 1, 0
  %v8293 = vsel %vm8165, 1, 0
  %v8294 = vsel %vm8166, 1, 0
  %v8295 = vsel %vm8167, 1, 0
  %v8296 = vsel %vm8168, 1, 0
  %v8297 = vsel %vm8169, 1, 0
  %v8298 = vsel %vm8170, 1, 0
  %v8299 = vsel %vm8171, 1, 0
  %v8300 = vsel %vm8172, 1, 0
  %v8301 = vsel %vm8173, 1, 0
  %v8302 = vsel %vm8174, 1, 0
  %v8303 = vsel %vm8175, 1, 0
  %v8304 = vsel %vm8176, 1, 0
  %v8305 = vsel %vm8177, 1, 0
  %v8306 = vsel %vm8178, 1, 0
  %v8307 = vsel %vm8179, 1, 0
  %v8308 = vsel %vm8180, 1, 0
  %v8309 = vsel %vm8181, 1, 0
  %v8310 = vsel %vm8182, 1, 0
  %v8311 = vsel %vm8183, 1, 0
  %v8312 = vsel %vm8184, 1, 0
  %v8313 = vsel %vm8185, 1, 0
  %v8314 = vsel %vm8186, 1, 0
  %v8315 = vsel %vm8187, 1, 0
  %v8316 = vsel %vm8188, 1, 0
  %v8317 = vsel %vm8189, 1, 0
  %v8318 = vsel %vm8190, 1, 0
  %v8319 = vsel %vm8191, 1, 0
  %v8320 = vsel %vm8192, 1, 0
  %v8321 = vsel %vm8193, 1, 0
  %v8322 = vsel %vm8194, 1, 0
  %v8323 = vsel %vm8195, 1, 0
  %v8324 = vsel %vm8196, 1, 0
  %v8325 = vsel %vm8197, 1, 0
  %v8326 = vsel %vm8198, 1, 0
  %v8327 = vsel %vm8199, 1, 0
  %v8328 = vsel %vm8200, 1, 0
  %v8329 = vsel %vm8201, 1, 0
  %v8330 = vsel %vm8202, 1, 0
  %v8331 = vsel %vm8203, 1, 0
  %v8332 = vsel %vm8204, 1, 0
  %v8333 = vsel %vm8205, 1, 0
  %v8334 = vsel %vm8206, 1, 0
  %v8335 = vsel %vm8207, 1, 0
  %v8336 = vsel %vm8208, 1, 0
  %v8337 = vsel %vm8209, 1, 0
  %v8338 = vsel %vm8210, 1, 0
  %v8339 = vsel %vm8211, 1, 0
  %v8340 = vsel %vm8212, 1, 0
  %v8341 = vsel %vm8213, 1, 0
  %v8342 = vsel %vm8214, 1, 0
  %v8343 = vsel %vm8215, 1, 0
  %v8344 = vsel %vm8216, 1, 0
  %v8345 = vsel %vm8217, 1, 0
  %v8346 = vsel %vm8218, 1, 0
  %v8347 = vsel %vm8219, 1, 0
  %v8348 = vcvt.s32.f32 %v8220
  %v8349 = vcvt.s32.f32 %v8221
  %v8350 = vcvt.s32.f32 %v8222
  %v8351 = vcvt.s32.f32 %v8223
  %v8352 = vcvt.s32.f32 %v8224
  %v8353 = vcvt.s32.f32 %v8225
  %v8354 = vcvt.s32.f32 %v8226
  %v8355 = vcvt.s32.f32 %v8227
  %v8356 = vcvt.s32.f32 %v8228
  %v8357 = vcvt.s32.f32 %v8229
  %v8358 = vcvt.s32.f32 %v8230
  %v8359 = vcvt.s32.f32 %v8231
  %v8360 = vcvt.s32.f32 %v8232
  %v8361 = vcvt.s32.f32 %v8233
  %v8362 = vcvt.s32.f32 %v8234
  %v8363 = vcvt.s32.f32 %v8235
  %v8364 = vcvt.s32.f32 %v8236
  %v8365 = vcvt.s32.f32 %v8237
  %v8366 = vcvt.s32.f32 %v8238
  %v8367 = vcvt.s32.f32 %v8239
  %v8368 = vcvt.s32.f32 %v8240
  %v8369 = vcvt.s32.f32 %v8241
  %v8370 = vcvt.s32.f32 %v8242
  %v8371 = vcvt.s32.f32 %v8243
  %v8372 = vcvt.s32.f32 %v8244
  %v8373 = vcvt.s32.f32 %v8245
  %v8374 = vcvt.s32.f32 %v8246
  %v8375 = vcvt.s32.f32 %v8247
  %v8376 = vcvt.s32.f32 %v8248
  %v8377 = vcvt.s32.f32 %v8249
  %v8378 = vcvt.s32.f32 %v8250
  %v8379 = vcvt.s32.f32 %v8251
  %v8380 = vcvt.s32.f32 %v8252
  %v8381 = vcvt.s32.f32 %v8253
  %v8382 = vcvt.s32.f32 %v8254
  %v8383 = vcvt.s32.f32 %v8255
  %v8384 = vcvt.s32.f32 %v8256
  %v8385 = vcvt.s32.f32 %v8257
  %v8386 = vcvt.s32.f32 %v8258
  %v8387 = vcvt.s32.f32 %v8259
  %v8388 = vcvt.s32.f32 %v8260
  %v8389 = vcvt.s32.f32 %v8261
  %v8390 = vcvt.s32.f32 %v8262
  %v8391 = vcvt.s32.f32 %v8263
  %v8392 = vcvt.s32.f32 %v8264
  %v8393 = vcvt.s32.f32 %v8265
  %v8394 = vcvt.s32.f32 %v8266
  %v8395 = vcvt.s32.f32 %v8267
  %v8396 = vcvt.s32.f32 %v8268
  %v8397 = vcvt.s32.f32 %v8269
  %v8398 = vcvt.s32.f32 %v8270
  %v8399 = vcvt.s32.f32 %v8271
  %v8400 = vcvt.s32.f32 %v8272
  %v8401 = vcvt.s32.f32 %v8273
  %v8402 = vcvt.s32.f32 %v8274
  %v8403 = vcvt.s32.f32 %v8275
  %v8404 = vcvt.s32.f32 %v8276
  %v8405 = vcvt.s32.f32 %v8277
  %v8406 = vcvt.s32.f32 %v8278
  %v8407 = vcvt.s32.f32 %v8279
  %v8408 = vcvt.s32.f32 %v8280
  %v8409 = vcvt.s32.f32 %v8281
  %v8410 = vcvt.s32.f32 %v8282
  %v8411 = vcvt.s32.f32 %v8283
  %v8412 = vcvt.s32.f32 %v8284
  %v8413 = vcvt.s32.f32 %v8285
  %v8414 = vcvt.s32.f32 %v8286
  %v8415 = vcvt.s32.f32 %v8287
  %v8416 = vcvt.s32.f32 %v8288
  %v8417 = vcvt.s32.f32 %v8289
  %v8418 = vcvt.s32.f32 %v8290
  %v8419 = vcvt.s32.f32 %v8291
  %v8420 = vcvt.s32.f32 %v8292
  %v8421 = vcvt.s32.f32 %v8293
  %v8422 = vcvt.s32.f32 %v8294
  %v8423 = vcvt.s32.f32 %v8295
  %v8424 = vcvt.s32.f32 %v8296
  %v8425 = vcvt.s32.f32 %v8297
  %v8426 = vcvt.s32.f32 %v8298
  %v8427 = vcvt.s32.f32 %v8299
  %v8428 = vcvt.s32.f32 %v8300
  %v8429 = vcvt.s32.f32 %v8301
  %v8430 = vcvt.s32.f32 %v8302
  %v8431 = vcvt.s32.f32 %v8303
  %v8432 = vcvt.s32.f32 %v8304
  %v8433 = vcvt.s32.f32 %v8305
  %v8434 = vcvt.s32.f32 %v8306
  %v8435 = vcvt.s32.f32 %v8307
  %v8436 = vcvt.s32.f32 %v8308
  %v8437 = vcvt.s32.f32 %v8309
  %v8438 = vcvt.s32.f32 %v8310
  %v8439 = vcvt.s32.f32 %v8311
  %v8440 = vcvt.s32.f32 %v8312
  %v8441 = vcvt.s32.f32 %v8313
  %v8442 = vcvt.s32.f32 %v8314
  %v8443 = vcvt.s32.f32 %v8315
  %v8444 = vcvt.s32.f32 %v8316
  %v8445 = vcvt.s32.f32 %v8317
  %v8446 = vcvt.s32.f32 %v8318
  %v8447 = vcvt.s32.f32 %v8319
  %v8448 = vcvt.s32.f32 %v8320
  %v8449 = vcvt.s32.f32 %v8321
  %v8450 = vcvt.s32.f32 %v8322
  %v8451 = vcvt.s32.f32 %v8323
  %v8452 = vcvt.s32.f32 %v8324
  %v8453 = vcvt.s32.f32 %v8325
  %v8454 = vcvt.s32.f32 %v8326
  %v8455 = vcvt.s32.f32 %v8327
  %v8456 = vcvt.s32.f32 %v8328
  %v8457 = vcvt.s32.f32 %v8329
  %v8458 = vcvt.s32.f32 %v8330
  %v8459 = vcvt.s32.f32 %v8331
  %v8460 = vcvt.s32.f32 %v8332
  %v8461 = vcvt.s32.f32 %v8333
  %v8462 = vcvt.s32.f32 %v8334
  %v8463 = vcvt.s32.f32 %v8335
  %v8464 = vcvt.s32.f32 %v8336
  %v8465 = vcvt.s32.f32 %v8337
  %v8466 = vcvt.s32.f32 %v8338
  %v8467 = vcvt.s32.f32 %v8339
  %v8468 = vcvt.s32.f32 %v8340
  %v8469 = vcvt.s32.f32 %v8341
  %v8470 = vcvt.s32.f32 %v8342
  %v8471 = vcvt.s32.f32 %v8343
  %v8472 = vcvt.s32.f32 %v8344
  %v8473 = vcvt.s32.f32 %v8345
  %v8474 = vcvt.s32.f32 %v8346
  %v8475 = vcvt.s32.f32 %v8347
  %8476 = vmatprep.subr.mxu0 0.0
  %8477 = vmatpush1.msra.mxu0 %v7542
  %8478 = vmatprep.subr.mxu0 0.0
  %8479 = vmatpush1.msra.mxu0 %v7543
  %8480 = vmatprep.subr.mxu0 0.0
  %8481 = vmatpush1.msra.mxu0 %v7544
  %8482 = vmatprep.subr.mxu0 0.0
  %8483 = vmatpush1.msra.mxu0 %v7545
  %8484 = vmatprep.subr.mxu0 0.0
  %8485 = vmatpush1.msra.mxu0 %v7546
  %8486 = vmatprep.subr.mxu0 0.0
  %8487 = vmatpush1.msra.mxu0 %v7547
  %8488 = vmatprep.subr.mxu0 0.0
  %8489 = vmatpush1.msra.mxu0 %v7548
  %8490 = vmatprep.subr.mxu0 0.0
  %8491 = vmatpush1.msra.mxu0 %v7549
  %8492 = vmatprep.subr.mxu0 0.0
  %8493 = vmatpush1.msra.mxu0 %v7550
  %8494 = vmatprep.subr.mxu0 0.0
  %8495 = vmatpush1.msra.mxu0 %v7551
  %8496 = vmatprep.subr.mxu0 0.0
  %8497 = vmatpush1.msra.mxu0 %v7552
  %8498 = vmatprep.subr.mxu0 0.0
  %8499 = vmatpush1.msra.mxu0 %v7553
  %8500 = vmatprep.subr.mxu0 0.0
  %8501 = vmatpush1.msra.mxu0 %v7554
  %8502 = vmatprep.subr.mxu0 0.0
  %8503 = vmatpush1.msra.mxu0 %v7555
  %8504 = vmatprep.subr.mxu0 0.0
  %8505 = vmatpush1.msra.mxu0 %v7556
  %8506 = vmatprep.subr.mxu0 0.0
  %8507 = vmatpush1.msra.mxu0 %v7557
  %8508 = vmatprep.subr.mxu0 0.0
  %8509 = vmatpush1.msra.mxu0 %v7558
  %8510 = vmatprep.subr.mxu0 0.0
  %8511 = vmatpush1.msra.mxu0 %v7559
  %8512 = vmatprep.subr.mxu0 0.0
  %8513 = vmatpush1.msra.mxu0 %v7560
  %8514 = vmatprep.subr.mxu0 0.0
  %8515 = vmatpush1.msra.mxu0 %v7561
  %8516 = vmatprep.subr.mxu0 0.0
  %8517 = vmatpush1.msra.mxu0 %v7562
  %8518 = vmatprep.subr.mxu0 0.0
  %8519 = vmatpush1.msra.mxu0 %v7563
  %8520 = vmatprep.subr.mxu0 0.0
  %8521 = vmatpush1.msra.mxu0 %v7564
  %8522 = vmatprep.subr.mxu0 0.0
  %8523 = vmatpush1.msra.mxu0 %v7565
  %8524 = vmatprep.subr.mxu0 0.0
  %8525 = vmatpush1.msra.mxu0 %v7566
  %8526 = vmatprep.subr.mxu0 0.0
  %8527 = vmatpush1.msra.mxu0 %v7567
  %8528 = vmatprep.subr.mxu0 0.0
  %8529 = vmatpush1.msra.mxu0 %v7568
  %8530 = vmatprep.subr.mxu0 0.0
  %8531 = vmatpush1.msra.mxu0 %v7569
  %8532 = vmatprep.subr.mxu0 0.0
  %8533 = vmatpush1.msra.mxu0 %v7570
  %8534 = vmatprep.subr.mxu0 0.0
  %8535 = vmatpush1.msra.mxu0 %v7571
  %8536 = vmatprep.subr.mxu0 0.0
  %8537 = vmatpush1.msra.mxu0 %v7572
  %8538 = vmatprep.subr.mxu0 0.0
  %8539 = vmatpush1.msra.mxu0 %v7573
  %8540 = vmatprep.mubr.f32.mxu0 %v7933
  %8541 = vmatmul.mubr.f32.gmra.mrb[0].mxu0 %v7932
  %v8542 = vpop.f32.mrb[0].mxu0
  %v8543 = vadd.f32 0.0, %v8542
  %v8544 = vpop.f32.mrb[0].mxu0
  %8545 = vmatprep.mubr.f32.mxu0 %v7937
  %8546 = vmatmul.mubr.f32.gmra.mrb[0].mxu0 %v7936
  %v8547 = vpop.f32.mrb[0].mxu0
  %v8548 = vadd.f32 0.0, %v8547
  %v8549 = vpop.f32.mrb[0].mxu0
  %8550 = vmatprep.mubr.f32.mxu0 %v7941
  %8551 = vmatmul.mubr.f32.gmra.mrb[0].mxu0 %v7940
  %v8552 = vpop.f32.mrb[0].mxu0
  %v8553 = vadd.f32 0.0, %v8552
  %v8554 = vpop.f32.mrb[0].mxu0
  %8555 = vmatprep.mubr.f32.mxu0 %v7945
  %8556 = vmatmul.mubr.f32.gmra.mrb[0].mxu0 %v7944
  %v8557 = vpop.f32.mrb[0].mxu0
  %v8558 = vadd.f32 0.0, %v8557
  %v8559 = vpop.f32.mrb[0].mxu0
  %8560 = vmatprep.mubr.f32.mxu0 %v7949
  %8561 = vmatmul.mubr.f32.gmra.mrb[0].mxu0 %v7948
  %v8562 = vpop.f32.mrb[0].mxu0
  %v8563 = vadd.f32 0.0, %v8562
  %v8564 = vpop.f32.mrb[0].mxu0
  %8565 = vmatprep.mubr.f32.mxu0 %v7953
  %8566 = vmatmul.mubr.f32.gmra.mrb[0].mxu0 %v7952
  %v8567 = vpop.f32.mrb[0].mxu0
  %v8568 = vadd.f32 0.0, %v8567
  %v8569 = vpop.f32.mrb[0].mxu0
  %8570 = vmatprep.mubr.f32.mxu0 %v7957
  %8571 = vmatmul.mubr.f32.gmra.mrb[0].mxu0 %v7956
  %v8572 = vpop.f32.mrb[0].mxu0
  %v8573 = vadd.f32 0.0, %v8572
  %v8574 = vpop.f32.mrb[0].mxu0
  %8575 = vmatprep.mubr.f32.mxu0 %v7961
  %8576 = vmatmul.mubr.f32.gmra.mrb[0].mxu0 %v7960
  %v8577 = vpop.f32.mrb[0].mxu0
  %v8578 = vadd.f32 0.0, %v8577
  %v8579 = vpop.f32.mrb[0].mxu0
  %8580 = vmatprep.mubr.f32.mxu0 %v7965
  %8581 = vmatmul.mubr.f32.gmra.mrb[0].mxu0 %v7964
  %v8582 = vpop.f32.mrb[0].mxu0
  %v8583 = vadd.f32 0.0, %v8582
  %v8584 = vpop.f32.mrb[0].mxu0
  %8585 = vmatprep.mubr.f32.mxu0 %v7969
  %8586 = vmatmul.mubr.f32.gmra.mrb[0].mxu0 %v7968
  %v8587 = vpop.f32.mrb[0].mxu0
  %v8588 = vadd.f32 0.0, %v8587
  %v8589 = vpop.f32.mrb[0].mxu0
  %8590 = vmatprep.mubr.f32.mxu0 %v7973
  %8591 = vmatmul.mubr.f32.gmra.mrb[0].mxu0 %v7972
  %v8592 = vpop.f32.mrb[0].mxu0
  %v8593 = vadd.f32 0.0, %v8592
  %v8594 = vpop.f32.mrb[0].mxu0
  %8595 = vmatprep.mubr.f32.mxu0 %v7977
  %8596 = vmatmul.mubr.f32.gmra.mrb[0].mxu0 %v7976
  %v8597 = vpop.f32.mrb[0].mxu0
  %v8598 = vadd.f32 0.0, %v8597
  %v8599 = vpop.f32.mrb[0].mxu0
  %8600 = vmatprep.mubr.f32.mxu0 %v7981
  %8601 = vmatmul.mubr.f32.gmra.mrb[0].mxu0 %v7980
  %v8602 = vpop.f32.mrb[0].mxu0
  %v8603 = vadd.f32 0.0, %v8602
  %v8604 = vpop.f32.mrb[0].mxu0
  %8605 = vmatprep.mubr.f32.mxu0 %v7985
  %8606 = vmatmul.mubr.f32.gmra.mrb[0].mxu0 %v7984
  %v8607 = vpop.f32.mrb[0].mxu0
  %v8608 = vadd.f32 0.0, %v8607
  %v8609 = vpop.f32.mrb[0].mxu0
  %8610 = vmatprep.mubr.f32.mxu0 %v7989
  %8611 = vmatmul.mubr.f32.gmra.mrb[0].mxu0 %v7988
  %v8612 = vpop.f32.mrb[0].mxu0
  %v8613 = vadd.f32 0.0, %v8612
  %v8614 = vpop.f32.mrb[0].mxu0
  %8615 = vmatprep.mubr.f32.mxu0 %v7993
  %8616 = vmatmul.mubr.f32.gmra.mrb[0].mxu0 %v7992
  %v8617 = vpop.f32.mrb[0].mxu0
  %v8618 = vadd.f32 0.0, %v8617
  %v8619 = vpop.f32.mrb[0].mxu0
  %8620 = vmatprep.mubr.f32.mxu0 %v7997
  %8621 = vmatmul.mubr.f32.gmra.mrb[0].mxu0 %v7996
  %v8622 = vpop.f32.mrb[0].mxu0
  %v8623 = vadd.f32 0.0, %v8622
  %v8624 = vpop.f32.mrb[0].mxu0
  %8625 = vmatprep.mubr.f32.mxu0 %v8001
  %8626 = vmatmul.mubr.f32.gmra.mrb[0].mxu0 %v8000
  %v8627 = vpop.f32.mrb[0].mxu0
  %v8628 = vadd.f32 0.0, %v8627
  %v8629 = vpop.f32.mrb[0].mxu0
  %8630 = vmatprep.mubr.f32.mxu0 %v8005
  %8631 = vmatmul.mubr.f32.gmra.mrb[0].mxu0 %v8004
  %v8632 = vpop.f32.mrb[0].mxu0
  %v8633 = vadd.f32 0.0, %v8632
  %v8634 = vpop.f32.mrb[0].mxu0
  %8635 = vmatprep.mubr.f32.mxu0 %v8009
  %8636 = vmatmul.mubr.f32.gmra.mrb[0].mxu0 %v8008
  %v8637 = vpop.f32.mrb[0].mxu0
  %v8638 = vadd.f32 0.0, %v8637
  %v8639 = vpop.f32.mrb[0].mxu0
  %8640 = vmatprep.mubr.f32.mxu0 %v8013
  %8641 = vmatmul.mubr.f32.gmra.mrb[0].mxu0 %v8012
  %v8642 = vpop.f32.mrb[0].mxu0
  %v8643 = vadd.f32 0.0, %v8642
  %v8644 = vpop.f32.mrb[0].mxu0
  %8645 = vmatprep.mubr.f32.mxu0 %v8017
  %8646 = vmatmul.mubr.f32.gmra.mrb[0].mxu0 %v8016
  %v8647 = vpop.f32.mrb[0].mxu0
  %v8648 = vadd.f32 0.0, %v8647
  %v8649 = vpop.f32.mrb[0].mxu0
  %8650 = vmatprep.mubr.f32.mxu0 %v8021
  %8651 = vmatmul.mubr.f32.gmra.mrb[0].mxu0 %v8020
  %v8652 = vpop.f32.mrb[0].mxu0
  %v8653 = vadd.f32 0.0, %v8652
  %v8654 = vpop.f32.mrb[0].mxu0
  %8655 = vmatprep.mubr.f32.mxu0 %v8025
  %8656 = vmatmul.mubr.f32.gmra.mrb[0].mxu0 %v8024
  %v8657 = vpop.f32.mrb[0].mxu0
  %v8658 = vadd.f32 0.0, %v8657
  %v8659 = vpop.f32.mrb[0].mxu0
  %8660 = vmatprep.mubr.f32.mxu0 %v8029
  %8661 = vmatmul.mubr.f32.gmra.mrb[0].mxu0 %v8028
  %v8662 = vpop.f32.mrb[0].mxu0
  %v8663 = vadd.f32 0.0, %v8662
  %v8664 = vpop.f32.mrb[0].mxu0
  %8665 = vmatprep.mubr.f32.mxu0 %v8033
  %8666 = vmatmul.mubr.f32.gmra.mrb[0].mxu0 %v8032
  %v8667 = vpop.f32.mrb[0].mxu0
  %v8668 = vadd.f32 0.0, %v8667
  %v8669 = vpop.f32.mrb[0].mxu0
  %8670 = vmatprep.mubr.f32.mxu0 %v8037
  %8671 = vmatmul.mubr.f32.gmra.mrb[0].mxu0 %v8036
  %v8672 = vpop.f32.mrb[0].mxu0
  %v8673 = vadd.f32 0.0, %v8672
  %v8674 = vpop.f32.mrb[0].mxu0
  %8675 = vmatprep.mubr.f32.mxu0 %v8041
  %8676 = vmatmul.mubr.f32.gmra.mrb[0].mxu0 %v8040
  %v8677 = vpop.f32.mrb[0].mxu0
  %v8678 = vadd.f32 0.0, %v8677
  %v8679 = vpop.f32.mrb[0].mxu0
  %8680 = vmatprep.mubr.f32.mxu0 %v8045
  %8681 = vmatmul.mubr.f32.gmra.mrb[0].mxu0 %v8044
  %v8682 = vpop.f32.mrb[0].mxu0
  %v8683 = vadd.f32 0.0, %v8682
  %v8684 = vpop.f32.mrb[0].mxu0
  %8685 = vmatprep.mubr.f32.mxu0 %v8049
  %8686 = vmatmul.mubr.f32.gmra.mrb[0].mxu0 %v8048
  %v8687 = vpop.f32.mrb[0].mxu0
  %v8688 = vadd.f32 0.0, %v8687
  %v8689 = vpop.f32.mrb[0].mxu0
  %8690 = vmatprep.mubr.f32.mxu0 %v8053
  %8691 = vmatmul.mubr.f32.gmra.mrb[0].mxu0 %v8052
  %v8692 = vpop.f32.mrb[0].mxu0
  %v8693 = vadd.f32 0.0, %v8692
  %v8694 = vpop.f32.mrb[0].mxu0
  %8695 = vmatprep.mubr.f32.mxu0 %v8057
  %8696 = vmatmul.mubr.f32.gmra.mrb[0].mxu0 %v8056
  %v8697 = vpop.f32.mrb[0].mxu0
  %v8698 = vadd.f32 0.0, %v8697
  %v8699 = vpop.f32.mrb[0].mxu0
  %8700 = vdwg.mxu0
  %8701 = vmatprep.subr.mxu0 0.0
  %8702 = vmatpush1.msra.mxu0 %v7574
  %8703 = vmatprep.subr.mxu0 0.0
  %8704 = vmatpush1.msra.mxu0 %v7575
  %8705 = vmatprep.subr.mxu0 0.0
  %8706 = vmatpush1.msra.mxu0 %v7576
  %8707 = vmatprep.subr.mxu0 0.0
  %8708 = vmatpush1.msra.mxu0 %v7577
  %8709 = vmatprep.subr.mxu0 0.0
  %8710 = vmatpush1.msra.mxu0 %v7578
  %8711 = vmatprep.subr.mxu0 0.0
  %8712 = vmatpush1.msra.mxu0 %v7579
  %8713 = vmatprep.subr.mxu0 0.0
  %8714 = vmatpush1.msra.mxu0 %v7580
  %8715 = vmatprep.subr.mxu0 0.0
  %8716 = vmatpush1.msra.mxu0 %v7581
  %8717 = vmatprep.subr.mxu0 0.0
  %8718 = vmatpush1.msra.mxu0 %v7582
  %8719 = vmatprep.subr.mxu0 0.0
  %8720 = vmatpush1.msra.mxu0 %v7583
  %8721 = vmatprep.subr.mxu0 0.0
  %8722 = vmatpush1.msra.mxu0 %v7584
  %8723 = vmatprep.subr.mxu0 0.0
  %8724 = vmatpush1.msra.mxu0 %v7585
  %8725 = vmatprep.subr.mxu0 0.0
  %8726 = vmatpush1.msra.mxu0 %v7586
  %8727 = vmatprep.subr.mxu0 0.0
  %8728 = vmatpush1.msra.mxu0 %v7587
  %8729 = vmatprep.subr.mxu0 0.0
  %8730 = vmatpush1.msra.mxu0 %v7588
  %8731 = vmatprep.subr.mxu0 0.0
  %8732 = vmatpush1.msra.mxu0 %v7589
  %8733 = vmatprep.subr.mxu0 0.0
  %8734 = vmatpush1.msra.mxu0 %v7590
  %8735 = vmatprep.subr.mxu0 0.0
  %8736 = vmatpush1.msra.mxu0 %v7591
  %8737 = vmatprep.subr.mxu0 0.0
  %8738 = vmatpush1.msra.mxu0 %v7592
  %8739 = vmatprep.subr.mxu0 0.0
  %8740 = vmatpush1.msra.mxu0 %v7593
  %8741 = vmatprep.subr.mxu0 0.0
  %8742 = vmatpush1.msra.mxu0 %v7594
  %8743 = vmatprep.subr.mxu0 0.0
  %8744 = vmatpush1.msra.mxu0 %v7595
  %8745 = vmatprep.subr.mxu0 0.0
  %8746 = vmatpush1.msra.mxu0 %v7596
  %8747 = vmatprep.subr.mxu0 0.0
  %8748 = vmatpush1.msra.mxu0 %v7597
  %8749 = vmatprep.subr.mxu0 0.0
  %8750 = vmatpush1.msra.mxu0 %v7598
  %8751 = vmatprep.subr.mxu0 0.0
  %8752 = vmatpush1.msra.mxu0 %v7599
  %8753 = vmatprep.subr.mxu0 0.0
  %8754 = vmatpush1.msra.mxu0 %v7600
  %8755 = vmatprep.subr.mxu0 0.0
  %8756 = vmatpush1.msra.mxu0 %v7601
  %8757 = vmatprep.subr.mxu0 0.0
  %8758 = vmatpush1.msra.mxu0 %v7602
  %8759 = vmatprep.subr.mxu0 0.0
  %8760 = vmatpush1.msra.mxu0 %v7603
  %8761 = vmatprep.subr.mxu0 0.0
  %8762 = vmatpush1.msra.mxu0 %v7604
  %8763 = vmatprep.subr.mxu0 0.0
  %8764 = vmatpush1.msra.mxu0 %v7605
  %8765 = vmatprep.mubr.f32.mxu0 %v7935
  %8766 = vmatmul.mubr.f32.gmra.mrb[0].mxu0 %v7934
  %v8767 = vpop.f32.mrb[0].mxu0
  %v8768 = vadd.f32 %v8543, %v8767
  %v8769 = vpop.f32.mrb[0].mxu0
  %8770 = vmatprep.mubr.f32.mxu0 %v7939
  %8771 = vmatmul.mubr.f32.gmra.mrb[0].mxu0 %v7938
  %v8772 = vpop.f32.mrb[0].mxu0
  %v8773 = vadd.f32 %v8548, %v8772
  %v8774 = vpop.f32.mrb[0].mxu0
  %8775 = vmatprep.mubr.f32.mxu0 %v7943
  %8776 = vmatmul.mubr.f32.gmra.mrb[0].mxu0 %v7942
  %v8777 = vpop.f32.mrb[0].mxu0
  %v8778 = vadd.f32 %v8553, %v8777
  %v8779 = vpop.f32.mrb[0].mxu0
  %8780 = vmatprep.mubr.f32.mxu0 %v7947
  %8781 = vmatmul.mubr.f32.gmra.mrb[0].mxu0 %v7946
  %v8782 = vpop.f32.mrb[0].mxu0
  %v8783 = vadd.f32 %v8558, %v8782
  %v8784 = vpop.f32.mrb[0].mxu0
  %8785 = vmatprep.mubr.f32.mxu0 %v7951
  %8786 = vmatmul.mubr.f32.gmra.mrb[0].mxu0 %v7950
  %v8787 = vpop.f32.mrb[0].mxu0
  %v8788 = vadd.f32 %v8563, %v8787
  %v8789 = vpop.f32.mrb[0].mxu0
  %8790 = vmatprep.mubr.f32.mxu0 %v7955
  %8791 = vmatmul.mubr.f32.gmra.mrb[0].mxu0 %v7954
  %v8792 = vpop.f32.mrb[0].mxu0
  %v8793 = vadd.f32 %v8568, %v8792
  %v8794 = vpop.f32.mrb[0].mxu0
  %8795 = vmatprep.mubr.f32.mxu0 %v7959
  %8796 = vmatmul.mubr.f32.gmra.mrb[0].mxu0 %v7958
  %v8797 = vpop.f32.mrb[0].mxu0
  %v8798 = vadd.f32 %v8573, %v8797
  %v8799 = vpop.f32.mrb[0].mxu0
  %8800 = vmatprep.mubr.f32.mxu0 %v7963
  %8801 = vmatmul.mubr.f32.gmra.mrb[0].mxu0 %v7962
  %v8802 = vpop.f32.mrb[0].mxu0
  %v8803 = vadd.f32 %v8578, %v8802
  %v8804 = vpop.f32.mrb[0].mxu0
  %8805 = vmatprep.mubr.f32.mxu0 %v7967
  %8806 = vmatmul.mubr.f32.gmra.mrb[0].mxu0 %v7966
  %v8807 = vpop.f32.mrb[0].mxu0
  %v8808 = vadd.f32 %v8583, %v8807
  %v8809 = vpop.f32.mrb[0].mxu0
  %8810 = vmatprep.mubr.f32.mxu0 %v7971
  %8811 = vmatmul.mubr.f32.gmra.mrb[0].mxu0 %v7970
  %v8812 = vpop.f32.mrb[0].mxu0
  %v8813 = vadd.f32 %v8588, %v8812
  %v8814 = vpop.f32.mrb[0].mxu0
  %8815 = vmatprep.mubr.f32.mxu0 %v7975
  %8816 = vmatmul.mubr.f32.gmra.mrb[0].mxu0 %v7974
  %v8817 = vpop.f32.mrb[0].mxu0
  %v8818 = vadd.f32 %v8593, %v8817
  %v8819 = vpop.f32.mrb[0].mxu0
  %8820 = vmatprep.mubr.f32.mxu0 %v7979
  %8821 = vmatmul.mubr.f32.gmra.mrb[0].mxu0 %v7978
  %v8822 = vpop.f32.mrb[0].mxu0
  %v8823 = vadd.f32 %v8598, %v8822
  %v8824 = vpop.f32.mrb[0].mxu0
  %8825 = vmatprep.mubr.f32.mxu0 %v7983
  %8826 = vmatmul.mubr.f32.gmra.mrb[0].mxu0 %v7982
  %v8827 = vpop.f32.mrb[0].mxu0
  %v8828 = vadd.f32 %v8603, %v8827
  %v8829 = vpop.f32.mrb[0].mxu0
  %8830 = vmatprep.mubr.f32.mxu0 %v7987
  %8831 = vmatmul.mubr.f32.gmra.mrb[0].mxu0 %v7986
  %v8832 = vpop.f32.mrb[0].mxu0
  %v8833 = vadd.f32 %v8608, %v8832
  %v8834 = vpop.f32.mrb[0].mxu0
  %8835 = vmatprep.mubr.f32.mxu0 %v7991
  %8836 = vmatmul.mubr.f32.gmra.mrb[0].mxu0 %v7990
  %v8837 = vpop.f32.mrb[0].mxu0
  %v8838 = vadd.f32 %v8613, %v8837
  %v8839 = vpop.f32.mrb[0].mxu0
  %8840 = vmatprep.mubr.f32.mxu0 %v7995
  %8841 = vmatmul.mubr.f32.gmra.mrb[0].mxu0 %v7994
  %v8842 = vpop.f32.mrb[0].mxu0
  %v8843 = vadd.f32 %v8618, %v8842
  %v8844 = vpop.f32.mrb[0].mxu0
  %8845 = vmatprep.mubr.f32.mxu0 %v7999
  %8846 = vmatmul.mubr.f32.gmra.mrb[0].mxu0 %v7998
  %v8847 = vpop.f32.mrb[0].mxu0
  %v8848 = vadd.f32 %v8623, %v8847
  %v8849 = vpop.f32.mrb[0].mxu0
  %8850 = vmatprep.mubr.f32.mxu0 %v8003
  %8851 = vmatmul.mubr.f32.gmra.mrb[0].mxu0 %v8002
  %v8852 = vpop.f32.mrb[0].mxu0
  %v8853 = vadd.f32 %v8628, %v8852
  %v8854 = vpop.f32.mrb[0].mxu0
  %8855 = vmatprep.mubr.f32.mxu0 %v8007
  %8856 = vmatmul.mubr.f32.gmra.mrb[0].mxu0 %v8006
  %v8857 = vpop.f32.mrb[0].mxu0
  %v8858 = vadd.f32 %v8633, %v8857
  %v8859 = vpop.f32.mrb[0].mxu0
  %8860 = vmatprep.mubr.f32.mxu0 %v8011
  %8861 = vmatmul.mubr.f32.gmra.mrb[0].mxu0 %v8010
  %v8862 = vpop.f32.mrb[0].mxu0
  %v8863 = vadd.f32 %v8638, %v8862
  %v8864 = vpop.f32.mrb[0].mxu0
  %8865 = vmatprep.mubr.f32.mxu0 %v8015
  %8866 = vmatmul.mubr.f32.gmra.mrb[0].mxu0 %v8014
  %v8867 = vpop.f32.mrb[0].mxu0
  %v8868 = vadd.f32 %v8643, %v8867
  %v8869 = vpop.f32.mrb[0].mxu0
  %8870 = vmatprep.mubr.f32.mxu0 %v8019
  %8871 = vmatmul.mubr.f32.gmra.mrb[0].mxu0 %v8018
  %v8872 = vpop.f32.mrb[0].mxu0
  %v8873 = vadd.f32 %v8648, %v8872
  %v8874 = vpop.f32.mrb[0].mxu0
  %8875 = vmatprep.mubr.f32.mxu0 %v8023
  %8876 = vmatmul.mubr.f32.gmra.mrb[0].mxu0 %v8022
  %v8877 = vpop.f32.mrb[0].mxu0
  %v8878 = vadd.f32 %v8653, %v8877
  %v8879 = vpop.f32.mrb[0].mxu0
  %8880 = vmatprep.mubr.f32.mxu0 %v8027
  %8881 = vmatmul.mubr.f32.gmra.mrb[0].mxu0 %v8026
  %v8882 = vpop.f32.mrb[0].mxu0
  %v8883 = vadd.f32 %v8658, %v8882
  %v8884 = vpop.f32.mrb[0].mxu0
  %8885 = vmatprep.mubr.f32.mxu0 %v8031
  %8886 = vmatmul.mubr.f32.gmra.mrb[0].mxu0 %v8030
  %v8887 = vpop.f32.mrb[0].mxu0
  %v8888 = vadd.f32 %v8663, %v8887
  %v8889 = vpop.f32.mrb[0].mxu0
  %8890 = vmatprep.mubr.f32.mxu0 %v8035
  %8891 = vmatmul.mubr.f32.gmra.mrb[0].mxu0 %v8034
  %v8892 = vpop.f32.mrb[0].mxu0
  %v8893 = vadd.f32 %v8668, %v8892
  %v8894 = vpop.f32.mrb[0].mxu0
  %8895 = vmatprep.mubr.f32.mxu0 %v8039
  %8896 = vmatmul.mubr.f32.gmra.mrb[0].mxu0 %v8038
  %v8897 = vpop.f32.mrb[0].mxu0
  %v8898 = vadd.f32 %v8673, %v8897
  %v8899 = vpop.f32.mrb[0].mxu0
  %8900 = vmatprep.mubr.f32.mxu0 %v8043
  %8901 = vmatmul.mubr.f32.gmra.mrb[0].mxu0 %v8042
  %v8902 = vpop.f32.mrb[0].mxu0
  %v8903 = vadd.f32 %v8678, %v8902
  %v8904 = vpop.f32.mrb[0].mxu0
  %8905 = vmatprep.mubr.f32.mxu0 %v8047
  %8906 = vmatmul.mubr.f32.gmra.mrb[0].mxu0 %v8046
  %v8907 = vpop.f32.mrb[0].mxu0
  %v8908 = vadd.f32 %v8683, %v8907
  %v8909 = vpop.f32.mrb[0].mxu0
  %8910 = vmatprep.mubr.f32.mxu0 %v8051
  %8911 = vmatmul.mubr.f32.gmra.mrb[0].mxu0 %v8050
  %v8912 = vpop.f32.mrb[0].mxu0
  %v8913 = vadd.f32 %v8688, %v8912
  %v8914 = vpop.f32.mrb[0].mxu0
  %8915 = vmatprep.mubr.f32.mxu0 %v8055
  %8916 = vmatmul.mubr.f32.gmra.mrb[0].mxu0 %v8054
  %v8917 = vpop.f32.mrb[0].mxu0
  %v8918 = vadd.f32 %v8693, %v8917
  %v8919 = vpop.f32.mrb[0].mxu0
  %8920 = vmatprep.mubr.f32.mxu0 %v8059
  %8921 = vmatmul.mubr.f32.gmra.mrb[0].mxu0 %v8058
  %v8922 = vpop.f32.mrb[0].mxu0
  %v8923 = vadd.f32 %v8698, %v8922
  %v8924 = vpop.f32.mrb[0].mxu0
  %8925 = vdwg.mxu0
  %8926 = vmatprep.subr.mxu0 0.0
  %8927 = vmatpush1.msra.mxu0 %v7542
  %8928 = vmatprep.subr.mxu0 0.0
  %8929 = vmatpush1.msra.mxu0 %v7543
  %8930 = vmatprep.subr.mxu0 0.0
  %8931 = vmatpush1.msra.mxu0 %v7544
  %8932 = vmatprep.subr.mxu0 0.0
  %8933 = vmatpush1.msra.mxu0 %v7545
  %8934 = vmatprep.subr.mxu0 0.0
  %8935 = vmatpush1.msra.mxu0 %v7546
  %8936 = vmatprep.subr.mxu0 0.0
  %8937 = vmatpush1.msra.mxu0 %v7547
  %8938 = vmatprep.subr.mxu0 0.0
  %8939 = vmatpush1.msra.mxu0 %v7548
  %8940 = vmatprep.subr.mxu0 0.0
  %8941 = vmatpush1.msra.mxu0 %v7549
  %8942 = vmatprep.subr.mxu0 0.0
  %8943 = vmatpush1.msra.mxu0 %v7550
  %8944 = vmatprep.subr.mxu0 0.0
  %8945 = vmatpush1.msra.mxu0 %v7551
  %8946 = vmatprep.subr.mxu0 0.0
  %8947 = vmatpush1.msra.mxu0 %v7552
  %8948 = vmatprep.subr.mxu0 0.0
  %8949 = vmatpush1.msra.mxu0 %v7553
  %8950 = vmatprep.subr.mxu0 0.0
  %8951 = vmatpush1.msra.mxu0 %v7554
  %8952 = vmatprep.subr.mxu0 0.0
  %8953 = vmatpush1.msra.mxu0 %v7555
  %8954 = vmatprep.subr.mxu0 0.0
  %8955 = vmatpush1.msra.mxu0 %v7556
  %8956 = vmatprep.subr.mxu0 0.0
  %8957 = vmatpush1.msra.mxu0 %v7557
  %8958 = vmatprep.subr.mxu0 0.0
  %8959 = vmatpush1.msra.mxu0 %v7558
  %8960 = vmatprep.subr.mxu0 0.0
  %8961 = vmatpush1.msra.mxu0 %v7559
  %8962 = vmatprep.subr.mxu0 0.0
  %8963 = vmatpush1.msra.mxu0 %v7560
  %8964 = vmatprep.subr.mxu0 0.0
  %8965 = vmatpush1.msra.mxu0 %v7561
  %8966 = vmatprep.subr.mxu0 0.0
  %8967 = vmatpush1.msra.mxu0 %v7562
  %8968 = vmatprep.subr.mxu0 0.0
  %8969 = vmatpush1.msra.mxu0 %v7563
  %8970 = vmatprep.subr.mxu0 0.0
  %8971 = vmatpush1.msra.mxu0 %v7564
  %8972 = vmatprep.subr.mxu0 0.0
  %8973 = vmatpush1.msra.mxu0 %v7565
  %8974 = vmatprep.subr.mxu0 0.0
  %8975 = vmatpush1.msra.mxu0 %v7566
  %8976 = vmatprep.subr.mxu0 0.0
  %8977 = vmatpush1.msra.mxu0 %v7567
  %8978 = vmatprep.subr.mxu0 0.0
  %8979 = vmatpush1.msra.mxu0 %v7568
  %8980 = vmatprep.subr.mxu0 0.0
  %8981 = vmatpush1.msra.mxu0 %v7569
  %8982 = vmatprep.subr.mxu0 0.0
  %8983 = vmatpush1.msra.mxu0 %v7570
  %8984 = vmatprep.subr.mxu0 0.0
  %8985 = vmatpush1.msra.mxu0 %v7571
  %8986 = vmatprep.subr.mxu0 0.0
  %8987 = vmatpush1.msra.mxu0 %v7572
  %8988 = vmatprep.subr.mxu0 0.0
  %8989 = vmatpush1.msra.mxu0 %v7573
  %8990 = vmatprep.mubr.f32.mxu0 %v8349
  %8991 = vmatmul.mubr.f32.gmra.mrb[0].mxu0 %v8348
  %v8992 = vpop.f32.mrb[0].mxu0
  %v8993 = vadd.f32 0.0, %v8992
  %v8994 = vpop.f32.mrb[0].mxu0
  %8995 = vmatprep.mubr.f32.mxu0 %v8353
  %8996 = vmatmul.mubr.f32.gmra.mrb[0].mxu0 %v8352
  %v8997 = vpop.f32.mrb[0].mxu0
  %v8998 = vadd.f32 0.0, %v8997
  %v8999 = vpop.f32.mrb[0].mxu0
  %9000 = vmatprep.mubr.f32.mxu0 %v8357
  %9001 = vmatmul.mubr.f32.gmra.mrb[0].mxu0 %v8356
  %v9002 = vpop.f32.mrb[0].mxu0
  %v9003 = vadd.f32 0.0, %v9002
  %v9004 = vpop.f32.mrb[0].mxu0
  %9005 = vmatprep.mubr.f32.mxu0 %v8361
  %9006 = vmatmul.mubr.f32.gmra.mrb[0].mxu0 %v8360
  %v9007 = vpop.f32.mrb[0].mxu0
  %v9008 = vadd.f32 0.0, %v9007
  %v9009 = vpop.f32.mrb[0].mxu0
  %9010 = vmatprep.mubr.f32.mxu0 %v8365
  %9011 = vmatmul.mubr.f32.gmra.mrb[0].mxu0 %v8364
  %v9012 = vpop.f32.mrb[0].mxu0
  %v9013 = vadd.f32 0.0, %v9012
  %v9014 = vpop.f32.mrb[0].mxu0
  %9015 = vmatprep.mubr.f32.mxu0 %v8369
  %9016 = vmatmul.mubr.f32.gmra.mrb[0].mxu0 %v8368
  %v9017 = vpop.f32.mrb[0].mxu0
  %v9018 = vadd.f32 0.0, %v9017
  %v9019 = vpop.f32.mrb[0].mxu0
  %9020 = vmatprep.mubr.f32.mxu0 %v8373
  %9021 = vmatmul.mubr.f32.gmra.mrb[0].mxu0 %v8372
  %v9022 = vpop.f32.mrb[0].mxu0
  %v9023 = vadd.f32 0.0, %v9022
  %v9024 = vpop.f32.mrb[0].mxu0
  %9025 = vmatprep.mubr.f32.mxu0 %v8377
  %9026 = vmatmul.mubr.f32.gmra.mrb[0].mxu0 %v8376
  %v9027 = vpop.f32.mrb[0].mxu0
  %v9028 = vadd.f32 0.0, %v9027
  %v9029 = vpop.f32.mrb[0].mxu0
  %9030 = vmatprep.mubr.f32.mxu0 %v8381
  %9031 = vmatmul.mubr.f32.gmra.mrb[0].mxu0 %v8380
  %v9032 = vpop.f32.mrb[0].mxu0
  %v9033 = vadd.f32 0.0, %v9032
  %v9034 = vpop.f32.mrb[0].mxu0
  %9035 = vmatprep.mubr.f32.mxu0 %v8385
  %9036 = vmatmul.mubr.f32.gmra.mrb[0].mxu0 %v8384
  %v9037 = vpop.f32.mrb[0].mxu0
  %v9038 = vadd.f32 0.0, %v9037
  %v9039 = vpop.f32.mrb[0].mxu0
  %9040 = vmatprep.mubr.f32.mxu0 %v8389
  %9041 = vmatmul.mubr.f32.gmra.mrb[0].mxu0 %v8388
  %v9042 = vpop.f32.mrb[0].mxu0
  %v9043 = vadd.f32 0.0, %v9042
  %v9044 = vpop.f32.mrb[0].mxu0
  %9045 = vmatprep.mubr.f32.mxu0 %v8393
  %9046 = vmatmul.mubr.f32.gmra.mrb[0].mxu0 %v8392
  %v9047 = vpop.f32.mrb[0].mxu0
  %v9048 = vadd.f32 0.0, %v9047
  %v9049 = vpop.f32.mrb[0].mxu0
  %9050 = vmatprep.mubr.f32.mxu0 %v8397
  %9051 = vmatmul.mubr.f32.gmra.mrb[0].mxu0 %v8396
  %v9052 = vpop.f32.mrb[0].mxu0
  %v9053 = vadd.f32 0.0, %v9052
  %v9054 = vpop.f32.mrb[0].mxu0
  %9055 = vmatprep.mubr.f32.mxu0 %v8401
  %9056 = vmatmul.mubr.f32.gmra.mrb[0].mxu0 %v8400
  %v9057 = vpop.f32.mrb[0].mxu0
  %v9058 = vadd.f32 0.0, %v9057
  %v9059 = vpop.f32.mrb[0].mxu0
  %9060 = vmatprep.mubr.f32.mxu0 %v8405
  %9061 = vmatmul.mubr.f32.gmra.mrb[0].mxu0 %v8404
  %v9062 = vpop.f32.mrb[0].mxu0
  %v9063 = vadd.f32 0.0, %v9062
  %v9064 = vpop.f32.mrb[0].mxu0
  %9065 = vmatprep.mubr.f32.mxu0 %v8409
  %9066 = vmatmul.mubr.f32.gmra.mrb[0].mxu0 %v8408
  %v9067 = vpop.f32.mrb[0].mxu0
  %v9068 = vadd.f32 0.0, %v9067
  %v9069 = vpop.f32.mrb[0].mxu0
  %9070 = vmatprep.mubr.f32.mxu0 %v8413
  %9071 = vmatmul.mubr.f32.gmra.mrb[0].mxu0 %v8412
  %v9072 = vpop.f32.mrb[0].mxu0
  %v9073 = vadd.f32 0.0, %v9072
  %v9074 = vpop.f32.mrb[0].mxu0
  %9075 = vmatprep.mubr.f32.mxu0 %v8417
  %9076 = vmatmul.mubr.f32.gmra.mrb[0].mxu0 %v8416
  %v9077 = vpop.f32.mrb[0].mxu0
  %v9078 = vadd.f32 0.0, %v9077
  %v9079 = vpop.f32.mrb[0].mxu0
  %9080 = vmatprep.mubr.f32.mxu0 %v8421
  %9081 = vmatmul.mubr.f32.gmra.mrb[0].mxu0 %v8420
  %v9082 = vpop.f32.mrb[0].mxu0
  %v9083 = vadd.f32 0.0, %v9082
  %v9084 = vpop.f32.mrb[0].mxu0
  %9085 = vmatprep.mubr.f32.mxu0 %v8425
  %9086 = vmatmul.mubr.f32.gmra.mrb[0].mxu0 %v8424
  %v9087 = vpop.f32.mrb[0].mxu0
  %v9088 = vadd.f32 0.0, %v9087
  %v9089 = vpop.f32.mrb[0].mxu0
  %9090 = vmatprep.mubr.f32.mxu0 %v8429
  %9091 = vmatmul.mubr.f32.gmra.mrb[0].mxu0 %v8428
  %v9092 = vpop.f32.mrb[0].mxu0
  %v9093 = vadd.f32 0.0, %v9092
  %v9094 = vpop.f32.mrb[0].mxu0
  %9095 = vmatprep.mubr.f32.mxu0 %v8433
  %9096 = vmatmul.mubr.f32.gmra.mrb[0].mxu0 %v8432
  %v9097 = vpop.f32.mrb[0].mxu0
  %v9098 = vadd.f32 0.0, %v9097
  %v9099 = vpop.f32.mrb[0].mxu0
  %9100 = vmatprep.mubr.f32.mxu0 %v8437
  %9101 = vmatmul.mubr.f32.gmra.mrb[0].mxu0 %v8436
  %v9102 = vpop.f32.mrb[0].mxu0
  %v9103 = vadd.f32 0.0, %v9102
  %v9104 = vpop.f32.mrb[0].mxu0
  %9105 = vmatprep.mubr.f32.mxu0 %v8441
  %9106 = vmatmul.mubr.f32.gmra.mrb[0].mxu0 %v8440
  %v9107 = vpop.f32.mrb[0].mxu0
  %v9108 = vadd.f32 0.0, %v9107
  %v9109 = vpop.f32.mrb[0].mxu0
  %9110 = vmatprep.mubr.f32.mxu0 %v8445
  %9111 = vmatmul.mubr.f32.gmra.mrb[0].mxu0 %v8444
  %v9112 = vpop.f32.mrb[0].mxu0
  %v9113 = vadd.f32 0.0, %v9112
  %v9114 = vpop.f32.mrb[0].mxu0
  %9115 = vmatprep.mubr.f32.mxu0 %v8449
  %9116 = vmatmul.mubr.f32.gmra.mrb[0].mxu0 %v8448
  %v9117 = vpop.f32.mrb[0].mxu0
  %v9118 = vadd.f32 0.0, %v9117
  %v9119 = vpop.f32.mrb[0].mxu0
  %9120 = vmatprep.mubr.f32.mxu0 %v8453
  %9121 = vmatmul.mubr.f32.gmra.mrb[0].mxu0 %v8452
  %v9122 = vpop.f32.mrb[0].mxu0
  %v9123 = vadd.f32 0.0, %v9122
  %v9124 = vpop.f32.mrb[0].mxu0
  %9125 = vmatprep.mubr.f32.mxu0 %v8457
  %9126 = vmatmul.mubr.f32.gmra.mrb[0].mxu0 %v8456
  %v9127 = vpop.f32.mrb[0].mxu0
  %v9128 = vadd.f32 0.0, %v9127
  %v9129 = vpop.f32.mrb[0].mxu0
  %9130 = vmatprep.mubr.f32.mxu0 %v8461
  %9131 = vmatmul.mubr.f32.gmra.mrb[0].mxu0 %v8460
  %v9132 = vpop.f32.mrb[0].mxu0
  %v9133 = vadd.f32 0.0, %v9132
  %v9134 = vpop.f32.mrb[0].mxu0
  %9135 = vmatprep.mubr.f32.mxu0 %v8465
  %9136 = vmatmul.mubr.f32.gmra.mrb[0].mxu0 %v8464
  %v9137 = vpop.f32.mrb[0].mxu0
  %v9138 = vadd.f32 0.0, %v9137
  %v9139 = vpop.f32.mrb[0].mxu0
  %9140 = vmatprep.mubr.f32.mxu0 %v8469
  %9141 = vmatmul.mubr.f32.gmra.mrb[0].mxu0 %v8468
  %v9142 = vpop.f32.mrb[0].mxu0
  %v9143 = vadd.f32 0.0, %v9142
  %v9144 = vpop.f32.mrb[0].mxu0
  %9145 = vmatprep.mubr.f32.mxu0 %v8473
  %9146 = vmatmul.mubr.f32.gmra.mrb[0].mxu0 %v8472
  %v9147 = vpop.f32.mrb[0].mxu0
  %v9148 = vadd.f32 0.0, %v9147
  %v9149 = vpop.f32.mrb[0].mxu0
  %9150 = vdwg.mxu0
  %9151 = vmatprep.subr.mxu0 0.0
  %9152 = vmatpush1.msra.mxu0 %v7574
  %9153 = vmatprep.subr.mxu0 0.0
  %9154 = vmatpush1.msra.mxu0 %v7575
  %9155 = vmatprep.subr.mxu0 0.0
  %9156 = vmatpush1.msra.mxu0 %v7576
  %9157 = vmatprep.subr.mxu0 0.0
  %9158 = vmatpush1.msra.mxu0 %v7577
  %9159 = vmatprep.subr.mxu0 0.0
  %9160 = vmatpush1.msra.mxu0 %v7578
  %9161 = vmatprep.subr.mxu0 0.0
  %9162 = vmatpush1.msra.mxu0 %v7579
  %9163 = vmatprep.subr.mxu0 0.0
  %9164 = vmatpush1.msra.mxu0 %v7580
  %9165 = vmatprep.subr.mxu0 0.0
  %9166 = vmatpush1.msra.mxu0 %v7581
  %9167 = vmatprep.subr.mxu0 0.0
  %9168 = vmatpush1.msra.mxu0 %v7582
  %9169 = vmatprep.subr.mxu0 0.0
  %9170 = vmatpush1.msra.mxu0 %v7583
  %9171 = vmatprep.subr.mxu0 0.0
  %9172 = vmatpush1.msra.mxu0 %v7584
  %9173 = vmatprep.subr.mxu0 0.0
  %9174 = vmatpush1.msra.mxu0 %v7585
  %9175 = vmatprep.subr.mxu0 0.0
  %9176 = vmatpush1.msra.mxu0 %v7586
  %9177 = vmatprep.subr.mxu0 0.0
  %9178 = vmatpush1.msra.mxu0 %v7587
  %9179 = vmatprep.subr.mxu0 0.0
  %9180 = vmatpush1.msra.mxu0 %v7588
  %9181 = vmatprep.subr.mxu0 0.0
  %9182 = vmatpush1.msra.mxu0 %v7589
  %9183 = vmatprep.subr.mxu0 0.0
  %9184 = vmatpush1.msra.mxu0 %v7590
  %9185 = vmatprep.subr.mxu0 0.0
  %9186 = vmatpush1.msra.mxu0 %v7591
  %9187 = vmatprep.subr.mxu0 0.0
  %9188 = vmatpush1.msra.mxu0 %v7592
  %9189 = vmatprep.subr.mxu0 0.0
  %9190 = vmatpush1.msra.mxu0 %v7593
  %9191 = vmatprep.subr.mxu0 0.0
  %9192 = vmatpush1.msra.mxu0 %v7594
  %9193 = vmatprep.subr.mxu0 0.0
  %9194 = vmatpush1.msra.mxu0 %v7595
  %9195 = vmatprep.subr.mxu0 0.0
  %9196 = vmatpush1.msra.mxu0 %v7596
  %9197 = vmatprep.subr.mxu0 0.0
  %9198 = vmatpush1.msra.mxu0 %v7597
  %9199 = vmatprep.subr.mxu0 0.0
  %9200 = vmatpush1.msra.mxu0 %v7598
  %9201 = vmatprep.subr.mxu0 0.0
  %9202 = vmatpush1.msra.mxu0 %v7599
  %9203 = vmatprep.subr.mxu0 0.0
  %9204 = vmatpush1.msra.mxu0 %v7600
  %9205 = vmatprep.subr.mxu0 0.0
  %9206 = vmatpush1.msra.mxu0 %v7601
  %9207 = vmatprep.subr.mxu0 0.0
  %9208 = vmatpush1.msra.mxu0 %v7602
  %9209 = vmatprep.subr.mxu0 0.0
  %9210 = vmatpush1.msra.mxu0 %v7603
  %9211 = vmatprep.subr.mxu0 0.0
  %9212 = vmatpush1.msra.mxu0 %v7604
  %9213 = vmatprep.subr.mxu0 0.0
  %9214 = vmatpush1.msra.mxu0 %v7605
  %9215 = vmatprep.mubr.f32.mxu0 %v8351
  %9216 = vmatmul.mubr.f32.gmra.mrb[0].mxu0 %v8350
  %v9217 = vpop.f32.mrb[0].mxu0
  %v9218 = vadd.f32 %v8993, %v9217
  %v9219 = vpop.f32.mrb[0].mxu0
  %9220 = vmatprep.mubr.f32.mxu0 %v8355
  %9221 = vmatmul.mubr.f32.gmra.mrb[0].mxu0 %v8354
  %v9222 = vpop.f32.mrb[0].mxu0
  %v9223 = vadd.f32 %v8998, %v9222
  %v9224 = vpop.f32.mrb[0].mxu0
  %9225 = vmatprep.mubr.f32.mxu0 %v8359
  %9226 = vmatmul.mubr.f32.gmra.mrb[0].mxu0 %v8358
  %v9227 = vpop.f32.mrb[0].mxu0
  %v9228 = vadd.f32 %v9003, %v9227
  %v9229 = vpop.f32.mrb[0].mxu0
  %9230 = vmatprep.mubr.f32.mxu0 %v8363
  %9231 = vmatmul.mubr.f32.gmra.mrb[0].mxu0 %v8362
  %v9232 = vpop.f32.mrb[0].mxu0
  %v9233 = vadd.f32 %v9008, %v9232
  %v9234 = vpop.f32.mrb[0].mxu0
  %9235 = vmatprep.mubr.f32.mxu0 %v8367
  %9236 = vmatmul.mubr.f32.gmra.mrb[0].mxu0 %v8366
  %v9237 = vpop.f32.mrb[0].mxu0
  %v9238 = vadd.f32 %v9013, %v9237
  %v9239 = vpop.f32.mrb[0].mxu0
  %9240 = vmatprep.mubr.f32.mxu0 %v8371
  %9241 = vmatmul.mubr.f32.gmra.mrb[0].mxu0 %v8370
  %v9242 = vpop.f32.mrb[0].mxu0
  %v9243 = vadd.f32 %v9018, %v9242
  %v9244 = vpop.f32.mrb[0].mxu0
  %9245 = vmatprep.mubr.f32.mxu0 %v8375
  %9246 = vmatmul.mubr.f32.gmra.mrb[0].mxu0 %v8374
  %v9247 = vpop.f32.mrb[0].mxu0
  %v9248 = vadd.f32 %v9023, %v9247
  %v9249 = vpop.f32.mrb[0].mxu0
  %9250 = vmatprep.mubr.f32.mxu0 %v8379
  %9251 = vmatmul.mubr.f32.gmra.mrb[0].mxu0 %v8378
  %v9252 = vpop.f32.mrb[0].mxu0
  %v9253 = vadd.f32 %v9028, %v9252
  %v9254 = vpop.f32.mrb[0].mxu0
  %9255 = vmatprep.mubr.f32.mxu0 %v8383
  %9256 = vmatmul.mubr.f32.gmra.mrb[0].mxu0 %v8382
  %v9257 = vpop.f32.mrb[0].mxu0
  %v9258 = vadd.f32 %v9033, %v9257
  %v9259 = vpop.f32.mrb[0].mxu0
  %9260 = vmatprep.mubr.f32.mxu0 %v8387
  %9261 = vmatmul.mubr.f32.gmra.mrb[0].mxu0 %v8386
  %v9262 = vpop.f32.mrb[0].mxu0
  %v9263 = vadd.f32 %v9038, %v9262
  %v9264 = vpop.f32.mrb[0].mxu0
  %9265 = vmatprep.mubr.f32.mxu0 %v8391
  %9266 = vmatmul.mubr.f32.gmra.mrb[0].mxu0 %v8390
  %v9267 = vpop.f32.mrb[0].mxu0
  %v9268 = vadd.f32 %v9043, %v9267
  %v9269 = vpop.f32.mrb[0].mxu0
  %9270 = vmatprep.mubr.f32.mxu0 %v8395
  %9271 = vmatmul.mubr.f32.gmra.mrb[0].mxu0 %v8394
  %v9272 = vpop.f32.mrb[0].mxu0
  %v9273 = vadd.f32 %v9048, %v9272
  %v9274 = vpop.f32.mrb[0].mxu0
  %9275 = vmatprep.mubr.f32.mxu0 %v8399
  %9276 = vmatmul.mubr.f32.gmra.mrb[0].mxu0 %v8398
  %v9277 = vpop.f32.mrb[0].mxu0
  %v9278 = vadd.f32 %v9053, %v9277
  %v9279 = vpop.f32.mrb[0].mxu0
  %9280 = vmatprep.mubr.f32.mxu0 %v8403
  %9281 = vmatmul.mubr.f32.gmra.mrb[0].mxu0 %v8402
  %v9282 = vpop.f32.mrb[0].mxu0
  %v9283 = vadd.f32 %v9058, %v9282
  %v9284 = vpop.f32.mrb[0].mxu0
  %9285 = vmatprep.mubr.f32.mxu0 %v8407
  %9286 = vmatmul.mubr.f32.gmra.mrb[0].mxu0 %v8406
  %v9287 = vpop.f32.mrb[0].mxu0
  %v9288 = vadd.f32 %v9063, %v9287
  %v9289 = vpop.f32.mrb[0].mxu0
  %9290 = vmatprep.mubr.f32.mxu0 %v8411
  %9291 = vmatmul.mubr.f32.gmra.mrb[0].mxu0 %v8410
  %v9292 = vpop.f32.mrb[0].mxu0
  %v9293 = vadd.f32 %v9068, %v9292
  %v9294 = vpop.f32.mrb[0].mxu0
  %9295 = vmatprep.mubr.f32.mxu0 %v8415
  %9296 = vmatmul.mubr.f32.gmra.mrb[0].mxu0 %v8414
  %v9297 = vpop.f32.mrb[0].mxu0
  %v9298 = vadd.f32 %v9073, %v9297
  %v9299 = vpop.f32.mrb[0].mxu0
  %9300 = vmatprep.mubr.f32.mxu0 %v8419
  %9301 = vmatmul.mubr.f32.gmra.mrb[0].mxu0 %v8418
  %v9302 = vpop.f32.mrb[0].mxu0
  %v9303 = vadd.f32 %v9078, %v9302
  %v9304 = vpop.f32.mrb[0].mxu0
  %9305 = vmatprep.mubr.f32.mxu0 %v8423
  %9306 = vmatmul.mubr.f32.gmra.mrb[0].mxu0 %v8422
  %v9307 = vpop.f32.mrb[0].mxu0
  %v9308 = vadd.f32 %v9083, %v9307
  %v9309 = vpop.f32.mrb[0].mxu0
  %9310 = vmatprep.mubr.f32.mxu0 %v8427
  %9311 = vmatmul.mubr.f32.gmra.mrb[0].mxu0 %v8426
  %v9312 = vpop.f32.mrb[0].mxu0
  %v9313 = vadd.f32 %v9088, %v9312
  %v9314 = vpop.f32.mrb[0].mxu0
  %9315 = vmatprep.mubr.f32.mxu0 %v8431
  %9316 = vmatmul.mubr.f32.gmra.mrb[0].mxu0 %v8430
  %v9317 = vpop.f32.mrb[0].mxu0
  %v9318 = vadd.f32 %v9093, %v9317
  %v9319 = vpop.f32.mrb[0].mxu0
  %9320 = vmatprep.mubr.f32.mxu0 %v8435
  %9321 = vmatmul.mubr.f32.gmra.mrb[0].mxu0 %v8434
  %v9322 = vpop.f32.mrb[0].mxu0
  %v9323 = vadd.f32 %v9098, %v9322
  %v9324 = vpop.f32.mrb[0].mxu0
  %9325 = vmatprep.mubr.f32.mxu0 %v8439
  %9326 = vmatmul.mubr.f32.gmra.mrb[0].mxu0 %v8438
  %v9327 = vpop.f32.mrb[0].mxu0
  %v9328 = vadd.f32 %v9103, %v9327
  %v9329 = vpop.f32.mrb[0].mxu0
  %9330 = vmatprep.mubr.f32.mxu0 %v8443
  %9331 = vmatmul.mubr.f32.gmra.mrb[0].mxu0 %v8442
  %v9332 = vpop.f32.mrb[0].mxu0
  %v9333 = vadd.f32 %v9108, %v9332
  %v9334 = vpop.f32.mrb[0].mxu0
  %9335 = vmatprep.mubr.f32.mxu0 %v8447
  %9336 = vmatmul.mubr.f32.gmra.mrb[0].mxu0 %v8446
  %v9337 = vpop.f32.mrb[0].mxu0
  %v9338 = vadd.f32 %v9113, %v9337
  %v9339 = vpop.f32.mrb[0].mxu0
  %9340 = vmatprep.mubr.f32.mxu0 %v8451
  %9341 = vmatmul.mubr.f32.gmra.mrb[0].mxu0 %v8450
  %v9342 = vpop.f32.mrb[0].mxu0
  %v9343 = vadd.f32 %v9118, %v9342
  %v9344 = vpop.f32.mrb[0].mxu0
  %9345 = vmatprep.mubr.f32.mxu0 %v8455
  %9346 = vmatmul.mubr.f32.gmra.mrb[0].mxu0 %v8454
  %v9347 = vpop.f32.mrb[0].mxu0
  %v9348 = vadd.f32 %v9123, %v9347
  %v9349 = vpop.f32.mrb[0].mxu0
  %9350 = vmatprep.mubr.f32.mxu0 %v8459
  %9351 = vmatmul.mubr.f32.gmra.mrb[0].mxu0 %v8458
  %v9352 = vpop.f32.mrb[0].mxu0
  %v9353 = vadd.f32 %v9128, %v9352
  %v9354 = vpop.f32.mrb[0].mxu0
  %9355 = vmatprep.mubr.f32.mxu0 %v8463
  %9356 = vmatmul.mubr.f32.gmra.mrb[0].mxu0 %v8462
  %v9357 = vpop.f32.mrb[0].mxu0
  %v9358 = vadd.f32 %v9133, %v9357
  %v9359 = vpop.f32.mrb[0].mxu0
  %9360 = vmatprep.mubr.f32.mxu0 %v8467
  %9361 = vmatmul.mubr.f32.gmra.mrb[0].mxu0 %v8466
  %v9362 = vpop.f32.mrb[0].mxu0
  %v9363 = vadd.f32 %v9138, %v9362
  %v9364 = vpop.f32.mrb[0].mxu0
  %9365 = vmatprep.mubr.f32.mxu0 %v8471
  %9366 = vmatmul.mubr.f32.gmra.mrb[0].mxu0 %v8470
  %v9367 = vpop.f32.mrb[0].mxu0
  %v9368 = vadd.f32 %v9143, %v9367
  %v9369 = vpop.f32.mrb[0].mxu0
  %9370 = vmatprep.mubr.f32.mxu0 %v8475
  %9371 = vmatmul.mubr.f32.gmra.mrb[0].mxu0 %v8474
  %v9372 = vpop.f32.mrb[0].mxu0
  %v9373 = vadd.f32 %v9148, %v9372
  %v9374 = vpop.f32.mrb[0].mxu0
  %9375 = vdwg.mxu0
  %v9376 = vmax.f32 %v8768, %v9218
  %v9377 = vmax.f32 %v8773, %v9223
  %v9378 = vmax.f32 %v8778, %v9228
  %v9379 = vmax.f32 %v8783, %v9233
  %v9380 = vmax.f32 %v8788, %v9238
  %v9381 = vmax.f32 %v8793, %v9243
  %v9382 = vmax.f32 %v8798, %v9248
  %v9383 = vmax.f32 %v8803, %v9253
  %v9384 = vmax.f32 %v8808, %v9258
  %v9385 = vmax.f32 %v8813, %v9263
  %v9386 = vmax.f32 %v8818, %v9268
  %v9387 = vmax.f32 %v8823, %v9273
  %v9388 = vmax.f32 %v8828, %v9278
  %v9389 = vmax.f32 %v8833, %v9283
  %v9390 = vmax.f32 %v8838, %v9288
  %v9391 = vmax.f32 %v8843, %v9293
  %v9392 = vmax.f32 %v8848, %v9298
  %v9393 = vmax.f32 %v8853, %v9303
  %v9394 = vmax.f32 %v8858, %v9308
  %v9395 = vmax.f32 %v8863, %v9313
  %v9396 = vmax.f32 %v8868, %v9318
  %v9397 = vmax.f32 %v8873, %v9323
  %v9398 = vmax.f32 %v8878, %v9328
  %v9399 = vmax.f32 %v8883, %v9333
  %v9400 = vmax.f32 %v8888, %v9338
  %v9401 = vmax.f32 %v8893, %v9343
  %v9402 = vmax.f32 %v8898, %v9348
  %v9403 = vmax.f32 %v8903, %v9353
  %v9404 = vmax.f32 %v8908, %v9358
  %v9405 = vmax.f32 %v8913, %v9363
  %v9406 = vmax.f32 %v8918, %v9368
  %v9407 = vmax.f32 %v8923, %v9373
  %9408 = vst.msk [vmem:[#allocation2] sm:$0xff] %vm5663, 0.0
  %vm9409 = vcmask 123904
  %9410 = vst.msk [vmem:[#allocation2 + $0x8] sm:$0x3] %vm9409, 0.0
  %9411 = vst.msk [vmem:[#allocation2 + $0x10] sm:$0xff] %vm5663, 0.0
  %9412 = vst.msk [vmem:[#allocation2 + $0x18] sm:$0x3] %vm9409, 0.0
  %9413 = vst.msk [vmem:[#allocation2 + $0x20] sm:$0xff] %vm5663, 0.0
  %9414 = vst.msk [vmem:[#allocation2 + $0x28] sm:$0x3] %vm9409, 0.0
  %9415 = vst.msk [vmem:[#allocation2 + $0x30] sm:$0xff] %vm5663, 0.0
  %9416 = vst.msk [vmem:[#allocation2 + $0x38] sm:$0x3] %vm9409, 0.0
  %9417 = vst.msk [vmem:[#allocation2 + $0x40] sm:$0xff] %vm5663, 0.0
  %9418 = vst.msk [vmem:[#allocation2 + $0x48] sm:$0x3] %vm9409, 0.0
  %9419 = vst.msk [vmem:[#allocation2 + $0x50] sm:$0xff] %vm5663, 0.0
  %9420 = vst.msk [vmem:[#allocation2 + $0x58] sm:$0x3] %vm9409, 0.0
  %9421 = vst.msk [vmem:[#allocation2 + $0x60] sm:$0xff] %vm5663, 0.0
  %9422 = vst.msk [vmem:[#allocation2 + $0x68] sm:$0x3] %vm9409, 0.0
  %9423 = vst.msk [vmem:[#allocation2 + $0x70] sm:$0xff] %vm5663, 0.0
  %9424 = vst.msk [vmem:[#allocation2 + $0x78] sm:$0x3] %vm9409, 0.0
  %9425 = vst.msk [vmem:[#allocation2 + $0x80] sm:$0xff] %vm5663, 0.0
  %9426 = vst.msk [vmem:[#allocation2 + $0x88] sm:$0x3] %vm9409, 0.0
  %9427 = vst.msk [vmem:[#allocation2 + $0x90] sm:$0xff] %vm5663, 0.0
  %9428 = vst.msk [vmem:[#allocation2 + $0x98] sm:$0x3] %vm9409, 0.0
  %9429 = vst.msk [vmem:[#allocation2 + $0xa0] sm:$0xff] %vm5663, 0.0
  %9430 = vst.msk [vmem:[#allocation2 + $0xa8] sm:$0x3] %vm9409, 0.0
  %9431 = vst.msk [vmem:[#allocation2 + $0xb0] sm:$0xff] %vm5663, 0.0
  %9432 = vst.msk [vmem:[#allocation2 + $0xb8] sm:$0x3] %vm9409, 0.0
  %9433 = vst.msk [vmem:[#allocation2 + $0xc0] sm:$0xff] %vm5663, 0.0
  %9434 = vst.msk [vmem:[#allocation2 + $0xc8] sm:$0x3] %vm9409, 0.0
  %9435 = vst.msk [vmem:[#allocation2 + $0xd0] sm:$0xff] %vm5663, 0.0
  %9436 = vst.msk [vmem:[#allocation2 + $0xd8] sm:$0x3] %vm9409, 0.0
  %9437 = vst.msk [vmem:[#allocation2 + $0xe0] sm:$0xff] %vm5663, 0.0
  %9438 = vst.msk [vmem:[#allocation2 + $0xe8] sm:$0x3] %vm9409, 0.0
  %9439 = vst.msk [vmem:[#allocation2 + $0xf0] sm:$0xff] %vm5663, 0.0
  %9440 = vst.msk [vmem:[#allocation2 + $0xf8] sm:$0x3] %vm9409, 0.0
  %9441 = vst.msk [vmem:[#allocation2 + $0x100] sm:$0xff] %vm5663, 0.0
  %9442 = vst.msk [vmem:[#allocation2 + $0x108] sm:$0x3] %vm9409, 0.0
  %9443 = vst.msk [vmem:[#allocation2 + $0x110] sm:$0xff] %vm5663, 0.0
  %9444 = vst.msk [vmem:[#allocation2 + $0x118] sm:$0x3] %vm9409, 0.0
  %9445 = vst.msk [vmem:[#allocation2 + $0x120] sm:$0xff] %vm5663, 0.0
  %9446 = vst.msk [vmem:[#allocation2 + $0x128] sm:$0x3] %vm9409, 0.0
  %9447 = vst.msk [vmem:[#allocation2 + $0x130] sm:$0xff] %vm5663, 0.0
  %9448 = vst.msk [vmem:[#allocation2 + $0x138] sm:$0x3] %vm9409, 0.0
  %9449 = vst.msk [vmem:[#allocation2 + $0x140] sm:$0xff] %vm5663, 0.0
  %9450 = vst.msk [vmem:[#allocation2 + $0x148] sm:$0x3] %vm9409, 0.0
  %9451 = vst.msk [vmem:[#allocation2 + $0x150] sm:$0xff] %vm5663, 0.0
  %9452 = vst.msk [vmem:[#allocation2 + $0x158] sm:$0x3] %vm9409, 0.0
  %9453 = vst.msk [vmem:[#allocation2 + $0x160] sm:$0xff] %vm5663, 0.0
  %9454 = vst.msk [vmem:[#allocation2 + $0x168] sm:$0x3] %vm9409, 0.0
  %9455 = vst.msk [vmem:[#allocation2 + $0x170] sm:$0xff] %vm5663, 0.0
  %9456 = vst.msk [vmem:[#allocation2 + $0x178] sm:$0x3] %vm9409, 0.0
  %9457 = vst.msk [vmem:[#allocation2 + $0x180] sm:$0xff] %vm5663, 0.0
  %9458 = vst.msk [vmem:[#allocation2 + $0x188] sm:$0x3] %vm9409, 0.0
  %9459 = vst.msk [vmem:[#allocation2 + $0x190] sm:$0xff] %vm5663, 0.0
  %9460 = vst.msk [vmem:[#allocation2 + $0x198] sm:$0x3] %vm9409, 0.0
  %9461 = vst.msk [vmem:[#allocation2 + $0x1a0] sm:$0xff] %vm5663, 0.0
  %9462 = vst.msk [vmem:[#allocation2 + $0x1a8] sm:$0x3] %vm9409, 0.0
  %9463 = vst.msk [vmem:[#allocation2 + $0x1b0] sm:$0xff] %vm5663, 0.0
  %9464 = vst.msk [vmem:[#allocation2 + $0x1b8] sm:$0x3] %vm9409, 0.0
  %9465 = vst.msk [vmem:[#allocation2 + $0x1c0] sm:$0xff] %vm5663, 0.0
  %9466 = vst.msk [vmem:[#allocation2 + $0x1c8] sm:$0x3] %vm9409, 0.0
  %9467 = vst.msk [vmem:[#allocation2 + $0x1d0] sm:$0xff] %vm5663, 0.0
  %9468 = vst.msk [vmem:[#allocation2 + $0x1d8] sm:$0x3] %vm9409, 0.0
  %9469 = vst.msk [vmem:[#allocation2 + $0x1e0] sm:$0xff] %vm5663, 0.0
  %9470 = vst.msk [vmem:[#allocation2 + $0x1e8] sm:$0x3] %vm9409, 0.0
  %9471 = vst.msk [vmem:[#allocation2 + $0x1f0] sm:$0xff] %vm5663, 0.0
  %9472 = vst.msk [vmem:[#allocation2 + $0x1f8] sm:$0x3] %vm9409, 0.0
  %9473 = vst.msk [vmem:[#allocation2 + $0x200] sm:$0xff] %vm5663, 0.0
  %9474 = vst.msk [vmem:[#allocation2 + $0x208] sm:$0x3] %vm9409, 0.0
  %9475 = vst.msk [vmem:[#allocation2 + $0x210] sm:$0xff] %vm5663, 0.0
  %9476 = vst.msk [vmem:[#allocation2 + $0x218] sm:$0x3] %vm9409, 0.0
  %9477 = vst.msk [vmem:[#allocation2 + $0x220] sm:$0xff] %vm5663, 0.0
  %9478 = vst.msk [vmem:[#allocation2 + $0x228] sm:$0x3] %vm9409, 0.0
  %9479 = vst.msk [vmem:[#allocation2 + $0x230] sm:$0xff] %vm5663, 0.0
  %9480 = vst.msk [vmem:[#allocation2 + $0x238] sm:$0x3] %vm9409, 0.0
  %9481 = vst.msk [vmem:[#allocation2 + $0x240] sm:$0xff] %vm5663, 0.0
  %9482 = vst.msk [vmem:[#allocation2 + $0x248] sm:$0x3] %vm9409, 0.0
  %9483 = vst.msk [vmem:[#allocation2 + $0x250] sm:$0xff] %vm5663, 0.0
  %9484 = vst.msk [vmem:[#allocation2 + $0x258] sm:$0x3] %vm9409, 0.0
  %9485 = vst.msk [vmem:[#allocation2 + $0x260] sm:$0xff] %vm5663, 0.0
  %9486 = vst.msk [vmem:[#allocation2 + $0x268] sm:$0x3] %vm9409, 0.0
  %9487 = vst.msk [vmem:[#allocation2 + $0x270] sm:$0xff] %vm5663, 0.0
  %9488 = vst.msk [vmem:[#allocation2 + $0x278] sm:$0x3] %vm9409, 0.0
  %s9489 = scalar_lea.vmem [#allocation2], 16
  %9490 = vst.msk [vmem:[%s9489 + $0x1] sm:$0xff] %vm5663, %v9376
  %9491 = vst.msk [vmem:[%s9489 + $0x11] sm:$0xff] %vm5663, %v9377
  %9492 = vst.msk [vmem:[%s9489 + $0x21] sm:$0xff] %vm5663, %v9378
  %9493 = vst.msk [vmem:[%s9489 + $0x31] sm:$0xff] %vm5663, %v9379
  %9494 = vst.msk [vmem:[%s9489 + $0x41] sm:$0xff] %vm5663, %v9380
  %9495 = vst.msk [vmem:[%s9489 + $0x51] sm:$0xff] %vm5663, %v9381
  %9496 = vst.msk [vmem:[%s9489 + $0x61] sm:$0xff] %vm5663, %v9382
  %9497 = vst.msk [vmem:[%s9489 + $0x71] sm:$0xff] %vm5663, %v9383
  %9498 = vst.msk [vmem:[%s9489 + $0xa1] sm:$0xff] %vm5663, %v9384
  %9499 = vst.msk [vmem:[%s9489 + $0xb1] sm:$0xff] %vm5663, %v9385
  %9500 = vst.msk [vmem:[%s9489 + $0xc1] sm:$0xff] %vm5663, %v9386
  %9501 = vst.msk [vmem:[%s9489 + $0xd1] sm:$0xff] %vm5663, %v9387
  %9502 = vst.msk [vmem:[%s9489 + $0xe1] sm:$0xff] %vm5663, %v9388
  %9503 = vst.msk [vmem:[%s9489 + $0xf1] sm:$0xff] %vm5663, %v9389
  %9504 = vst.msk [vmem:[%s9489 + $0x101] sm:$0xff] %vm5663, %v9390
  %9505 = vst.msk [vmem:[%s9489 + $0x111] sm:$0xff] %vm5663, %v9391
  %9506 = vst.msk [vmem:[%s9489 + $0x141] sm:$0xff] %vm5663, %v9392
  %9507 = vst.msk [vmem:[%s9489 + $0x151] sm:$0xff] %vm5663, %v9393
  %9508 = vst.msk [vmem:[%s9489 + $0x161] sm:$0xff] %vm5663, %v9394
  %9509 = vst.msk [vmem:[%s9489 + $0x171] sm:$0xff] %vm5663, %v9395
  %9510 = vst.msk [vmem:[%s9489 + $0x181] sm:$0xff] %vm5663, %v9396
  %9511 = vst.msk [vmem:[%s9489 + $0x191] sm:$0xff] %vm5663, %v9397
  %9512 = vst.msk [vmem:[%s9489 + $0x1a1] sm:$0xff] %vm5663, %v9398
  %9513 = vst.msk [vmem:[%s9489 + $0x1b1] sm:$0xff] %vm5663, %v9399
  %9514 = vst.msk [vmem:[%s9489 + $0x1e1] sm:$0xff] %vm5663, %v9400
  %9515 = vst.msk [vmem:[%s9489 + $0x1f1] sm:$0xff] %vm5663, %v9401
  %9516 = vst.msk [vmem:[%s9489 + $0x201] sm:$0xff] %vm5663, %v9402
  %9517 = vst.msk [vmem:[%s9489 + $0x211] sm:$0xff] %vm5663, %v9403
  %9518 = vst.msk [vmem:[%s9489 + $0x221] sm:$0xff] %vm5663, %v9404
  %9519 = vst.msk [vmem:[%s9489 + $0x231] sm:$0xff] %vm5663, %v9405
  %9520 = vst.msk [vmem:[%s9489 + $0x241] sm:$0xff] %vm5663, %v9406
  %9521 = vst.msk [vmem:[%s9489 + $0x251] sm:$0xff] %vm5663, %v9407
  %v9522 = vld [vmem:[#allocation2] sm:$0xff]
  %v9523 = vld [vmem:[#allocation2 + $0x10] sm:$0xff]
  %v9524 = vld [vmem:[#allocation2 + $0x20] sm:$0xff]
  %v9525 = vld [vmem:[#allocation2 + $0x30] sm:$0xff]
  %v9526 = vld [vmem:[#allocation2 + $0x40] sm:$0xff]
  %v9527 = vld [vmem:[#allocation2 + $0x50] sm:$0xff]
  %v9528 = vld [vmem:[#allocation2 + $0x60] sm:$0xff]
  %v9529 = vld [vmem:[#allocation2 + $0x70] sm:$0xff]
  %v9530 = vld [vmem:[#allocation2 + $0xa0] sm:$0xff]
  %v9531 = vld [vmem:[#allocation2 + $0xb0] sm:$0xff]
  %v9532 = vld [vmem:[#allocation2 + $0xc0] sm:$0xff]
  %v9533 = vld [vmem:[#allocation2 + $0xd0] sm:$0xff]
  %v9534 = vld [vmem:[#allocation2 + $0xe0] sm:$0xff]
  %v9535 = vld [vmem:[#allocation2 + $0xf0] sm:$0xff]
  %v9536 = vld [vmem:[#allocation2 + $0x100] sm:$0xff]
  %v9537 = vld [vmem:[#allocation2 + $0x110] sm:$0xff]
  %v9538 = vld [vmem:[#allocation2 + $0x140] sm:$0xff]
  %v9539 = vld [vmem:[#allocation2 + $0x150] sm:$0xff]
  %v9540 = vld [vmem:[#allocation2 + $0x160] sm:$0xff]
  %v9541 = vld [vmem:[#allocation2 + $0x170] sm:$0xff]
  %v9542 = vld [vmem:[#allocation2 + $0x180] sm:$0xff]
  %v9543 = vld [vmem:[#allocation2 + $0x190] sm:$0xff]
  %v9544 = vld [vmem:[#allocation2 + $0x1a0] sm:$0xff]
  %v9545 = vld [vmem:[#allocation2 + $0x1b0] sm:$0xff]
  %v9546 = vld [vmem:[#allocation2 + $0x1e0] sm:$0xff]
  %v9547 = vld [vmem:[#allocation2 + $0x1f0] sm:$0xff]
  %v9548 = vld [vmem:[#allocation2 + $0x200] sm:$0xff]
  %v9549 = vld [vmem:[#allocation2 + $0x210] sm:$0xff]
  %v9550 = vld [vmem:[#allocation2 + $0x220] sm:$0xff]
  %v9551 = vld [vmem:[#allocation2 + $0x230] sm:$0xff]
  %v9552 = vld [vmem:[#allocation2 + $0x240] sm:$0xff]
  %v9553 = vld [vmem:[#allocation2 + $0x250] sm:$0xff]
  %v9554 = vld [vmem:[#allocation2 + $0x1] sm:$0xff]
  %v9555 = vld [vmem:[#allocation2 + $0x11] sm:$0xff]
  %v9556 = vld [vmem:[#allocation2 + $0x21] sm:$0xff]
  %v9557 = vld [vmem:[#allocation2 + $0x31] sm:$0xff]
  %v9558 = vld [vmem:[#allocation2 + $0x41] sm:$0xff]
  %v9559 = vld [vmem:[#allocation2 + $0x51] sm:$0xff]
  %v9560 = vld [vmem:[#allocation2 + $0x61] sm:$0xff]
  %v9561 = vld [vmem:[#allocation2 + $0x71] sm:$0xff]
  %v9562 = vld [vmem:[#allocation2 + $0xa1] sm:$0xff]
  %v9563 = vld [vmem:[#allocation2 + $0xb1] sm:$0xff]
  %v9564 = vld [vmem:[#allocation2 + $0xc1] sm:$0xff]
  %v9565 = vld [vmem:[#allocation2 + $0xd1] sm:$0xff]
  %v9566 = vld [vmem:[#allocation2 + $0xe1] sm:$0xff]
  %v9567 = vld [vmem:[#allocation2 + $0xf1] sm:$0xff]
  %v9568 = vld [vmem:[#allocation2 + $0x101] sm:$0xff]
  %v9569 = vld [vmem:[#allocation2 + $0x111] sm:$0xff]
  %v9570 = vld [vmem:[#allocation2 + $0x141] sm:$0xff]
  %v9571 = vld [vmem:[#allocation2 + $0x151] sm:$0xff]
  %v9572 = vld [vmem:[#allocation2 + $0x161] sm:$0xff]
  %v9573 = vld [vmem:[#allocation2 + $0x171] sm:$0xff]
  %v9574 = vld [vmem:[#allocation2 + $0x181] sm:$0xff]
  %v9575 = vld [vmem:[#allocation2 + $0x191] sm:$0xff]
  %v9576 = vld [vmem:[#allocation2 + $0x1a1] sm:$0xff]
  %v9577 = vld [vmem:[#allocation2 + $0x1b1] sm:$0xff]
  %v9578 = vld [vmem:[#allocation2 + $0x1e1] sm:$0xff]
  %v9579 = vld [vmem:[#allocation2 + $0x1f1] sm:$0xff]
  %v9580 = vld [vmem:[#allocation2 + $0x201] sm:$0xff]
  %v9581 = vld [vmem:[#allocation2 + $0x211] sm:$0xff]
  %v9582 = vld [vmem:[#allocation2 + $0x221] sm:$0xff]
  %v9583 = vld [vmem:[#allocation2 + $0x231] sm:$0xff]
  %v9584 = vld [vmem:[#allocation2 + $0x241] sm:$0xff]
  %v9585 = vld [vmem:[#allocation2 + $0x251] sm:$0xff]
  %v9586 = vld [vmem:[#allocation2 + $0x2] sm:$0xff]
  %v9587 = vld [vmem:[#allocation2 + $0x12] sm:$0xff]
  %v9588 = vld [vmem:[#allocation2 + $0x22] sm:$0xff]
  %v9589 = vld [vmem:[#allocation2 + $0x32] sm:$0xff]
  %v9590 = vld [vmem:[#allocation2 + $0x42] sm:$0xff]
  %v9591 = vld [vmem:[#allocation2 + $0x52] sm:$0xff]
  %v9592 = vld [vmem:[#allocation2 + $0x62] sm:$0xff]
  %v9593 = vld [vmem:[#allocation2 + $0x72] sm:$0xff]
  %v9594 = vld [vmem:[#allocation2 + $0xa2] sm:$0xff]
  %v9595 = vld [vmem:[#allocation2 + $0xb2] sm:$0xff]
  %v9596 = vld [vmem:[#allocation2 + $0xc2] sm:$0xff]
  %v9597 = vld [vmem:[#allocation2 + $0xd2] sm:$0xff]
  %v9598 = vld [vmem:[#allocation2 + $0xe2] sm:$0xff]
  %v9599 = vld [vmem:[#allocation2 + $0xf2] sm:$0xff]
  %v9600 = vld [vmem:[#allocation2 + $0x102] sm:$0xff]
  %v9601 = vld [vmem:[#allocation2 + $0x112] sm:$0xff]
  %v9602 = vld [vmem:[#allocation2 + $0x142] sm:$0xff]
  %v9603 = vld [vmem:[#allocation2 + $0x152] sm:$0xff]
  %v9604 = vld [vmem:[#allocation2 + $0x162] sm:$0xff]
  %v9605 = vld [vmem:[#allocation2 + $0x172] sm:$0xff]
  %v9606 = vld [vmem:[#allocation2 + $0x182] sm:$0xff]
  %v9607 = vld [vmem:[#allocation2 + $0x192] sm:$0xff]
  %v9608 = vld [vmem:[#allocation2 + $0x1a2] sm:$0xff]
  %v9609 = vld [vmem:[#allocation2 + $0x1b2] sm:$0xff]
  %v9610 = vld [vmem:[#allocation2 + $0x1e2] sm:$0xff]
  %v9611 = vld [vmem:[#allocation2 + $0x1f2] sm:$0xff]
  %v9612 = vld [vmem:[#allocation2 + $0x202] sm:$0xff]
  %v9613 = vld [vmem:[#allocation2 + $0x212] sm:$0xff]
  %v9614 = vld [vmem:[#allocation2 + $0x222] sm:$0xff]
  %v9615 = vld [vmem:[#allocation2 + $0x232] sm:$0xff]
  %v9616 = vld [vmem:[#allocation2 + $0x242] sm:$0xff]
  %v9617 = vld [vmem:[#allocation2 + $0x252] sm:$0xff]
  %v9618 = vld [vmem:[%s9489] sm:$0xff]
  %v9619 = vld [vmem:[%s9489 + $0x10] sm:$0xff]
  %v9620 = vld [vmem:[%s9489 + $0x20] sm:$0xff]
  %v9621 = vld [vmem:[%s9489 + $0x30] sm:$0xff]
  %v9622 = vld [vmem:[%s9489 + $0x40] sm:$0xff]
  %v9623 = vld [vmem:[%s9489 + $0x50] sm:$0xff]
  %v9624 = vld [vmem:[%s9489 + $0x60] sm:$0xff]
  %v9625 = vld [vmem:[%s9489 + $0x70] sm:$0xff]
  %v9626 = vld [vmem:[%s9489 + $0xa0] sm:$0xff]
  %v9627 = vld [vmem:[%s9489 + $0xb0] sm:$0xff]
  %v9628 = vld [vmem:[%s9489 + $0xc0] sm:$0xff]
  %v9629 = vld [vmem:[%s9489 + $0xd0] sm:$0xff]
  %v9630 = vld [vmem:[%s9489 + $0xe0] sm:$0xff]
  %v9631 = vld [vmem:[%s9489 + $0xf0] sm:$0xff]
  %v9632 = vld [vmem:[%s9489 + $0x100] sm:$0xff]
  %v9633 = vld [vmem:[%s9489 + $0x110] sm:$0xff]
  %v9634 = vld [vmem:[%s9489 + $0x140] sm:$0xff]
  %v9635 = vld [vmem:[%s9489 + $0x150] sm:$0xff]
  %v9636 = vld [vmem:[%s9489 + $0x160] sm:$0xff]
  %v9637 = vld [vmem:[%s9489 + $0x170] sm:$0xff]
  %v9638 = vld [vmem:[%s9489 + $0x180] sm:$0xff]
  %v9639 = vld [vmem:[%s9489 + $0x190] sm:$0xff]
  %v9640 = vld [vmem:[%s9489 + $0x1a0] sm:$0xff]
  %v9641 = vld [vmem:[%s9489 + $0x1b0] sm:$0xff]
  %v9642 = vld [vmem:[%s9489 + $0x1e0] sm:$0xff]
  %v9643 = vld [vmem:[%s9489 + $0x1f0] sm:$0xff]
  %v9644 = vld [vmem:[%s9489 + $0x200] sm:$0xff]
  %v9645 = vld [vmem:[%s9489 + $0x210] sm:$0xff]
  %v9646 = vld [vmem:[%s9489 + $0x220] sm:$0xff]
  %v9647 = vld [vmem:[%s9489 + $0x230] sm:$0xff]
  %v9648 = vld [vmem:[%s9489 + $0x240] sm:$0xff]
  %v9649 = vld [vmem:[%s9489 + $0x250] sm:$0xff]
  %v9650 = vld [vmem:[%s9489 + $0x1] sm:$0xff]
  %v9651 = vld [vmem:[%s9489 + $0x11] sm:$0xff]
  %v9652 = vld [vmem:[%s9489 + $0x21] sm:$0xff]
  %v9653 = vld [vmem:[%s9489 + $0x31] sm:$0xff]
  %v9654 = vld [vmem:[%s9489 + $0x41] sm:$0xff]
  %v9655 = vld [vmem:[%s9489 + $0x51] sm:$0xff]
  %v9656 = vld [vmem:[%s9489 + $0x61] sm:$0xff]
  %v9657 = vld [vmem:[%s9489 + $0x71] sm:$0xff]
  %v9658 = vld [vmem:[%s9489 + $0xa1] sm:$0xff]
  %v9659 = vld [vmem:[%s9489 + $0xb1] sm:$0xff]
  %v9660 = vld [vmem:[%s9489 + $0xc1] sm:$0xff]
  %v9661 = vld [vmem:[%s9489 + $0xd1] sm:$0xff]
  %v9662 = vld [vmem:[%s9489 + $0xe1] sm:$0xff]
  %v9663 = vld [vmem:[%s9489 + $0xf1] sm:$0xff]
  %v9664 = vld [vmem:[%s9489 + $0x101] sm:$0xff]
  %v9665 = vld [vmem:[%s9489 + $0x111] sm:$0xff]
  %v9666 = vld [vmem:[%s9489 + $0x141] sm:$0xff]
  %v9667 = vld [vmem:[%s9489 + $0x151] sm:$0xff]
  %v9668 = vld [vmem:[%s9489 + $0x161] sm:$0xff]
  %v9669 = vld [vmem:[%s9489 + $0x171] sm:$0xff]
  %v9670 = vld [vmem:[%s9489 + $0x181] sm:$0xff]
  %v9671 = vld [vmem:[%s9489 + $0x191] sm:$0xff]
  %v9672 = vld [vmem:[%s9489 + $0x1a1] sm:$0xff]
  %v9673 = vld [vmem:[%s9489 + $0x1b1] sm:$0xff]
  %v9674 = vld [vmem:[%s9489 + $0x1e1] sm:$0xff]
  %v9675 = vld [vmem:[%s9489 + $0x1f1] sm:$0xff]
  %v9676 = vld [vmem:[%s9489 + $0x201] sm:$0xff]
  %v9677 = vld [vmem:[%s9489 + $0x211] sm:$0xff]
  %v9678 = vld [vmem:[%s9489 + $0x221] sm:$0xff]
  %v9679 = vld [vmem:[%s9489 + $0x231] sm:$0xff]
  %v9680 = vld [vmem:[%s9489 + $0x241] sm:$0xff]
  %v9681 = vld [vmem:[%s9489 + $0x251] sm:$0xff]
  %v9682 = vld [vmem:[%s9489 + $0x2] sm:$0xff]
  %v9683 = vld [vmem:[%s9489 + $0x12] sm:$0xff]
  %v9684 = vld [vmem:[%s9489 + $0x22] sm:$0xff]
  %v9685 = vld [vmem:[%s9489 + $0x32] sm:$0xff]
  %v9686 = vld [vmem:[%s9489 + $0x42] sm:$0xff]
  %v9687 = vld [vmem:[%s9489 + $0x52] sm:$0xff]
  %v9688 = vld [vmem:[%s9489 + $0x62] sm:$0xff]
  %v9689 = vld [vmem:[%s9489 + $0x72] sm:$0xff]
  %v9690 = vld [vmem:[%s9489 + $0xa2] sm:$0xff]
  %v9691 = vld [vmem:[%s9489 + $0xb2] sm:$0xff]
  %v9692 = vld [vmem:[%s9489 + $0xc2] sm:$0xff]
  %v9693 = vld [vmem:[%s9489 + $0xd2] sm:$0xff]
  %v9694 = vld [vmem:[%s9489 + $0xe2] sm:$0xff]
  %v9695 = vld [vmem:[%s9489 + $0xf2] sm:$0xff]
  %v9696 = vld [vmem:[%s9489 + $0x102] sm:$0xff]
  %v9697 = vld [vmem:[%s9489 + $0x112] sm:$0xff]
  %v9698 = vld [vmem:[%s9489 + $0x142] sm:$0xff]
  %v9699 = vld [vmem:[%s9489 + $0x152] sm:$0xff]
  %v9700 = vld [vmem:[%s9489 + $0x162] sm:$0xff]
  %v9701 = vld [vmem:[%s9489 + $0x172] sm:$0xff]
  %v9702 = vld [vmem:[%s9489 + $0x182] sm:$0xff]
  %v9703 = vld [vmem:[%s9489 + $0x192] sm:$0xff]
  %v9704 = vld [vmem:[%s9489 + $0x1a2] sm:$0xff]
  %v9705 = vld [vmem:[%s9489 + $0x1b2] sm:$0xff]
  %v9706 = vld [vmem:[%s9489 + $0x1e2] sm:$0xff]
  %v9707 = vld [vmem:[%s9489 + $0x1f2] sm:$0xff]
  %v9708 = vld [vmem:[%s9489 + $0x202] sm:$0xff]
  %v9709 = vld [vmem:[%s9489 + $0x212] sm:$0xff]
  %v9710 = vld [vmem:[%s9489 + $0x222] sm:$0xff]
  %v9711 = vld [vmem:[%s9489 + $0x232] sm:$0xff]
  %v9712 = vld [vmem:[%s9489 + $0x242] sm:$0xff]
  %v9713 = vld [vmem:[%s9489 + $0x252] sm:$0xff]
  %s9714 = scalar_lea.vmem [#allocation2], 32
  %v9715 = vld [vmem:[%s9714] sm:$0xff]
  %v9716 = vld [vmem:[%s9714 + $0x10] sm:$0xff]
  %v9717 = vld [vmem:[%s9714 + $0x20] sm:$0xff]
  %v9718 = vld [vmem:[%s9714 + $0x30] sm:$0xff]
  %v9719 = vld [vmem:[%s9714 + $0x40] sm:$0xff]
  %v9720 = vld [vmem:[%s9714 + $0x50] sm:$0xff]
  %v9721 = vld [vmem:[%s9714 + $0x60] sm:$0xff]
  %v9722 = vld [vmem:[%s9714 + $0x70] sm:$0xff]
  %v9723 = vld [vmem:[%s9714 + $0xa0] sm:$0xff]
  %v9724 = vld [vmem:[%s9714 + $0xb0] sm:$0xff]
  %v9725 = vld [vmem:[%s9714 + $0xc0] sm:$0xff]
  %v9726 = vld [vmem:[%s9714 + $0xd0] sm:$0xff]
  %v9727 = vld [vmem:[%s9714 + $0xe0] sm:$0xff]
  %v9728 = vld [vmem:[%s9714 + $0xf0] sm:$0xff]
  %v9729 = vld [vmem:[%s9714 + $0x100] sm:$0xff]
  %v9730 = vld [vmem:[%s9714 + $0x110] sm:$0xff]
  %v9731 = vld [vmem:[%s9714 + $0x140] sm:$0xff]
  %v9732 = vld [vmem:[%s9714 + $0x150] sm:$0xff]
  %v9733 = vld [vmem:[%s9714 + $0x160] sm:$0xff]
  %v9734 = vld [vmem:[%s9714 + $0x170] sm:$0xff]
  %v9735 = vld [vmem:[%s9714 + $0x180] sm:$0xff]
  %v9736 = vld [vmem:[%s9714 + $0x190] sm:$0xff]
  %v9737 = vld [vmem:[%s9714 + $0x1a0] sm:$0xff]
  %v9738 = vld [vmem:[%s9714 + $0x1b0] sm:$0xff]
  %v9739 = vld [vmem:[%s9714 + $0x1e0] sm:$0xff]
  %v9740 = vld [vmem:[%s9714 + $0x1f0] sm:$0xff]
  %v9741 = vld [vmem:[%s9714 + $0x200] sm:$0xff]
  %v9742 = vld [vmem:[%s9714 + $0x210] sm:$0xff]
  %v9743 = vld [vmem:[%s9714 + $0x220] sm:$0xff]
  %v9744 = vld [vmem:[%s9714 + $0x230] sm:$0xff]
  %v9745 = vld [vmem:[%s9714 + $0x240] sm:$0xff]
  %v9746 = vld [vmem:[%s9714 + $0x250] sm:$0xff]
  %v9747 = vld [vmem:[%s9714 + $0x1] sm:$0xff]
  %v9748 = vld [vmem:[%s9714 + $0x11] sm:$0xff]
  %v9749 = vld [vmem:[%s9714 + $0x21] sm:$0xff]
  %v9750 = vld [vmem:[%s9714 + $0x31] sm:$0xff]
  %v9751 = vld [vmem:[%s9714 + $0x41] sm:$0xff]
  %v9752 = vld [vmem:[%s9714 + $0x51] sm:$0xff]
  %v9753 = vld [vmem:[%s9714 + $0x61] sm:$0xff]
  %v9754 = vld [vmem:[%s9714 + $0x71] sm:$0xff]
  %v9755 = vld [vmem:[%s9714 + $0xa1] sm:$0xff]
  %v9756 = vld [vmem:[%s9714 + $0xb1] sm:$0xff]
  %v9757 = vld [vmem:[%s9714 + $0xc1] sm:$0xff]
  %v9758 = vld [vmem:[%s9714 + $0xd1] sm:$0xff]
  %v9759 = vld [vmem:[%s9714 + $0xe1] sm:$0xff]
  %v9760 = vld [vmem:[%s9714 + $0xf1] sm:$0xff]
  %v9761 = vld [vmem:[%s9714 + $0x101] sm:$0xff]
  %v9762 = vld [vmem:[%s9714 + $0x111] sm:$0xff]
  %v9763 = vld [vmem:[%s9714 + $0x141] sm:$0xff]
  %v9764 = vld [vmem:[%s9714 + $0x151] sm:$0xff]
  %v9765 = vld [vmem:[%s9714 + $0x161] sm:$0xff]
  %v9766 = vld [vmem:[%s9714 + $0x171] sm:$0xff]
  %v9767 = vld [vmem:[%s9714 + $0x181] sm:$0xff]
  %v9768 = vld [vmem:[%s9714 + $0x191] sm:$0xff]
  %v9769 = vld [vmem:[%s9714 + $0x1a1] sm:$0xff]
  %v9770 = vld [vmem:[%s9714 + $0x1b1] sm:$0xff]
  %v9771 = vld [vmem:[%s9714 + $0x1e1] sm:$0xff]
  %v9772 = vld [vmem:[%s9714 + $0x1f1] sm:$0xff]
  %v9773 = vld [vmem:[%s9714 + $0x201] sm:$0xff]
  %v9774 = vld [vmem:[%s9714 + $0x211] sm:$0xff]
  %v9775 = vld [vmem:[%s9714 + $0x221] sm:$0xff]
  %v9776 = vld [vmem:[%s9714 + $0x231] sm:$0xff]
  %v9777 = vld [vmem:[%s9714 + $0x241] sm:$0xff]
  %v9778 = vld [vmem:[%s9714 + $0x251] sm:$0xff]
  %v9779 = vld [vmem:[%s9714 + $0x2] sm:$0xff]
  %v9780 = vld [vmem:[%s9714 + $0x12] sm:$0xff]
  %v9781 = vld [vmem:[%s9714 + $0x22] sm:$0xff]
  %v9782 = vld [vmem:[%s9714 + $0x32] sm:$0xff]
  %v9783 = vld [vmem:[%s9714 + $0x42] sm:$0xff]
  %v9784 = vld [vmem:[%s9714 + $0x52] sm:$0xff]
  %v9785 = vld [vmem:[%s9714 + $0x62] sm:$0xff]
  %v9786 = vld [vmem:[%s9714 + $0x72] sm:$0xff]
  %v9787 = vld [vmem:[%s9714 + $0xa2] sm:$0xff]
  %v9788 = vld [vmem:[%s9714 + $0xb2] sm:$0xff]
  %v9789 = vld [vmem:[%s9714 + $0xc2] sm:$0xff]
  %v9790 = vld [vmem:[%s9714 + $0xd2] sm:$0xff]
  %v9791 = vld [vmem:[%s9714 + $0xe2] sm:$0xff]
  %v9792 = vld [vmem:[%s9714 + $0xf2] sm:$0xff]
  %v9793 = vld [vmem:[%s9714 + $0x102] sm:$0xff]
  %v9794 = vld [vmem:[%s9714 + $0x112] sm:$0xff]
  %v9795 = vld [vmem:[%s9714 + $0x142] sm:$0xff]
  %v9796 = vld [vmem:[%s9714 + $0x152] sm:$0xff]
  %v9797 = vld [vmem:[%s9714 + $0x162] sm:$0xff]
  %v9798 = vld [vmem:[%s9714 + $0x172] sm:$0xff]
  %v9799 = vld [vmem:[%s9714 + $0x182] sm:$0xff]
  %v9800 = vld [vmem:[%s9714 + $0x192] sm:$0xff]
  %v9801 = vld [vmem:[%s9714 + $0x1a2] sm:$0xff]
  %v9802 = vld [vmem:[%s9714 + $0x1b2] sm:$0xff]
  %v9803 = vld [vmem:[%s9714 + $0x1e2] sm:$0xff]
  %v9804 = vld [vmem:[%s9714 + $0x1f2] sm:$0xff]
  %v9805 = vld [vmem:[%s9714 + $0x202] sm:$0xff]
  %v9806 = vld [vmem:[%s9714 + $0x212] sm:$0xff]
  %v9807 = vld [vmem:[%s9714 + $0x222] sm:$0xff]
  %v9808 = vld [vmem:[%s9714 + $0x232] sm:$0xff]
  %v9809 = vld [vmem:[%s9714 + $0x242] sm:$0xff]
  %v9810 = vld [vmem:[%s9714 + $0x252] sm:$0xff]
  %9843 = vrot.lane.b32.xlu0 %v9554, 16
  %v9844 = vpop.permute.xlu0 %9843
  %9845 = vrot.lane.b32.xlu0 %v9555, 16
  %v9846 = vpop.permute.xlu0 %9845
  %9847 = vrot.lane.b32.xlu0 %v9556, 16
  %v9848 = vpop.permute.xlu0 %9847
  %9849 = vrot.lane.b32.xlu0 %v9557, 16
  %v9850 = vpop.permute.xlu0 %9849
  %9851 = vrot.lane.b32.xlu0 %v9558, 16
  %v9852 = vpop.permute.xlu0 %9851
  %9853 = vrot.lane.b32.xlu0 %v9559, 16
  %v9854 = vpop.permute.xlu0 %9853
  %9855 = vrot.lane.b32.xlu0 %v9560, 16
  %v9856 = vpop.permute.xlu0 %9855
  %9857 = vrot.lane.b32.xlu0 %v9561, 16
  %v9858 = vpop.permute.xlu0 %9857
  %9859 = vrot.lane.b32.xlu0 %v9562, 16
  %v9860 = vpop.permute.xlu0 %9859
  %9861 = vrot.lane.b32.xlu0 %v9563, 16
  %v9862 = vpop.permute.xlu0 %9861
  %9863 = vrot.lane.b32.xlu0 %v9564, 16
  %v9864 = vpop.permute.xlu0 %9863
  %9865 = vrot.lane.b32.xlu0 %v9565, 16
  %v9866 = vpop.permute.xlu0 %9865
  %9867 = vrot.lane.b32.xlu0 %v9566, 16
  %v9868 = vpop.permute.xlu0 %9867
  %9869 = vrot.lane.b32.xlu0 %v9567, 16
  %v9870 = vpop.permute.xlu0 %9869
  %9871 = vrot.lane.b32.xlu0 %v9568, 16
  %v9872 = vpop.permute.xlu0 %9871
  %9873 = vrot.lane.b32.xlu0 %v9569, 16
  %v9874 = vpop.permute.xlu0 %9873
  %9875 = vrot.lane.b32.xlu0 %v9570, 16
  %v9876 = vpop.permute.xlu0 %9875
  %9877 = vrot.lane.b32.xlu0 %v9571, 16
  %v9878 = vpop.permute.xlu0 %9877
  %9879 = vrot.lane.b32.xlu0 %v9572, 16
  %v9880 = vpop.permute.xlu0 %9879
  %9881 = vrot.lane.b32.xlu0 %v9573, 16
  %v9882 = vpop.permute.xlu0 %9881
  %9883 = vrot.lane.b32.xlu0 %v9574, 16
  %v9884 = vpop.permute.xlu0 %9883
  %9885 = vrot.lane.b32.xlu0 %v9575, 16
  %v9886 = vpop.permute.xlu0 %9885
  %9887 = vrot.lane.b32.xlu0 %v9576, 16
  %v9888 = vpop.permute.xlu0 %9887
  %9889 = vrot.lane.b32.xlu0 %v9577, 16
  %v9890 = vpop.permute.xlu0 %9889
  %9891 = vrot.lane.b32.xlu0 %v9578, 16
  %v9892 = vpop.permute.xlu0 %9891
  %9893 = vrot.lane.b32.xlu0 %v9579, 16
  %v9894 = vpop.permute.xlu0 %9893
  %9895 = vrot.lane.b32.xlu0 %v9580, 16
  %v9896 = vpop.permute.xlu0 %9895
  %9897 = vrot.lane.b32.xlu0 %v9581, 16
  %v9898 = vpop.permute.xlu0 %9897
  %9899 = vrot.lane.b32.xlu0 %v9582, 16
  %v9900 = vpop.permute.xlu0 %9899
  %9901 = vrot.lane.b32.xlu0 %v9583, 16
  %v9902 = vpop.permute.xlu0 %9901
  %9903 = vrot.lane.b32.xlu0 %v9584, 16
  %v9904 = vpop.permute.xlu0 %9903
  %9905 = vrot.lane.b32.xlu0 %v9585, 16
  %v9906 = vpop.permute.xlu0 %9905
  %9971 = vrot.lane.b32.xlu0 %v9586, 32
  %v9972 = vpop.permute.xlu0 %9971
  %9973 = vrot.lane.b32.xlu0 %v9587, 32
  %v9974 = vpop.permute.xlu0 %9973
  %9975 = vrot.lane.b32.xlu0 %v9588, 32
  %v9976 = vpop.permute.xlu0 %9975
  %9977 = vrot.lane.b32.xlu0 %v9589, 32
  %v9978 = vpop.permute.xlu0 %9977
  %9979 = vrot.lane.b32.xlu0 %v9590, 32
  %v9980 = vpop.permute.xlu0 %9979
  %9981 = vrot.lane.b32.xlu0 %v9591, 32
  %v9982 = vpop.permute.xlu0 %9981
  %9983 = vrot.lane.b32.xlu0 %v9592, 32
  %v9984 = vpop.permute.xlu0 %9983
  %9985 = vrot.lane.b32.xlu0 %v9593, 32
  %v9986 = vpop.permute.xlu0 %9985
  %9987 = vrot.lane.b32.xlu0 %v9594, 32
  %v9988 = vpop.permute.xlu0 %9987
  %9989 = vrot.lane.b32.xlu0 %v9595, 32
  %v9990 = vpop.permute.xlu0 %9989
  %9991 = vrot.lane.b32.xlu0 %v9596, 32
  %v9992 = vpop.permute.xlu0 %9991
  %9993 = vrot.lane.b32.xlu0 %v9597, 32
  %v9994 = vpop.permute.xlu0 %9993
  %9995 = vrot.lane.b32.xlu0 %v9598, 32
  %v9996 = vpop.permute.xlu0 %9995
  %9997 = vrot.lane.b32.xlu0 %v9599, 32
  %v9998 = vpop.permute.xlu0 %9997
  %9999 = vrot.lane.b32.xlu0 %v9600, 32
  %v10000 = vpop.permute.xlu0 %9999
  %10001 = vrot.lane.b32.xlu0 %v9601, 32
  %v10002 = vpop.permute.xlu0 %10001
  %10003 = vrot.lane.b32.xlu0 %v9602, 32
  %v10004 = vpop.permute.xlu0 %10003
  %10005 = vrot.lane.b32.xlu0 %v9603, 32
  %v10006 = vpop.permute.xlu0 %10005
  %10007 = vrot.lane.b32.xlu0 %v9604, 32
  %v10008 = vpop.permute.xlu0 %10007
  %10009 = vrot.lane.b32.xlu0 %v9605, 32
  %v10010 = vpop.permute.xlu0 %10009
  %10011 = vrot.lane.b32.xlu0 %v9606, 32
  %v10012 = vpop.permute.xlu0 %10011
  %10013 = vrot.lane.b32.xlu0 %v9607, 32
  %v10014 = vpop.permute.xlu0 %10013
  %10015 = vrot.lane.b32.xlu0 %v9608, 32
  %v10016 = vpop.permute.xlu0 %10015
  %10017 = vrot.lane.b32.xlu0 %v9609, 32
  %v10018 = vpop.permute.xlu0 %10017
  %10019 = vrot.lane.b32.xlu0 %v9610, 32
  %v10020 = vpop.permute.xlu0 %10019
  %10021 = vrot.lane.b32.xlu0 %v9611, 32
  %v10022 = vpop.permute.xlu0 %10021
  %10023 = vrot.lane.b32.xlu0 %v9612, 32
  %v10024 = vpop.permute.xlu0 %10023
  %10025 = vrot.lane.b32.xlu0 %v9613, 32
  %v10026 = vpop.permute.xlu0 %10025
  %10027 = vrot.lane.b32.xlu0 %v9614, 32
  %v10028 = vpop.permute.xlu0 %10027
  %10029 = vrot.lane.b32.xlu0 %v9615, 32
  %v10030 = vpop.permute.xlu0 %10029
  %10031 = vrot.lane.b32.xlu0 %v9616, 32
  %v10032 = vpop.permute.xlu0 %10031
  %10033 = vrot.lane.b32.xlu0 %v9617, 32
  %v10034 = vpop.permute.xlu0 %10033
  %10099 = vrot.lane.b32.xlu0 %v9618, 48
  %v10100 = vpop.permute.xlu0 %10099
  %10101 = vrot.lane.b32.xlu0 %v9619, 48
  %v10102 = vpop.permute.xlu0 %10101
  %10103 = vrot.lane.b32.xlu0 %v9620, 48
  %v10104 = vpop.permute.xlu0 %10103
  %10105 = vrot.lane.b32.xlu0 %v9621, 48
  %v10106 = vpop.permute.xlu0 %10105
  %10107 = vrot.lane.b32.xlu0 %v9622, 48
  %v10108 = vpop.permute.xlu0 %10107
  %10109 = vrot.lane.b32.xlu0 %v9623, 48
  %v10110 = vpop.permute.xlu0 %10109
  %10111 = vrot.lane.b32.xlu0 %v9624, 48
  %v10112 = vpop.permute.xlu0 %10111
  %10113 = vrot.lane.b32.xlu0 %v9625, 48
  %v10114 = vpop.permute.xlu0 %10113
  %10115 = vrot.lane.b32.xlu0 %v9626, 48
  %v10116 = vpop.permute.xlu0 %10115
  %10117 = vrot.lane.b32.xlu0 %v9627, 48
  %v10118 = vpop.permute.xlu0 %10117
  %10119 = vrot.lane.b32.xlu0 %v9628, 48
  %v10120 = vpop.permute.xlu0 %10119
  %10121 = vrot.lane.b32.xlu0 %v9629, 48
  %v10122 = vpop.permute.xlu0 %10121
  %10123 = vrot.lane.b32.xlu0 %v9630, 48
  %v10124 = vpop.permute.xlu0 %10123
  %10125 = vrot.lane.b32.xlu0 %v9631, 48
  %v10126 = vpop.permute.xlu0 %10125
  %10127 = vrot.lane.b32.xlu0 %v9632, 48
  %v10128 = vpop.permute.xlu0 %10127
  %10129 = vrot.lane.b32.xlu0 %v9633, 48
  %v10130 = vpop.permute.xlu0 %10129
  %10131 = vrot.lane.b32.xlu0 %v9634, 48
  %v10132 = vpop.permute.xlu0 %10131
  %10133 = vrot.lane.b32.xlu0 %v9635, 48
  %v10134 = vpop.permute.xlu0 %10133
  %10135 = vrot.lane.b32.xlu0 %v9636, 48
  %v10136 = vpop.permute.xlu0 %10135
  %10137 = vrot.lane.b32.xlu0 %v9637, 48
  %v10138 = vpop.permute.xlu0 %10137
  %10139 = vrot.lane.b32.xlu0 %v9638, 48
  %v10140 = vpop.permute.xlu0 %10139
  %10141 = vrot.lane.b32.xlu0 %v9639, 48
  %v10142 = vpop.permute.xlu0 %10141
  %10143 = vrot.lane.b32.xlu0 %v9640, 48
  %v10144 = vpop.permute.xlu0 %10143
  %10145 = vrot.lane.b32.xlu0 %v9641, 48
  %v10146 = vpop.permute.xlu0 %10145
  %10147 = vrot.lane.b32.xlu0 %v9642, 48
  %v10148 = vpop.permute.xlu0 %10147
  %10149 = vrot.lane.b32.xlu0 %v9643, 48
  %v10150 = vpop.permute.xlu0 %10149
  %10151 = vrot.lane.b32.xlu0 %v9644, 48
  %v10152 = vpop.permute.xlu0 %10151
  %10153 = vrot.lane.b32.xlu0 %v9645, 48
  %v10154 = vpop.permute.xlu0 %10153
  %10155 = vrot.lane.b32.xlu0 %v9646, 48
  %v10156 = vpop.permute.xlu0 %10155
  %10157 = vrot.lane.b32.xlu0 %v9647, 48
  %v10158 = vpop.permute.xlu0 %10157
  %10159 = vrot.lane.b32.xlu0 %v9648, 48
  %v10160 = vpop.permute.xlu0 %10159
  %10161 = vrot.lane.b32.xlu0 %v9649, 48
  %v10162 = vpop.permute.xlu0 %10161
  %10227 = vrot.lane.b32.xlu0 %v9650, 64
  %v10228 = vpop.permute.xlu0 %10227
  %10229 = vrot.lane.b32.xlu0 %v9651, 64
  %v10230 = vpop.permute.xlu0 %10229
  %10231 = vrot.lane.b32.xlu0 %v9652, 64
  %v10232 = vpop.permute.xlu0 %10231
  %10233 = vrot.lane.b32.xlu0 %v9653, 64
  %v10234 = vpop.permute.xlu0 %10233
  %10235 = vrot.lane.b32.xlu0 %v9654, 64
  %v10236 = vpop.permute.xlu0 %10235
  %10237 = vrot.lane.b32.xlu0 %v9655, 64
  %v10238 = vpop.permute.xlu0 %10237
  %10239 = vrot.lane.b32.xlu0 %v9656, 64
  %v10240 = vpop.permute.xlu0 %10239
  %10241 = vrot.lane.b32.xlu0 %v9657, 64
  %v10242 = vpop.permute.xlu0 %10241
  %10243 = vrot.lane.b32.xlu0 %v9658, 64
  %v10244 = vpop.permute.xlu0 %10243
  %10245 = vrot.lane.b32.xlu0 %v9659, 64
  %v10246 = vpop.permute.xlu0 %10245
  %10247 = vrot.lane.b32.xlu0 %v9660, 64
  %v10248 = vpop.permute.xlu0 %10247
  %10249 = vrot.lane.b32.xlu0 %v9661, 64
  %v10250 = vpop.permute.xlu0 %10249
  %10251 = vrot.lane.b32.xlu0 %v9662, 64
  %v10252 = vpop.permute.xlu0 %10251
  %10253 = vrot.lane.b32.xlu0 %v9663, 64
  %v10254 = vpop.permute.xlu0 %10253
  %10255 = vrot.lane.b32.xlu0 %v9664, 64
  %v10256 = vpop.permute.xlu0 %10255
  %10257 = vrot.lane.b32.xlu0 %v9665, 64
  %v10258 = vpop.permute.xlu0 %10257
  %10259 = vrot.lane.b32.xlu0 %v9666, 64
  %v10260 = vpop.permute.xlu0 %10259
  %10261 = vrot.lane.b32.xlu0 %v9667, 64
  %v10262 = vpop.permute.xlu0 %10261
  %10263 = vrot.lane.b32.xlu0 %v9668, 64
  %v10264 = vpop.permute.xlu0 %10263
  %10265 = vrot.lane.b32.xlu0 %v9669, 64
  %v10266 = vpop.permute.xlu0 %10265
  %10267 = vrot.lane.b32.xlu0 %v9670, 64
  %v10268 = vpop.permute.xlu0 %10267
  %10269 = vrot.lane.b32.xlu0 %v9671, 64
  %v10270 = vpop.permute.xlu0 %10269
  %10271 = vrot.lane.b32.xlu0 %v9672, 64
  %v10272 = vpop.permute.xlu0 %10271
  %10273 = vrot.lane.b32.xlu0 %v9673, 64
  %v10274 = vpop.permute.xlu0 %10273
  %10275 = vrot.lane.b32.xlu0 %v9674, 64
  %v10276 = vpop.permute.xlu0 %10275
  %10277 = vrot.lane.b32.xlu0 %v9675, 64
  %v10278 = vpop.permute.xlu0 %10277
  %10279 = vrot.lane.b32.xlu0 %v9676, 64
  %v10280 = vpop.permute.xlu0 %10279
  %10281 = vrot.lane.b32.xlu0 %v9677, 64
  %v10282 = vpop.permute.xlu0 %10281
  %10283 = vrot.lane.b32.xlu0 %v9678, 64
  %v10284 = vpop.permute.xlu0 %10283
  %10285 = vrot.lane.b32.xlu0 %v9679, 64
  %v10286 = vpop.permute.xlu0 %10285
  %10287 = vrot.lane.b32.xlu0 %v9680, 64
  %v10288 = vpop.permute.xlu0 %10287
  %10289 = vrot.lane.b32.xlu0 %v9681, 64
  %v10290 = vpop.permute.xlu0 %10289
  %10355 = vrot.lane.b32.xlu0 %v9682, 80
  %v10356 = vpop.permute.xlu0 %10355
  %10357 = vrot.lane.b32.xlu0 %v9683, 80
  %v10358 = vpop.permute.xlu0 %10357
  %10359 = vrot.lane.b32.xlu0 %v9684, 80
  %v10360 = vpop.permute.xlu0 %10359
  %10361 = vrot.lane.b32.xlu0 %v9685, 80
  %v10362 = vpop.permute.xlu0 %10361
  %10363 = vrot.lane.b32.xlu0 %v9686, 80
  %v10364 = vpop.permute.xlu0 %10363
  %10365 = vrot.lane.b32.xlu0 %v9687, 80
  %v10366 = vpop.permute.xlu0 %10365
  %10367 = vrot.lane.b32.xlu0 %v9688, 80
  %v10368 = vpop.permute.xlu0 %10367
  %10369 = vrot.lane.b32.xlu0 %v9689, 80
  %v10370 = vpop.permute.xlu0 %10369
  %10371 = vrot.lane.b32.xlu0 %v9690, 80
  %v10372 = vpop.permute.xlu0 %10371
  %10373 = vrot.lane.b32.xlu0 %v9691, 80
  %v10374 = vpop.permute.xlu0 %10373
  %10375 = vrot.lane.b32.xlu0 %v9692, 80
  %v10376 = vpop.permute.xlu0 %10375
  %10377 = vrot.lane.b32.xlu0 %v9693, 80
  %v10378 = vpop.permute.xlu0 %10377
  %10379 = vrot.lane.b32.xlu0 %v9694, 80
  %v10380 = vpop.permute.xlu0 %10379
  %10381 = vrot.lane.b32.xlu0 %v9695, 80
  %v10382 = vpop.permute.xlu0 %10381
  %10383 = vrot.lane.b32.xlu0 %v9696, 80
  %v10384 = vpop.permute.xlu0 %10383
  %10385 = vrot.lane.b32.xlu0 %v9697, 80
  %v10386 = vpop.permute.xlu0 %10385
  %10387 = vrot.lane.b32.xlu0 %v9698, 80
  %v10388 = vpop.permute.xlu0 %10387
  %10389 = vrot.lane.b32.xlu0 %v9699, 80
  %v10390 = vpop.permute.xlu0 %10389
  %10391 = vrot.lane.b32.xlu0 %v9700, 80
  %v10392 = vpop.permute.xlu0 %10391
  %10393 = vrot.lane.b32.xlu0 %v9701, 80
  %v10394 = vpop.permute.xlu0 %10393
  %10395 = vrot.lane.b32.xlu0 %v9702, 80
  %v10396 = vpop.permute.xlu0 %10395
  %10397 = vrot.lane.b32.xlu0 %v9703, 80
  %v10398 = vpop.permute.xlu0 %10397
  %10399 = vrot.lane.b32.xlu0 %v9704, 80
  %v10400 = vpop.permute.xlu0 %10399
  %10401 = vrot.lane.b32.xlu0 %v9705, 80
  %v10402 = vpop.permute.xlu0 %10401
  %10403 = vrot.lane.b32.xlu0 %v9706, 80
  %v10404 = vpop.permute.xlu0 %10403
  %10405 = vrot.lane.b32.xlu0 %v9707, 80
  %v10406 = vpop.permute.xlu0 %10405
  %10407 = vrot.lane.b32.xlu0 %v9708, 80
  %v10408 = vpop.permute.xlu0 %10407
  %10409 = vrot.lane.b32.xlu0 %v9709, 80
  %v10410 = vpop.permute.xlu0 %10409
  %10411 = vrot.lane.b32.xlu0 %v9710, 80
  %v10412 = vpop.permute.xlu0 %10411
  %10413 = vrot.lane.b32.xlu0 %v9711, 80
  %v10414 = vpop.permute.xlu0 %10413
  %10415 = vrot.lane.b32.xlu0 %v9712, 80
  %v10416 = vpop.permute.xlu0 %10415
  %10417 = vrot.lane.b32.xlu0 %v9713, 80
  %v10418 = vpop.permute.xlu0 %10417
  %10483 = vrot.lane.b32.xlu0 %v9715, 96
  %v10484 = vpop.permute.xlu0 %10483
  %10485 = vrot.lane.b32.xlu0 %v9716, 96
  %v10486 = vpop.permute.xlu0 %10485
  %10487 = vrot.lane.b32.xlu0 %v9717, 96
  %v10488 = vpop.permute.xlu0 %10487
  %10489 = vrot.lane.b32.xlu0 %v9718, 96
  %v10490 = vpop.permute.xlu0 %10489
  %10491 = vrot.lane.b32.xlu0 %v9719, 96
  %v10492 = vpop.permute.xlu0 %10491
  %10493 = vrot.lane.b32.xlu0 %v9720, 96
  %v10494 = vpop.permute.xlu0 %10493
  %10495 = vrot.lane.b32.xlu0 %v9721, 96
  %v10496 = vpop.permute.xlu0 %10495
  %10497 = vrot.lane.b32.xlu0 %v9722, 96
  %v10498 = vpop.permute.xlu0 %10497
  %10499 = vrot.lane.b32.xlu0 %v9723, 96
  %v10500 = vpop.permute.xlu0 %10499
  %10501 = vrot.lane.b32.xlu0 %v9724, 96
  %v10502 = vpop.permute.xlu0 %10501
  %10503 = vrot.lane.b32.xlu0 %v9725, 96
  %v10504 = vpop.permute.xlu0 %10503
  %10505 = vrot.lane.b32.xlu0 %v9726, 96
  %v10506 = vpop.permute.xlu0 %10505
  %10507 = vrot.lane.b32.xlu0 %v9727, 96
  %v10508 = vpop.permute.xlu0 %10507
  %10509 = vrot.lane.b32.xlu0 %v9728, 96
  %v10510 = vpop.permute.xlu0 %10509
  %10511 = vrot.lane.b32.xlu0 %v9729, 96
  %v10512 = vpop.permute.xlu0 %10511
  %10513 = vrot.lane.b32.xlu0 %v9730, 96
  %v10514 = vpop.permute.xlu0 %10513
  %10515 = vrot.lane.b32.xlu0 %v9731, 96
  %v10516 = vpop.permute.xlu0 %10515
  %10517 = vrot.lane.b32.xlu0 %v9732, 96
  %v10518 = vpop.permute.xlu0 %10517
  %10519 = vrot.lane.b32.xlu0 %v9733, 96
  %v10520 = vpop.permute.xlu0 %10519
  %10521 = vrot.lane.b32.xlu0 %v9734, 96
  %v10522 = vpop.permute.xlu0 %10521
  %10523 = vrot.lane.b32.xlu0 %v9735, 96
  %v10524 = vpop.permute.xlu0 %10523
  %10525 = vrot.lane.b32.xlu0 %v9736, 96
  %v10526 = vpop.permute.xlu0 %10525
  %10527 = vrot.lane.b32.xlu0 %v9737, 96
  %v10528 = vpop.permute.xlu0 %10527
  %10529 = vrot.lane.b32.xlu0 %v9738, 96
  %v10530 = vpop.permute.xlu0 %10529
  %10531 = vrot.lane.b32.xlu0 %v9739, 96
  %v10532 = vpop.permute.xlu0 %10531
  %10533 = vrot.lane.b32.xlu0 %v9740, 96
  %v10534 = vpop.permute.xlu0 %10533
  %10535 = vrot.lane.b32.xlu0 %v9741, 96
  %v10536 = vpop.permute.xlu0 %10535
  %10537 = vrot.lane.b32.xlu0 %v9742, 96
  %v10538 = vpop.permute.xlu0 %10537
  %10539 = vrot.lane.b32.xlu0 %v9743, 96
  %v10540 = vpop.permute.xlu0 %10539
  %10541 = vrot.lane.b32.xlu0 %v9744, 96
  %v10542 = vpop.permute.xlu0 %10541
  %10543 = vrot.lane.b32.xlu0 %v9745, 96
  %v10544 = vpop.permute.xlu0 %10543
  %10545 = vrot.lane.b32.xlu0 %v9746, 96
  %v10546 = vpop.permute.xlu0 %10545
  %10611 = vrot.lane.b32.xlu0 %v9747, 112
  %v10612 = vpop.permute.xlu0 %10611
  %10613 = vrot.lane.b32.xlu0 %v9748, 112
  %v10614 = vpop.permute.xlu0 %10613
  %10615 = vrot.lane.b32.xlu0 %v9749, 112
  %v10616 = vpop.permute.xlu0 %10615
  %10617 = vrot.lane.b32.xlu0 %v9750, 112
  %v10618 = vpop.permute.xlu0 %10617
  %10619 = vrot.lane.b32.xlu0 %v9751, 112
  %v10620 = vpop.permute.xlu0 %10619
  %10621 = vrot.lane.b32.xlu0 %v9752, 112
  %v10622 = vpop.permute.xlu0 %10621
  %10623 = vrot.lane.b32.xlu0 %v9753, 112
  %v10624 = vpop.permute.xlu0 %10623
  %10625 = vrot.lane.b32.xlu0 %v9754, 112
  %v10626 = vpop.permute.xlu0 %10625
  %10627 = vrot.lane.b32.xlu0 %v9755, 112
  %v10628 = vpop.permute.xlu0 %10627
  %10629 = vrot.lane.b32.xlu0 %v9756, 112
  %v10630 = vpop.permute.xlu0 %10629
  %10631 = vrot.lane.b32.xlu0 %v9757, 112
  %v10632 = vpop.permute.xlu0 %10631
  %10633 = vrot.lane.b32.xlu0 %v9758, 112
  %v10634 = vpop.permute.xlu0 %10633
  %10635 = vrot.lane.b32.xlu0 %v9759, 112
  %v10636 = vpop.permute.xlu0 %10635
  %10637 = vrot.lane.b32.xlu0 %v9760, 112
  %v10638 = vpop.permute.xlu0 %10637
  %10639 = vrot.lane.b32.xlu0 %v9761, 112
  %v10640 = vpop.permute.xlu0 %10639
  %10641 = vrot.lane.b32.xlu0 %v9762, 112
  %v10642 = vpop.permute.xlu0 %10641
  %10643 = vrot.lane.b32.xlu0 %v9763, 112
  %v10644 = vpop.permute.xlu0 %10643
  %10645 = vrot.lane.b32.xlu0 %v9764, 112
  %v10646 = vpop.permute.xlu0 %10645
  %10647 = vrot.lane.b32.xlu0 %v9765, 112
  %v10648 = vpop.permute.xlu0 %10647
  %10649 = vrot.lane.b32.xlu0 %v9766, 112
  %v10650 = vpop.permute.xlu0 %10649
  %10651 = vrot.lane.b32.xlu0 %v9767, 112
  %v10652 = vpop.permute.xlu0 %10651
  %10653 = vrot.lane.b32.xlu0 %v9768, 112
  %v10654 = vpop.permute.xlu0 %10653
  %10655 = vrot.lane.b32.xlu0 %v9769, 112
  %v10656 = vpop.permute.xlu0 %10655
  %10657 = vrot.lane.b32.xlu0 %v9770, 112
  %v10658 = vpop.permute.xlu0 %10657
  %10659 = vrot.lane.b32.xlu0 %v9771, 112
  %v10660 = vpop.permute.xlu0 %10659
  %10661 = vrot.lane.b32.xlu0 %v9772, 112
  %v10662 = vpop.permute.xlu0 %10661
  %10663 = vrot.lane.b32.xlu0 %v9773, 112
  %v10664 = vpop.permute.xlu0 %10663
  %10665 = vrot.lane.b32.xlu0 %v9774, 112
  %v10666 = vpop.permute.xlu0 %10665
  %10667 = vrot.lane.b32.xlu0 %v9775, 112
  %v10668 = vpop.permute.xlu0 %10667
  %10669 = vrot.lane.b32.xlu0 %v9776, 112
  %v10670 = vpop.permute.xlu0 %10669
  %10671 = vrot.lane.b32.xlu0 %v9777, 112
  %v10672 = vpop.permute.xlu0 %10671
  %10673 = vrot.lane.b32.xlu0 %v9778, 112
  %v10674 = vpop.permute.xlu0 %10673
  %v10707 = vsel %vm5663, %v9522, %v9844
  %v10708 = vsel %vm5663, %v9523, %v9846
  %v10709 = vsel %vm5663, %v9524, %v9848
  %v10710 = vsel %vm5663, %v9525, %v9850
  %v10711 = vsel %vm5663, %v9526, %v9852
  %v10712 = vsel %vm5663, %v9527, %v9854
  %v10713 = vsel %vm5663, %v9528, %v9856
  %v10714 = vsel %vm5663, %v9529, %v9858
  %v10715 = vsel %vm5663, %v9530, %v9860
  %v10716 = vsel %vm5663, %v9531, %v9862
  %v10717 = vsel %vm5663, %v9532, %v9864
  %v10718 = vsel %vm5663, %v9533, %v9866
  %v10719 = vsel %vm5663, %v9534, %v9868
  %v10720 = vsel %vm5663, %v9535, %v9870
  %v10721 = vsel %vm5663, %v9536, %v9872
  %v10722 = vsel %vm5663, %v9537, %v9874
  %v10723 = vsel %vm5663, %v9538, %v9876
  %v10724 = vsel %vm5663, %v9539, %v9878
  %v10725 = vsel %vm5663, %v9540, %v9880
  %v10726 = vsel %vm5663, %v9541, %v9882
  %v10727 = vsel %vm5663, %v9542, %v9884
  %v10728 = vsel %vm5663, %v9543, %v9886
  %v10729 = vsel %vm5663, %v9544, %v9888
  %v10730 = vsel %vm5663, %v9545, %v9890
  %v10731 = vsel %vm5663, %v9546, %v9892
  %v10732 = vsel %vm5663, %v9547, %v9894
  %v10733 = vsel %vm5663, %v9548, %v9896
  %v10734 = vsel %vm5663, %v9549, %v9898
  %v10735 = vsel %vm5663, %v9550, %v9900
  %v10736 = vsel %vm5663, %v9551, %v9902
  %v10737 = vsel %vm5663, %v9552, %v9904
  %v10738 = vsel %vm5663, %v9553, %v9906
  %v10739 = vsel %vm6179, %v10707, %v9972
  %v10740 = vsel %vm6179, %v10708, %v9974
  %v10741 = vsel %vm6179, %v10709, %v9976
  %v10742 = vsel %vm6179, %v10710, %v9978
  %v10743 = vsel %vm6179, %v10711, %v9980
  %v10744 = vsel %vm6179, %v10712, %v9982
  %v10745 = vsel %vm6179, %v10713, %v9984
  %v10746 = vsel %vm6179, %v10714, %v9986
  %v10747 = vsel %vm6179, %v10715, %v9988
  %v10748 = vsel %vm6179, %v10716, %v9990
  %v10749 = vsel %vm6179, %v10717, %v9992
  %v10750 = vsel %vm6179, %v10718, %v9994
  %v10751 = vsel %vm6179, %v10719, %v9996
  %v10752 = vsel %vm6179, %v10720, %v9998
  %v10753 = vsel %vm6179, %v10721, %v10000
  %v10754 = vsel %vm6179, %v10722, %v10002
  %v10755 = vsel %vm6179, %v10723, %v10004
  %v10756 = vsel %vm6179, %v10724, %v10006
  %v10757 = vsel %vm6179, %v10725, %v10008
  %v10758 = vsel %vm6179, %v10726, %v10010
  %v10759 = vsel %vm6179, %v10727, %v10012
  %v10760 = vsel %vm6179, %v10728, %v10014
  %v10761 = vsel %vm6179, %v10729, %v10016
  %v10762 = vsel %vm6179, %v10730, %v10018
  %v10763 = vsel %vm6179, %v10731, %v10020
  %v10764 = vsel %vm6179, %v10732, %v10022
  %v10765 = vsel %vm6179, %v10733, %v10024
  %v10766 = vsel %vm6179, %v10734, %v10026
  %v10767 = vsel %vm6179, %v10735, %v10028
  %v10768 = vsel %vm6179, %v10736, %v10030
  %v10769 = vsel %vm6179, %v10737, %v10032
  %v10770 = vsel %vm6179, %v10738, %v10034
  %vm10771 = vcmask 392192
  %v10772 = vsel %vm10771, %v10739, %v10100
  %v10773 = vsel %vm10771, %v10740, %v10102
  %v10774 = vsel %vm10771, %v10741, %v10104
  %v10775 = vsel %vm10771, %v10742, %v10106
  %v10776 = vsel %vm10771, %v10743, %v10108
  %v10777 = vsel %vm10771, %v10744, %v10110
  %v10778 = vsel %vm10771, %v10745, %v10112
  %v10779 = vsel %vm10771, %v10746, %v10114
  %v10780 = vsel %vm10771, %v10747, %v10116
  %v10781 = vsel %vm10771, %v10748, %v10118
  %v10782 = vsel %vm10771, %v10749, %v10120
  %v10783 = vsel %vm10771, %v10750, %v10122
  %v10784 = vsel %vm10771, %v10751, %v10124
  %v10785 = vsel %vm10771, %v10752, %v10126
  %v10786 = vsel %vm10771, %v10753, %v10128
  %v10787 = vsel %vm10771, %v10754, %v10130
  %v10788 = vsel %vm10771, %v10755, %v10132
  %v10789 = vsel %vm10771, %v10756, %v10134
  %v10790 = vsel %vm10771, %v10757, %v10136
  %v10791 = vsel %vm10771, %v10758, %v10138
  %v10792 = vsel %vm10771, %v10759, %v10140
  %v10793 = vsel %vm10771, %v10760, %v10142
  %v10794 = vsel %vm10771, %v10761, %v10144
  %v10795 = vsel %vm10771, %v10762, %v10146
  %v10796 = vsel %vm10771, %v10763, %v10148
  %v10797 = vsel %vm10771, %v10764, %v10150
  %v10798 = vsel %vm10771, %v10765, %v10152
  %v10799 = vsel %vm10771, %v10766, %v10154
  %v10800 = vsel %vm10771, %v10767, %v10156
  %v10801 = vsel %vm10771, %v10768, %v10158
  %v10802 = vsel %vm10771, %v10769, %v10160
  %v10803 = vsel %vm10771, %v10770, %v10162
  %vm10804 = vcmask 523264
  %v10805 = vsel %vm10804, %v10772, %v10228
  %v10806 = vsel %vm10804, %v10773, %v10230
  %v10807 = vsel %vm10804, %v10774, %v10232
  %v10808 = vsel %vm10804, %v10775, %v10234
  %v10809 = vsel %vm10804, %v10776, %v10236
  %v10810 = vsel %vm10804, %v10777, %v10238
  %v10811 = vsel %vm10804, %v10778, %v10240
  %v10812 = vsel %vm10804, %v10779, %v10242
  %v10813 = vsel %vm10804, %v10780, %v10244
  %v10814 = vsel %vm10804, %v10781, %v10246
  %v10815 = vsel %vm10804, %v10782, %v10248
  %v10816 = vsel %vm10804, %v10783, %v10250
  %v10817 = vsel %vm10804, %v10784, %v10252
  %v10818 = vsel %vm10804, %v10785, %v10254
  %v10819 = vsel %vm10804, %v10786, %v10256
  %v10820 = vsel %vm10804, %v10787, %v10258
  %v10821 = vsel %vm10804, %v10788, %v10260
  %v10822 = vsel %vm10804, %v10789, %v10262
  %v10823 = vsel %vm10804, %v10790, %v10264
  %v10824 = vsel %vm10804, %v10791, %v10266
  %v10825 = vsel %vm10804, %v10792, %v10268
  %v10826 = vsel %vm10804, %v10793, %v10270
  %v10827 = vsel %vm10804, %v10794, %v10272
  %v10828 = vsel %vm10804, %v10795, %v10274
  %v10829 = vsel %vm10804, %v10796, %v10276
  %v10830 = vsel %vm10804, %v10797, %v10278
  %v10831 = vsel %vm10804, %v10798, %v10280
  %v10832 = vsel %vm10804, %v10799, %v10282
  %v10833 = vsel %vm10804, %v10800, %v10284
  %v10834 = vsel %vm10804, %v10801, %v10286
  %v10835 = vsel %vm10804, %v10802, %v10288
  %v10836 = vsel %vm10804, %v10803, %v10290
  %vm10837 = vcmask 654336
  %v10838 = vsel %vm10837, %v10805, %v10356
  %v10839 = vsel %vm10837, %v10806, %v10358
  %v10840 = vsel %vm10837, %v10807, %v10360
  %v10841 = vsel %vm10837, %v10808, %v10362
  %v10842 = vsel %vm10837, %v10809, %v10364
  %v10843 = vsel %vm10837, %v10810, %v10366
  %v10844 = vsel %vm10837, %v10811, %v10368
  %v10845 = vsel %vm10837, %v10812, %v10370
  %v10846 = vsel %vm10837, %v10813, %v10372
  %v10847 = vsel %vm10837, %v10814, %v10374
  %v10848 = vsel %vm10837, %v10815, %v10376
  %v10849 = vsel %vm10837, %v10816, %v10378
  %v10850 = vsel %vm10837, %v10817, %v10380
  %v10851 = vsel %vm10837, %v10818, %v10382
  %v10852 = vsel %vm10837, %v10819, %v10384
  %v10853 = vsel %vm10837, %v10820, %v10386
  %v10854 = vsel %vm10837, %v10821, %v10388
  %v10855 = vsel %vm10837, %v10822, %v10390
  %v10856 = vsel %vm10837, %v10823, %v10392
  %v10857 = vsel %vm10837, %v10824, %v10394
  %v10858 = vsel %vm10837, %v10825, %v10396
  %v10859 = vsel %vm10837, %v10826, %v10398
  %v10860 = vsel %vm10837, %v10827, %v10400
  %v10861 = vsel %vm10837, %v10828, %v10402
  %v10862 = vsel %vm10837, %v10829, %v10404
  %v10863 = vsel %vm10837, %v10830, %v10406
  %v10864 = vsel %vm10837, %v10831, %v10408
  %v10865 = vsel %vm10837, %v10832, %v10410
  %v10866 = vsel %vm10837, %v10833, %v10412
  %v10867 = vsel %vm10837, %v10834, %v10414
  %v10868 = vsel %vm10837, %v10835, %v10416
  %v10869 = vsel %vm10837, %v10836, %v10418
  %vm10870 = vcmask 785408
  %v10871 = vsel %vm10870, %v10838, %v10484
  %v10872 = vsel %vm10870, %v10839, %v10486
  %v10873 = vsel %vm10870, %v10840, %v10488
  %v10874 = vsel %vm10870, %v10841, %v10490
  %v10875 = vsel %vm10870, %v10842, %v10492
  %v10876 = vsel %vm10870, %v10843, %v10494
  %v10877 = vsel %vm10870, %v10844, %v10496
  %v10878 = vsel %vm10870, %v10845, %v10498
  %v10879 = vsel %vm10870, %v10846, %v10500
  %v10880 = vsel %vm10870, %v10847, %v10502
  %v10881 = vsel %vm10870, %v10848, %v10504
  %v10882 = vsel %vm10870, %v10849, %v10506
  %v10883 = vsel %vm10870, %v10850, %v10508
  %v10884 = vsel %vm10870, %v10851, %v10510
  %v10885 = vsel %vm10870, %v10852, %v10512
  %v10886 = vsel %vm10870, %v10853, %v10514
  %v10887 = vsel %vm10870, %v10854, %v10516
  %v10888 = vsel %vm10870, %v10855, %v10518
  %v10889 = vsel %vm10870, %v10856, %v10520
  %v10890 = vsel %vm10870, %v10857, %v10522
  %v10891 = vsel %vm10870, %v10858, %v10524
  %v10892 = vsel %vm10870, %v10859, %v10526
  %v10893 = vsel %vm10870, %v10860, %v10528
  %v10894 = vsel %vm10870, %v10861, %v10530
  %v10895 = vsel %vm10870, %v10862, %v10532
  %v10896 = vsel %vm10870, %v10863, %v10534
  %v10897 = vsel %vm10870, %v10864, %v10536
  %v10898 = vsel %vm10870, %v10865, %v10538
  %v10899 = vsel %vm10870, %v10866, %v10540
  %v10900 = vsel %vm10870, %v10867, %v10542
  %v10901 = vsel %vm10870, %v10868, %v10544
  %v10902 = vsel %vm10870, %v10869, %v10546
  %vm10903 = vcmask 916480
  %v10904 = vsel %vm10903, %v10871, %v10612
  %v10905 = vsel %vm10903, %v10872, %v10614
  %v10906 = vsel %vm10903, %v10873, %v10616
  %v10907 = vsel %vm10903, %v10874, %v10618
  %v10908 = vsel %vm10903, %v10875, %v10620
  %v10909 = vsel %vm10903, %v10876, %v10622
  %v10910 = vsel %vm10903, %v10877, %v10624
  %v10911 = vsel %vm10903, %v10878, %v10626
  %v10912 = vsel %vm10903, %v10879, %v10628
  %v10913 = vsel %vm10903, %v10880, %v10630
  %v10914 = vsel %vm10903, %v10881, %v10632
  %v10915 = vsel %vm10903, %v10882, %v10634
  %v10916 = vsel %vm10903, %v10883, %v10636
  %v10917 = vsel %vm10903, %v10884, %v10638
  %v10918 = vsel %vm10903, %v10885, %v10640
  %v10919 = vsel %vm10903, %v10886, %v10642
  %v10920 = vsel %vm10903, %v10887, %v10644
  %v10921 = vsel %vm10903, %v10888, %v10646
  %v10922 = vsel %vm10903, %v10889, %v10648
  %v10923 = vsel %vm10903, %v10890, %v10650
  %v10924 = vsel %vm10903, %v10891, %v10652
  %v10925 = vsel %vm10903, %v10892, %v10654
  %v10926 = vsel %vm10903, %v10893, %v10656
  %v10927 = vsel %vm10903, %v10894, %v10658
  %v10928 = vsel %vm10903, %v10895, %v10660
  %v10929 = vsel %vm10903, %v10896, %v10662
  %v10930 = vsel %vm10903, %v10897, %v10664
  %v10931 = vsel %vm10903, %v10898, %v10666
  %v10932 = vsel %vm10903, %v10899, %v10668
  %v10933 = vsel %vm10903, %v10900, %v10670
  %v10934 = vsel %vm10903, %v10901, %v10672
  %v10935 = vsel %vm10903, %v10902, %v10674
  %v10936 = vld [vmem:[%s3] sm:$0xff]
  %v10937 = vld [vmem:[%s3 + $0x8] sm:$0xff]
  %v10938 = vld [vmem:[%s3 + $0x10] sm:$0xff]
  %v10939 = vld [vmem:[%s3 + $0x18] sm:$0xff]
  %v10940 = vld [vmem:[%s3 + $0x20] sm:$0xff]
  %v10941 = vld [vmem:[%s3 + $0x28] sm:$0xff]
  %v10942 = vld [vmem:[%s3 + $0x30] sm:$0xff]
  %v10943 = vld [vmem:[%s3 + $0x38] sm:$0xff]
  %v10944 = vld [vmem:[%s3 + $0x40] sm:$0xff]
  %v10945 = vld [vmem:[%s3 + $0x48] sm:$0xff]
  %v10946 = vld [vmem:[%s3 + $0x50] sm:$0xff]
  %v10947 = vld [vmem:[%s3 + $0x58] sm:$0xff]
  %v10948 = vld [vmem:[%s3 + $0x60] sm:$0xff]
  %v10949 = vld [vmem:[%s3 + $0x68] sm:$0xff]
  %v10950 = vld [vmem:[%s3 + $0x70] sm:$0xff]
  %v10951 = vld [vmem:[%s3 + $0x78] sm:$0xff]
  %v10952 = vld [vmem:[%s3 + $0x80] sm:$0xff]
  %v10953 = vld [vmem:[%s3 + $0x88] sm:$0xff]
  %v10954 = vld [vmem:[%s4] sm:$0x1]
  %v10956 = vlaneseq
  %v10957 = vshrl.u32 %v10956, 7
  %v10958 = vsub.s32 0, %v10957
  %v10959 = vrot.slane %v10954, %v10958
  %v10962 = vsel %vm5663, %v9779, 0
  %v10965 = vsel %vm5663, %v9780, 0
  %v10968 = vsel %vm5663, %v9781, 0
  %v10971 = vsel %vm5663, %v9782, 0
  %v10974 = vsel %vm5663, %v9783, 0
  %v10977 = vsel %vm5663, %v9784, 0
  %v10980 = vsel %vm5663, %v9785, 0
  %v10983 = vsel %vm5663, %v9786, 0
  %v10986 = vsel %vm5663, %v9787, 0
  %v10989 = vsel %vm5663, %v9788, 0
  %v10992 = vsel %vm5663, %v9789, 0
  %v10995 = vsel %vm5663, %v9790, 0
  %v10998 = vsel %vm5663, %v9791, 0
  %v11001 = vsel %vm5663, %v9792, 0
  %v11004 = vsel %vm5663, %v9793, 0
  %v11007 = vsel %vm5663, %v9794, 0
  %v11010 = vsel %vm5663, %v9795, 0
  %v11013 = vsel %vm5663, %v9796, 0
  %v11016 = vsel %vm5663, %v9797, 0
  %v11019 = vsel %vm5663, %v9798, 0
  %v11022 = vsel %vm5663, %v9799, 0
  %v11025 = vsel %vm5663, %v9800, 0
  %v11028 = vsel %vm5663, %v9801, 0
  %v11031 = vsel %vm5663, %v9802, 0
  %v11034 = vsel %vm5663, %v9803, 0
  %v11037 = vsel %vm5663, %v9804, 0
  %v11040 = vsel %vm5663, %v9805, 0
  %v11043 = vsel %vm5663, %v9806, 0
  %v11046 = vsel %vm5663, %v9807, 0
  %v11049 = vsel %vm5663, %v9808, 0
  %v11052 = vsel %vm5663, %v9809, 0
  %v11055 = vsel %vm5663, %v9810, 0
  %11057 = vmatprep.subr.mxu0 0.0
  %11058 = vmatpush1.msra.mxu0 %v10936
  %11059 = vmatprep.subr.mxu0 0.0
  %11060 = vmatpush1.msra.mxu0 %v10937
  %11061 = vmatprep.subr.mxu0 0.0
  %11062 = vmatpush1.msra.mxu0 %v10938
  %11063 = vmatprep.subr.mxu0 0.0
  %11064 = vmatpush1.msra.mxu0 %v10939
  %11065 = vmatprep.subr.mxu0 0.0
  %11066 = vmatpush1.msra.mxu0 %v10940
  %11067 = vmatprep.subr.mxu0 0.0
  %11068 = vmatpush1.msra.mxu0 %v10941
  %11069 = vmatprep.subr.mxu0 0.0
  %11070 = vmatpush1.msra.mxu0 %v10942
  %11071 = vmatprep.subr.mxu0 0.0
  %11072 = vmatpush1.msra.mxu0 %v10943
  %11073 = vmatprep.subr.mxu0 0.0
  %11074 = vmatpush1.msra.mxu0 %v10944
  %11075 = vmatprep.subr.mxu0 0.0
  %11076 = vmatpush1.msra.mxu0 %v10945
  %11077 = vmatprep.subr.mxu0 0.0
  %11078 = vmatpush1.msra.mxu0 %v10946
  %11079 = vmatprep.subr.mxu0 0.0
  %11080 = vmatpush1.msra.mxu0 %v10947
  %11081 = vmatprep.subr.mxu0 0.0
  %11082 = vmatpush1.msra.mxu0 %v10948
  %11083 = vmatprep.subr.mxu0 0.0
  %11084 = vmatpush1.msra.mxu0 %v10949
  %11085 = vmatprep.subr.mxu0 0.0
  %11086 = vmatpush1.msra.mxu0 %v10950
  %11087 = vmatprep.subr.mxu0 0.0
  %11088 = vmatpush1.msra.mxu0 %v10951
  %11089 = vmatprep.subr.mxu0 0.0
  %11090 = vmatpush1.msra.mxu0 %v10952
  %11091 = vmatprep.subr.mxu0 0.0
  %11092 = vmatpush1.msra.mxu0 %v10953
  %11093 = vmatprep.subr.mxu0 0.0
  %11094 = vmatpush1.msra.mxu0 0.0
  %11095 = vmatprep.subr.mxu0 0.0
  %11096 = vmatpush1.msra.mxu0 0.0
  %11097 = vmatprep.subr.mxu0 0.0
  %11098 = vmatpush1.msra.mxu0 0.0
  %11099 = vmatprep.subr.mxu0 0.0
  %11100 = vmatpush1.msra.mxu0 0.0
  %11101 = vmatprep.subr.mxu0 0.0
  %11102 = vmatpush1.msra.mxu0 0.0
  %11103 = vmatprep.subr.mxu0 0.0
  %11104 = vmatpush1.msra.mxu0 0.0
  %11105 = vmatprep.subr.mxu0 0.0
  %11106 = vmatpush1.msra.mxu0 0.0
  %11107 = vmatprep.subr.mxu0 0.0
  %11108 = vmatpush1.msra.mxu0 0.0
  %11109 = vmatprep.subr.mxu0 0.0
  %11110 = vmatpush1.msra.mxu0 0.0
  %11111 = vmatprep.subr.mxu0 0.0
  %11112 = vmatpush1.msra.mxu0 0.0
  %11113 = vmatprep.subr.mxu0 0.0
  %11114 = vmatpush1.msra.mxu0 0.0
  %11115 = vmatprep.subr.mxu0 0.0
  %11116 = vmatpush1.msra.mxu0 0.0
  %11117 = vmatprep.subr.mxu0 0.0
  %11118 = vmatpush1.msra.mxu0 0.0
  %11119 = vmatprep.subr.mxu0 0.0
  %11120 = vmatpush1.msra.mxu0 0.0
  %11121 = vmatprep.mubr.f32.mxu0 %v10962
  %11122 = vmatmul.mubr.f32.gmra.mrb[0].mxu0 %v10904
  %v11123 = vpop.f32.mrb[0].mxu0
  %v11124 = vadd.f32 %v10959, %v11123
  %v11125 = vpop.f32.mrb[0].mxu0
  %11126 = vmatprep.mubr.f32.mxu0 %v10965
  %11127 = vmatmul.mubr.f32.gmra.mrb[0].mxu0 %v10905
  %v11128 = vpop.f32.mrb[0].mxu0
  %v11129 = vadd.f32 %v10959, %v11128
  %v11130 = vpop.f32.mrb[0].mxu0
  %11131 = vmatprep.mubr.f32.mxu0 %v10968
  %11132 = vmatmul.mubr.f32.gmra.mrb[0].mxu0 %v10906
  %v11133 = vpop.f32.mrb[0].mxu0
  %v11134 = vadd.f32 %v10959, %v11133
  %v11135 = vpop.f32.mrb[0].mxu0
  %11136 = vmatprep.mubr.f32.mxu0 %v10971
  %11137 = vmatmul.mubr.f32.gmra.mrb[0].mxu0 %v10907
  %v11138 = vpop.f32.mrb[0].mxu0
  %v11139 = vadd.f32 %v10959, %v11138
  %v11140 = vpop.f32.mrb[0].mxu0
  %11141 = vmatprep.mubr.f32.mxu0 %v10974
  %11142 = vmatmul.mubr.f32.gmra.mrb[0].mxu0 %v10908
  %v11143 = vpop.f32.mrb[0].mxu0
  %v11144 = vadd.f32 %v10959, %v11143
  %v11145 = vpop.f32.mrb[0].mxu0
  %11146 = vmatprep.mubr.f32.mxu0 %v10977
  %11147 = vmatmul.mubr.f32.gmra.mrb[0].mxu0 %v10909
  %v11148 = vpop.f32.mrb[0].mxu0
  %v11149 = vadd.f32 %v10959, %v11148
  %v11150 = vpop.f32.mrb[0].mxu0
  %11151 = vmatprep.mubr.f32.mxu0 %v10980
  %11152 = vmatmul.mubr.f32.gmra.mrb[0].mxu0 %v10910
  %v11153 = vpop.f32.mrb[0].mxu0
  %v11154 = vadd.f32 %v10959, %v11153
  %v11155 = vpop.f32.mrb[0].mxu0
  %11156 = vmatprep.mubr.f32.mxu0 %v10983
  %11157 = vmatmul.mubr.f32.gmra.mrb[0].mxu0 %v10911
  %v11158 = vpop.f32.mrb[0].mxu0
  %v11159 = vadd.f32 %v10959, %v11158
  %v11160 = vpop.f32.mrb[0].mxu0
  %11161 = vmatprep.mubr.f32.mxu0 %v10986
  %11162 = vmatmul.mubr.f32.gmra.mrb[0].mxu0 %v10912
  %v11163 = vpop.f32.mrb[0].mxu0
  %v11164 = vadd.f32 %v10959, %v11163
  %v11165 = vpop.f32.mrb[0].mxu0
  %11166 = vmatprep.mubr.f32.mxu0 %v10989
  %11167 = vmatmul.mubr.f32.gmra.mrb[0].mxu0 %v10913
  %v11168 = vpop.f32.mrb[0].mxu0
  %v11169 = vadd.f32 %v10959, %v11168
  %v11170 = vpop.f32.mrb[0].mxu0
  %11171 = vmatprep.mubr.f32.mxu0 %v10992
  %11172 = vmatmul.mubr.f32.gmra.mrb[0].mxu0 %v10914
  %v11173 = vpop.f32.mrb[0].mxu0
  %v11174 = vadd.f32 %v10959, %v11173
  %v11175 = vpop.f32.mrb[0].mxu0
  %11176 = vmatprep.mubr.f32.mxu0 %v10995
  %11177 = vmatmul.mubr.f32.gmra.mrb[0].mxu0 %v10915
  %v11178 = vpop.f32.mrb[0].mxu0
  %v11179 = vadd.f32 %v10959, %v11178
  %v11180 = vpop.f32.mrb[0].mxu0
  %11181 = vmatprep.mubr.f32.mxu0 %v10998
  %11182 = vmatmul.mubr.f32.gmra.mrb[0].mxu0 %v10916
  %v11183 = vpop.f32.mrb[0].mxu0
  %v11184 = vadd.f32 %v10959, %v11183
  %v11185 = vpop.f32.mrb[0].mxu0
  %11186 = vmatprep.mubr.f32.mxu0 %v11001
  %11187 = vmatmul.mubr.f32.gmra.mrb[0].mxu0 %v10917
  %v11188 = vpop.f32.mrb[0].mxu0
  %v11189 = vadd.f32 %v10959, %v11188
  %v11190 = vpop.f32.mrb[0].mxu0
  %11191 = vmatprep.mubr.f32.mxu0 %v11004
  %11192 = vmatmul.mubr.f32.gmra.mrb[0].mxu0 %v10918
  %v11193 = vpop.f32.mrb[0].mxu0
  %v11194 = vadd.f32 %v10959, %v11193
  %v11195 = vpop.f32.mrb[0].mxu0
  %11196 = vmatprep.mubr.f32.mxu0 %v11007
  %11197 = vmatmul.mubr.f32.gmra.mrb[0].mxu0 %v10919
  %v11198 = vpop.f32.mrb[0].mxu0
  %v11199 = vadd.f32 %v10959, %v11198
  %v11200 = vpop.f32.mrb[0].mxu0
  %11201 = vmatprep.mubr.f32.mxu0 %v11010
  %11202 = vmatmul.mubr.f32.gmra.mrb[0].mxu0 %v10920
  %v11203 = vpop.f32.mrb[0].mxu0
  %v11204 = vadd.f32 %v10959, %v11203
  %v11205 = vpop.f32.mrb[0].mxu0
  %11206 = vmatprep.mubr.f32.mxu0 %v11013
  %11207 = vmatmul.mubr.f32.gmra.mrb[0].mxu0 %v10921
  %v11208 = vpop.f32.mrb[0].mxu0
  %v11209 = vadd.f32 %v10959, %v11208
  %v11210 = vpop.f32.mrb[0].mxu0
  %11211 = vmatprep.mubr.f32.mxu0 %v11016
  %11212 = vmatmul.mubr.f32.gmra.mrb[0].mxu0 %v10922
  %v11213 = vpop.f32.mrb[0].mxu0
  %v11214 = vadd.f32 %v10959, %v11213
  %v11215 = vpop.f32.mrb[0].mxu0
  %11216 = vmatprep.mubr.f32.mxu0 %v11019
  %11217 = vmatmul.mubr.f32.gmra.mrb[0].mxu0 %v10923
  %v11218 = vpop.f32.mrb[0].mxu0
  %v11219 = vadd.f32 %v10959, %v11218
  %v11220 = vpop.f32.mrb[0].mxu0
  %11221 = vmatprep.mubr.f32.mxu0 %v11022
  %11222 = vmatmul.mubr.f32.gmra.mrb[0].mxu0 %v10924
  %v11223 = vpop.f32.mrb[0].mxu0
  %v11224 = vadd.f32 %v10959, %v11223
  %v11225 = vpop.f32.mrb[0].mxu0
  %11226 = vmatprep.mubr.f32.mxu0 %v11025
  %11227 = vmatmul.mubr.f32.gmra.mrb[0].mxu0 %v10925
  %v11228 = vpop.f32.mrb[0].mxu0
  %v11229 = vadd.f32 %v10959, %v11228
  %v11230 = vpop.f32.mrb[0].mxu0
  %11231 = vmatprep.mubr.f32.mxu0 %v11028
  %11232 = vmatmul.mubr.f32.gmra.mrb[0].mxu0 %v10926
  %v11233 = vpop.f32.mrb[0].mxu0
  %v11234 = vadd.f32 %v10959, %v11233
  %v11235 = vpop.f32.mrb[0].mxu0
  %11236 = vmatprep.mubr.f32.mxu0 %v11031
  %11237 = vmatmul.mubr.f32.gmra.mrb[0].mxu0 %v10927
  %v11238 = vpop.f32.mrb[0].mxu0
  %v11239 = vadd.f32 %v10959, %v11238
  %v11240 = vpop.f32.mrb[0].mxu0
  %11241 = vmatprep.mubr.f32.mxu0 %v11034
  %11242 = vmatmul.mubr.f32.gmra.mrb[0].mxu0 %v10928
  %v11243 = vpop.f32.mrb[0].mxu0
  %v11244 = vadd.f32 %v10959, %v11243
  %v11245 = vpop.f32.mrb[0].mxu0
  %11246 = vmatprep.mubr.f32.mxu0 %v11037
  %11247 = vmatmul.mubr.f32.gmra.mrb[0].mxu0 %v10929
  %v11248 = vpop.f32.mrb[0].mxu0
  %v11249 = vadd.f32 %v10959, %v11248
  %v11250 = vpop.f32.mrb[0].mxu0
  %11251 = vmatprep.mubr.f32.mxu0 %v11040
  %11252 = vmatmul.mubr.f32.gmra.mrb[0].mxu0 %v10930
  %v11253 = vpop.f32.mrb[0].mxu0
  %v11254 = vadd.f32 %v10959, %v11253
  %v11255 = vpop.f32.mrb[0].mxu0
  %11256 = vmatprep.mubr.f32.mxu0 %v11043
  %11257 = vmatmul.mubr.f32.gmra.mrb[0].mxu0 %v10931
  %v11258 = vpop.f32.mrb[0].mxu0
  %v11259 = vadd.f32 %v10959, %v11258
  %v11260 = vpop.f32.mrb[0].mxu0
  %11261 = vmatprep.mubr.f32.mxu0 %v11046
  %11262 = vmatmul.mubr.f32.gmra.mrb[0].mxu0 %v10932
  %v11263 = vpop.f32.mrb[0].mxu0
  %v11264 = vadd.f32 %v10959, %v11263
  %v11265 = vpop.f32.mrb[0].mxu0
  %11266 = vmatprep.mubr.f32.mxu0 %v11049
  %11267 = vmatmul.mubr.f32.gmra.mrb[0].mxu0 %v10933
  %v11268 = vpop.f32.mrb[0].mxu0
  %v11269 = vadd.f32 %v10959, %v11268
  %v11270 = vpop.f32.mrb[0].mxu0
  %11271 = vmatprep.mubr.f32.mxu0 %v11052
  %11272 = vmatmul.mubr.f32.gmra.mrb[0].mxu0 %v10934
  %v11273 = vpop.f32.mrb[0].mxu0
  %v11274 = vadd.f32 %v10959, %v11273
  %v11275 = vpop.f32.mrb[0].mxu0
  %11276 = vmatprep.mubr.f32.mxu0 %v11055
  %11277 = vmatmul.mubr.f32.gmra.mrb[0].mxu0 %v10935
  %v11278 = vpop.f32.mrb[0].mxu0
  %v11279 = vadd.f32 %v10959, %v11278
  %v11280 = vpop.f32.mrb[0].mxu0
  %11281 = vdwg.mxu0
  %v11282 = vmax.f32 %v11124, 0.0
  %v11283 = vmax.f32 %v11129, 0.0
  %v11284 = vmax.f32 %v11134, 0.0
  %v11285 = vmax.f32 %v11139, 0.0
  %v11286 = vmax.f32 %v11144, 0.0
  %v11287 = vmax.f32 %v11149, 0.0
  %v11288 = vmax.f32 %v11154, 0.0
  %v11289 = vmax.f32 %v11159, 0.0
  %v11290 = vmax.f32 %v11164, 0.0
  %v11291 = vmax.f32 %v11169, 0.0
  %v11292 = vmax.f32 %v11174, 0.0
  %v11293 = vmax.f32 %v11179, 0.0
  %v11294 = vmax.f32 %v11184, 0.0
  %v11295 = vmax.f32 %v11189, 0.0
  %v11296 = vmax.f32 %v11194, 0.0
  %v11297 = vmax.f32 %v11199, 0.0
  %v11298 = vmax.f32 %v11204, 0.0
  %v11299 = vmax.f32 %v11209, 0.0
  %v11300 = vmax.f32 %v11214, 0.0
  %v11301 = vmax.f32 %v11219, 0.0
  %v11302 = vmax.f32 %v11224, 0.0
  %v11303 = vmax.f32 %v11229, 0.0
  %v11304 = vmax.f32 %v11234, 0.0
  %v11305 = vmax.f32 %v11239, 0.0
  %v11306 = vmax.f32 %v11244, 0.0
  %v11307 = vmax.f32 %v11249, 0.0
  %v11308 = vmax.f32 %v11254, 0.0
  %v11309 = vmax.f32 %v11259, 0.0
  %v11310 = vmax.f32 %v11264, 0.0
  %v11311 = vmax.f32 %v11269, 0.0
  %v11312 = vmax.f32 %v11274, 0.0
  %v11313 = vmax.f32 %v11279, 0.0
  %v11314 = vmax.f32 %v11282, %v11283
  %v11315 = vmax.f32 %v11284, %v11285
  %v11316 = vmax.f32 %v11286, %v11287
  %v11317 = vmax.f32 %v11288, %v11289
  %v11318 = vmax.f32 %v11290, %v11291
  %v11319 = vmax.f32 %v11292, %v11293
  %v11320 = vmax.f32 %v11294, %v11295
  %v11321 = vmax.f32 %v11296, %v11297
  %v11322 = vmax.f32 %v11298, %v11299
  %v11323 = vmax.f32 %v11300, %v11301
  %v11324 = vmax.f32 %v11302, %v11303
  %v11325 = vmax.f32 %v11304, %v11305
  %v11326 = vmax.f32 %v11306, %v11307
  %v11327 = vmax.f32 %v11308, %v11309
  %v11328 = vmax.f32 %v11310, %v11311
  %v11329 = vmax.f32 %v11312, %v11313
  %11330 = vmatprep.subr.mxu0 0.0
  %11331 = vmatpush1.msra.mxu0 %v11314
  %11332 = vmatprep.subr.mxu0 0.0
  %11333 = vmatpush1.msra.mxu0 %v11315
  %11334 = vmatprep.subr.mxu0 0.0
  %11335 = vmatpush1.msra.mxu0 %v11316
  %11336 = vmatprep.subr.mxu0 0.0
  %11337 = vmatpush1.msra.mxu0 %v11317
  %11338 = vmatprep.subr.mxu0 0.0
  %11339 = vmatpush1.msra.mxu0 %v11318
  %11340 = vmatprep.subr.mxu0 0.0
  %11341 = vmatpush1.msra.mxu0 %v11319
  %11342 = vmatprep.subr.mxu0 0.0
  %11343 = vmatpush1.msra.mxu0 %v11320
  %11344 = vmatprep.subr.mxu0 0.0
  %11345 = vmatpush1.msra.mxu0 %v11321
  %11346 = vmatprep.subr.mxu0 0.0
  %11347 = vmatpush1.msra.mxu0 %v11322
  %11348 = vmatprep.subr.mxu0 0.0
  %11349 = vmatpush1.msra.mxu0 %v11323
  %11350 = vmatprep.subr.mxu0 0.0
  %11351 = vmatpush1.msra.mxu0 %v11324
  %11352 = vmatprep.subr.mxu0 0.0
  %11353 = vmatpush1.msra.mxu0 %v11325
  %11354 = vmatprep.subr.mxu0 0.0
  %11355 = vmatpush1.msra.mxu0 %v11326
  %11356 = vmatprep.subr.mxu0 0.0
  %11357 = vmatpush1.msra.mxu0 %v11327
  %11358 = vmatprep.subr.mxu0 0.0
  %11359 = vmatpush1.msra.mxu0 %v11328
  %11360 = vmatprep.subr.mxu0 0.0
  %11361 = vmatpush1.msra.mxu0 %v11329
  %11362 = vmatprep.subr.mxu0 0.0
  %11363 = vmatpush1.msra.mxu0 0.0
  %11364 = vmatprep.subr.mxu0 0.0
  %11365 = vmatpush1.msra.mxu0 0.0
  %11366 = vmatprep.subr.mxu0 0.0
  %11367 = vmatpush1.msra.mxu0 0.0
  %11368 = vmatprep.subr.mxu0 0.0
  %11369 = vmatpush1.msra.mxu0 0.0
  %11370 = vmatprep.subr.mxu0 0.0
  %11371 = vmatpush1.msra.mxu0 0.0
  %11372 = vmatprep.subr.mxu0 0.0
  %11373 = vmatpush1.msra.mxu0 0.0
  %11374 = vmatprep.subr.mxu0 0.0
  %11375 = vmatpush1.msra.mxu0 0.0
  %11376 = vmatprep.subr.mxu0 0.0
  %11377 = vmatpush1.msra.mxu0 0.0
  %11378 = vmatprep.subr.mxu0 0.0
  %11379 = vmatpush1.msra.mxu0 0.0
  %11380 = vmatprep.subr.mxu0 0.0
  %11381 = vmatpush1.msra.mxu0 0.0
  %11382 = vmatprep.subr.mxu0 0.0
  %11383 = vmatpush1.msra.mxu0 0.0
  %11384 = vmatprep.subr.mxu0 0.0
  %11385 = vmatpush1.msra.mxu0 0.0
  %11386 = vmatprep.subr.mxu0 0.0
  %11387 = vmatpush1.msra.mxu0 0.0
  %11388 = vmatprep.subr.mxu0 0.0
  %11389 = vmatpush1.msra.mxu0 0.0
  %11390 = vmatprep.subr.mxu0 0.0
  %11391 = vmatpush1.msra.mxu0 0.0
  %11392 = vmatprep.subr.mxu0 0.0
  %11393 = vmatpush1.msra.mxu0 0.0
  %11394 = vmatprep.mubr.f32.mxu0 0.0
  %11395 = vmatmul.mubr.f32.gmra.mrb[0].mxu0 %v7932
  %v11396 = vpop.f32.mrb[0].mxu0
  %v11397 = vadd.f32 0.0, %v11396
  %v11398 = vpop.f32.mrb[0].mxu0
  %11399 = vmatprep.mubr.f32.mxu0 0.0
  %11400 = vmatmul.mubr.f32.gmra.mrb[0].mxu0 %v7936
  %v11401 = vpop.f32.mrb[0].mxu0
  %v11402 = vadd.f32 0.0, %v11401
  %v11403 = vpop.f32.mrb[0].mxu0
  %11404 = vmatprep.mubr.f32.mxu0 0.0
  %11405 = vmatmul.mubr.f32.gmra.mrb[0].mxu0 %v7940
  %v11406 = vpop.f32.mrb[0].mxu0
  %v11407 = vadd.f32 0.0, %v11406
  %v11408 = vpop.f32.mrb[0].mxu0
  %11409 = vmatprep.mubr.f32.mxu0 0.0
  %11410 = vmatmul.mubr.f32.gmra.mrb[0].mxu0 %v7944
  %v11411 = vpop.f32.mrb[0].mxu0
  %v11412 = vadd.f32 0.0, %v11411
  %v11413 = vpop.f32.mrb[0].mxu0
  %11414 = vmatprep.mubr.f32.mxu0 0.0
  %11415 = vmatmul.mubr.f32.gmra.mrb[0].mxu0 %v7948
  %v11416 = vpop.f32.mrb[0].mxu0
  %v11417 = vadd.f32 0.0, %v11416
  %v11418 = vpop.f32.mrb[0].mxu0
  %11419 = vmatprep.mubr.f32.mxu0 0.0
  %11420 = vmatmul.mubr.f32.gmra.mrb[0].mxu0 %v7952
  %v11421 = vpop.f32.mrb[0].mxu0
  %v11422 = vadd.f32 0.0, %v11421
  %v11423 = vpop.f32.mrb[0].mxu0
  %11424 = vmatprep.mubr.f32.mxu0 0.0
  %11425 = vmatmul.mubr.f32.gmra.mrb[0].mxu0 %v7956
  %v11426 = vpop.f32.mrb[0].mxu0
  %v11427 = vadd.f32 0.0, %v11426
  %v11428 = vpop.f32.mrb[0].mxu0
  %11429 = vmatprep.mubr.f32.mxu0 0.0
  %11430 = vmatmul.mubr.f32.gmra.mrb[0].mxu0 %v7960
  %v11431 = vpop.f32.mrb[0].mxu0
  %v11432 = vadd.f32 0.0, %v11431
  %v11433 = vpop.f32.mrb[0].mxu0
  %11434 = vdwg.mxu0
  %11435 = vmatprep.subr.mxu0 0.0
  %11436 = vmatpush1.msra.mxu0 %v11314
  %11437 = vmatprep.subr.mxu0 0.0
  %11438 = vmatpush1.msra.mxu0 %v11315
  %11439 = vmatprep.subr.mxu0 0.0
  %11440 = vmatpush1.msra.mxu0 %v11316
  %11441 = vmatprep.subr.mxu0 0.0
  %11442 = vmatpush1.msra.mxu0 %v11317
  %11443 = vmatprep.subr.mxu0 0.0
  %11444 = vmatpush1.msra.mxu0 %v11318
  %11445 = vmatprep.subr.mxu0 0.0
  %11446 = vmatpush1.msra.mxu0 %v11319
  %11447 = vmatprep.subr.mxu0 0.0
  %11448 = vmatpush1.msra.mxu0 %v11320
  %11449 = vmatprep.subr.mxu0 0.0
  %11450 = vmatpush1.msra.mxu0 %v11321
  %11451 = vmatprep.subr.mxu0 0.0
  %11452 = vmatpush1.msra.mxu0 %v11322
  %11453 = vmatprep.subr.mxu0 0.0
  %11454 = vmatpush1.msra.mxu0 %v11323
  %11455 = vmatprep.subr.mxu0 0.0
  %11456 = vmatpush1.msra.mxu0 %v11324
  %11457 = vmatprep.subr.mxu0 0.0
  %11458 = vmatpush1.msra.mxu0 %v11325
  %11459 = vmatprep.subr.mxu0 0.0
  %11460 = vmatpush1.msra.mxu0 %v11326
  %11461 = vmatprep.subr.mxu0 0.0
  %11462 = vmatpush1.msra.mxu0 %v11327
  %11463 = vmatprep.subr.mxu0 0.0
  %11464 = vmatpush1.msra.mxu0 %v11328
  %11465 = vmatprep.subr.mxu0 0.0
  %11466 = vmatpush1.msra.mxu0 %v11329
  %11467 = vmatprep.subr.mxu0 0.0
  %11468 = vmatpush1.msra.mxu0 0.0
  %11469 = vmatprep.subr.mxu0 0.0
  %11470 = vmatpush1.msra.mxu0 0.0
  %11471 = vmatprep.subr.mxu0 0.0
  %11472 = vmatpush1.msra.mxu0 0.0
  %11473 = vmatprep.subr.mxu0 0.0
  %11474 = vmatpush1.msra.mxu0 0.0
  %11475 = vmatprep.subr.mxu0 0.0
  %11476 = vmatpush1.msra.mxu0 0.0
  %11477 = vmatprep.subr.mxu0 0.0
  %11478 = vmatpush1.msra.mxu0 0.0
  %11479 = vmatprep.subr.mxu0 0.0
  %11480 = vmatpush1.msra.mxu0 0.0
  %11481 = vmatprep.subr.mxu0 0.0
  %11482 = vmatpush1.msra.mxu0 0.0
  %11483 = vmatprep.subr.mxu0 0.0
  %11484 = vmatpush1.msra.mxu0 0.0
  %11485 = vmatprep.subr.mxu0 0.0
  %11486 = vmatpush1.msra.mxu0 0.0
  %11487 = vmatprep.subr.mxu0 0.0
  %11488 = vmatpush1.msra.mxu0 0.0
  %11489 = vmatprep.subr.mxu0 0.0
  %11490 = vmatpush1.msra.mxu0 0.0
  %11491 = vmatprep.subr.mxu0 0.0
  %11492 = vmatpush1.msra.mxu0 0.0
  %11493 = vmatprep.subr.mxu0 0.0
  %11494 = vmatpush1.msra.mxu0 0.0
  %11495 = vmatprep.subr.mxu0 0.0
  %11496 = vmatpush1.msra.mxu0 0.0
  %11497 = vmatprep.subr.mxu0 0.0
  %11498 = vmatpush1.msra.mxu0 0.0
  %11499 = vmatprep.mubr.f32.mxu0 0.0
  %11500 = vmatmul.mubr.f32.gmra.mrb[0].mxu0 %v8348
  %v11501 = vpop.f32.mrb[0].mxu0
  %v11502 = vadd.f32 0.0, %v11501
  %v11503 = vpop.f32.mrb[0].mxu0
  %11504 = vmatprep.mubr.f32.mxu0 0.0
  %11505 = vmatmul.mubr.f32.gmra.mrb[0].mxu0 %v8352
  %v11506 = vpop.f32.mrb[0].mxu0
  %v11507 = vadd.f32 0.0, %v11506
  %v11508 = vpop.f32.mrb[0].mxu0
  %11509 = vmatprep.mubr.f32.mxu0 0.0
  %11510 = vmatmul.mubr.f32.gmra.mrb[0].mxu0 %v8356
  %v11511 = vpop.f32.mrb[0].mxu0
  %v11512 = vadd.f32 0.0, %v11511
  %v11513 = vpop.f32.mrb[0].mxu0
  %11514 = vmatprep.mubr.f32.mxu0 0.0
  %11515 = vmatmul.mubr.f32.gmra.mrb[0].mxu0 %v8360
  %v11516 = vpop.f32.mrb[0].mxu0
  %v11517 = vadd.f32 0.0, %v11516
  %v11518 = vpop.f32.mrb[0].mxu0
  %11519 = vmatprep.mubr.f32.mxu0 0.0
  %11520 = vmatmul.mubr.f32.gmra.mrb[0].mxu0 %v8364
  %v11521 = vpop.f32.mrb[0].mxu0
  %v11522 = vadd.f32 0.0, %v11521
  %v11523 = vpop.f32.mrb[0].mxu0
  %11524 = vmatprep.mubr.f32.mxu0 0.0
  %11525 = vmatmul.mubr.f32.gmra.mrb[0].mxu0 %v8368
  %v11526 = vpop.f32.mrb[0].mxu0
  %v11527 = vadd.f32 0.0, %v11526
  %v11528 = vpop.f32.mrb[0].mxu0
  %11529 = vmatprep.mubr.f32.mxu0 0.0
  %11530 = vmatmul.mubr.f32.gmra.mrb[0].mxu0 %v8372
  %v11531 = vpop.f32.mrb[0].mxu0
  %v11532 = vadd.f32 0.0, %v11531
  %v11533 = vpop.f32.mrb[0].mxu0
  %11534 = vmatprep.mubr.f32.mxu0 0.0
  %11535 = vmatmul.mubr.f32.gmra.mrb[0].mxu0 %v8376
  %v11536 = vpop.f32.mrb[0].mxu0
  %v11537 = vadd.f32 0.0, %v11536
  %v11538 = vpop.f32.mrb[0].mxu0
  %11539 = vdwg.mxu0
  %v11540 = vmax.f32 %v11397, %v11502
  %v11541 = vmax.f32 %v11402, %v11507
  %v11542 = vmax.f32 %v11407, %v11512
  %v11543 = vmax.f32 %v11412, %v11517
  %v11544 = vmax.f32 %v11417, %v11522
  %v11545 = vmax.f32 %v11422, %v11527
  %v11546 = vmax.f32 %v11427, %v11532
  %v11547 = vmax.f32 %v11432, %v11537
  %v11548 = vsel %vm6179, %v11540, 0.0
  %v11549 = vsel %vm6179, %v11541, 0.0
  %v11550 = vadd.f32 %v11548, %v11549
  %v11551 = vrot.slane %v11550, 4
  %v11552 = vadd.f32 %v11550, %v11551
  %v11553 = vrot.slane %v11552, 2
  %v11554 = vadd.f32 %v11552, %v11553
  %v11555 = vrot.slane %v11554, 1
  %v11556 = vadd.f32 %v11554, %v11555
  %v11557 = vsel %vm6179, %v11542, 0.0
  %v11558 = vsel %vm6179, %v11543, 0.0
  %v11559 = vadd.f32 %v11557, %v11558
  %v11560 = vrot.slane %v11559, 4
  %v11561 = vadd.f32 %v11559, %v11560
  %v11562 = vrot.slane %v11561, 2
  %v11563 = vadd.f32 %v11561, %v11562
  %v11564 = vrot.slane %v11563, 1
  %v11565 = vadd.f32 %v11563, %v11564
  %v11566 = vsel %vm6179, %v11544, 0.0
  %v11567 = vsel %vm6179, %v11545, 0.0
  %v11568 = vadd.f32 %v11566, %v11567
  %v11569 = vrot.slane %v11568, 4
  %v11570 = vadd.f32 %v11568, %v11569
  %v11571 = vrot.slane %v11570, 2
  %v11572 = vadd.f32 %v11570, %v11571
  %v11573 = vrot.slane %v11572, 1
  %v11574 = vadd.f32 %v11572, %v11573
  %v11575 = vsel %vm6179, %v11546, 0.0
  %v11576 = vsel %vm6179, %v11547, 0.0
  %v11577 = vadd.f32 %v11575, %v11576
  %v11578 = vrot.slane %v11577, 4
  %v11579 = vadd.f32 %v11577, %v11578
  %v11580 = vrot.slane %v11579, 2
  %v11581 = vadd.f32 %v11579, %v11580
  %v11582 = vrot.slane %v11581, 1
  %v11583 = vadd.f32 %v11581, %v11582
  %v11584 = vmul.f32 %v11556, 0.0625
  %v11585 = vmul.f32 %v11565, 0.0625
  %v11586 = vmul.f32 %v11574, 0.0625
  %v11587 = vmul.f32 %v11583, 0.0625
  %v11588 = vld [vmem:[%s5] sm:$0xff]
  %v11589 = vld [vmem:[%s5 + $0x8] sm:$0xff]
  %v11590 = vld [vmem:[%s5 + $0x10] sm:$0xff]
  %v11591 = vld [vmem:[%s5 + $0x18] sm:$0xff]
  %v11592 = vld [vmem:[%s6] sm:$0x1]
  %v11594 = vlaneseq
  %v11595 = vshrl.u32 %v11594, 7
  %v11596 = vsub.s32 0, %v11595
  %v11597 = vrot.slane %v11592, %v11596
  %vm11603 = vcmask 1041409
  %v11604 = vsel %vm11603, %v11585, %v11584
  %vm11605 = vcmask 1042434
  %v11606 = vsel %vm11605, %v11586, %v11604
  %vm11607 = vcmask 1043459
  %v11608 = vsel %vm11607, %v11587, %v11606
  %v11609 = vsel %vm6179, %v11608, 0
  %11611 = vmatprep.subr.mxu0 0.0
  %11612 = vmatpush1.msra.mxu0 %v11588
  %11613 = vmatprep.subr.mxu0 0.0
  %11614 = vmatpush1.msra.mxu0 %v11589
  %11615 = vmatprep.subr.mxu0 0.0
  %11616 = vmatpush1.msra.mxu0 %v11590
  %11617 = vmatprep.subr.mxu0 0.0
  %11618 = vmatpush1.msra.mxu0 %v11591
  %11619 = vmatprep.subr.mxu0 0.0
  %11620 = vmatpush1.msra.mxu0 0.0
  %11621 = vmatprep.subr.mxu0 0.0
  %11622 = vmatpush1.msra.mxu0 0.0
  %11623 = vmatprep.subr.mxu0 0.0
  %11624 = vmatpush1.msra.mxu0 0.0
  %11625 = vmatprep.subr.mxu0 0.0
  %11626 = vmatpush1.msra.mxu0 0.0
  %11627 = vmatprep.subr.mxu0 0.0
  %11628 = vmatpush1.msra.mxu0 0.0
  %11629 = vmatprep.subr.mxu0 0.0
  %11630 = vmatpush1.msra.mxu0 0.0
  %11631 = vmatprep.subr.mxu0 0.0
  %11632 = vmatpush1.msra.mxu0 0.0
  %11633 = vmatprep.subr.mxu0 0.0
  %11634 = vmatpush1.msra.mxu0 0.0
  %11635 = vmatprep.subr.mxu0 0.0
  %11636 = vmatpush1.msra.mxu0 0.0
  %11637 = vmatprep.subr.mxu0 0.0
  %11638 = vmatpush1.msra.mxu0 0.0
  %11639 = vmatprep.subr.mxu0 0.0
  %11640 = vmatpush1.msra.mxu0 0.0
  %11641 = vmatprep.subr.mxu0 0.0
  %11642 = vmatpush1.msra.mxu0 0.0
  %11643 = vmatprep.subr.mxu0 0.0
  %11644 = vmatpush1.msra.mxu0 0.0
  %11645 = vmatprep.subr.mxu0 0.0
  %11646 = vmatpush1.msra.mxu0 0.0
  %11647 = vmatprep.subr.mxu0 0.0
  %11648 = vmatpush1.msra.mxu0 0.0
  %11649 = vmatprep.subr.mxu0 0.0
  %11650 = vmatpush1.msra.mxu0 0.0
  %11651 = vmatprep.subr.mxu0 0.0
  %11652 = vmatpush1.msra.mxu0 0.0
  %11653 = vmatprep.subr.mxu0 0.0
  %11654 = vmatpush1.msra.mxu0 0.0
  %11655 = vmatprep.subr.mxu0 0.0
  %11656 = vmatpush1.msra.mxu0 0.0
  %11657 = vmatprep.subr.mxu0 0.0
  %11658 = vmatpush1.msra.mxu0 0.0
  %11659 = vmatprep.subr.mxu0 0.0
  %11660 = vmatpush1.msra.mxu0 0.0
  %11661 = vmatprep.subr.mxu0 0.0
  %11662 = vmatpush1.msra.mxu0 0.0
  %11663 = vmatprep.subr.mxu0 0.0
  %11664 = vmatpush1.msra.mxu0 0.0
  %11665 = vmatprep.subr.mxu0 0.0
  %11666 = vmatpush1.msra.mxu0 0.0
  %11667 = vmatprep.subr.mxu0 0.0
  %11668 = vmatpush1.msra.mxu0 0.0
  %11669 = vmatprep.subr.mxu0 0.0
  %11670 = vmatpush1.msra.mxu0 0.0
  %11671 = vmatprep.subr.mxu0 0.0
  %11672 = vmatpush1.msra.mxu0 0.0
  %11673 = vmatprep.subr.mxu0 0.0
  %11674 = vmatpush1.msra.mxu0 0.0
  %11675 = vmatprep.mubr.f32.mxu0 0.0
  %11676 = vmatmul.mubr.f32.gmra.mrb[0].mxu0 %v11609
  %v11677 = vpop.f32.mrb[0].mxu0
  %v11678 = vadd.f32 %v11597, %v11677
  %v11679 = vpop.f32.mrb[0].mxu0
  %11680 = vdwg.mxu0
  %vm11681 = vcmask 257024
  %11682 = vst.msk [vmem:[%s7] sm:$0xf] %vm11681, %v11678
  // Predicated region
  $region30: #{siamese_forward.1} parent=0 // pred_check
    _
  $region31: #{siamese_forward.1} parent=0 // pred_check_branch
    %11684 = sbr.rel (0) target = $region33
  $region32: #{siamese_forward.1} parent=0 // pred_region
    _
  $region33: #{siamese_forward.1} parent=0 // pred_fallthru
    _
  // Predicated region
  $region34: #{siamese_forward.1} parent=0 // pred_check
    _
  $region35: #{siamese_forward.1} parent=0 // pred_check_branch
    %11686 = sbr.rel (0) target = $region37
  $region36: #{siamese_forward.1} parent=0 // pred_region
    _
  $region37: #{siamese_forward.1} parent=0 // pred_fallthru
    _

</llo_original>
